<compile_context>
chip_gen: v6e
topology: v6e:2x2x1
jax: 0.10.0
libtpu: 0.0.40
codegen_flags: <defaults>
</compile_context>

<pallas_src>
import functools

import jax
import jax.numpy as jnp
from jax import lax
from jax.experimental import pallas as pl
from jax.experimental.pallas import tpu as pltpu


def _silu(v):
    return v * jax.nn.sigmoid(v)


def _round_up(v, m):
    return (v + m - 1) // m * m


@functools.lru_cache(maxsize=None)
def _vmem_limit_bytes():
    # ~48 MiB on v7x (64 MiB physical), ~96 MiB on v5e/v6e (128 MiB physical).
    cap = 64 * 1024 * 1024                       # conservative fallback
    try:
        info = pltpu.get_tpu_info()
        cap = int(getattr(info, "vmem_capacity_bytes", cap) or cap)
    except Exception:
        pass
    return int(min(100 * 1024 * 1024, cap * 3 // 4))


@functools.lru_cache(maxsize=None)
def _probe_sublane_roll(interpret=False):
    """Check that pltpu.roll on the sublane axis compiles and matches jnp.roll.

    If it does, the trunk kernel uses the XLU rotate for the 3x3 dx shifts
    (free slot); otherwise it falls back to jnp.roll (concat of slices)."""
    try:
        def k(x_ref, o_ref):
            o_ref[...] = pltpu.roll(x_ref[...], shift=1, axis=1)

        x = jnp.arange(8 * 24 * 16, dtype=jnp.float32).reshape(8, 24, 16)
        got = pl.pallas_call(
            k, out_shape=jax.ShapeDtypeStruct(x.shape, x.dtype),
            interpret=interpret)(x)
        return bool(jnp.array_equal(got, jnp.roll(x, 1, axis=1)))
    except Exception:
        return False


# ---------------------------------------------------------------------------
# Kernel A: fused cv1 (1x1) -> m.cv1 (1x1) -> m.cv2 (3x3) + pooling partials
# ---------------------------------------------------------------------------
def _trunk_kernel(xm_ref, xt_ref, xb_ref, w1_ref, b1_ref, wm1_ref, bm1_ref,
                  wm2_ref, bm2_ref, b2_ref, psum_ref, pmax_ref, b1p_ref,
                  *, use_tpu_roll):
    # xm_ref : (1, TH, W, c1)  row tile of x
    # xt/xb  : (1, 1, W, c1)   top / bottom halo row of x (index map clamps at
    #                          the border; masked to zero inside the kernel)
    # w*/b*  : BN-folded conv weights (compute dtype) / f32 biases
    # b2_ref : (1, TH, W, c_)  output tile of the 3x3 branch (compute dtype)
    # psum/pmax_ref : (1,1,1,c_) per-tile channel sum / max of b2 (f32)
    # b1p_ref: VMEM scratch (TH+2, WPAD, c_) zero-column-padded 3x3 staging
    t = pl.program_id(1)
    n_t = pl.num_programs(1)
    _, th, W, c1 = xm_ref.shape
    c_ = b2_ref.shape[-1]
    thp2, wpad, _ = b1p_ref.shape
    cdt = w1_ref.dtype

    # ---- pointwise chain a = SiLU(cv1(x)), b1 = SiLU(m.cv1(a)) --------------
    xm = xm_ref[0].reshape(th * W, c1).astype(cdt)
    a_m = _silu(jnp.dot(xm, w1_ref[...],
                        preferred_element_type=jnp.float32) + b1_ref[...])
    b1_m = _silu(jnp.dot(a_m.astype(cdt), wm1_ref[...],
                         preferred_element_type=jnp.float32) + bm1_ref[...])

    # same chain for the two halo rows (one small matmul)
    xh = jnp.concatenate([xt_ref[0], xb_ref[0]], axis=0).reshape(2 * W, c1)
    a_h = _silu(jnp.dot(xh.astype(cdt), w1_ref[...],
                        preferred_element_type=jnp.float32) + b1_ref[...])
    b1_h = _silu(jnp.dot(a_h.astype(cdt), wm1_ref[...],
                         preferred_element_type=jnp.float32)
                 + bm1_ref[...]).reshape(2, W, c_)
    top = jnp.where(t > 0, b1_h[0:1], 0.0)          # image row -1 is zero pad
    bot = jnp.where(t < n_t - 1, b1_h[1:2], 0.0)    # image row H  is zero pad

    # ---- stage b1; only the pad columns get zero-filled (every step, so it
    #      is per-core safe with both grid axes marked "parallel") ------------
    pdt = b1p_ref.dtype
    b1p_ref[:, W:, :] = jnp.zeros((thp2, wpad - W, c_), pdt)
    b1p_ref[0:1, :W, :] = top.astype(pdt)
    b1p_ref[1:1 + th, :W, :] = b1_m.reshape(th, W, c_).astype(pdt)
    b1p_ref[th + 1:, :W, :] = bot.astype(pdt)

    # ---- 3x3 conv: 9 full-width matmuls; dy via (free) leading-axis slices,
    #      dx via a roll along the sublane axis, one aligned slice at the end -
    rows = [b1p_ref[dy:dy + th].reshape(th * wpad, c_) for dy in range(3)]
    conv = jnp.zeros((th, wpad, c_), jnp.float32)
    for dx in range(3):
        acc = jnp.zeros((th * wpad, c_), jnp.float32)
        for dy in range(3):
            acc = acc + jnp.dot(rows[dy], wm2_ref[3 * dy + dx],
                                preferred_element_type=jnp.float32)
        accr = acc.reshape(th, wpad, c_)
        sh = (1 - dx) % wpad                     # 1, 0, wpad-1 (jnp.roll conv)
        if sh:
            if use_tpu_roll:
                accr = pltpu.roll(accr, shift=sh, axis=1)
            else:
                accr = jnp.roll(accr, sh, axis=1)
        conv = conv + accr
    b2 = _silu(conv[:, :W, :] + bm2_ref[...])

    b2_ref[...] = b2.reshape(1, th, W, c_).astype(b2_ref.dtype)
    b2f = b2.reshape(th * W, c_)
    psum_ref[...] = jnp.sum(b2f, axis=0, keepdims=True).reshape(1, 1, 1, c_)
    pmax_ref[...] = jnp.max(b2f, axis=0, keepdims=True).reshape(1, 1, 1, c_)


# ---------------------------------------------------------------------------
# Kernel B: spatial-attention input map, single read of b2
#   s[:, 0] = mean_c(ca * b2),  s[:, 1] = max_c(ca * b2)   (lane-dense W axis)
# ---------------------------------------------------------------------------
def _smap_kernel(b2_ref, ca_ref, s_ref):
    t3 = b2_ref[0].astype(jnp.float32) * ca_ref[0]          # (TH, W, c_)
    s_ref[0, 0, :, :] = jnp.mean(t3, axis=-1)
    s_ref[0, 1, :, :] = jnp.max(t3, axis=-1)


# ---------------------------------------------------------------------------
# Kernel C: attention application + residual + fused CSP tail (all pointwise)
# ---------------------------------------------------------------------------
def _tail_kernel(x_ref, b2_ref, sa_ref, ca_ref,
                 w1_ref, b1_ref, w3_ref, b3_ref, w2c_ref, b2c_ref,
                 w4a_ref, w4b_ref, b4_ref, o_ref):
    # x_ref  : (1, TH, W, c1) input row tile        b2_ref: (1, TH, W, c_)
    # sa_ref : (1, TH, W)  spatial attention        ca_ref: (1, 1, c_)
    _, th, W, c1 = x_ref.shape
    c_ = b2_ref.shape[-1]
    cdt = w1_ref.dtype
    xf = x_ref[0].reshape(th * W, c1).astype(cdt)
    # Recompute a = SiLU(cv1(x)) -- cheaper than a second HBM round trip of a.
    a = _silu(jnp.dot(xf, w1_ref[...],
                      preferred_element_type=jnp.float32) + b1_ref[...])
    t3 = b2_ref[0].astype(jnp.float32) * ca_ref[0]           # channel attn
    cb = t3 * sa_ref[0][:, :, None]                          # spatial attn
    mb = a + cb.reshape(th * W, c_)                          # residual
    # CSP tail: concat + BN folded into the two 1x1 convs; cv4 split in two.
    z1 = _silu(jnp.dot(mb.astype(cdt), w3_ref[...],
                       preferred_element_type=jnp.float32) + b3_ref[...])
    z2 = _silu(jnp.dot(xf, w2c_ref[...],
                       preferred_element_type=jnp.float32) + b2c_ref[...])
    y = (jnp.dot(z1.astype(cdt), w4a_ref[...],
                 preferred_element_type=jnp.float32)
         + jnp.dot(z2.astype(cdt), w4b_ref[...],
                   preferred_element_type=jnp.float32)
         + b4_ref[...])
    o_ref[...] = _silu(y).reshape(1, th, W, -1).astype(o_ref.dtype)


# ---------------------------------------------------------------------------
# Parameter folding: BN -> conv weight/bias, channel-last matmul layout
# ---------------------------------------------------------------------------
def _fold_bn(bn, eps=1e-5):
    gamma, beta, mean, var = bn
    s = gamma / jnp.sqrt(var + eps)
    return s, beta - mean * s


def prepare_kernel_params(P, eps=1e-5, compute_dtype=jnp.bfloat16):
    """Fold BatchNorms into the adjacent convs; transpose weights to (Cin, Cout).
    compute_dtype=bfloat16 runs the MXU matmuls in bf16 (biases / accumulation
    stay f32)."""
    c_ = P["cv1_w"].shape[0]

    def pw(w_oihw):                          # (co, ci, 1, 1) -> (ci, co)
        return jnp.transpose(w_oihw[:, :, 0, 0], (1, 0))

    s, b = _fold_bn(P["cv1_bn"], eps)
    w1, b1 = pw(P["cv1_w"]) * s[None, :], b

    s, b = _fold_bn(P["m_cv1_bn"], eps)
    wm1, bm1 = pw(P["m_cv1_w"]) * s[None, :], b

    s, b = _fold_bn(P["m_cv2_bn"], eps)
    wm2 = jnp.transpose(P["m_cv2_w"], (2, 3, 1, 0)) * s[None, None, None, :]
    wm2 = wm2.reshape(9, c_, c_)             # tap index = 3*dy + dx
    bm2 = b

    s_cat, b_cat = _fold_bn(P["bn_cat"], eps)      # BN over cat([y1, y2])
    w3, b3 = pw(P["cv3_w"]) * s_cat[None, :c_], b_cat[:c_]
    w2c, b2c = pw(P["cv2_w"]) * s_cat[None, c_:], b_cat[c_:]

    s4, b4 = _fold_bn(P["cv4_bn"], eps)
    w4 = pw(P["cv4_w"]) * s4[None, :]
    w4a, w4b = w4[:c_], w4[c_:]

    cd = lambda v: v.astype(compute_dtype)
    r = lambda v: v.reshape(1, -1).astype(jnp.float32)
    return dict(w1=cd(w1), b1=r(b1), wm1=cd(wm1), bm1=r(bm1),
                wm2=cd(wm2), bm2=r(bm2),
                w3=cd(w3), b3=r(b3), w2c=cd(w2c), b2c=r(b2c),
                w4a=cd(w4a), w4b=cd(w4b), b4=r(b4))


# ---------------------------------------------------------------------------
# Wrapper
# ---------------------------------------------------------------------------
def bottleneck_csp_cbam_pallas(x, P, *, tile_h=None, eps=1e-5,
                               compute_dtype=jnp.bfloat16, interpret=False):
    """x: (N, H, W, c1) NHWC.  BottleneckCSP_CBAM forward with n=1, g=1,
    shortcut=True (the module defaults).  compute_dtype controls the MXU
    matmul + b2-storage precision (bf16 default; accumulation stays f32)."""
    # TODO(synk): only the default n=1 stack of Bottleneck_CBCA blocks is
    # implemented; for n>1 the trunk kernel + CBAM glue would be iterated.
    N, H, W, c1 = x.shape
    KP = prepare_kernel_params(P, eps, compute_dtype)
    c_ = KP["w1"].shape[1]
    c2 = KP["w4a"].shape[1]

    if tile_h is None:                       # largest multiple-of-8 tile <= 32
        tile_h = H
        for cand in (32, 24, 16, 8):
            if H % cand == 0:
                tile_h = cand
                break
    assert H % tile_h == 0
    T = H // tile_h
    wpad = _round_up(W + 1, 8)               # >= 1 zero column for the dx rolls
    use_roll = _probe_sublane_roll(interpret)

    bpe = jnp.dtype(compute_dtype).itemsize
    xbpe = jnp.dtype(x.dtype).itemsize
    cparams = pltpu.CompilerParams(
        dimension_semantics=("parallel", "parallel"),   # batch & row tiles
        vmem_limit_bytes=_vmem_limit_bytes())

    # ---- Kernel A: fused conv trunk + pooling partials ----------------------
    ce_trunk = pl.CostEstimate(
        flops=int(2 * N * H * W * c_ * (c1 + c_ + 9 * c_)),
        transcendentals=int(3 * N * H * W * c_),
        bytes_accessed=int(N * H * W * (c1 * xbpe + c_ * bpe)))
    row_top = lambda n, t: (n, jnp.maximum(t * tile_h - 1, 0), 0, 0)
    row_bot = lambda n, t: (n, jnp.minimum((t + 1) * tile_h, H - 1), 0, 0)
    b2, psum, pmax = pl.pallas_call(
        functools.partial(_trunk_kernel, use_tpu_roll=use_roll),
        out_shape=(jax.ShapeDtypeStruct((N, H, W, c_), compute_dtype),
                   jax.ShapeDtypeStruct((N, T, 1, c_), jnp.float32),
                   jax.ShapeDtypeStruct((N, T, 1, c_), jnp.float32)),
        grid=(N, T),
        in_specs=[
            pl.BlockSpec((1, tile_h, W, c1), lambda n, t: (n, t, 0, 0)),
            pl.BlockSpec((1, 1, W, c1), row_top),
            pl.BlockSpec((1, 1, W, c1), row_bot),
            pl.BlockSpec((c1, c_), lambda n, t: (0, 0)),
            pl.BlockSpec((1, c_), lambda n, t: (0, 0)),
            pl.BlockSpec((c_, c_), lambda n, t: (0, 0)),
            pl.BlockSpec((1, c_), lambda n, t: (0, 0)),
            pl.BlockSpec((9, c_, c_), lambda n, t: (0, 0, 0)),
            pl.BlockSpec((1, c_), lambda n, t: (0, 0)),
        ],
        out_specs=[
            pl.BlockSpec((1, tile_h, W, c_), lambda n, t: (n, t, 0, 0)),
            pl.BlockSpec((1, 1, 1, c_), lambda n, t: (n, t, 0, 0)),
            pl.BlockSpec((1, 1, 1, c_), lambda n, t: (n, t, 0, 0)),
        ],
        scratch_shapes=[pltpu.VMEM((tile_h + 2, wpad, c_), compute_dtype)],
        compiler_params=cparams,
        cost_estimate=ce_trunk,
        interpret=interpret,
    )(x, x, x, KP["w1"], KP["b1"], KP["wm1"], KP["bm1"], KP["wm2"], KP["bm2"])

    # ---- CBAM channel attention (tiny (N, c_) work, plain JAX) --------------
    avg = jnp.sum(psum, axis=(1, 2)) / float(H * W)          # (N, c_)
    mx = jnp.max(pmax, axis=(1, 2))                          # (N, c_)

    def mlp(v):
        h = v @ P["fc1_w"].T + P["fc1_b"]
        h = jnp.where(h > 0, h, 0.1 * h)                     # LeakyReLU(0.1)
        return h @ P["fc2_w"].T + P["fc2_b"]

    ca = jax.nn.sigmoid(mlp(avg) + mlp(mx))                  # (N, c_)
    ca3 = ca.reshape(N, 1, c_)

    # ---- Kernel B: s = [mean_c(ca*b2), max_c(ca*b2)], single read of b2 -----
    ce_smap = pl.CostEstimate(
        flops=int(3 * N * H * W * c_),
        transcendentals=0,
        bytes_accessed=int(N * H * W * (c_ * bpe + 2 * 4)))
    s = pl.pallas_call(
        _smap_kernel,
        out_shape=jax.ShapeDtypeStruct((N, 2, H, W), jnp.float32),
        grid=(N, T),
        in_specs=[pl.BlockSpec((1, tile_h, W, c_), lambda n, t: (n, t, 0, 0)),
                  pl.BlockSpec((1, 1, c_), lambda n, t: (n, 0, 0))],
        out_specs=pl.BlockSpec((1, 2, tile_h, W), lambda n, t: (n, 0, t, 0)),
        compiler_params=cparams,
        cost_estimate=ce_smap,
        interpret=interpret,
    )(b2, ca3)

    # TODO(synk): the tiny 7x7 2-in/1-out spatial-attention conv stays in XLA;
    # it is negligible next to the fused kernels.
    sa = jax.nn.sigmoid(
        lax.conv_general_dilated(
            s, P["sa_w"], (1, 1), [(3, 3), (3, 3)],
            dimension_numbers=("NCHW", "OIHW", "NCHW"))
        + P["sa_b"].reshape(1, 1, 1, 1))[:, 0]               # (N, H, W) f32

    # ---- Kernel C: attention + residual + folded CSP tail -------------------
    ce_tail = pl.CostEstimate(
        flops=int(2 * N * H * W * (2 * c1 * c_ + c_ * c_ + 2 * c_ * c2)),
        transcendentals=int(N * H * W * (3 * c_ + c2)),
        bytes_accessed=int(N * H * W * (c1 * xbpe + c_ * bpe + 4 + c2 * xbpe)))
    out = pl.pallas_call(
        _tail_kernel,
        out_shape=jax.ShapeDtypeStruct((N, H, W, c2), x.dtype),
        grid=(N, T),
        in_specs=[
            pl.BlockSpec((1, tile_h, W, c1), lambda n, t: (n, t, 0, 0)),
            pl.BlockSpec((1, tile_h, W, c_), lambda n, t: (n, t, 0, 0)),
            pl.BlockSpec((1, tile_h, W), lambda n, t: (n, t, 0)),
            pl.BlockSpec((1, 1, c_), lambda n, t: (n, 0, 0)),
            pl.BlockSpec((c1, c_), lambda n, t: (0, 0)),
            pl.BlockSpec((1, c_), lambda n, t: (0, 0)),
            pl.BlockSpec((c_, c_), lambda n, t: (0, 0)),
            pl.BlockSpec((1, c_), lambda n, t: (0, 0)),
            pl.BlockSpec((c1, c_), lambda n, t: (0, 0)),
            pl.BlockSpec((1, c_), lambda n, t: (0, 0)),
            pl.BlockSpec((c_, c2), lambda n, t: (0, 0)),
            pl.BlockSpec((c_, c2), lambda n, t: (0, 0)),
            pl.BlockSpec((1, c2), lambda n, t: (0, 0)),
        ],
        out_specs=pl.BlockSpec((1, tile_h, W, c2), lambda n, t: (n, t, 0, 0)),
        compiler_params=cparams,
        cost_estimate=ce_tail,
        interpret=interpret,
    )(x, b2, sa, ca3,
      KP["w1"], KP["b1"], KP["w3"], KP["b3"], KP["w2c"], KP["b2c"],
      KP["w4a"], KP["w4b"], KP["b4"])
    return out


# ---------------------------------------------------------------------------
# Deterministic parameter init (shapes from BottleneckCSP_CBAM.__init__)
# ---------------------------------------------------------------------------
def init_params(key, c1, c2, *, e=0.5, reduction=16):
    c_ = int(c2 * e)
    mid = c_ // reduction
    assert mid >= 1, "need c2*e >= reduction so the CBAM MLP is non-degenerate"
    ks = jax.random.split(key, 16)
    norm = jax.random.normal

    def conv_w(k, co, ci, kh, kw):
        return norm(k, (co, ci, kh, kw), jnp.float32) / jnp.sqrt(ci * kh * kw)

    def bn_params(k, c):
        k1, k2, k3, k4 = jax.random.split(k, 4)
        return (1.0 + 0.1 * norm(k1, (c,), jnp.float32),     # gamma
                0.1 * norm(k2, (c,), jnp.float32),           # beta
                0.1 * norm(k3, (c,), jnp.float32),           # running_mean
                jnp.exp(0.2 * norm(k4, (c,), jnp.float32)))  # running_var

    return dict(
        cv1_w=conv_w(ks[0], c_, c1, 1, 1), cv1_bn=bn_params(ks[1], c_),
        cv2_w=conv_w(ks[2], c_, c1, 1, 1),                 # CSP branch, no BN
        cv3_w=conv_w(ks[3], c_, c_, 1, 1),                 # CSP branch, no BN
        cv4_w=conv_w(ks[4], c2, 2 * c_, 1, 1), cv4_bn=bn_params(ks[5], c2),
        bn_cat=bn_params(ks[6], 2 * c_),
        m_cv1_w=conv_w(ks[7], c_, c_, 1, 1), m_cv1_bn=bn_params(ks[8], c_),
        m_cv2_w=conv_w(ks[9], c_, c_, 3, 3), m_cv2_bn=bn_params(ks[10], c_),
        fc1_w=norm(ks[11], (mid, c_), jnp.float32) / jnp.sqrt(c_),
        fc1_b=0.1 * norm(ks[12], (mid,), jnp.float32),
        fc2_w=norm(ks[13], (c_, mid), jnp.float32) / jnp.sqrt(mid),
        fc2_b=0.1 * norm(ks[14], (c_,), jnp.float32),
        sa_w=norm(ks[15], (1, 2, 7, 7), jnp.float32) / jnp.sqrt(2 * 49),
        sa_b=0.05 * jnp.ones((1,), jnp.float32),
    )


# ---------------------------------------------------------------------------
# Pure-JAX reference (NHWC), unfolded BN, op-for-op with the PyTorch module
# ---------------------------------------------------------------------------
def bottleneck_csp_cbam_ref(x, P, eps=1e-5):
    silu = jax.nn.silu

    def bn(y, p):
        gamma, beta, mean, var = p
        return (y - mean) * (gamma / jnp.sqrt(var + eps)) + beta

    def conv(y, w_oihw, pad):
        return lax.conv_general_dilated(
            y, jnp.transpose(w_oihw, (2, 3, 1, 0)), (1, 1),
            [(pad, pad), (pad, pad)],
            dimension_numbers=("NHWC", "HWIO", "NHWC"))

    a = silu(bn(conv(x, P["cv1_w"], 0), P["cv1_bn"]))            # cv1
    b1 = silu(bn(conv(a, P["m_cv1_w"], 0), P["m_cv1_bn"]))       # m.cv1
    b2 = silu(bn(conv(b1, P["m_cv2_w"], 1), P["m_cv2_bn"]))      # m.cv2 (3x3)

    def mlp(v):
        h = v @ P["fc1_w"].T + P["fc1_b"]
        h = jnp.where(h > 0, h, 0.1 * h)
        return h @ P["fc2_w"].T + P["fc2_b"]

    avg = jnp.mean(b2, axis=(1, 2))
    mx = jnp.max(b2, axis=(1, 2))
    ca = jax.nn.sigmoid(mlp(avg) + mlp(mx))[:, None, None, :]    # channel attn
    t = ca * b2
    s = jnp.concatenate([jnp.mean(t, axis=-1, keepdims=True),
                         jnp.max(t, axis=-1, keepdims=True)], axis=-1)
    sa = jax.nn.sigmoid(conv(s, P["sa_w"], 3) + P["sa_b"])       # spatial attn
    mb = a + sa * t                                              # residual
    y1 = conv(mb, P["cv3_w"], 0)
    y2 = conv(x, P["cv2_w"], 0)
    z = silu(bn(jnp.concatenate([y1, y2], axis=-1), P["bn_cat"]))
    return silu(bn(conv(z, P["cv4_w"], 0), P["cv4_bn"]))         # cv4


if __name__ == "__main__":
    # c1 = c2 = 32 -> c_ = 16, CBAM MLP hidden = 1 (smallest non-degenerate).
    N, C1, C2, H, W = 2, 32, 32, 16, 16
    kx, kp = jax.random.split(jax.random.PRNGKey(0))
    x = jax.random.normal(kx, (N, H, W, C1), jnp.float32)        # NHWC
    P = init_params(kp, C1, C2)

    ref = jax.block_until_ready(bottleneck_csp_cbam_ref(x, P))

    # f32 path: tight check of the kernel math.
    out32 = jax.block_until_ready(
        bottleneck_csp_cbam_pallas(x, P, compute_dtype=jnp.float32))
    assert out32.shape == (N, H, W, C2), out32.shape
    err32 = float(jnp.max(jnp.abs(out32 - ref)))
    assert jnp.allclose(out32, ref, rtol=2e-2, atol=2e-2), err32

    # bf16 path (default): looser tolerance for the lower-precision MXU math.
    out16 = jax.block_until_ready(bottleneck_csp_cbam_pallas(x, P))
    assert out16.shape == (N, H, W, C2), out16.shape
    err16 = float(jnp.max(jnp.abs(out16.astype(jnp.float32) - ref)))
    assert jnp.allclose(out16.astype(jnp.float32), ref, rtol=8e-2, atol=8e-2), err16

    print("KERNEL_OK")
</pallas_src>

<mosaic_0001>
module attributes {stable_mosaic.version = 11 : i64} {
  func.func @k(%arg0: memref<8x24x16xf32, #tpu.memory_space<vmem>>, %arg1: memref<8x24x16xf32, #tpu.memory_space<vmem>>) attributes {dimension_semantics = [], scalar_prefetch = 0 : i64, scratch_operands = 0 : i64, tpu.core_type = #tpu.core_type<tc>} {
    %c0 = arith.constant 0 : index
    %c0_0 = arith.constant 0 : index
    %c0_1 = arith.constant 0 : index
    %0 = vector.load %arg0[%c0, %c0_0, %c0_1] : memref<8x24x16xf32, #tpu.memory_space<vmem>>, vector<8x24x16xf32>
    %c1_i32 = arith.constant 1 : i32
    %1 = tpu.dynamic_rotate %0 by %c1_i32 dim 1 : vector<8x24x16xf32>, i32 -> vector<8x24x16xf32>
    %c0_2 = arith.constant 0 : index
    %c0_3 = arith.constant 0 : index
    %c0_4 = arith.constant 0 : index
    %2 = vector.load %arg1[%c0_2, %c0_3, %c0_4] : memref<8x24x16xf32, #tpu.memory_space<vmem>>, vector<8x24x16xf32>
    tpu.vector_store %arg1[%c0_2, %c0_3, %c0_4], %1 {strides = array<i32>} : memref<8x24x16xf32, #tpu.memory_space<vmem>>, vector<8x24x16xf32>,
    return
  }
}

module attributes {stable_mosaic.version = 11 : i64} {
  func.func @_trunk_kernel(%arg0: i32, %arg1: i32, %arg2: memref<1x16x16x32xf32, #tpu.memory_space<vmem>>, %arg3: memref<1x1x16x32xf32, #tpu.memory_space<vmem>>, %arg4: memref<1x1x16x32xf32, #tpu.memory_space<vmem>>, %arg5: memref<32x16xf32, #tpu.memory_space<vmem>>, %arg6: memref<1x16xf32, #tpu.memory_space<vmem>>, %arg7: memref<16x16xf32, #tpu.memory_space<vmem>>, %arg8: memref<1x16xf32, #tpu.memory_space<vmem>>, %arg9: memref<9x16x16xf32, #tpu.memory_space<vmem>>, %arg10: memref<1x16xf32, #tpu.memory_space<vmem>>, %arg11: memref<1x16x16x16xf32, #tpu.memory_space<vmem>>, %arg12: memref<1x1x1x16xf32, #tpu.memory_space<vmem>>, %arg13: memref<1x1x1x16xf32, #tpu.memory_space<vmem>>, %arg14: memref<18x24x16xf32, #tpu.memory_space<vmem>>) attributes {dimension_semantics = [#tpu.dimension_semantics<parallel>, #tpu.dimension_semantics<parallel>], iteration_bounds = array<i64: 2, 1>, scalar_prefetch = 0 : i64, scratch_operands = 1 : i64, tpu.core_type = #tpu.core_type<tc>, window_params = [{transform_indices = @transform_0, window_bounds = array<i64: 1, 16, 16, 32>}, {transform_indices = @transform_1, window_bounds = array<i64: 1, 1, 16, 32>}, {transform_indices = @transform_2, window_bounds = array<i64: 1, 1, 16, 32>}, {pipeline_mode = #tpu.pipeline_mode<synchronous>, transform_indices = @transform_3, window_bounds = array<i64: 32, 16>}, {pipeline_mode = #tpu.pipeline_mode<synchronous>, transform_indices = @transform_4, window_bounds = array<i64: 1, 16>}, {pipeline_mode = #tpu.pipeline_mode<synchronous>, transform_indices = @transform_5, window_bounds = array<i64: 16, 16>}, {pipeline_mode = #tpu.pipeline_mode<synchronous>, transform_indices = @transform_6, window_bounds = array<i64: 1, 16>}, {pipeline_mode = #tpu.pipeline_mode<synchronous>, transform_indices = @transform_7, window_bounds = array<i64: 9, 16, 16>}, {pipeline_mode = #tpu.pipeline_mode<synchronous>, transform_indices = @transform_8, window_bounds = array<i64: 1, 16>}, {transform_indices = @transform_9, window_bounds = array<i64: 1, 16, 16, 16>}, {transform_indices = @transform_10, window_bounds = array<i64: 1, 1, 1, 16>}, {transform_indices = @transform_11, window_bounds = array<i64: 1, 1, 1, 16>}]} {
    %c0 = arith.constant 0 : index
    %c0_0 = arith.constant 0 : index
    %c0_1 = arith.constant 0 : index
    %c0_2 = arith.constant 0 : index
    %0 = vector.load %arg2[%c0, %c0_0, %c0_1, %c0_2] : memref<1x16x16x32xf32, #tpu.memory_space<vmem>>, vector<1x16x16x32xf32>
    %1 = vector.shape_cast %0 : vector<1x16x16x32xf32> to vector<16x16x32xf32>
    %2 = vector.shape_cast %1 : vector<16x16x32xf32> to vector<256x32xf32>
    %c0_3 = arith.constant 0 : index
    %c0_4 = arith.constant 0 : index
    %3 = vector.load %arg5[%c0_3, %c0_4] : memref<32x16xf32, #tpu.memory_space<vmem>>, vector<32x16xf32>
    %cst = arith.constant dense<0.000000e+00> : vector<256x16xf32>
    %4 = tpu.matmul %2, %3, %cst {dimension_numbers = #tpu.dot_dimension_numbers<[1], [0], [0], [1], [0, 0, 1, 1], [], []>} : vector<256x32xf32>, vector<32x16xf32>, vector<256x16xf32> -> vector<256x16xf32>
    %c0_5 = arith.constant 0 : index
    %c0_6 = arith.constant 0 : index
    %5 = vector.load %arg6[%c0_5, %c0_6] : memref<1x16xf32, #tpu.memory_space<vmem>>, vector<1x16xf32>
    %6 = vector.broadcast %5 : vector<1x16xf32> to vector<256x16xf32>
    %7 = arith.addf %4, %6 : vector<256x16xf32>
    %8 = arith.negf %7 : vector<256x16xf32>
    %9 = math.exp %8 : vector<256x16xf32>
    %cst_7 = arith.constant 1.000000e+00 : f32
    %10 = vector.broadcast %cst_7 : f32 to vector<256x16xf32>
    %11 = arith.addf %10, %9 : vector<256x16xf32>
    %12 = arith.divf %10, %11 : vector<256x16xf32>
    %13 = arith.mulf %7, %12 : vector<256x16xf32>
    %c0_8 = arith.constant 0 : index
    %c0_9 = arith.constant 0 : index
    %14 = vector.load %arg7[%c0_8, %c0_9] : memref<16x16xf32, #tpu.memory_space<vmem>>, vector<16x16xf32>
    %cst_10 = arith.constant dense<0.000000e+00> : vector<256x16xf32>
    %15 = tpu.matmul %13, %14, %cst_10 {dimension_numbers = #tpu.dot_dimension_numbers<[1], [0], [0], [1], [0, 0, 1, 1], [], []>} : vector<256x16xf32>, vector<16x16xf32>, vector<256x16xf32> -> vector<256x16xf32>
    %c0_11 = arith.constant 0 : index
    %c0_12 = arith.constant 0 : index
    %16 = vector.load %arg8[%c0_11, %c0_12] : memref<1x16xf32, #tpu.memory_space<vmem>>, vector<1x16xf32>
    %17 = vector.broadcast %16 : vector<1x16xf32> to vector<256x16xf32>
    %18 = arith.addf %15, %17 : vector<256x16xf32>
    %19 = arith.negf %18 : vector<256x16xf32>
    %20 = math.exp %19 : vector<256x16xf32>
    %cst_13 = arith.constant 1.000000e+00 : f32
    %21 = vector.broadcast %cst_13 : f32 to vector<256x16xf32>
    %22 = arith.addf %21, %20 : vector<256x16xf32>
    %23 = arith.divf %21, %22 : vector<256x16xf32>
    %24 = arith.mulf %18, %23 : vector<256x16xf32>
    %c0_14 = arith.constant 0 : index
    %c0_15 = arith.constant 0 : index
    %c0_16 = arith.constant 0 : index
    %c0_17 = arith.constant 0 : index
    %25 = vector.load %arg3[%c0_14, %c0_15, %c0_16, %c0_17] : memref<1x1x16x32xf32, #tpu.memory_space<vmem>>, vector<1x1x16x32xf32>
    %26 = vector.shape_cast %25 : vector<1x1x16x32xf32> to vector<1x16x32xf32>
    %c0_18 = arith.constant 0 : index
    %c0_19 = arith.constant 0 : index
    %c0_20 = arith.constant 0 : index
    %c0_21 = arith.constant 0 : index
    %27 = vector.load %arg4[%c0_18, %c0_19, %c0_20, %c0_21] : memref<1x1x16x32xf32, #tpu.memory_space<vmem>>, vector<1x1x16x32xf32>
    %28 = vector.shape_cast %27 : vector<1x1x16x32xf32> to vector<1x16x32xf32>
    %29 = tpu.concatenate %26, %28 in 0 : vector<1x16x32xf32>, vector<1x16x32xf32> -> vector<2x16x32xf32>
    %30 = vector.shape_cast %29 : vector<2x16x32xf32> to vector<32x32xf32>
    %c0_22 = arith.constant 0 : index
    %c0_23 = arith.constant 0 : index
    %31 = vector.load %arg5[%c0_22, %c0_23] : memref<32x16xf32, #tpu.memory_space<vmem>>, vector<32x16xf32>
    %cst_24 = arith.constant dense<0.000000e+00> : vector<32x16xf32>
    %32 = tpu.matmul %30, %31, %cst_24 {dimension_numbers = #tpu.dot_dimension_numbers<[1], [0], [0], [1], [0, 0, 1, 1], [], []>} : vector<32x32xf32>, vector<32x16xf32>, vector<32x16xf32> -> vector<32x16xf32>
    %c0_25 = arith.constant 0 : index
    %c0_26 = arith.constant 0 : index
    %33 = vector.load %arg6[%c0_25, %c0_26] : memref<1x16xf32, #tpu.memory_space<vmem>>, vector<1x16xf32>
    %34 = vector.broadcast %33 : vector<1x16xf32> to vector<32x16xf32>
    %35 = arith.addf %32, %34 : vector<32x16xf32>
    %36 = arith.negf %35 : vector<32x16xf32>
    %37 = math.exp %36 : vector<32x16xf32>
    %cst_27 = arith.constant 1.000000e+00 : f32
    %38 = vector.broadcast %cst_27 : f32 to vector<32x16xf32>
    %39 = arith.addf %38, %37 : vector<32x16xf32>
    %40 = arith.divf %38, %39 : vector<32x16xf32>
    %41 = arith.mulf %35, %40 : vector<32x16xf32>
    %c0_28 = arith.constant 0 : index
    %c0_29 = arith.constant 0 : index
    %42 = vector.load %arg7[%c0_28, %c0_29] : memref<16x16xf32, #tpu.memory_space<vmem>>, vector<16x16xf32>
    %cst_30 = arith.constant dense<0.000000e+00> : vector<32x16xf32>
    %43 = tpu.matmul %41, %42, %cst_30 {dimension_numbers = #tpu.dot_dimension_numbers<[1], [0], [0], [1], [0, 0, 1, 1], [], []>} : vector<32x16xf32>, vector<16x16xf32>, vector<32x16xf32> -> vector<32x16xf32>
    %c0_31 = arith.constant 0 : index
    %c0_32 = arith.constant 0 : index
    %44 = vector.load %arg8[%c0_31, %c0_32] : memref<1x16xf32, #tpu.memory_space<vmem>>, vector<1x16xf32>
    %45 = vector.broadcast %44 : vector<1x16xf32> to vector<32x16xf32>
    %46 = arith.addf %43, %45 : vector<32x16xf32>
    %47 = arith.negf %46 : vector<32x16xf32>
    %48 = math.exp %47 : vector<32x16xf32>
    %cst_33 = arith.constant 1.000000e+00 : f32
    %49 = vector.broadcast %cst_33 : f32 to vector<32x16xf32>
    %50 = arith.addf %49, %48 : vector<32x16xf32>
    %51 = arith.divf %49, %50 : vector<32x16xf32>
    %52 = arith.mulf %46, %51 : vector<32x16xf32>
    %53 = vector.shape_cast %52 : vector<32x16xf32> to vector<2x16x16xf32>
    %c0_i32 = arith.constant 0 : i32
    %54 = arith.cmpi sgt, %arg1, %c0_i32 : i32
    %55 = vector.extract_strided_slice %53 {offsets = [0, 0, 0], sizes = [1, 16, 16], strides = [1, 1, 1]} : vector<2x16x16xf32> to vector<1x16x16xf32>
    %cst_34 = arith.constant 0.000000e+00 : f32
    %56 = vector.broadcast %cst_34 : f32 to vector<1x16x16xf32>
    %57 = arith.select %54, %55, %56 : vector<1x16x16xf32>
    %c0_i32_35 = arith.constant 0 : i32
    %58 = arith.cmpi slt, %arg1, %c0_i32_35 : i32
    %59 = vector.extract_strided_slice %53 {offsets = [1, 0, 0], sizes = [1, 16, 16], strides = [1, 1, 1]} : vector<2x16x16xf32> to vector<1x16x16xf32>
    %cst_36 = arith.constant 0.000000e+00 : f32
    %60 = vector.broadcast %cst_36 : f32 to vector<1x16x16xf32>
    %61 = arith.select %58, %59, %60 : vector<1x16x16xf32>
    %cst_37 = arith.constant 0.000000e+00 : f32
    %62 = vector.broadcast %cst_37 : f32 to vector<18x8x16xf32>
    %c0_38 = arith.constant 0 : index
    %c16 = arith.constant 16 : index
    %c0_39 = arith.constant 0 : index
    %63 = vector.load %arg14[%c0_38, %c16, %c0_39] : memref<18x24x16xf32, #tpu.memory_space<vmem>>, vector<18x8x16xf32>
    tpu.vector_store %arg14[%c0_38, %c16, %c0_39], %62 {strides = array<i32>} : memref<18x24x16xf32, #tpu.memory_space<vmem>>, vector<18x8x16xf32>,
    %c0_40 = arith.constant 0 : index
    %c0_41 = arith.constant 0 : index
    %c0_42 = arith.constant 0 : index
    %64 = vector.load %arg14[%c0_40, %c0_41, %c0_42] : memref<18x24x16xf32, #tpu.memory_space<vmem>>, vector<1x16x16xf32>
    tpu.vector_store %arg14[%c0_40, %c0_41, %c0_42], %57 {strides = array<i32>} : memref<18x24x16xf32, #tpu.memory_space<vmem>>, vector<1x16x16xf32>,
    %65 = vector.shape_cast %24 : vector<256x16xf32> to vector<16x16x16xf32>
    %c1 = arith.constant 1 : index
    %c0_43 = arith.constant 0 : index
    %c0_44 = arith.constant 0 : index
    %66 = vector.load %arg14[%c1, %c0_43, %c0_44] : memref<18x24x16xf32, #tpu.memory_space<vmem>>, vector<16x16x16xf32>
    tpu.vector_store %arg14[%c1, %c0_43, %c0_44], %65 {strides = array<i32>} : memref<18x24x16xf32, #tpu.memory_space<vmem>>, vector<16x16x16xf32>,
    %c17 = arith.constant 17 : index
    %c0_45 = arith.constant 0 : index
    %c0_46 = arith.constant 0 : index
    %67 = vector.load %arg14[%c17, %c0_45, %c0_46] : memref<18x24x16xf32, #tpu.memory_space<vmem>>, vector<1x16x16xf32>
    tpu.vector_store %arg14[%c17, %c0_45, %c0_46], %61 {strides = array<i32>} : memref<18x24x16xf32, #tpu.memory_space<vmem>>, vector<1x16x16xf32>,
    %c0_47 = arith.constant 0 : index
    %c0_48 = arith.constant 0 : index
    %c0_49 = arith.constant 0 : index
    %68 = vector.load %arg14[%c0_47, %c0_48, %c0_49] : memref<18x24x16xf32, #tpu.memory_space<vmem>>, vector<16x24x16xf32>
    %69 = vector.shape_cast %68 : vector<16x24x16xf32> to vector<384x16xf32>
    %c1_50 = arith.constant 1 : index
    %c0_51 = arith.constant 0 : index
    %c0_52 = arith.constant 0 : index
    %70 = vector.load %arg14[%c1_50, %c0_51, %c0_52] : memref<18x24x16xf32, #tpu.memory_space<vmem>>, vector<16x24x16xf32>
    %71 = vector.shape_cast %70 : vector<16x24x16xf32> to vector<384x16xf32>
    %c2 = arith.constant 2 : index
    %c0_53 = arith.constant 0 : index
    %c0_54 = arith.constant 0 : index
    %72 = vector.load %arg14[%c2, %c0_53, %c0_54] : memref<18x24x16xf32, #tpu.memory_space<vmem>>, vector<16x24x16xf32>
    %73 = vector.shape_cast %72 : vector<16x24x16xf32> to vector<384x16xf32>
    %cst_55 = arith.constant 0.000000e+00 : f32
    %74 = vector.broadcast %cst_55 : f32 to vector<16x24x16xf32>
    %cst_56 = arith.constant 0.000000e+00 : f32
    %75 = vector.broadcast %cst_56 : f32 to vector<384x16xf32>
    %c0_57 = arith.constant 0 : index
    %c0_58 = arith.constant 0 : index
    %c0_59 = arith.constant 0 : index
    %76 = vector.load %arg9[%c0_57, %c0_58, %c0_59] : memref<9x16x16xf32, #tpu.memory_space<vmem>>, vector<1x16x16xf32>
    %77 = vector.shape_cast %76 : vector<1x16x16xf32> to vector<16x16xf32>
    %cst_60 = arith.constant dense<0.000000e+00> : vector<384x16xf32>
    %78 = tpu.matmul %69, %77, %cst_60 {dimension_numbers = #tpu.dot_dimension_numbers<[1], [0], [0], [1], [0, 0, 1, 1], [], []>} : vector<384x16xf32>, vector<16x16xf32>, vector<384x16xf32> -> vector<384x16xf32>
    %79 = arith.addf %75, %78 : vector<384x16xf32>
    %c3 = arith.constant 3 : index
    %c0_61 = arith.constant 0 : index
    %c0_62 = arith.constant 0 : index
    %80 = vector.load %arg9[%c3, %c0_61, %c0_62] : memref<9x16x16xf32, #tpu.memory_space<vmem>>, vector<1x16x16xf32>
    %81 = vector.shape_cast %80 : vector<1x16x16xf32> to vector<16x16xf32>
    %cst_63 = arith.constant dense<0.000000e+00> : vector<384x16xf32>
    %82 = tpu.matmul %71, %81, %cst_63 {dimension_numbers = #tpu.dot_dimension_numbers<[1], [0], [0], [1], [0, 0, 1, 1], [], []>} : vector<384x16xf32>, vector<16x16xf32>, vector<384x16xf32> -> vector<384x16xf32>
    %83 = arith.addf %79, %82 : vector<384x16xf32>
    %c6 = arith.constant 6 : index
    %c0_64 = arith.constant 0 : index
    %c0_65 = arith.constant 0 : index
    %84 = vector.load %arg9[%c6, %c0_64, %c0_65] : memref<9x16x16xf32, #tpu.memory_space<vmem>>, vector<1x16x16xf32>
    %85 = vector.shape_cast %84 : vector<1x16x16xf32> to vector<16x16xf32>
    %cst_66 = arith.constant dense<0.000000e+00> : vector<384x16xf32>
    %86 = tpu.matmul %73, %85, %cst_66 {dimension_numbers = #tpu.dot_dimension_numbers<[1], [0], [0], [1], [0, 0, 1, 1], [], []>} : vector<384x16xf32>, vector<16x16xf32>, vector<384x16xf32> -> vector<384x16xf32>
    %87 = arith.addf %83, %86 : vector<384x16xf32>
    %88 = vector.shape_cast %87 : vector<384x16xf32> to vector<16x24x16xf32>
    %89 = vector.extract_strided_slice %88 {offsets = [0, 23, 0], sizes = [16, 1, 16], strides = [1, 1, 1]} : vector<16x24x16xf32> to vector<16x1x16xf32>
    %90 = vector.extract_strided_slice %88 {offsets = [0, 0, 0], sizes = [16, 23, 16], strides = [1, 1, 1]} : vector<16x24x16xf32> to vector<16x23x16xf32>
    %91 = tpu.concatenate %89, %90 in 1 : vector<16x1x16xf32>, vector<16x23x16xf32> -> vector<16x24x16xf32>
    %92 = arith.addf %74, %91 : vector<16x24x16xf32>
    %cst_67 = arith.constant 0.000000e+00 : f32
    %93 = vector.broadcast %cst_67 : f32 to vector<384x16xf32>
    %c1_68 = arith.constant 1 : index
    %c0_69 = arith.constant 0 : index
    %c0_70 = arith.constant 0 : index
    %94 = vector.load %arg9[%c1_68, %c0_69, %c0_70] : memref<9x16x16xf32, #tpu.memory_space<vmem>>, vector<1x16x16xf32>
    %95 = vector.shape_cast %94 : vector<1x16x16xf32> to vector<16x16xf32>
    %cst_71 = arith.constant dense<0.000000e+00> : vector<384x16xf32>
    %96 = tpu.matmul %69, %95, %cst_71 {dimension_numbers = #tpu.dot_dimension_numbers<[1], [0], [0], [1], [0, 0, 1, 1], [], []>} : vector<384x16xf32>, vector<16x16xf32>, vector<384x16xf32> -> vector<384x16xf32>
    %97 = arith.addf %93, %96 : vector<384x16xf32>
    %c4 = arith.constant 4 : index
    %c0_72 = arith.constant 0 : index
    %c0_73 = arith.constant 0 : index
    %98 = vector.load %arg9[%c4, %c0_72, %c0_73] : memref<9x16x16xf32, #tpu.memory_space<vmem>>, vector<1x16x16xf32>
    %99 = vector.shape_cast %98 : vector<1x16x16xf32> to vector<16x16xf32>
    %cst_74 = arith.constant dense<0.000000e+00> : vector<384x16xf32>
    %100 = tpu.matmul %71, %99, %cst_74 {dimension_numbers = #tpu.dot_dimension_numbers<[1], [0], [0], [1], [0, 0, 1, 1], [], []>} : vector<384x16xf32>, vector<16x16xf32>, vector<384x16xf32> -> vector<384x16xf32>
    %101 = arith.addf %97, %100 : vector<384x16xf32>
    %c7 = arith.constant 7 : index
    %c0_75 = arith.constant 0 : index
    %c0_76 = arith.constant 0 : index
    %102 = vector.load %arg9[%c7, %c0_75, %c0_76] : memref<9x16x16xf32, #tpu.memory_space<vmem>>, vector<1x16x16xf32>
    %103 = vector.shape_cast %102 : vector<1x16x16xf32> to vector<16x16xf32>
    %cst_77 = arith.constant dense<0.000000e+00> : vector<384x16xf32>
    %104 = tpu.matmul %73, %103, %cst_77 {dimension_numbers = #tpu.dot_dimension_numbers<[1], [0], [0], [1], [0, 0, 1, 1], [], []>} : vector<384x16xf32>, vector<16x16xf32>, vector<384x16xf32> -> vector<384x16xf32>
    %105 = arith.addf %101, %104 : vector<384x16xf32>
    %106 = vector.shape_cast %105 : vector<384x16xf32> to vector<16x24x16xf32>
    %107 = arith.addf %92, %106 : vector<16x24x16xf32>
    %cst_78 = arith.constant 0.000000e+00 : f32
    %108 = vector.broadcast %cst_78 : f32 to vector<384x16xf32>
    %c2_79 = arith.constant 2 : index
    %c0_80 = arith.constant 0 : index
    %c0_81 = arith.constant 0 : index
    %109 = vector.load %arg9[%c2_79, %c0_80, %c0_81] : memref<9x16x16xf32, #tpu.memory_space<vmem>>, vector<1x16x16xf32>
    %110 = vector.shape_cast %109 : vector<1x16x16xf32> to vector<16x16xf32>
    %cst_82 = arith.constant dense<0.000000e+00> : vector<384x16xf32>
    %111 = tpu.matmul %69, %110, %cst_82 {dimension_numbers = #tpu.dot_dimension_numbers<[1], [0], [0], [1], [0, 0, 1, 1], [], []>} : vector<384x16xf32>, vector<16x16xf32>, vector<384x16xf32> -> vector<384x16xf32>
    %112 = arith.addf %108, %111 : vector<384x16xf32>
    %c5 = arith.constant 5 : index
    %c0_83 = arith.constant 0 : index
    %c0_84 = arith.constant 0 : index
    %113 = vector.load %arg9[%c5, %c0_83, %c0_84] : memref<9x16x16xf32, #tpu.memory_space<vmem>>, vector<1x16x16xf32>
    %114 = vector.shape_cast %113 : vector<1x16x16xf32> to vector<16x16xf32>
    %cst_85 = arith.constant dense<0.000000e+00> : vector<384x16xf32>
    %115 = tpu.matmul %71, %114, %cst_85 {dimension_numbers = #tpu.dot_dimension_numbers<[1], [0], [0], [1], [0, 0, 1, 1], [], []>} : vector<384x16xf32>, vector<16x16xf32>, vector<384x16xf32> -> vector<384x16xf32>
    %116 = arith.addf %112, %115 : vector<384x16xf32>
    %c8 = arith.constant 8 : index
    %c0_86 = arith.constant 0 : index
    %c0_87 = arith.constant 0 : index
    %117 = vector.load %arg9[%c8, %c0_86, %c0_87] : memref<9x16x16xf32, #tpu.memory_space<vmem>>, vector<1x16x16xf32>
    %118 = vector.shape_cast %117 : vector<1x16x16xf32> to vector<16x16xf32>
    %cst_88 = arith.constant dense<0.000000e+00> : vector<384x16xf32>
    %119 = tpu.matmul %73, %118, %cst_88 {dimension_numbers = #tpu.dot_dimension_numbers<[1], [0], [0], [1], [0, 0, 1, 1], [], []>} : vector<384x16xf32>, vector<16x16xf32>, vector<384x16xf32> -> vector<384x16xf32>
    %120 = arith.addf %116, %119 : vector<384x16xf32>
    %121 = vector.shape_cast %120 : vector<384x16xf32> to vector<16x24x16xf32>
    %122 = vector.extract_strided_slice %121 {offsets = [0, 1, 0], sizes = [16, 23, 16], strides = [1, 1, 1]} : vector<16x24x16xf32> to vector<16x23x16xf32>
    %123 = vector.extract_strided_slice %121 {offsets = [0, 0, 0], sizes = [16, 1, 16], strides = [1, 1, 1]} : vector<16x24x16xf32> to vector<16x1x16xf32>
    %124 = tpu.concatenate %122, %123 in 1 : vector<16x23x16xf32>, vector<16x1x16xf32> -> vector<16x24x16xf32>
    %125 = arith.addf %107, %124 : vector<16x24x16xf32>
    %126 = vector.extract_strided_slice %125 {offsets = [0, 0, 0], sizes = [16, 16, 16], strides = [1, 1, 1]} : vector<16x24x16xf32> to vector<16x16x16xf32>
    %c0_89 = arith.constant 0 : index
    %c0_90 = arith.constant 0 : index
    %127 = vector.load %arg10[%c0_89, %c0_90] : memref<1x16xf32, #tpu.memory_space<vmem>>, vector<1x16xf32>
    %128 = vector.shape_cast %127 : vector<1x16xf32> to vector<1x1x16xf32>
    %129 = vector.broadcast %128 : vector<1x1x16xf32> to vector<16x16x16xf32>
    %130 = arith.addf %126, %129 : vector<16x16x16xf32>
    %131 = arith.negf %130 : vector<16x16x16xf32>
    %132 = math.exp %131 : vector<16x16x16xf32>
    %cst_91 = arith.constant 1.000000e+00 : f32
    %133 = vector.broadcast %cst_91 : f32 to vector<16x16x16xf32>
    %134 = arith.addf %133, %132 : vector<16x16x16xf32>
    %135 = arith.divf %133, %134 : vector<16x16x16xf32>
    %136 = arith.mulf %130, %135 : vector<16x16x16xf32>
    %137 = vector.shape_cast %136 : vector<16x16x16xf32> to vector<1x16x16x16xf32>
    %c0_92 = arith.constant 0 : index
    %c0_93 = arith.constant 0 : index
    %c0_94 = arith.constant 0 : index
    %c0_95 = arith.constant 0 : index
    %138 = vector.load %arg11[%c0_92, %c0_93, %c0_94, %c0_95] : memref<1x16x16x16xf32, #tpu.memory_space<vmem>>, vector<1x16x16x16xf32>
    tpu.vector_store %arg11[%c0_92, %c0_93, %c0_94, %c0_95], %137 {strides = array<i32>} : memref<1x16x16x16xf32, #tpu.memory_space<vmem>>, vector<1x16x16x16xf32>,
    %139 = vector.shape_cast %136 : vector<16x16x16xf32> to vector<256x16xf32>
    %cst_96 = arith.constant dense<0.000000e+00> : vector<16xf32>
    %140 = vector.multi_reduction <add>, %139, %cst_96 [0] : vector<256x16xf32> to vector<16xf32>
    %141 = vector.shape_cast %140 : vector<16xf32> to vector<1x16xf32>
    %142 = vector.shape_cast %141 : vector<1x16xf32> to vector<1x1x1x16xf32>
    %c0_97 = arith.constant 0 : index
    %c0_98 = arith.constant 0 : index
    %c0_99 = arith.constant 0 : index
    %c0_100 = arith.constant 0 : index
    %143 = vector.load %arg12[%c0_97, %c0_98, %c0_99, %c0_100] : memref<1x1x1x16xf32, #tpu.memory_space<vmem>>, vector<1x1x1x16xf32>
    tpu.vector_store %arg12[%c0_97, %c0_98, %c0_99, %c0_100], %142 {strides = array<i32>} : memref<1x1x1x16xf32, #tpu.memory_space<vmem>>, vector<1x1x1x16xf32>,
    %cst_101 = arith.constant dense<0xFF800000> : vector<16xf32>
    %144 = vector.multi_reduction <maximumf>, %139, %cst_101 [0] : vector<256x16xf32> to vector<16xf32>
    %145 = vector.shape_cast %144 : vector<16xf32> to vector<1x16xf32>
    %146 = vector.shape_cast %145 : vector<1x16xf32> to vector<1x1x1x16xf32>
    %c0_102 = arith.constant 0 : index
    %c0_103 = arith.constant 0 : index
    %c0_104 = arith.constant 0 : index
    %c0_105 = arith.constant 0 : index
    %147 = vector.load %arg13[%c0_102, %c0_103, %c0_104, %c0_105] : memref<1x1x1x16xf32, #tpu.memory_space<vmem>>, vector<1x1x1x16xf32>
    tpu.vector_store %arg13[%c0_102, %c0_103, %c0_104, %c0_105], %146 {strides = array<i32>} : memref<1x1x1x16xf32, #tpu.memory_space<vmem>>, vector<1x1x1x16xf32>,
    return
  }
  func.func @transform_0(%arg0: i32, %arg1: i32) -> (i32, i32, i32, i32) {
    %c0_i32 = arith.constant 0 : i32
    %c0_i32_0 = arith.constant 0 : i32
    %c0_i32_1 = arith.constant 0 : i32
    return %arg0, %arg1, %c0_i32, %c0_i32_0 : i32, i32, i32, i32
  }
  func.func @transform_1(%arg0: i32, %arg1: i32) -> (i32, i32, i32, i32) {
    %c16_i32 = arith.constant 16 : i32
    %0 = arith.muli %arg1, %c16_i32 : i32
    %c1_i32 = arith.constant 1 : i32
    %1 = arith.subi %0, %c1_i32 : i32
    %c0_i32 = arith.constant 0 : i32
    %2 = arith.maxsi %1, %c0_i32 : i32
    %c0_i32_0 = arith.constant 0 : i32
    %c0_i32_1 = arith.constant 0 : i32
    %c0_i32_2 = arith.constant 0 : i32
    return %arg0, %2, %c0_i32_0, %c0_i32_1 : i32, i32, i32, i32
  }
  func.func @transform_2(%arg0: i32, %arg1: i32) -> (i32, i32, i32, i32) {
    %c1_i32 = arith.constant 1 : i32
    %0 = arith.addi %arg1, %c1_i32 : i32
    %c16_i32 = arith.constant 16 : i32
    %1 = arith.muli %0, %c16_i32 : i32
    %c15_i32 = arith.constant 15 : i32
    %2 = arith.minsi %1, %c15_i32 : i32
    %c0_i32 = arith.constant 0 : i32
    %c0_i32_0 = arith.constant 0 : i32
    %c0_i32_1 = arith.constant 0 : i32
    return %arg0, %2, %c0_i32, %c0_i32_0 : i32, i32, i32, i32
  }
  func.func @transform_3(%arg0: i32, %arg1: i32) -> (i32, i32) {
    %c0_i32 = arith.constant 0 : i32
    %c0_i32_0 = arith.constant 0 : i32
    %c0_i32_1 = arith.constant 0 : i32
    return %c0_i32, %c0_i32_0 : i32, i32
  }
  func.func @transform_4(%arg0: i32, %arg1: i32) -> (i32, i32) {
    %c0_i32 = arith.constant 0 : i32
    %c0_i32_0 = arith.constant 0 : i32
    %c0_i32_1 = arith.constant 0 : i32
    return %c0_i32, %c0_i32_0 : i32, i32
  }
  func.func @transform_5(%arg0: i32, %arg1: i32) -> (i32, i32) {
    %c0_i32 = arith.constant 0 : i32
    %c0_i32_0 = arith.constant 0 : i32
    %c0_i32_1 = arith.constant 0 : i32
    return %c0_i32, %c0_i32_0 : i32, i32
  }
  func.func @transform_6(%arg0: i32, %arg1: i32) -> (i32, i32) {
    %c0_i32 = arith.constant 0 : i32
    %c0_i32_0 = arith.constant 0 : i32
    %c0_i32_1 = arith.constant 0 : i32
    return %c0_i32, %c0_i32_0 : i32, i32
  }
  func.func @transform_7(%arg0: i32, %arg1: i32) -> (i32, i32, i32) {
    %c0_i32 = arith.constant 0 : i32
    %c0_i32_0 = arith.constant 0 : i32
    %c0_i32_1 = arith.constant 0 : i32
    %c0_i32_2 = arith.constant 0 : i32
    return %c0_i32, %c0_i32_0, %c0_i32_1 : i32, i32, i32
  }
  func.func @transform_8(%arg0: i32, %arg1: i32) -> (i32, i32) {
    %c0_i32 = arith.constant 0 : i32
    %c0_i32_0 = arith.constant 0 : i32
    %c0_i32_1 = arith.constant 0 : i32
    return %c0_i32, %c0_i32_0 : i32, i32
  }
  func.func @transform_9(%arg0: i32, %arg1: i32) -> (i32, i32, i32, i32) {
    %c0_i32 = arith.constant 0 : i32
    %c0_i32_0 = arith.constant 0 : i32
    %c0_i32_1 = arith.constant 0 : i32
    return %arg0, %arg1, %c0_i32, %c0_i32_0 : i32, i32, i32, i32
  }
  func.func @transform_10(%arg0: i32, %arg1: i32) -> (i32, i32, i32, i32) {
    %c0_i32 = arith.constant 0 : i32
    %c0_i32_0 = arith.constant 0 : i32
    %c0_i32_1 = arith.constant 0 : i32
    return %arg0, %arg1, %c0_i32, %c0_i32_0 : i32, i32, i32, i32
  }
  func.func @transform_11(%arg0: i32, %arg1: i32) -> (i32, i32, i32, i32) {
    %c0_i32 = arith.constant 0 : i32
    %c0_i32_0 = arith.constant 0 : i32
    %c0_i32_1 = arith.constant 0 : i32
    return %arg0, %arg1, %c0_i32, %c0_i32_0 : i32, i32, i32, i32
  }
}

</mosaic_0001>

<llo_original>
// kernel: tpu_custom_call.1
$region0: #{tpu_custom_call.1}
  #allocation0 [shape = 'u32[]', space=smem, size = 0x4, offset = 0x4, fixed_abs, tag = 'smem constant byte address 0x4 - core index']
  #allocation1 [shape = 'u32[144,128]{1,0:T(1,128)}', space=vmem, size = 0x12000, scoped, tag = 'internal scratch']
  %s0 = inlined_call_operand.vmem [shape: f32[8,24,16], index: 0, kind: input, shape index: {}]
  %s1 = inlined_call_operand.vmem [shape: f32[8,24,16], index: 1, kind: output, shape index: {}]
  %s2 = sld [smem:[#allocation0]]
  $region14: #{tpu_custom_call.1} parent=0
    _
  %s4 = ssub.s32 1, %s2
  %s5 = scalar_select 0, %s4, %s2
  // Predicated region
  $region2: #{tpu_custom_call.1} parent=0 // pred_check
    _
  $region3: #{tpu_custom_call.1} parent=0 // pred_check_branch
    %7 = sbr.rel (0) target = $region5
  $region4: #{tpu_custom_call.1} parent=0 // pred_region
    _
  $region5: #{tpu_custom_call.1} parent=0 // pred_fallthru
    _
  %v8 = vld [vmem:[%s0] sm:$0xff]
  %v9 = vld [vmem:[%s0 + $0x8] sm:$0xff]
  %v10 = vld [vmem:[%s0 + $0x10] sm:$0xff]
  %v11 = vld [vmem:[%s0 + $0x18] sm:$0xff]
  %v12 = vld [vmem:[%s0 + $0x20] sm:$0xff]
  %v13 = vld [vmem:[%s0 + $0x28] sm:$0xff]
  %v14 = vld [vmem:[%s0 + $0x30] sm:$0xff]
  %v15 = vld [vmem:[%s0 + $0x38] sm:$0xff]
  %v16 = vld [vmem:[%s0 + $0x40] sm:$0xff]
  %v17 = vld [vmem:[%s0 + $0x48] sm:$0xff]
  %v18 = vld [vmem:[%s0 + $0x50] sm:$0xff]
  %v19 = vld [vmem:[%s0 + $0x58] sm:$0xff]
  %v20 = vld [vmem:[%s0 + $0x60] sm:$0xff]
  %v21 = vld [vmem:[%s0 + $0x68] sm:$0xff]
  %v22 = vld [vmem:[%s0 + $0x70] sm:$0xff]
  %v23 = vld [vmem:[%s0 + $0x78] sm:$0xff]
  %v24 = vld [vmem:[%s0 + $0x80] sm:$0xff]
  %v25 = vld [vmem:[%s0 + $0x88] sm:$0xff]
  %v26 = vld [vmem:[%s0 + $0x90] sm:$0xff]
  %v27 = vld [vmem:[%s0 + $0x98] sm:$0xff]
  %v28 = vld [vmem:[%s0 + $0xa0] sm:$0xff]
  %v29 = vld [vmem:[%s0 + $0xa8] sm:$0xff]
  %v30 = vld [vmem:[%s0 + $0xb0] sm:$0xff]
  %v31 = vld [vmem:[%s0 + $0xb8] sm:$0xff]
  %v32 = vrot.slane %v8, 7
  %v33 = vrot.slane %v11, 7
  %v34 = vrot.slane %v14, 7
  %v35 = vrot.slane %v17, 7
  %v36 = vrot.slane %v20, 7
  %v37 = vrot.slane %v23, 7
  %v38 = vrot.slane %v26, 7
  %v39 = vrot.slane %v29, 7
  %v40 = vrot.slane %v9, 7
  %v41 = vrot.slane %v12, 7
  %v42 = vrot.slane %v15, 7
  %v43 = vrot.slane %v18, 7
  %v44 = vrot.slane %v21, 7
  %v45 = vrot.slane %v24, 7
  %v46 = vrot.slane %v27, 7
  %v47 = vrot.slane %v30, 7
  %v48 = vrot.slane %v10, 7
  %v49 = vrot.slane %v13, 7
  %v50 = vrot.slane %v16, 7
  %v51 = vrot.slane %v19, 7
  %v52 = vrot.slane %v22, 7
  %v53 = vrot.slane %v25, 7
  %v54 = vrot.slane %v28, 7
  %v55 = vrot.slane %v31, 7
  %v56 = vlaneseq
  %v57 = vshrl.u32 %v56, 7
  %vm58 = vcmp.lt.s32.totalorder %v57, 1
  %v59 = vsel %vm58, %v40, %v48
  %v60 = vsel %vm58, %v41, %v49
  %v61 = vsel %vm58, %v42, %v50
  %v62 = vsel %vm58, %v43, %v51
  %v63 = vsel %vm58, %v44, %v52
  %v64 = vsel %vm58, %v45, %v53
  %v65 = vsel %vm58, %v46, %v54
  %v66 = vsel %vm58, %v47, %v55
  %v67 = vsel %vm58, %v32, %v40
  %v68 = vsel %vm58, %v33, %v41
  %v69 = vsel %vm58, %v34, %v42
  %v70 = vsel %vm58, %v35, %v43
  %v71 = vsel %vm58, %v36, %v44
  %v72 = vsel %vm58, %v37, %v45
  %v73 = vsel %vm58, %v38, %v46
  %v74 = vsel %vm58, %v39, %v47
  %v75 = vsel %vm58, %v48, %v32
  %v76 = vsel %vm58, %v49, %v33
  %v77 = vsel %vm58, %v50, %v34
  %v78 = vsel %vm58, %v51, %v35
  %v79 = vsel %vm58, %v52, %v36
  %v80 = vsel %vm58, %v53, %v37
  %v81 = vsel %vm58, %v54, %v38
  %v82 = vsel %vm58, %v55, %v39
  %vm83 = vcmask 130048
  %84 = vst.msk [vmem:[%s1] sm:$0xff] %vm83, %v75
  %85 = vst.msk [vmem:[%s1 + $0x8] sm:$0xff] %vm83, %v67
  %86 = vst.msk [vmem:[%s1 + $0x10] sm:$0xff] %vm83, %v59
  %87 = vst.msk [vmem:[%s1 + $0x18] sm:$0xff] %vm83, %v76
  %88 = vst.msk [vmem:[%s1 + $0x20] sm:$0xff] %vm83, %v68
  %89 = vst.msk [vmem:[%s1 + $0x28] sm:$0xff] %vm83, %v60
  %90 = vst.msk [vmem:[%s1 + $0x30] sm:$0xff] %vm83, %v77
  %91 = vst.msk [vmem:[%s1 + $0x38] sm:$0xff] %vm83, %v69
  %92 = vst.msk [vmem:[%s1 + $0x40] sm:$0xff] %vm83, %v61
  %93 = vst.msk [vmem:[%s1 + $0x48] sm:$0xff] %vm83, %v78
  %94 = vst.msk [vmem:[%s1 + $0x50] sm:$0xff] %vm83, %v70
  %95 = vst.msk [vmem:[%s1 + $0x58] sm:$0xff] %vm83, %v62
  %96 = vst.msk [vmem:[%s1 + $0x60] sm:$0xff] %vm83, %v79
  %97 = vst.msk [vmem:[%s1 + $0x68] sm:$0xff] %vm83, %v71
  %98 = vst.msk [vmem:[%s1 + $0x70] sm:$0xff] %vm83, %v63
  %99 = vst.msk [vmem:[%s1 + $0x78] sm:$0xff] %vm83, %v80
  %100 = vst.msk [vmem:[%s1 + $0x80] sm:$0xff] %vm83, %v72
  %101 = vst.msk [vmem:[%s1 + $0x88] sm:$0xff] %vm83, %v64
  %102 = vst.msk [vmem:[%s1 + $0x90] sm:$0xff] %vm83, %v81
  %103 = vst.msk [vmem:[%s1 + $0x98] sm:$0xff] %vm83, %v73
  %104 = vst.msk [vmem:[%s1 + $0xa0] sm:$0xff] %vm83, %v65
  %105 = vst.msk [vmem:[%s1 + $0xa8] sm:$0xff] %vm83, %v82
  %106 = vst.msk [vmem:[%s1 + $0xb0] sm:$0xff] %vm83, %v74
  %107 = vst.msk [vmem:[%s1 + $0xb8] sm:$0xff] %vm83, %v66
  // Predicated region
  $region6: #{tpu_custom_call.1} parent=0 // pred_check
    _
  $region7: #{tpu_custom_call.1} parent=0 // pred_check_branch
    %109 = sbr.rel (0) target = $region9
  $region8: #{tpu_custom_call.1} parent=0 // pred_region
    _
  $region9: #{tpu_custom_call.1} parent=0 // pred_fallthru
    _
  // Predicated region
  $region10: #{tpu_custom_call.1} parent=0 // pred_check
    _
  $region11: #{tpu_custom_call.1} parent=0 // pred_check_branch
    %111 = sbr.rel (0) target = $region13
  $region12: #{tpu_custom_call.1} parent=0 // pred_region
    _
  $region13: #{tpu_custom_call.1} parent=0 // pred_fallthru
    _

// kernel: tpu_custom_call.1
$region0: #{tpu_custom_call.1}
  #allocation0 [shape = 'u32[]', space=smem, size = 0x4, offset = 0x4, fixed_abs, tag = 'smem constant byte address 0x4 - core index']
  #allocation1 [shape = 'u32[144,128]{1,0:T(1,128)}', space=vmem, size = 0x12000, scoped, tag = 'internal scratch']
  #allocation2 [shape = 'f32[18,24,16]{2,1,0:T(8,128)}', space=vmem, size = 0x36000, scoped, tag = 'scratch operand']
  %s0 = inlined_call_operand.hbm [shape: f32[2,16,16,32], index: 0, kind: input, shape index: {}]
  %s1 = inlined_call_operand.hbm [shape: f32[2,16,16,32], index: 1, kind: input, shape index: {}]
  %s2 = inlined_call_operand.hbm [shape: f32[2,16,16,32], index: 2, kind: input, shape index: {}]
  %s3 = inlined_call_operand.vmem [shape: f32[32,16], index: 3, kind: input, shape index: {}]
  %s4 = inlined_call_operand.vmem [shape: f32[1,16], index: 4, kind: input, shape index: {}]
  %s5 = inlined_call_operand.vmem [shape: f32[16,16], index: 5, kind: input, shape index: {}]
  %s6 = inlined_call_operand.vmem [shape: f32[1,16], index: 6, kind: input, shape index: {}]
  %s7 = inlined_call_operand.hbm [shape: f32[9,16,16], index: 7, kind: input, shape index: {}]
  %s8 = inlined_call_operand.vmem [shape: f32[1,16], index: 8, kind: input, shape index: {}]
  %s9 = inlined_call_operand.hbm [shape: f32[2,16,16,16], index: 9, kind: output, shape index: {0}]
  %s10 = inlined_call_operand.hbm [shape: f32[2,1,1,16], index: 10, kind: output, shape index: {1}]
  %s11 = inlined_call_operand.hbm [shape: f32[2,1,1,16], index: 11, kind: output, shape index: {2}]
  %12 = xla_tuple %s9, %s10, %s11
  %s13 = sld [smem:[#allocation0]]
  $region101: #{tpu_custom_call.1} parent=0
    _
  %s15 = ssub.s32 1, %s13
  %s16 = scalar_select 0, %s15, %s13
  $region1: #{tpu_custom_call.1} parent=0
    #allocation3 [shape = 'u8[262144]{0}', space=vmem, size = 0x40000, scoped, tag = 'input window, operand 0']
    #allocation4 [shape = 's32[2]{0}', space=sflag, size = 0x8, scoped, tag = 'scoped memory for tpu_custom_call.1']
    #allocation5 [shape = 's32[2]{0}', space=sflag, size = 0x8, scoped, tag = 'scoped memory for tpu_custom_call.1']
    #allocation6 [shape = 'u8[16384]{0}', space=vmem, size = 0x4000, scoped, tag = 'input window, operand 1']
    #allocation7 [shape = 's32[2]{0}', space=sflag, size = 0x8, scoped, tag = 'scoped memory for tpu_custom_call.1']
    #allocation8 [shape = 'u8[16384]{0}', space=vmem, size = 0x4000, scoped, tag = 'input window, operand 2']
    #allocation9 [shape = 'u8[73728]{0}', space=vmem, size = 0x12000, scoped, tag = 'input window, operand 7, single buffered']
    #allocation10 [shape = 's32[1]{0}', space=sflag, size = 0x4, scoped, tag = 'scoped memory for tpu_custom_call.1']
    #allocation11 [shape = 'u8[262144]{0}', space=vmem, size = 0x40000, scoped, tag = 'output window, operand 0']
    #allocation12 [shape = 'u8[1024]{0}', space=vmem, size = 0x400, scoped, tag = 'output window, operand 1']
    #allocation13 [shape = 's32[2]{0}', space=sflag, size = 0x8, scoped, tag = 'scoped memory for tpu_custom_call.1']
    #allocation14 [shape = 'u8[1024]{0}', space=vmem, size = 0x400, scoped, tag = 'output window, operand 2']
    %17 = vsyncpa [#allocation4], 0
    %s18 = scalar_lea.sflag [#allocation4], 1
    %19 = vsyncpa %s18, 0
    %20 = vsyncpa [#allocation7], 0
    %s21 = scalar_lea.sflag [#allocation7], 1
    %22 = vsyncpa %s21, 0
    %23 = vsyncpa [#allocation10], 0
    %24 = vsyncpa [#allocation5], 0
    %s25 = scalar_lea.sflag [#allocation5], 1
    %26 = vsyncpa %s25, 0
    %27 = vsyncpa [#allocation13], 0
    %s28 = scalar_lea.sflag [#allocation13], 1
    %29 = vsyncpa %s28, 0
    loop: start=0, step=1, limit=4
    $region2: #{tpu_custom_call.1} parent=1 // loop_pre_header
      _
    $region3: #{tpu_custom_call.1} parent=1 // loop_header
      %s31 = sphi 0, %s35
      %p32 = scmp.ge.s32.totalorder %s31, 4
      %s38 = sphi 0, %s50
      %s39 = sphi 0, %s46
      %s40 = sphi 0, %s38
      %s41 = sphi 0, %s39
      %s42 = sphi 0, %s40
      %s43 = sphi 0, %s41
      %s55 = sphi 0, %s57
      %s58 = sphi 0, %s55
      %s59 = sphi 0, %s58
      %s75 = sphi 0, %s59
      %s91 = sphi 0, %s93
      %s94 = sphi 0, %s91
      %s95 = sphi 0, %s94
      %s111 = sphi 0, %s95
      %s127 = sphi 0, %s129
      %s130 = sphi 0, %s127
      %s131 = sphi 0, %s130
      %s147 = sphi 0, %s131
      %s151 = sphi 0, %s151
      %s153 = sphi 0, %s151
      %s154 = sphi 0, %s153
      %s168 = sphi 0, %s154
      %s172 = sphi 0, %s172
      %s174 = sphi 0, %s172
      %s175 = sphi 0, %s174
      %s189 = sphi 0, %s175
      %s193 = sphi 0, %s193
      %s195 = sphi 0, %s193
      %s196 = sphi 0, %s195
      %s210 = sphi 0, %s196
      %s214 = sphi 0, %s214
      %s216 = sphi 0, %s214
      %s217 = sphi 0, %s216
      %s231 = sphi 0, %s217
      %s235 = sphi 0, %s235
      %s237 = sphi 0, %s235
      %s238 = sphi 0, %s237
      %s252 = sphi 0, %s238
      %s256 = sphi 0, %s256
      %s258 = sphi 0, %s256
      %s259 = sphi 0, %s258
      %s273 = sphi 0, %s259
      %s281 = sphi 0, %s283
      %s284 = sphi 0, %s281
      %s285 = sphi 0, %s284
      %s301 = sphi 0, %s285
      %s309 = sphi 0, %s311
      %s312 = sphi 0, %s309
      %s313 = sphi 0, %s312
      %s329 = sphi 0, %s313
      %s337 = sphi 0, %s339
      %s340 = sphi 0, %s337
      %s341 = sphi 0, %s340
      %s357 = sphi 0, %s341
    $region4: #{tpu_custom_call.1} parent=1 // loop_header_branch
      %34 = sbr.rel (%p32) target = $region8
    $region5: #{tpu_custom_call.1} parent=1 // loop_body
      %s36 = ssub.s32 %s31, 1
      %s37 = ssub.s32 %s31, 2
      %s44 = sadd.s32 1, %s39
      %p45 = scmp.ge.s32.totalorder %s44, 1
      %s46 = scalar_select %p45, 0, %s44
      %s47 = sadd.s32 1, %s38
      %s48 = scalar_select %p45, %s47, %s38
      %p49 = scmp.ge.s32.totalorder %s48, 2
      %s50 = scalar_select %p49, 0, %s48
      %s51 = ssub.s32 %s38, %s50
      %s52 = ssub.s32 %s39, %s46
      %s53 = sor.u32 %s51, %s52
      %p54 = scmp.eq.s32.totalorder %s53, 0
      %s56 = sadd.s32 %s55, 1
      %s57 = scalar_select %p54, %s55, %s56
      %p60 = pneg %p54
      %p61 = scmp.eq.s32.totalorder %s31, 1
      %p62 = por %p60, %p61
      %p63 = scmp.ne.s32.totalorder %s55, %s58
      %p64 = scmp.eq.s32.totalorder %s31, 0
      %p65 = por %p63, %p64
      %p66 = scmp.ne.s32.totalorder %s55, %s58
      %p67 = scmp.eq.s32.totalorder %s36, 1
      %p68 = por %p66, %p67
      %p69 = scmp.ne.s32.totalorder %s58, %s59
      %p70 = scmp.eq.s32.totalorder %s36, 0
      %p71 = por %p69, %p70
      %p72 = scmp.ne.s32.totalorder %s58, %s59
      %p73 = scmp.eq.s32.totalorder %s37, 1
      %p74 = por %p72, %p73
      %p76 = scmp.ne.s32.totalorder %s59, %s75
      %p77 = scmp.eq.s32.totalorder %s37, 0
      %p78 = por %p76, %p77
      %s79 = smul.u32 %s39, 16
      %s80 = ssub.s32 %s79, 1
      %p81 = scmp.gt.s32.totalorder %s80, 0
      %s82 = scalar_select %p81, %s80, 0
      %s83 = smul.u32 %s46, 16
      %s84 = ssub.s32 %s83, 1
      %p85 = scmp.gt.s32.totalorder %s84, 0
      %s86 = scalar_select %p85, %s84, 0
      %s87 = ssub.s32 %s38, %s50
      %s88 = ssub.s32 %s82, %s86
      %s89 = sor.u32 %s87, %s88
      %p90 = scmp.eq.s32.totalorder %s89, 0
      %s92 = sadd.s32 %s91, 1
      %s93 = scalar_select %p90, %s91, %s92
      %p96 = pneg %p90
      %p97 = scmp.eq.s32.totalorder %s31, 1
      %p98 = por %p96, %p97
      %p99 = scmp.ne.s32.totalorder %s91, %s94
      %p100 = scmp.eq.s32.totalorder %s31, 0
      %p101 = por %p99, %p100
      %p102 = scmp.ne.s32.totalorder %s91, %s94
      %p103 = scmp.eq.s32.totalorder %s36, 1
      %p104 = por %p102, %p103
      %p105 = scmp.ne.s32.totalorder %s94, %s95
      %p106 = scmp.eq.s32.totalorder %s36, 0
      %p107 = por %p105, %p106
      %p108 = scmp.ne.s32.totalorder %s94, %s95
      %p109 = scmp.eq.s32.totalorder %s37, 1
      %p110 = por %p108, %p109
      %p112 = scmp.ne.s32.totalorder %s95, %s111
      %p113 = scmp.eq.s32.totalorder %s37, 0
      %p114 = por %p112, %p113
      %s115 = sadd.s32 %s39, 1
      %s116 = smul.u32 %s115, 16
      %p117 = scmp.lt.s32.totalorder %s116, 15
      %s118 = scalar_select %p117, %s116, 15
      %s119 = sadd.s32 %s46, 1
      %s120 = smul.u32 %s119, 16
      %p121 = scmp.lt.s32.totalorder %s120, 15
      %s122 = scalar_select %p121, %s120, 15
      %s123 = ssub.s32 %s38, %s50
      %s124 = ssub.s32 %s118, %s122
      %s125 = sor.u32 %s123, %s124
      %p126 = scmp.eq.s32.totalorder %s125, 0
      %s128 = sadd.s32 %s127, 1
      %s129 = scalar_select %p126, %s127, %s128
      %p132 = pneg %p126
      %p133 = scmp.eq.s32.totalorder %s31, 1
      %p134 = por %p132, %p133
      %p135 = scmp.ne.s32.totalorder %s127, %s130
      %p136 = scmp.eq.s32.totalorder %s31, 0
      %p137 = por %p135, %p136
      %p138 = scmp.ne.s32.totalorder %s127, %s130
      %p139 = scmp.eq.s32.totalorder %s36, 1
      %p140 = por %p138, %p139
      %p141 = scmp.ne.s32.totalorder %s130, %s131
      %p142 = scmp.eq.s32.totalorder %s36, 0
      %p143 = por %p141, %p142
      %p144 = scmp.ne.s32.totalorder %s130, %s131
      %p145 = scmp.eq.s32.totalorder %s37, 1
      %p146 = por %p144, %p145
      %p148 = scmp.ne.s32.totalorder %s131, %s147
      %p149 = scmp.eq.s32.totalorder %s37, 0
      %p150 = por %p148, %p149
      %s152 = sadd.s32 %s151, 1
      %p155 = scmp.eq.s32.totalorder %s31, 1
      %p156 = scmp.ne.s32.totalorder %s151, %s153
      %p157 = scmp.eq.s32.totalorder %s31, 0
      %p158 = por %p156, %p157
      %p159 = scmp.ne.s32.totalorder %s151, %s153
      %p160 = scmp.eq.s32.totalorder %s36, 1
      %p161 = por %p159, %p160
      %p162 = scmp.ne.s32.totalorder %s153, %s154
      %p163 = scmp.eq.s32.totalorder %s36, 0
      %p164 = por %p162, %p163
      %p165 = scmp.ne.s32.totalorder %s153, %s154
      %p166 = scmp.eq.s32.totalorder %s37, 1
      %p167 = por %p165, %p166
      %p169 = scmp.ne.s32.totalorder %s154, %s168
      %p170 = scmp.eq.s32.totalorder %s37, 0
      %p171 = por %p169, %p170
      %s173 = sadd.s32 %s172, 1
      %p176 = scmp.eq.s32.totalorder %s31, 1
      %p177 = scmp.ne.s32.totalorder %s172, %s174
      %p178 = scmp.eq.s32.totalorder %s31, 0
      %p179 = por %p177, %p178
      %p180 = scmp.ne.s32.totalorder %s172, %s174
      %p181 = scmp.eq.s32.totalorder %s36, 1
      %p182 = por %p180, %p181
      %p183 = scmp.ne.s32.totalorder %s174, %s175
      %p184 = scmp.eq.s32.totalorder %s36, 0
      %p185 = por %p183, %p184
      %p186 = scmp.ne.s32.totalorder %s174, %s175
      %p187 = scmp.eq.s32.totalorder %s37, 1
      %p188 = por %p186, %p187
      %p190 = scmp.ne.s32.totalorder %s175, %s189
      %p191 = scmp.eq.s32.totalorder %s37, 0
      %p192 = por %p190, %p191
      %s194 = sadd.s32 %s193, 1
      %p197 = scmp.eq.s32.totalorder %s31, 1
      %p198 = scmp.ne.s32.totalorder %s193, %s195
      %p199 = scmp.eq.s32.totalorder %s31, 0
      %p200 = por %p198, %p199
      %p201 = scmp.ne.s32.totalorder %s193, %s195
      %p202 = scmp.eq.s32.totalorder %s36, 1
      %p203 = por %p201, %p202
      %p204 = scmp.ne.s32.totalorder %s195, %s196
      %p205 = scmp.eq.s32.totalorder %s36, 0
      %p206 = por %p204, %p205
      %p207 = scmp.ne.s32.totalorder %s195, %s196
      %p208 = scmp.eq.s32.totalorder %s37, 1
      %p209 = por %p207, %p208
      %p211 = scmp.ne.s32.totalorder %s196, %s210
      %p212 = scmp.eq.s32.totalorder %s37, 0
      %p213 = por %p211, %p212
      %s215 = sadd.s32 %s214, 1
      %p218 = scmp.eq.s32.totalorder %s31, 1
      %p219 = scmp.ne.s32.totalorder %s214, %s216
      %p220 = scmp.eq.s32.totalorder %s31, 0
      %p221 = por %p219, %p220
      %p222 = scmp.ne.s32.totalorder %s214, %s216
      %p223 = scmp.eq.s32.totalorder %s36, 1
      %p224 = por %p222, %p223
      %p225 = scmp.ne.s32.totalorder %s216, %s217
      %p226 = scmp.eq.s32.totalorder %s36, 0
      %p227 = por %p225, %p226
      %p228 = scmp.ne.s32.totalorder %s216, %s217
      %p229 = scmp.eq.s32.totalorder %s37, 1
      %p230 = por %p228, %p229
      %p232 = scmp.ne.s32.totalorder %s217, %s231
      %p233 = scmp.eq.s32.totalorder %s37, 0
      %p234 = por %p232, %p233
      %s236 = sadd.s32 %s235, 1
      %p239 = scmp.eq.s32.totalorder %s31, 1
      %p240 = scmp.ne.s32.totalorder %s235, %s237
      %p241 = scmp.eq.s32.totalorder %s31, 0
      %p242 = por %p240, %p241
      %p243 = scmp.ne.s32.totalorder %s235, %s237
      %p244 = scmp.eq.s32.totalorder %s36, 1
      %p245 = por %p243, %p244
      %p246 = scmp.ne.s32.totalorder %s237, %s238
      %p247 = scmp.eq.s32.totalorder %s36, 0
      %p248 = por %p246, %p247
      %p249 = scmp.ne.s32.totalorder %s237, %s238
      %p250 = scmp.eq.s32.totalorder %s37, 1
      %p251 = por %p249, %p250
      %p253 = scmp.ne.s32.totalorder %s238, %s252
      %p254 = scmp.eq.s32.totalorder %s37, 0
      %p255 = por %p253, %p254
      %s257 = sadd.s32 %s256, 1
      %p260 = scmp.eq.s32.totalorder %s31, 1
      %p261 = scmp.ne.s32.totalorder %s256, %s258
      %p262 = scmp.eq.s32.totalorder %s31, 0
      %p263 = por %p261, %p262
      %p264 = scmp.ne.s32.totalorder %s256, %s258
      %p265 = scmp.eq.s32.totalorder %s36, 1
      %p266 = por %p264, %p265
      %p267 = scmp.ne.s32.totalorder %s258, %s259
      %p268 = scmp.eq.s32.totalorder %s36, 0
      %p269 = por %p267, %p268
      %p270 = scmp.ne.s32.totalorder %s258, %s259
      %p271 = scmp.eq.s32.totalorder %s37, 1
      %p272 = por %p270, %p271
      %p274 = scmp.ne.s32.totalorder %s259, %s273
      %p275 = scmp.eq.s32.totalorder %s37, 0
      %p276 = por %p274, %p275
      %s277 = ssub.s32 %s38, %s50
      %s278 = ssub.s32 %s39, %s46
      %s279 = sor.u32 %s277, %s278
      %p280 = scmp.eq.s32.totalorder %s279, 0
      %s282 = sadd.s32 %s281, 1
      %s283 = scalar_select %p280, %s281, %s282
      %p286 = pneg %p280
      %p287 = scmp.eq.s32.totalorder %s31, 1
      %p288 = por %p286, %p287
      %p289 = scmp.ne.s32.totalorder %s281, %s284
      %p290 = scmp.eq.s32.totalorder %s31, 0
      %p291 = por %p289, %p290
      %p292 = scmp.ne.s32.totalorder %s281, %s284
      %p293 = scmp.eq.s32.totalorder %s36, 1
      %p294 = por %p292, %p293
      %p295 = scmp.ne.s32.totalorder %s284, %s285
      %p296 = scmp.eq.s32.totalorder %s36, 0
      %p297 = por %p295, %p296
      %p298 = scmp.ne.s32.totalorder %s284, %s285
      %p299 = scmp.eq.s32.totalorder %s37, 1
      %p300 = por %p298, %p299
      %p302 = scmp.ne.s32.totalorder %s285, %s301
      %p303 = scmp.eq.s32.totalorder %s37, 0
      %p304 = por %p302, %p303
      %s305 = ssub.s32 %s38, %s50
      %s306 = ssub.s32 %s39, %s46
      %s307 = sor.u32 %s305, %s306
      %p308 = scmp.eq.s32.totalorder %s307, 0
      %s310 = sadd.s32 %s309, 1
      %s311 = scalar_select %p308, %s309, %s310
      %p314 = pneg %p308
      %p315 = scmp.eq.s32.totalorder %s31, 1
      %p316 = por %p314, %p315
      %p317 = scmp.ne.s32.totalorder %s309, %s312
      %p318 = scmp.eq.s32.totalorder %s31, 0
      %p319 = por %p317, %p318
      %p320 = scmp.ne.s32.totalorder %s309, %s312
      %p321 = scmp.eq.s32.totalorder %s36, 1
      %p322 = por %p320, %p321
      %p323 = scmp.ne.s32.totalorder %s312, %s313
      %p324 = scmp.eq.s32.totalorder %s36, 0
      %p325 = por %p323, %p324
      %p326 = scmp.ne.s32.totalorder %s312, %s313
      %p327 = scmp.eq.s32.totalorder %s37, 1
      %p328 = por %p326, %p327
      %p330 = scmp.ne.s32.totalorder %s313, %s329
      %p331 = scmp.eq.s32.totalorder %s37, 0
      %p332 = por %p330, %p331
      %s333 = ssub.s32 %s38, %s50
      %s334 = ssub.s32 %s39, %s46
      %s335 = sor.u32 %s333, %s334
      %p336 = scmp.eq.s32.totalorder %s335, 0
      %s338 = sadd.s32 %s337, 1
      %s339 = scalar_select %p336, %s337, %s338
      %p342 = pneg %p336
      %p343 = scmp.eq.s32.totalorder %s31, 1
      %p344 = por %p342, %p343
      %p345 = scmp.ne.s32.totalorder %s337, %s340
      %p346 = scmp.eq.s32.totalorder %s31, 0
      %p347 = por %p345, %p346
      %p348 = scmp.ne.s32.totalorder %s337, %s340
      %p349 = scmp.eq.s32.totalorder %s36, 1
      %p350 = por %p348, %p349
      %p351 = scmp.ne.s32.totalorder %s340, %s341
      %p352 = scmp.eq.s32.totalorder %s36, 0
      %p353 = por %p351, %p352
      %p354 = scmp.ne.s32.totalorder %s340, %s341
      %p355 = scmp.eq.s32.totalorder %s37, 1
      %p356 = por %p354, %p355
      %p358 = scmp.ne.s32.totalorder %s341, %s357
      %p359 = scmp.eq.s32.totalorder %s37, 0
      %p360 = por %p358, %p359
      %p361 = scmp.le.s32.totalorder 1, %s31
      %p362 = scmp.lt.s32.totalorder %s31, 3
      %p363 = pnand %p361, %p362
      %p364 = pneg %p363
      // Predicated region
      $region9: #{tpu_custom_call.1} parent=5 // pred_check
        _
      $region10: #{tpu_custom_call.1} parent=5 // pred_check_branch
        %366 = sbr.rel (%p363) target = $region12
      $region11: #{tpu_custom_call.1} parent=5 // pred_region
        %s367 = ssub.s32 %s31, 1
        // Predicated region
        $region13: #{tpu_custom_call.1} parent=11 // pred_check
          %p368 = pneg %p164
        $region14: #{tpu_custom_call.1} parent=11 // pred_check_branch
          %370 = sbr.rel (%p368) target = $region16
        $region15: #{tpu_custom_call.1} parent=11 // pred_region
          _
        $region16: #{tpu_custom_call.1} parent=11 // pred_fallthru
          _
        // Predicated region
        $region17: #{tpu_custom_call.1} parent=11 // pred_check
          %p371 = pneg %p185
        $region18: #{tpu_custom_call.1} parent=11 // pred_check_branch
          %373 = sbr.rel (%p371) target = $region20
        $region19: #{tpu_custom_call.1} parent=11 // pred_region
          _
        $region20: #{tpu_custom_call.1} parent=11 // pred_fallthru
          _
        // Predicated region
        $region21: #{tpu_custom_call.1} parent=11 // pred_check
          %p374 = pneg %p206
        $region22: #{tpu_custom_call.1} parent=11 // pred_check_branch
          %376 = sbr.rel (%p374) target = $region24
        $region23: #{tpu_custom_call.1} parent=11 // pred_region
          _
        $region24: #{tpu_custom_call.1} parent=11 // pred_fallthru
          _
        // Predicated region
        $region25: #{tpu_custom_call.1} parent=11 // pred_check
          %p377 = pneg %p227
        $region26: #{tpu_custom_call.1} parent=11 // pred_check_branch
          %379 = sbr.rel (%p377) target = $region28
        $region27: #{tpu_custom_call.1} parent=11 // pred_region
          _
        $region28: #{tpu_custom_call.1} parent=11 // pred_fallthru
          _
        // Predicated region
        $region29: #{tpu_custom_call.1} parent=11 // pred_check
          %p380 = pneg %p248
        $region30: #{tpu_custom_call.1} parent=11 // pred_check_branch
          %382 = sbr.rel (%p380) target = $region32
        $region31: #{tpu_custom_call.1} parent=11 // pred_region
          %s384 = ssub.s32 2304, 2304
          %385 = vsyncadd [#allocation10], %s384
          %s386 = sshll.u32 [#allocation9], 4
          %s387 = int_to_ptr.vmem [resolvable:$true] %s386
          %392 = dma.hbm_to_vmem [thread:$0]  %s7, 2304, %s387, [#allocation10], 128, 128, 8
        $region32: #{tpu_custom_call.1} parent=11 // pred_fallthru
          _
        // Predicated region
        $region33: #{tpu_custom_call.1} parent=11 // pred_check
          %p393 = pneg %p269
        $region34: #{tpu_custom_call.1} parent=11 // pred_check_branch
          %395 = sbr.rel (%p393) target = $region36
        $region35: #{tpu_custom_call.1} parent=11 // pred_region
          _
        $region36: #{tpu_custom_call.1} parent=11 // pred_fallthru
          _
      $region12: #{tpu_custom_call.1} parent=5 // pred_fallthru
        _
      %p396 = scmp.lt.s32.totalorder %s31, 2
      // Predicated region
      $region37: #{tpu_custom_call.1} parent=5 // pred_check
        %p397 = pneg %p396
      $region38: #{tpu_custom_call.1} parent=5 // pred_check_branch
        %399 = sbr.rel (%p397) target = $region40
      $region39: #{tpu_custom_call.1} parent=5 // pred_region
        // Predicated region
        $region41: #{tpu_custom_call.1} parent=39 // pred_check
          %p400 = pneg %p65
        $region42: #{tpu_custom_call.1} parent=39 // pred_check_branch
          %402 = sbr.rel (%p400) target = $region44
        $region43: #{tpu_custom_call.1} parent=39 // pred_region
          %s403 = sand.u32 %s55, 1
          %s404 = scalar_lea.sflag [#allocation4], %s403
          %s405 = sand.u32 %s55, 1
          %s406 = smul.addr %s405, 256
          %s407 = scalar_lea.vmem [#allocation3], %s406
          %s408 = smul.u32 16, %s39
          %s410 = ssub.s32 4096, 4096
          %411 = vsyncadd %s404, %s410
          %s412 = smul.addr %s408, 2
          %s413 = smul.addr %s38, 32
          %s414 = sadd.s32 %s412, %s413
          %s415 = smul.addr %s414, 128
          %s416 = scalar_lea.hbm %s0, %s415
          %s417 = sshll.u32 %s407, 4
          %s418 = int_to_ptr.vmem [resolvable:$true] %s417
          %423 = dma.hbm_to_vmem [thread:$0]  %s416, 4096, %s418, %s404, 128, 128, 8
        $region44: #{tpu_custom_call.1} parent=39 // pred_fallthru
          _
        // Predicated region
        $region45: #{tpu_custom_call.1} parent=39 // pred_check
          %p424 = pneg %p101
        $region46: #{tpu_custom_call.1} parent=39 // pred_check_branch
          %426 = sbr.rel (%p424) target = $region48
        $region47: #{tpu_custom_call.1} parent=39 // pred_region
          %s427 = sand.u32 %s31, 1
          %s428 = scalar_lea.sflag [#allocation7], %s427
          %s429 = sand.u32 %s91, 1
          %s430 = smul.addr %s429, 16
          %s431 = scalar_lea.vmem [#allocation6], %s430
          %s432 = smul.u32 %s39, 16
          %s433 = ssub.s32 %s432, 1
          %p434 = scmp.gt.s32.totalorder %s433, 0
          %s435 = scalar_select %p434, %s433, 0
          %s437 = ssub.s32 256, 256
          %438 = vsyncadd %s428, %s437
          %s439 = smul.addr %s435, 2
          %s440 = smul.addr %s38, 32
          %s441 = sadd.s32 %s439, %s440
          %s442 = smul.addr %s441, 128
          %s443 = scalar_lea.hbm %s1, %s442
          %s444 = sshll.u32 %s431, 4
          %s445 = int_to_ptr.vmem [resolvable:$true] %s444
          %450 = dma.hbm_to_vmem [thread:$0]  %s443, 256, %s445, %s428, 128, 128, 8
        $region48: #{tpu_custom_call.1} parent=39 // pred_fallthru
          _
        // Predicated region
        $region49: #{tpu_custom_call.1} parent=39 // pred_check
          %p451 = pneg %p137
        $region50: #{tpu_custom_call.1} parent=39 // pred_check_branch
          %453 = sbr.rel (%p451) target = $region52
        $region51: #{tpu_custom_call.1} parent=39 // pred_region
          %s454 = sand.u32 %s31, 1
          %s455 = scalar_lea.sflag [#allocation7], %s454
          %s456 = sand.u32 %s127, 1
          %s457 = smul.addr %s456, 16
          %s458 = scalar_lea.vmem [#allocation8], %s457
          %s459 = sadd.s32 %s39, 1
          %s460 = smul.u32 %s459, 16
          %p461 = scmp.lt.s32.totalorder %s460, 15
          %s462 = scalar_select %p461, %s460, 15
          %s464 = ssub.s32 256, 256
          %465 = vsyncadd %s455, %s464
          %s466 = smul.addr %s462, 2
          %s467 = smul.addr %s38, 32
          %s468 = sadd.s32 %s466, %s467
          %s469 = smul.addr %s468, 128
          %s470 = scalar_lea.hbm %s2, %s469
          %s471 = sshll.u32 %s458, 4
          %s472 = int_to_ptr.vmem [resolvable:$true] %s471
          %477 = dma.hbm_to_vmem [thread:$0]  %s470, 256, %s472, %s455, 128, 128, 8
        $region52: #{tpu_custom_call.1} parent=39 // pred_fallthru
          _
      $region40: #{tpu_custom_call.1} parent=5 // pred_fallthru
        _
      %p478 = scmp.le.s32.totalorder 1, %s31
      %p479 = scmp.lt.s32.totalorder %s31, 3
      %p480 = pnand %p478, %p479
      %p481 = pneg %p480
      // Predicated region
      $region53: #{tpu_custom_call.1} parent=5 // pred_check
        _
      $region54: #{tpu_custom_call.1} parent=5 // pred_check_branch
        %483 = sbr.rel (%p480) target = $region56
      $region55: #{tpu_custom_call.1} parent=5 // pred_region
        %s484 = ssub.s32 %s31, 1
        %s485 = sand.u32 %s58, 1
        %s486 = scalar_lea.sflag [#allocation4], %s485
        %s487 = sand.u32 %s58, 1
        %s488 = smul.addr %s487, 256
        %s489 = scalar_lea.vmem [#allocation3], %s488
        // Predicated region
        $region57: #{tpu_custom_call.1} parent=55 // pred_check
          %p490 = pneg %p71
        $region58: #{tpu_custom_call.1} parent=55 // pred_check_branch
          %492 = sbr.rel (%p490) target = $region60
        $region59: #{tpu_custom_call.1} parent=55 // pred_region
          %493 = dma.done %s486, 4096
        $region60: #{tpu_custom_call.1} parent=55 // pred_fallthru
          _
        %s494 = sand.u32 %s36, 1
        %s495 = scalar_lea.sflag [#allocation7], %s494
        %s496 = sand.u32 %s94, 1
        %s497 = smul.addr %s496, 16
        %s498 = scalar_lea.vmem [#allocation6], %s497
        // Predicated region
        $region61: #{tpu_custom_call.1} parent=55 // pred_check
          %p499 = pneg %p107
        $region62: #{tpu_custom_call.1} parent=55 // pred_check_branch
          %501 = sbr.rel (%p499) target = $region64
        $region63: #{tpu_custom_call.1} parent=55 // pred_region
          %502 = dma.done %s495, 256
        $region64: #{tpu_custom_call.1} parent=55 // pred_fallthru
          _
        %s503 = sand.u32 %s36, 1
        %s504 = scalar_lea.sflag [#allocation7], %s503
        %s505 = sand.u32 %s130, 1
        %s506 = smul.addr %s505, 16
        %s507 = scalar_lea.vmem [#allocation8], %s506
        // Predicated region
        $region65: #{tpu_custom_call.1} parent=55 // pred_check
          %p508 = pneg %p143
        $region66: #{tpu_custom_call.1} parent=55 // pred_check_branch
          %510 = sbr.rel (%p508) target = $region68
        $region67: #{tpu_custom_call.1} parent=55 // pred_region
          %511 = dma.done %s504, 256
        $region68: #{tpu_custom_call.1} parent=55 // pred_fallthru
          _
        // Predicated region
        $region69: #{tpu_custom_call.1} parent=55 // pred_check
          %p512 = pneg %p248
        $region70: #{tpu_custom_call.1} parent=55 // pred_check_branch
          %514 = sbr.rel (%p512) target = $region72
        $region71: #{tpu_custom_call.1} parent=55 // pred_region
          %515 = dma.done [#allocation10], 2304
        $region72: #{tpu_custom_call.1} parent=55 // pred_fallthru
          _
        %s516 = sand.u32 %s58, 1
        %s517 = scalar_lea.sflag [#allocation4], %s516
        %s518 = sand.u32 %s58, 1
        %s519 = smul.addr %s518, 256
        %s520 = scalar_lea.vmem [#allocation3], %s519
        %p521 = pneg %p71
        %p522 = pneg %p68
        %s523 = sand.u32 %s36, 1
        %s524 = scalar_lea.sflag [#allocation7], %s523
        %s525 = sand.u32 %s94, 1
        %s526 = smul.addr %s525, 16
        %s527 = scalar_lea.vmem [#allocation6], %s526
        %p528 = pneg %p107
        %p529 = pneg %p104
        %s530 = sand.u32 %s36, 1
        %s531 = scalar_lea.sflag [#allocation7], %s530
        %s532 = sand.u32 %s130, 1
        %s533 = smul.addr %s532, 16
        %s534 = scalar_lea.vmem [#allocation8], %s533
        %p535 = pneg %p143
        %p536 = pneg %p140
        %p537 = pneg %p164
        %p538 = pneg %p161
        %p539 = pneg %p185
        %p540 = pneg %p182
        %p541 = pneg %p206
        %p542 = pneg %p203
        %p543 = pneg %p227
        %p544 = pneg %p224
        %p545 = pneg %p248
        %p546 = pneg %p245
        %p547 = pneg %p269
        %p548 = pneg %p266
        %p549 = pneg %p297
        %p550 = pneg %p294
        %s551 = sand.u32 %s284, 1
        %s552 = scalar_lea.sflag [#allocation5], %s551
        %s553 = sand.u32 %s284, 1
        %s554 = smul.addr %s553, 256
        %s555 = scalar_lea.vmem [#allocation11], %s554
        %p556 = pneg %p325
        %p557 = pneg %p322
        %s558 = sand.u32 %s36, 1
        %s559 = scalar_lea.sflag [#allocation13], %s558
        %s560 = sand.u32 %s312, 1
        %s561 = scalar_lea.vmem [#allocation12], %s560
        %p562 = pneg %p353
        %p563 = pneg %p350
        %s564 = sand.u32 %s36, 1
        %s565 = scalar_lea.sflag [#allocation13], %s564
        %s566 = sand.u32 %s340, 1
        %s567 = scalar_lea.vmem [#allocation14], %s566
        %s568 = smul.u32 16, %s41
        %s569 = smul.u32 %s41, 16
        %s570 = ssub.s32 %s569, 1
        %p571 = scmp.gt.s32.totalorder %s570, 0
        %s572 = scalar_select %p571, %s570, 0
        %s573 = sadd.s32 %s41, 1
        %s574 = smul.u32 %s573, 16
        %p575 = scmp.lt.s32.totalorder %s574, 15
        %s576 = scalar_select %p575, %s574, 15
        %s577 = smul.u32 16, %s41
        %v578 = vld [vmem:[%s489] sm:$0xff]
        %v579 = vld [vmem:[%s489 + $0x8] sm:$0xff]
        %v580 = vld [vmem:[%s489 + $0x10] sm:$0xff]
        %v581 = vld [vmem:[%s489 + $0x18] sm:$0xff]
        %v582 = vld [vmem:[%s489 + $0x20] sm:$0xff]
        %v583 = vld [vmem:[%s489 + $0x28] sm:$0xff]
        %v584 = vld [vmem:[%s489 + $0x30] sm:$0xff]
        %v585 = vld [vmem:[%s489 + $0x38] sm:$0xff]
        %v586 = vld [vmem:[%s489 + $0x40] sm:$0xff]
        %v587 = vld [vmem:[%s489 + $0x48] sm:$0xff]
        %v588 = vld [vmem:[%s489 + $0x50] sm:$0xff]
        %v589 = vld [vmem:[%s489 + $0x58] sm:$0xff]
        %v590 = vld [vmem:[%s489 + $0x60] sm:$0xff]
        %v591 = vld [vmem:[%s489 + $0x68] sm:$0xff]
        %v592 = vld [vmem:[%s489 + $0x70] sm:$0xff]
        %v593 = vld [vmem:[%s489 + $0x78] sm:$0xff]
        %v594 = vld [vmem:[%s489 + $0x80] sm:$0xff]
        %v595 = vld [vmem:[%s489 + $0x88] sm:$0xff]
        %v596 = vld [vmem:[%s489 + $0x90] sm:$0xff]
        %v597 = vld [vmem:[%s489 + $0x98] sm:$0xff]
        %v598 = vld [vmem:[%s489 + $0xa0] sm:$0xff]
        %v599 = vld [vmem:[%s489 + $0xa8] sm:$0xff]
        %v600 = vld [vmem:[%s489 + $0xb0] sm:$0xff]
        %v601 = vld [vmem:[%s489 + $0xb8] sm:$0xff]
        %v602 = vld [vmem:[%s489 + $0xc0] sm:$0xff]
        %v603 = vld [vmem:[%s489 + $0xc8] sm:$0xff]
        %v604 = vld [vmem:[%s489 + $0xd0] sm:$0xff]
        %v605 = vld [vmem:[%s489 + $0xd8] sm:$0xff]
        %v606 = vld [vmem:[%s489 + $0xe0] sm:$0xff]
        %v607 = vld [vmem:[%s489 + $0xe8] sm:$0xff]
        %v608 = vld [vmem:[%s489 + $0xf0] sm:$0xff]
        %v609 = vld [vmem:[%s489 + $0xf8] sm:$0xff]
        %v610 = vld [vmem:[%s3] sm:$0xff]
        %v611 = vld [vmem:[%s3 + $0x8] sm:$0xff]
        %v612 = vld [vmem:[%s3 + $0x10] sm:$0xff]
        %v613 = vld [vmem:[%s3 + $0x18] sm:$0xff]
        %v614 = vld [vmem:[%s4] sm:$0x1]
        %v616 = vlaneseq
        %v617 = vshrl.u32 %v616, 7
        %v618 = vsub.s32 0, %v617
        %v619 = vrot.slane %v614, %v618
        %vm621 = vcmask 261120
        %v623 = vsel %vm621, %v578, 0
        %v626 = vsel %vm621, %v579, 0
        %v629 = vsel %vm621, %v580, 0
        %v632 = vsel %vm621, %v581, 0
        %v635 = vsel %vm621, %v582, 0
        %v638 = vsel %vm621, %v583, 0
        %v641 = vsel %vm621, %v584, 0
        %v644 = vsel %vm621, %v585, 0
        %v647 = vsel %vm621, %v586, 0
        %v650 = vsel %vm621, %v587, 0
        %v653 = vsel %vm621, %v588, 0
        %v656 = vsel %vm621, %v589, 0
        %v659 = vsel %vm621, %v590, 0
        %v662 = vsel %vm621, %v591, 0
        %v665 = vsel %vm621, %v592, 0
        %v668 = vsel %vm621, %v593, 0
        %v671 = vsel %vm621, %v594, 0
        %v674 = vsel %vm621, %v595, 0
        %v677 = vsel %vm621, %v596, 0
        %v680 = vsel %vm621, %v597, 0
        %v683 = vsel %vm621, %v598, 0
        %v686 = vsel %vm621, %v599, 0
        %v689 = vsel %vm621, %v600, 0
        %v692 = vsel %vm621, %v601, 0
        %v695 = vsel %vm621, %v602, 0
        %v698 = vsel %vm621, %v603, 0
        %v701 = vsel %vm621, %v604, 0
        %v704 = vsel %vm621, %v605, 0
        %v707 = vsel %vm621, %v606, 0
        %v710 = vsel %vm621, %v607, 0
        %v713 = vsel %vm621, %v608, 0
        %v716 = vsel %vm621, %v609, 0
        %718 = vmatprep.subr.mxu0 0.0
        %719 = vmatpush1.msra.mxu0 0.0
        %720 = vmatprep.subr.mxu0 0.0
        %721 = vmatpush1.msra.mxu0 0.0
        %722 = vmatprep.subr.mxu0 0.0
        %723 = vmatpush1.msra.mxu0 0.0
        %724 = vmatprep.subr.mxu0 0.0
        %725 = vmatpush1.msra.mxu0 0.0
        %726 = vmatprep.subr.mxu0 0.0
        %727 = vmatpush1.msra.mxu0 0.0
        %728 = vmatprep.subr.mxu0 0.0
        %729 = vmatpush1.msra.mxu0 0.0
        %730 = vmatprep.subr.mxu0 0.0
        %731 = vmatpush1.msra.mxu0 0.0
        %732 = vmatprep.subr.mxu0 0.0
        %733 = vmatpush1.msra.mxu0 0.0
        %734 = vmatprep.subr.mxu0 0.0
        %735 = vmatpush1.msra.mxu0 0.0
        %736 = vmatprep.subr.mxu0 0.0
        %737 = vmatpush1.msra.mxu0 0.0
        %738 = vmatprep.subr.mxu0 0.0
        %739 = vmatpush1.msra.mxu0 0.0
        %740 = vmatprep.subr.mxu0 0.0
        %741 = vmatpush1.msra.mxu0 0.0
        %742 = vmatprep.subr.mxu0 0.0
        %743 = vmatpush1.msra.mxu0 %v613
        %744 = vmatprep.subr.mxu0 0.0
        %745 = vmatpush1.msra.mxu0 %v612
        %746 = vmatprep.subr.mxu0 0.0
        %747 = vmatpush1.msra.mxu0 %v611
        %748 = vmatprep.subr.mxu0 0.0
        %749 = vmatpush1.msra.mxu0 %v610
        %750 = vmatprep.subr.mxu0 0.0
        %751 = vmatpush2.msra.mxu0 0.0
        %752 = vmatprep.subr.mxu0 0.0
        %753 = vmatpush2.msra.mxu0 0.0
        %754 = vmatprep.subr.mxu0 0.0
        %755 = vmatpush2.msra.mxu0 0.0
        %756 = vmatprep.subr.mxu0 0.0
        %757 = vmatpush2.msra.mxu0 0.0
        %758 = vmatprep.subr.mxu0 0.0
        %759 = vmatpush2.msra.mxu0 0.0
        %760 = vmatprep.subr.mxu0 0.0
        %761 = vmatpush2.msra.mxu0 0.0
        %762 = vmatprep.subr.mxu0 0.0
        %763 = vmatpush2.msra.mxu0 0.0
        %764 = vmatprep.subr.mxu0 0.0
        %765 = vmatpush2.msra.mxu0 0.0
        %766 = vmatprep.subr.mxu0 0.0
        %767 = vmatpush2.msra.mxu0 0.0
        %768 = vmatprep.subr.mxu0 0.0
        %769 = vmatpush2.msra.mxu0 0.0
        %770 = vmatprep.subr.mxu0 0.0
        %771 = vmatpush2.msra.mxu0 0.0
        %772 = vmatprep.subr.mxu0 0.0
        %773 = vmatpush2.msra.mxu0 0.0
        %774 = vmatprep.subr.mxu0 0.0
        %775 = vmatpush2.msra.mxu0 0.0
        %776 = vmatprep.subr.mxu0 0.0
        %777 = vmatpush2.msra.mxu0 0.0
        %778 = vmatprep.subr.mxu0 0.0
        %779 = vmatpush2.msra.mxu0 0.0
        %780 = vmatprep.subr.mxu0 0.0
        %781 = vmatpush2.msra.mxu0 0.0
        %782 = vmatprep.mubr.f32.mxu0 0.0
        %783 = vmatmul.mubr.f32.gmra.mxu0 %v623
        %v784 = vpop.f32.mrf.mxu0
        %v785 = vadd.f32 %v619, %v784
        %v786 = vpop.f32.mrf.mxu0
        %787 = vmatprep.mubr.f32.mxu0 0.0
        %788 = vmatmul.mubr.f32.gmra.mxu0 %v626
        %v789 = vpop.f32.mrf.mxu0
        %v790 = vadd.f32 %v619, %v789
        %v791 = vpop.f32.mrf.mxu0
        %792 = vmatprep.mubr.f32.mxu0 0.0
        %793 = vmatmul.mubr.f32.gmra.mxu0 %v629
        %v794 = vpop.f32.mrf.mxu0
        %v795 = vadd.f32 %v619, %v794
        %v796 = vpop.f32.mrf.mxu0
        %797 = vmatprep.mubr.f32.mxu0 0.0
        %798 = vmatmul.mubr.f32.gmra.mxu0 %v632
        %v799 = vpop.f32.mrf.mxu0
        %v800 = vadd.f32 %v619, %v799
        %v801 = vpop.f32.mrf.mxu0
        %802 = vmatprep.mubr.f32.mxu0 0.0
        %803 = vmatmul.mubr.f32.gmra.mxu0 %v635
        %v804 = vpop.f32.mrf.mxu0
        %v805 = vadd.f32 %v619, %v804
        %v806 = vpop.f32.mrf.mxu0
        %807 = vmatprep.mubr.f32.mxu0 0.0
        %808 = vmatmul.mubr.f32.gmra.mxu0 %v638
        %v809 = vpop.f32.mrf.mxu0
        %v810 = vadd.f32 %v619, %v809
        %v811 = vpop.f32.mrf.mxu0
        %812 = vmatprep.mubr.f32.mxu0 0.0
        %813 = vmatmul.mubr.f32.gmra.mxu0 %v641
        %v814 = vpop.f32.mrf.mxu0
        %v815 = vadd.f32 %v619, %v814
        %v816 = vpop.f32.mrf.mxu0
        %817 = vmatprep.mubr.f32.mxu0 0.0
        %818 = vmatmul.mubr.f32.gmra.mxu0 %v644
        %v819 = vpop.f32.mrf.mxu0
        %v820 = vadd.f32 %v619, %v819
        %v821 = vpop.f32.mrf.mxu0
        %822 = vmatprep.mubr.f32.mxu0 0.0
        %823 = vmatmul.mubr.f32.gmra.mxu0 %v647
        %v824 = vpop.f32.mrf.mxu0
        %v825 = vadd.f32 %v619, %v824
        %v826 = vpop.f32.mrf.mxu0
        %827 = vmatprep.mubr.f32.mxu0 0.0
        %828 = vmatmul.mubr.f32.gmra.mxu0 %v650
        %v829 = vpop.f32.mrf.mxu0
        %v830 = vadd.f32 %v619, %v829
        %v831 = vpop.f32.mrf.mxu0
        %832 = vmatprep.mubr.f32.mxu0 0.0
        %833 = vmatmul.mubr.f32.gmra.mxu0 %v653
        %v834 = vpop.f32.mrf.mxu0
        %v835 = vadd.f32 %v619, %v834
        %v836 = vpop.f32.mrf.mxu0
        %837 = vmatprep.mubr.f32.mxu0 0.0
        %838 = vmatmul.mubr.f32.gmra.mxu0 %v656
        %v839 = vpop.f32.mrf.mxu0
        %v840 = vadd.f32 %v619, %v839
        %v841 = vpop.f32.mrf.mxu0
        %842 = vmatprep.mubr.f32.mxu0 0.0
        %843 = vmatmul.mubr.f32.gmra.mxu0 %v659
        %v844 = vpop.f32.mrf.mxu0
        %v845 = vadd.f32 %v619, %v844
        %v846 = vpop.f32.mrf.mxu0
        %847 = vmatprep.mubr.f32.mxu0 0.0
        %848 = vmatmul.mubr.f32.gmra.mxu0 %v662
        %v849 = vpop.f32.mrf.mxu0
        %v850 = vadd.f32 %v619, %v849
        %v851 = vpop.f32.mrf.mxu0
        %852 = vmatprep.mubr.f32.mxu0 0.0
        %853 = vmatmul.mubr.f32.gmra.mxu0 %v665
        %v854 = vpop.f32.mrf.mxu0
        %v855 = vadd.f32 %v619, %v854
        %v856 = vpop.f32.mrf.mxu0
        %857 = vmatprep.mubr.f32.mxu0 0.0
        %858 = vmatmul.mubr.f32.gmra.mxu0 %v668
        %v859 = vpop.f32.mrf.mxu0
        %v860 = vadd.f32 %v619, %v859
        %v861 = vpop.f32.mrf.mxu0
        %862 = vmatprep.mubr.f32.mxu0 0.0
        %863 = vmatmul.mubr.f32.gmra.mxu0 %v671
        %v864 = vpop.f32.mrf.mxu0
        %v865 = vadd.f32 %v619, %v864
        %v866 = vpop.f32.mrf.mxu0
        %867 = vmatprep.mubr.f32.mxu0 0.0
        %868 = vmatmul.mubr.f32.gmra.mxu0 %v674
        %v869 = vpop.f32.mrf.mxu0
        %v870 = vadd.f32 %v619, %v869
        %v871 = vpop.f32.mrf.mxu0
        %872 = vmatprep.mubr.f32.mxu0 0.0
        %873 = vmatmul.mubr.f32.gmra.mxu0 %v677
        %v874 = vpop.f32.mrf.mxu0
        %v875 = vadd.f32 %v619, %v874
        %v876 = vpop.f32.mrf.mxu0
        %877 = vmatprep.mubr.f32.mxu0 0.0
        %878 = vmatmul.mubr.f32.gmra.mxu0 %v680
        %v879 = vpop.f32.mrf.mxu0
        %v880 = vadd.f32 %v619, %v879
        %v881 = vpop.f32.mrf.mxu0
        %882 = vmatprep.mubr.f32.mxu0 0.0
        %883 = vmatmul.mubr.f32.gmra.mxu0 %v683
        %v884 = vpop.f32.mrf.mxu0
        %v885 = vadd.f32 %v619, %v884
        %v886 = vpop.f32.mrf.mxu0
        %887 = vmatprep.mubr.f32.mxu0 0.0
        %888 = vmatmul.mubr.f32.gmra.mxu0 %v686
        %v889 = vpop.f32.mrf.mxu0
        %v890 = vadd.f32 %v619, %v889
        %v891 = vpop.f32.mrf.mxu0
        %892 = vmatprep.mubr.f32.mxu0 0.0
        %893 = vmatmul.mubr.f32.gmra.mxu0 %v689
        %v894 = vpop.f32.mrf.mxu0
        %v895 = vadd.f32 %v619, %v894
        %v896 = vpop.f32.mrf.mxu0
        %897 = vmatprep.mubr.f32.mxu0 0.0
        %898 = vmatmul.mubr.f32.gmra.mxu0 %v692
        %v899 = vpop.f32.mrf.mxu0
        %v900 = vadd.f32 %v619, %v899
        %v901 = vpop.f32.mrf.mxu0
        %902 = vmatprep.mubr.f32.mxu0 0.0
        %903 = vmatmul.mubr.f32.gmra.mxu0 %v695
        %v904 = vpop.f32.mrf.mxu0
        %v905 = vadd.f32 %v619, %v904
        %v906 = vpop.f32.mrf.mxu0
        %907 = vmatprep.mubr.f32.mxu0 0.0
        %908 = vmatmul.mubr.f32.gmra.mxu0 %v698
        %v909 = vpop.f32.mrf.mxu0
        %v910 = vadd.f32 %v619, %v909
        %v911 = vpop.f32.mrf.mxu0
        %912 = vmatprep.mubr.f32.mxu0 0.0
        %913 = vmatmul.mubr.f32.gmra.mxu0 %v701
        %v914 = vpop.f32.mrf.mxu0
        %v915 = vadd.f32 %v619, %v914
        %v916 = vpop.f32.mrf.mxu0
        %917 = vmatprep.mubr.f32.mxu0 0.0
        %918 = vmatmul.mubr.f32.gmra.mxu0 %v704
        %v919 = vpop.f32.mrf.mxu0
        %v920 = vadd.f32 %v619, %v919
        %v921 = vpop.f32.mrf.mxu0
        %922 = vmatprep.mubr.f32.mxu0 0.0
        %923 = vmatmul.mubr.f32.gmra.mxu0 %v707
        %v924 = vpop.f32.mrf.mxu0
        %v925 = vadd.f32 %v619, %v924
        %v926 = vpop.f32.mrf.mxu0
        %927 = vmatprep.mubr.f32.mxu0 0.0
        %928 = vmatmul.mubr.f32.gmra.mxu0 %v710
        %v929 = vpop.f32.mrf.mxu0
        %v930 = vadd.f32 %v619, %v929
        %v931 = vpop.f32.mrf.mxu0
        %932 = vmatprep.mubr.f32.mxu0 0.0
        %933 = vmatmul.mubr.f32.gmra.mxu0 %v713
        %v934 = vpop.f32.mrf.mxu0
        %v935 = vadd.f32 %v619, %v934
        %v936 = vpop.f32.mrf.mxu0
        %937 = vmatprep.mubr.f32.mxu0 0.0
        %938 = vmatmul.mubr.f32.gmra.mxu0 %v716
        %v939 = vpop.f32.mrf.mxu0
        %v940 = vadd.f32 %v619, %v939
        %v941 = vpop.f32.mrf.mxu0
        %942 = vdwg.mxu0
        %v943 = vxor.u32 %v785, 2147483648
        %v944 = vxor.u32 %v790, 2147483648
        %v945 = vxor.u32 %v795, 2147483648
        %v946 = vxor.u32 %v800, 2147483648
        %v947 = vxor.u32 %v805, 2147483648
        %v948 = vxor.u32 %v810, 2147483648
        %v949 = vxor.u32 %v815, 2147483648
        %v950 = vxor.u32 %v820, 2147483648
        %v951 = vxor.u32 %v825, 2147483648
        %v952 = vxor.u32 %v830, 2147483648
        %v953 = vxor.u32 %v835, 2147483648
        %v954 = vxor.u32 %v840, 2147483648
        %v955 = vxor.u32 %v845, 2147483648
        %v956 = vxor.u32 %v850, 2147483648
        %v957 = vxor.u32 %v855, 2147483648
        %v958 = vxor.u32 %v860, 2147483648
        %v959 = vxor.u32 %v865, 2147483648
        %v960 = vxor.u32 %v870, 2147483648
        %v961 = vxor.u32 %v875, 2147483648
        %v962 = vxor.u32 %v880, 2147483648
        %v963 = vxor.u32 %v885, 2147483648
        %v964 = vxor.u32 %v890, 2147483648
        %v965 = vxor.u32 %v895, 2147483648
        %v966 = vxor.u32 %v900, 2147483648
        %v967 = vxor.u32 %v905, 2147483648
        %v968 = vxor.u32 %v910, 2147483648
        %v969 = vxor.u32 %v915, 2147483648
        %v970 = vxor.u32 %v920, 2147483648
        %v971 = vxor.u32 %v925, 2147483648
        %v972 = vxor.u32 %v930, 2147483648
        %v973 = vxor.u32 %v935, 2147483648
        %v974 = vxor.u32 %v940, 2147483648
        %v975 = vmul.f32 %v943, 1.442695
        %v976 = vpow.pop %v975
        %v977 = vmul.f32 %v944, 1.442695
        %v978 = vpow.pop %v977
        %v979 = vmul.f32 %v945, 1.442695
        %v980 = vpow.pop %v979
        %v981 = vmul.f32 %v946, 1.442695
        %v982 = vpow.pop %v981
        %v983 = vmul.f32 %v947, 1.442695
        %v984 = vpow.pop %v983
        %v985 = vmul.f32 %v948, 1.442695
        %v986 = vpow.pop %v985
        %v987 = vmul.f32 %v949, 1.442695
        %v988 = vpow.pop %v987
        %v989 = vmul.f32 %v950, 1.442695
        %v990 = vpow.pop %v989
        %v991 = vmul.f32 %v951, 1.442695
        %v992 = vpow.pop %v991
        %v993 = vmul.f32 %v952, 1.442695
        %v994 = vpow.pop %v993
        %v995 = vmul.f32 %v953, 1.442695
        %v996 = vpow.pop %v995
        %v997 = vmul.f32 %v954, 1.442695
        %v998 = vpow.pop %v997
        %v999 = vmul.f32 %v955, 1.442695
        %v1000 = vpow.pop %v999
        %v1001 = vmul.f32 %v956, 1.442695
        %v1002 = vpow.pop %v1001
        %v1003 = vmul.f32 %v957, 1.442695
        %v1004 = vpow.pop %v1003
        %v1005 = vmul.f32 %v958, 1.442695
        %v1006 = vpow.pop %v1005
        %v1007 = vmul.f32 %v959, 1.442695
        %v1008 = vpow.pop %v1007
        %v1009 = vmul.f32 %v960, 1.442695
        %v1010 = vpow.pop %v1009
        %v1011 = vmul.f32 %v961, 1.442695
        %v1012 = vpow.pop %v1011
        %v1013 = vmul.f32 %v962, 1.442695
        %v1014 = vpow.pop %v1013
        %v1015 = vmul.f32 %v963, 1.442695
        %v1016 = vpow.pop %v1015
        %v1017 = vmul.f32 %v964, 1.442695
        %v1018 = vpow.pop %v1017
        %v1019 = vmul.f32 %v965, 1.442695
        %v1020 = vpow.pop %v1019
        %v1021 = vmul.f32 %v966, 1.442695
        %v1022 = vpow.pop %v1021
        %v1023 = vmul.f32 %v967, 1.442695
        %v1024 = vpow.pop %v1023
        %v1025 = vmul.f32 %v968, 1.442695
        %v1026 = vpow.pop %v1025
        %v1027 = vmul.f32 %v969, 1.442695
        %v1028 = vpow.pop %v1027
        %v1029 = vmul.f32 %v970, 1.442695
        %v1030 = vpow.pop %v1029
        %v1031 = vmul.f32 %v971, 1.442695
        %v1032 = vpow.pop %v1031
        %v1033 = vmul.f32 %v972, 1.442695
        %v1034 = vpow.pop %v1033
        %v1035 = vmul.f32 %v973, 1.442695
        %v1036 = vpow.pop %v1035
        %v1037 = vmul.f32 %v974, 1.442695
        %v1038 = vpow.pop %v1037
        %v1039 = vadd.f32 %v976, 1.0
        %v1040 = vadd.f32 %v978, 1.0
        %v1041 = vadd.f32 %v980, 1.0
        %v1042 = vadd.f32 %v982, 1.0
        %v1043 = vadd.f32 %v984, 1.0
        %v1044 = vadd.f32 %v986, 1.0
        %v1045 = vadd.f32 %v988, 1.0
        %v1046 = vadd.f32 %v990, 1.0
        %v1047 = vadd.f32 %v992, 1.0
        %v1048 = vadd.f32 %v994, 1.0
        %v1049 = vadd.f32 %v996, 1.0
        %v1050 = vadd.f32 %v998, 1.0
        %v1051 = vadd.f32 %v1000, 1.0
        %v1052 = vadd.f32 %v1002, 1.0
        %v1053 = vadd.f32 %v1004, 1.0
        %v1054 = vadd.f32 %v1006, 1.0
        %v1055 = vadd.f32 %v1008, 1.0
        %v1056 = vadd.f32 %v1010, 1.0
        %v1057 = vadd.f32 %v1012, 1.0
        %v1058 = vadd.f32 %v1014, 1.0
        %v1059 = vadd.f32 %v1016, 1.0
        %v1060 = vadd.f32 %v1018, 1.0
        %v1061 = vadd.f32 %v1020, 1.0
        %v1062 = vadd.f32 %v1022, 1.0
        %v1063 = vadd.f32 %v1024, 1.0
        %v1064 = vadd.f32 %v1026, 1.0
        %v1065 = vadd.f32 %v1028, 1.0
        %v1066 = vadd.f32 %v1030, 1.0
        %v1067 = vadd.f32 %v1032, 1.0
        %v1068 = vadd.f32 %v1034, 1.0
        %v1069 = vadd.f32 %v1036, 1.0
        %v1070 = vadd.f32 %v1038, 1.0
        %v1071 = vrcp.pop %v1039
        %v1072 = vmul.f32 1.0, %v1071
        %v1073 = vrcp.pop %v1040
        %v1074 = vmul.f32 1.0, %v1073
        %v1075 = vrcp.pop %v1041
        %v1076 = vmul.f32 1.0, %v1075
        %v1077 = vrcp.pop %v1042
        %v1078 = vmul.f32 1.0, %v1077
        %v1079 = vrcp.pop %v1043
        %v1080 = vmul.f32 1.0, %v1079
        %v1081 = vrcp.pop %v1044
        %v1082 = vmul.f32 1.0, %v1081
        %v1083 = vrcp.pop %v1045
        %v1084 = vmul.f32 1.0, %v1083
        %v1085 = vrcp.pop %v1046
        %v1086 = vmul.f32 1.0, %v1085
        %v1087 = vrcp.pop %v1047
        %v1088 = vmul.f32 1.0, %v1087
        %v1089 = vrcp.pop %v1048
        %v1090 = vmul.f32 1.0, %v1089
        %v1091 = vrcp.pop %v1049
        %v1092 = vmul.f32 1.0, %v1091
        %v1093 = vrcp.pop %v1050
        %v1094 = vmul.f32 1.0, %v1093
        %v1095 = vrcp.pop %v1051
        %v1096 = vmul.f32 1.0, %v1095
        %v1097 = vrcp.pop %v1052
        %v1098 = vmul.f32 1.0, %v1097
        %v1099 = vrcp.pop %v1053
        %v1100 = vmul.f32 1.0, %v1099
        %v1101 = vrcp.pop %v1054
        %v1102 = vmul.f32 1.0, %v1101
        %v1103 = vrcp.pop %v1055
        %v1104 = vmul.f32 1.0, %v1103
        %v1105 = vrcp.pop %v1056
        %v1106 = vmul.f32 1.0, %v1105
        %v1107 = vrcp.pop %v1057
        %v1108 = vmul.f32 1.0, %v1107
        %v1109 = vrcp.pop %v1058
        %v1110 = vmul.f32 1.0, %v1109
        %v1111 = vrcp.pop %v1059
        %v1112 = vmul.f32 1.0, %v1111
        %v1113 = vrcp.pop %v1060
        %v1114 = vmul.f32 1.0, %v1113
        %v1115 = vrcp.pop %v1061
        %v1116 = vmul.f32 1.0, %v1115
        %v1117 = vrcp.pop %v1062
        %v1118 = vmul.f32 1.0, %v1117
        %v1119 = vrcp.pop %v1063
        %v1120 = vmul.f32 1.0, %v1119
        %v1121 = vrcp.pop %v1064
        %v1122 = vmul.f32 1.0, %v1121
        %v1123 = vrcp.pop %v1065
        %v1124 = vmul.f32 1.0, %v1123
        %v1125 = vrcp.pop %v1066
        %v1126 = vmul.f32 1.0, %v1125
        %v1127 = vrcp.pop %v1067
        %v1128 = vmul.f32 1.0, %v1127
        %v1129 = vrcp.pop %v1068
        %v1130 = vmul.f32 1.0, %v1129
        %v1131 = vrcp.pop %v1069
        %v1132 = vmul.f32 1.0, %v1131
        %v1133 = vrcp.pop %v1070
        %v1134 = vmul.f32 1.0, %v1133
        %v1135 = vmul.f32 %v785, %v1072
        %v1136 = vmul.f32 %v790, %v1074
        %v1137 = vmul.f32 %v795, %v1076
        %v1138 = vmul.f32 %v800, %v1078
        %v1139 = vmul.f32 %v805, %v1080
        %v1140 = vmul.f32 %v810, %v1082
        %v1141 = vmul.f32 %v815, %v1084
        %v1142 = vmul.f32 %v820, %v1086
        %v1143 = vmul.f32 %v825, %v1088
        %v1144 = vmul.f32 %v830, %v1090
        %v1145 = vmul.f32 %v835, %v1092
        %v1146 = vmul.f32 %v840, %v1094
        %v1147 = vmul.f32 %v845, %v1096
        %v1148 = vmul.f32 %v850, %v1098
        %v1149 = vmul.f32 %v855, %v1100
        %v1150 = vmul.f32 %v860, %v1102
        %v1151 = vmul.f32 %v865, %v1104
        %v1152 = vmul.f32 %v870, %v1106
        %v1153 = vmul.f32 %v875, %v1108
        %v1154 = vmul.f32 %v880, %v1110
        %v1155 = vmul.f32 %v885, %v1112
        %v1156 = vmul.f32 %v890, %v1114
        %v1157 = vmul.f32 %v895, %v1116
        %v1158 = vmul.f32 %v900, %v1118
        %v1159 = vmul.f32 %v905, %v1120
        %v1160 = vmul.f32 %v910, %v1122
        %v1161 = vmul.f32 %v915, %v1124
        %v1162 = vmul.f32 %v920, %v1126
        %v1163 = vmul.f32 %v925, %v1128
        %v1164 = vmul.f32 %v930, %v1130
        %v1165 = vmul.f32 %v935, %v1132
        %v1166 = vmul.f32 %v940, %v1134
        %v1167 = vld [vmem:[%s5] sm:$0xff]
        %v1168 = vld [vmem:[%s5 + $0x8] sm:$0xff]
        %v1169 = vld [vmem:[%s6] sm:$0x1]
        %v1171 = vlaneseq
        %v1172 = vshrl.u32 %v1171, 7
        %v1173 = vsub.s32 0, %v1172
        %v1174 = vrot.slane %v1169, %v1173
        %vm1176 = vcmask 130048
        %v1178 = vsel %vm1176, %v1135, 0
        %v1181 = vsel %vm1176, %v1136, 0
        %v1184 = vsel %vm1176, %v1137, 0
        %v1187 = vsel %vm1176, %v1138, 0
        %v1190 = vsel %vm1176, %v1139, 0
        %v1193 = vsel %vm1176, %v1140, 0
        %v1196 = vsel %vm1176, %v1141, 0
        %v1199 = vsel %vm1176, %v1142, 0
        %v1202 = vsel %vm1176, %v1143, 0
        %v1205 = vsel %vm1176, %v1144, 0
        %v1208 = vsel %vm1176, %v1145, 0
        %v1211 = vsel %vm1176, %v1146, 0
        %v1214 = vsel %vm1176, %v1147, 0
        %v1217 = vsel %vm1176, %v1148, 0
        %v1220 = vsel %vm1176, %v1149, 0
        %v1223 = vsel %vm1176, %v1150, 0
        %v1226 = vsel %vm1176, %v1151, 0
        %v1229 = vsel %vm1176, %v1152, 0
        %v1232 = vsel %vm1176, %v1153, 0
        %v1235 = vsel %vm1176, %v1154, 0
        %v1238 = vsel %vm1176, %v1155, 0
        %v1241 = vsel %vm1176, %v1156, 0
        %v1244 = vsel %vm1176, %v1157, 0
        %v1247 = vsel %vm1176, %v1158, 0
        %v1250 = vsel %vm1176, %v1159, 0
        %v1253 = vsel %vm1176, %v1160, 0
        %v1256 = vsel %vm1176, %v1161, 0
        %v1259 = vsel %vm1176, %v1162, 0
        %v1262 = vsel %vm1176, %v1163, 0
        %v1265 = vsel %vm1176, %v1164, 0
        %v1268 = vsel %vm1176, %v1165, 0
        %v1271 = vsel %vm1176, %v1166, 0
        %1273 = vmatprep.subr.mxu0 0.0
        %1274 = vmatpush1.msra.mxu0 0.0
        %1275 = vmatprep.subr.mxu0 0.0
        %1276 = vmatpush1.msra.mxu0 0.0
        %1277 = vmatprep.subr.mxu0 0.0
        %1278 = vmatpush1.msra.mxu0 0.0
        %1279 = vmatprep.subr.mxu0 0.0
        %1280 = vmatpush1.msra.mxu0 0.0
        %1281 = vmatprep.subr.mxu0 0.0
        %1282 = vmatpush1.msra.mxu0 0.0
        %1283 = vmatprep.subr.mxu0 0.0
        %1284 = vmatpush1.msra.mxu0 0.0
        %1285 = vmatprep.subr.mxu0 0.0
        %1286 = vmatpush1.msra.mxu0 0.0
        %1287 = vmatprep.subr.mxu0 0.0
        %1288 = vmatpush1.msra.mxu0 0.0
        %1289 = vmatprep.subr.mxu0 0.0
        %1290 = vmatpush1.msra.mxu0 0.0
        %1291 = vmatprep.subr.mxu0 0.0
        %1292 = vmatpush1.msra.mxu0 0.0
        %1293 = vmatprep.subr.mxu0 0.0
        %1294 = vmatpush1.msra.mxu0 0.0
        %1295 = vmatprep.subr.mxu0 0.0
        %1296 = vmatpush1.msra.mxu0 0.0
        %1297 = vmatprep.subr.mxu0 0.0
        %1298 = vmatpush1.msra.mxu0 0.0
        %1299 = vmatprep.subr.mxu0 0.0
        %1300 = vmatpush1.msra.mxu0 0.0
        %1301 = vmatprep.subr.mxu0 0.0
        %1302 = vmatpush1.msra.mxu0 %v1168
        %1303 = vmatprep.subr.mxu0 0.0
        %1304 = vmatpush1.msra.mxu0 %v1167
        %1305 = vmatprep.subr.mxu0 0.0
        %1306 = vmatpush2.msra.mxu0 0.0
        %1307 = vmatprep.subr.mxu0 0.0
        %1308 = vmatpush2.msra.mxu0 0.0
        %1309 = vmatprep.subr.mxu0 0.0
        %1310 = vmatpush2.msra.mxu0 0.0
        %1311 = vmatprep.subr.mxu0 0.0
        %1312 = vmatpush2.msra.mxu0 0.0
        %1313 = vmatprep.subr.mxu0 0.0
        %1314 = vmatpush2.msra.mxu0 0.0
        %1315 = vmatprep.subr.mxu0 0.0
        %1316 = vmatpush2.msra.mxu0 0.0
        %1317 = vmatprep.subr.mxu0 0.0
        %1318 = vmatpush2.msra.mxu0 0.0
        %1319 = vmatprep.subr.mxu0 0.0
        %1320 = vmatpush2.msra.mxu0 0.0
        %1321 = vmatprep.subr.mxu0 0.0
        %1322 = vmatpush2.msra.mxu0 0.0
        %1323 = vmatprep.subr.mxu0 0.0
        %1324 = vmatpush2.msra.mxu0 0.0
        %1325 = vmatprep.subr.mxu0 0.0
        %1326 = vmatpush2.msra.mxu0 0.0
        %1327 = vmatprep.subr.mxu0 0.0
        %1328 = vmatpush2.msra.mxu0 0.0
        %1329 = vmatprep.subr.mxu0 0.0
        %1330 = vmatpush2.msra.mxu0 0.0
        %1331 = vmatprep.subr.mxu0 0.0
        %1332 = vmatpush2.msra.mxu0 0.0
        %1333 = vmatprep.subr.mxu0 0.0
        %1334 = vmatpush2.msra.mxu0 0.0
        %1335 = vmatprep.subr.mxu0 0.0
        %1336 = vmatpush2.msra.mxu0 0.0
        %1337 = vmatprep.mubr.f32.mxu0 0.0
        %1338 = vmatmul.mubr.f32.gmra.mxu0 %v1178
        %v1339 = vpop.f32.mrf.mxu0
        %v1340 = vadd.f32 %v1174, %v1339
        %v1341 = vpop.f32.mrf.mxu0
        %1342 = vmatprep.mubr.f32.mxu0 0.0
        %1343 = vmatmul.mubr.f32.gmra.mxu0 %v1181
        %v1344 = vpop.f32.mrf.mxu0
        %v1345 = vadd.f32 %v1174, %v1344
        %v1346 = vpop.f32.mrf.mxu0
        %1347 = vmatprep.mubr.f32.mxu0 0.0
        %1348 = vmatmul.mubr.f32.gmra.mxu0 %v1184
        %v1349 = vpop.f32.mrf.mxu0
        %v1350 = vadd.f32 %v1174, %v1349
        %v1351 = vpop.f32.mrf.mxu0
        %1352 = vmatprep.mubr.f32.mxu0 0.0
        %1353 = vmatmul.mubr.f32.gmra.mxu0 %v1187
        %v1354 = vpop.f32.mrf.mxu0
        %v1355 = vadd.f32 %v1174, %v1354
        %v1356 = vpop.f32.mrf.mxu0
        %1357 = vmatprep.mubr.f32.mxu0 0.0
        %1358 = vmatmul.mubr.f32.gmra.mxu0 %v1190
        %v1359 = vpop.f32.mrf.mxu0
        %v1360 = vadd.f32 %v1174, %v1359
        %v1361 = vpop.f32.mrf.mxu0
        %1362 = vmatprep.mubr.f32.mxu0 0.0
        %1363 = vmatmul.mubr.f32.gmra.mxu0 %v1193
        %v1364 = vpop.f32.mrf.mxu0
        %v1365 = vadd.f32 %v1174, %v1364
        %v1366 = vpop.f32.mrf.mxu0
        %1367 = vmatprep.mubr.f32.mxu0 0.0
        %1368 = vmatmul.mubr.f32.gmra.mxu0 %v1196
        %v1369 = vpop.f32.mrf.mxu0
        %v1370 = vadd.f32 %v1174, %v1369
        %v1371 = vpop.f32.mrf.mxu0
        %1372 = vmatprep.mubr.f32.mxu0 0.0
        %1373 = vmatmul.mubr.f32.gmra.mxu0 %v1199
        %v1374 = vpop.f32.mrf.mxu0
        %v1375 = vadd.f32 %v1174, %v1374
        %v1376 = vpop.f32.mrf.mxu0
        %1377 = vmatprep.mubr.f32.mxu0 0.0
        %1378 = vmatmul.mubr.f32.gmra.mxu0 %v1202
        %v1379 = vpop.f32.mrf.mxu0
        %v1380 = vadd.f32 %v1174, %v1379
        %v1381 = vpop.f32.mrf.mxu0
        %1382 = vmatprep.mubr.f32.mxu0 0.0
        %1383 = vmatmul.mubr.f32.gmra.mxu0 %v1205
        %v1384 = vpop.f32.mrf.mxu0
        %v1385 = vadd.f32 %v1174, %v1384
        %v1386 = vpop.f32.mrf.mxu0
        %1387 = vmatprep.mubr.f32.mxu0 0.0
        %1388 = vmatmul.mubr.f32.gmra.mxu0 %v1208
        %v1389 = vpop.f32.mrf.mxu0
        %v1390 = vadd.f32 %v1174, %v1389
        %v1391 = vpop.f32.mrf.mxu0
        %1392 = vmatprep.mubr.f32.mxu0 0.0
        %1393 = vmatmul.mubr.f32.gmra.mxu0 %v1211
        %v1394 = vpop.f32.mrf.mxu0
        %v1395 = vadd.f32 %v1174, %v1394
        %v1396 = vpop.f32.mrf.mxu0
        %1397 = vmatprep.mubr.f32.mxu0 0.0
        %1398 = vmatmul.mubr.f32.gmra.mxu0 %v1214
        %v1399 = vpop.f32.mrf.mxu0
        %v1400 = vadd.f32 %v1174, %v1399
        %v1401 = vpop.f32.mrf.mxu0
        %1402 = vmatprep.mubr.f32.mxu0 0.0
        %1403 = vmatmul.mubr.f32.gmra.mxu0 %v1217
        %v1404 = vpop.f32.mrf.mxu0
        %v1405 = vadd.f32 %v1174, %v1404
        %v1406 = vpop.f32.mrf.mxu0
        %1407 = vmatprep.mubr.f32.mxu0 0.0
        %1408 = vmatmul.mubr.f32.gmra.mxu0 %v1220
        %v1409 = vpop.f32.mrf.mxu0
        %v1410 = vadd.f32 %v1174, %v1409
        %v1411 = vpop.f32.mrf.mxu0
        %1412 = vmatprep.mubr.f32.mxu0 0.0
        %1413 = vmatmul.mubr.f32.gmra.mxu0 %v1223
        %v1414 = vpop.f32.mrf.mxu0
        %v1415 = vadd.f32 %v1174, %v1414
        %v1416 = vpop.f32.mrf.mxu0
        %1417 = vmatprep.mubr.f32.mxu0 0.0
        %1418 = vmatmul.mubr.f32.gmra.mxu0 %v1226
        %v1419 = vpop.f32.mrf.mxu0
        %v1420 = vadd.f32 %v1174, %v1419
        %v1421 = vpop.f32.mrf.mxu0
        %1422 = vmatprep.mubr.f32.mxu0 0.0
        %1423 = vmatmul.mubr.f32.gmra.mxu0 %v1229
        %v1424 = vpop.f32.mrf.mxu0
        %v1425 = vadd.f32 %v1174, %v1424
        %v1426 = vpop.f32.mrf.mxu0
        %1427 = vmatprep.mubr.f32.mxu0 0.0
        %1428 = vmatmul.mubr.f32.gmra.mxu0 %v1232
        %v1429 = vpop.f32.mrf.mxu0
        %v1430 = vadd.f32 %v1174, %v1429
        %v1431 = vpop.f32.mrf.mxu0
        %1432 = vmatprep.mubr.f32.mxu0 0.0
        %1433 = vmatmul.mubr.f32.gmra.mxu0 %v1235
        %v1434 = vpop.f32.mrf.mxu0
        %v1435 = vadd.f32 %v1174, %v1434
        %v1436 = vpop.f32.mrf.mxu0
        %1437 = vmatprep.mubr.f32.mxu0 0.0
        %1438 = vmatmul.mubr.f32.gmra.mxu0 %v1238
        %v1439 = vpop.f32.mrf.mxu0
        %v1440 = vadd.f32 %v1174, %v1439
        %v1441 = vpop.f32.mrf.mxu0
        %1442 = vmatprep.mubr.f32.mxu0 0.0
        %1443 = vmatmul.mubr.f32.gmra.mxu0 %v1241
        %v1444 = vpop.f32.mrf.mxu0
        %v1445 = vadd.f32 %v1174, %v1444
        %v1446 = vpop.f32.mrf.mxu0
        %1447 = vmatprep.mubr.f32.mxu0 0.0
        %1448 = vmatmul.mubr.f32.gmra.mxu0 %v1244
        %v1449 = vpop.f32.mrf.mxu0
        %v1450 = vadd.f32 %v1174, %v1449
        %v1451 = vpop.f32.mrf.mxu0
        %1452 = vmatprep.mubr.f32.mxu0 0.0
        %1453 = vmatmul.mubr.f32.gmra.mxu0 %v1247
        %v1454 = vpop.f32.mrf.mxu0
        %v1455 = vadd.f32 %v1174, %v1454
        %v1456 = vpop.f32.mrf.mxu0
        %1457 = vmatprep.mubr.f32.mxu0 0.0
        %1458 = vmatmul.mubr.f32.gmra.mxu0 %v1250
        %v1459 = vpop.f32.mrf.mxu0
        %v1460 = vadd.f32 %v1174, %v1459
        %v1461 = vpop.f32.mrf.mxu0
        %1462 = vmatprep.mubr.f32.mxu0 0.0
        %1463 = vmatmul.mubr.f32.gmra.mxu0 %v1253
        %v1464 = vpop.f32.mrf.mxu0
        %v1465 = vadd.f32 %v1174, %v1464
        %v1466 = vpop.f32.mrf.mxu0
        %1467 = vmatprep.mubr.f32.mxu0 0.0
        %1468 = vmatmul.mubr.f32.gmra.mxu0 %v1256
        %v1469 = vpop.f32.mrf.mxu0
        %v1470 = vadd.f32 %v1174, %v1469
        %v1471 = vpop.f32.mrf.mxu0
        %1472 = vmatprep.mubr.f32.mxu0 0.0
        %1473 = vmatmul.mubr.f32.gmra.mxu0 %v1259
        %v1474 = vpop.f32.mrf.mxu0
        %v1475 = vadd.f32 %v1174, %v1474
        %v1476 = vpop.f32.mrf.mxu0
        %1477 = vmatprep.mubr.f32.mxu0 0.0
        %1478 = vmatmul.mubr.f32.gmra.mxu0 %v1262
        %v1479 = vpop.f32.mrf.mxu0
        %v1480 = vadd.f32 %v1174, %v1479
        %v1481 = vpop.f32.mrf.mxu0
        %1482 = vmatprep.mubr.f32.mxu0 0.0
        %1483 = vmatmul.mubr.f32.gmra.mxu0 %v1265
        %v1484 = vpop.f32.mrf.mxu0
        %v1485 = vadd.f32 %v1174, %v1484
        %v1486 = vpop.f32.mrf.mxu0
        %1487 = vmatprep.mubr.f32.mxu0 0.0
        %1488 = vmatmul.mubr.f32.gmra.mxu0 %v1268
        %v1489 = vpop.f32.mrf.mxu0
        %v1490 = vadd.f32 %v1174, %v1489
        %v1491 = vpop.f32.mrf.mxu0
        %1492 = vmatprep.mubr.f32.mxu0 0.0
        %1493 = vmatmul.mubr.f32.gmra.mxu0 %v1271
        %v1494 = vpop.f32.mrf.mxu0
        %v1495 = vadd.f32 %v1174, %v1494
        %v1496 = vpop.f32.mrf.mxu0
        %1497 = vdwg.mxu0
        %v1498 = vxor.u32 %v1340, 2147483648
        %v1499 = vxor.u32 %v1345, 2147483648
        %v1500 = vxor.u32 %v1350, 2147483648
        %v1501 = vxor.u32 %v1355, 2147483648
        %v1502 = vxor.u32 %v1360, 2147483648
        %v1503 = vxor.u32 %v1365, 2147483648
        %v1504 = vxor.u32 %v1370, 2147483648
        %v1505 = vxor.u32 %v1375, 2147483648
        %v1506 = vxor.u32 %v1380, 2147483648
        %v1507 = vxor.u32 %v1385, 2147483648
        %v1508 = vxor.u32 %v1390, 2147483648
        %v1509 = vxor.u32 %v1395, 2147483648
        %v1510 = vxor.u32 %v1400, 2147483648
        %v1511 = vxor.u32 %v1405, 2147483648
        %v1512 = vxor.u32 %v1410, 2147483648
        %v1513 = vxor.u32 %v1415, 2147483648
        %v1514 = vxor.u32 %v1420, 2147483648
        %v1515 = vxor.u32 %v1425, 2147483648
        %v1516 = vxor.u32 %v1430, 2147483648
        %v1517 = vxor.u32 %v1435, 2147483648
        %v1518 = vxor.u32 %v1440, 2147483648
        %v1519 = vxor.u32 %v1445, 2147483648
        %v1520 = vxor.u32 %v1450, 2147483648
        %v1521 = vxor.u32 %v1455, 2147483648
        %v1522 = vxor.u32 %v1460, 2147483648
        %v1523 = vxor.u32 %v1465, 2147483648
        %v1524 = vxor.u32 %v1470, 2147483648
        %v1525 = vxor.u32 %v1475, 2147483648
        %v1526 = vxor.u32 %v1480, 2147483648
        %v1527 = vxor.u32 %v1485, 2147483648
        %v1528 = vxor.u32 %v1490, 2147483648
        %v1529 = vxor.u32 %v1495, 2147483648
        %v1530 = vmul.f32 %v1498, 1.442695
        %v1531 = vpow.pop %v1530
        %v1532 = vmul.f32 %v1499, 1.442695
        %v1533 = vpow.pop %v1532
        %v1534 = vmul.f32 %v1500, 1.442695
        %v1535 = vpow.pop %v1534
        %v1536 = vmul.f32 %v1501, 1.442695
        %v1537 = vpow.pop %v1536
        %v1538 = vmul.f32 %v1502, 1.442695
        %v1539 = vpow.pop %v1538
        %v1540 = vmul.f32 %v1503, 1.442695
        %v1541 = vpow.pop %v1540
        %v1542 = vmul.f32 %v1504, 1.442695
        %v1543 = vpow.pop %v1542
        %v1544 = vmul.f32 %v1505, 1.442695
        %v1545 = vpow.pop %v1544
        %v1546 = vmul.f32 %v1506, 1.442695
        %v1547 = vpow.pop %v1546
        %v1548 = vmul.f32 %v1507, 1.442695
        %v1549 = vpow.pop %v1548
        %v1550 = vmul.f32 %v1508, 1.442695
        %v1551 = vpow.pop %v1550
        %v1552 = vmul.f32 %v1509, 1.442695
        %v1553 = vpow.pop %v1552
        %v1554 = vmul.f32 %v1510, 1.442695
        %v1555 = vpow.pop %v1554
        %v1556 = vmul.f32 %v1511, 1.442695
        %v1557 = vpow.pop %v1556
        %v1558 = vmul.f32 %v1512, 1.442695
        %v1559 = vpow.pop %v1558
        %v1560 = vmul.f32 %v1513, 1.442695
        %v1561 = vpow.pop %v1560
        %v1562 = vmul.f32 %v1514, 1.442695
        %v1563 = vpow.pop %v1562
        %v1564 = vmul.f32 %v1515, 1.442695
        %v1565 = vpow.pop %v1564
        %v1566 = vmul.f32 %v1516, 1.442695
        %v1567 = vpow.pop %v1566
        %v1568 = vmul.f32 %v1517, 1.442695
        %v1569 = vpow.pop %v1568
        %v1570 = vmul.f32 %v1518, 1.442695
        %v1571 = vpow.pop %v1570
        %v1572 = vmul.f32 %v1519, 1.442695
        %v1573 = vpow.pop %v1572
        %v1574 = vmul.f32 %v1520, 1.442695
        %v1575 = vpow.pop %v1574
        %v1576 = vmul.f32 %v1521, 1.442695
        %v1577 = vpow.pop %v1576
        %v1578 = vmul.f32 %v1522, 1.442695
        %v1579 = vpow.pop %v1578
        %v1580 = vmul.f32 %v1523, 1.442695
        %v1581 = vpow.pop %v1580
        %v1582 = vmul.f32 %v1524, 1.442695
        %v1583 = vpow.pop %v1582
        %v1584 = vmul.f32 %v1525, 1.442695
        %v1585 = vpow.pop %v1584
        %v1586 = vmul.f32 %v1526, 1.442695
        %v1587 = vpow.pop %v1586
        %v1588 = vmul.f32 %v1527, 1.442695
        %v1589 = vpow.pop %v1588
        %v1590 = vmul.f32 %v1528, 1.442695
        %v1591 = vpow.pop %v1590
        %v1592 = vmul.f32 %v1529, 1.442695
        %v1593 = vpow.pop %v1592
        %v1594 = vadd.f32 %v1531, 1.0
        %v1595 = vadd.f32 %v1533, 1.0
        %v1596 = vadd.f32 %v1535, 1.0
        %v1597 = vadd.f32 %v1537, 1.0
        %v1598 = vadd.f32 %v1539, 1.0
        %v1599 = vadd.f32 %v1541, 1.0
        %v1600 = vadd.f32 %v1543, 1.0
        %v1601 = vadd.f32 %v1545, 1.0
        %v1602 = vadd.f32 %v1547, 1.0
        %v1603 = vadd.f32 %v1549, 1.0
        %v1604 = vadd.f32 %v1551, 1.0
        %v1605 = vadd.f32 %v1553, 1.0
        %v1606 = vadd.f32 %v1555, 1.0
        %v1607 = vadd.f32 %v1557, 1.0
        %v1608 = vadd.f32 %v1559, 1.0
        %v1609 = vadd.f32 %v1561, 1.0
        %v1610 = vadd.f32 %v1563, 1.0
        %v1611 = vadd.f32 %v1565, 1.0
        %v1612 = vadd.f32 %v1567, 1.0
        %v1613 = vadd.f32 %v1569, 1.0
        %v1614 = vadd.f32 %v1571, 1.0
        %v1615 = vadd.f32 %v1573, 1.0
        %v1616 = vadd.f32 %v1575, 1.0
        %v1617 = vadd.f32 %v1577, 1.0
        %v1618 = vadd.f32 %v1579, 1.0
        %v1619 = vadd.f32 %v1581, 1.0
        %v1620 = vadd.f32 %v1583, 1.0
        %v1621 = vadd.f32 %v1585, 1.0
        %v1622 = vadd.f32 %v1587, 1.0
        %v1623 = vadd.f32 %v1589, 1.0
        %v1624 = vadd.f32 %v1591, 1.0
        %v1625 = vadd.f32 %v1593, 1.0
        %v1626 = vrcp.pop %v1594
        %v1627 = vmul.f32 1.0, %v1626
        %v1628 = vrcp.pop %v1595
        %v1629 = vmul.f32 1.0, %v1628
        %v1630 = vrcp.pop %v1596
        %v1631 = vmul.f32 1.0, %v1630
        %v1632 = vrcp.pop %v1597
        %v1633 = vmul.f32 1.0, %v1632
        %v1634 = vrcp.pop %v1598
        %v1635 = vmul.f32 1.0, %v1634
        %v1636 = vrcp.pop %v1599
        %v1637 = vmul.f32 1.0, %v1636
        %v1638 = vrcp.pop %v1600
        %v1639 = vmul.f32 1.0, %v1638
        %v1640 = vrcp.pop %v1601
        %v1641 = vmul.f32 1.0, %v1640
        %v1642 = vrcp.pop %v1602
        %v1643 = vmul.f32 1.0, %v1642
        %v1644 = vrcp.pop %v1603
        %v1645 = vmul.f32 1.0, %v1644
        %v1646 = vrcp.pop %v1604
        %v1647 = vmul.f32 1.0, %v1646
        %v1648 = vrcp.pop %v1605
        %v1649 = vmul.f32 1.0, %v1648
        %v1650 = vrcp.pop %v1606
        %v1651 = vmul.f32 1.0, %v1650
        %v1652 = vrcp.pop %v1607
        %v1653 = vmul.f32 1.0, %v1652
        %v1654 = vrcp.pop %v1608
        %v1655 = vmul.f32 1.0, %v1654
        %v1656 = vrcp.pop %v1609
        %v1657 = vmul.f32 1.0, %v1656
        %v1658 = vrcp.pop %v1610
        %v1659 = vmul.f32 1.0, %v1658
        %v1660 = vrcp.pop %v1611
        %v1661 = vmul.f32 1.0, %v1660
        %v1662 = vrcp.pop %v1612
        %v1663 = vmul.f32 1.0, %v1662
        %v1664 = vrcp.pop %v1613
        %v1665 = vmul.f32 1.0, %v1664
        %v1666 = vrcp.pop %v1614
        %v1667 = vmul.f32 1.0, %v1666
        %v1668 = vrcp.pop %v1615
        %v1669 = vmul.f32 1.0, %v1668
        %v1670 = vrcp.pop %v1616
        %v1671 = vmul.f32 1.0, %v1670
        %v1672 = vrcp.pop %v1617
        %v1673 = vmul.f32 1.0, %v1672
        %v1674 = vrcp.pop %v1618
        %v1675 = vmul.f32 1.0, %v1674
        %v1676 = vrcp.pop %v1619
        %v1677 = vmul.f32 1.0, %v1676
        %v1678 = vrcp.pop %v1620
        %v1679 = vmul.f32 1.0, %v1678
        %v1680 = vrcp.pop %v1621
        %v1681 = vmul.f32 1.0, %v1680
        %v1682 = vrcp.pop %v1622
        %v1683 = vmul.f32 1.0, %v1682
        %v1684 = vrcp.pop %v1623
        %v1685 = vmul.f32 1.0, %v1684
        %v1686 = vrcp.pop %v1624
        %v1687 = vmul.f32 1.0, %v1686
        %v1688 = vrcp.pop %v1625
        %v1689 = vmul.f32 1.0, %v1688
        %v1690 = vmul.f32 %v1340, %v1627
        %v1691 = vmul.f32 %v1345, %v1629
        %v1692 = vmul.f32 %v1350, %v1631
        %v1693 = vmul.f32 %v1355, %v1633
        %v1694 = vmul.f32 %v1360, %v1635
        %v1695 = vmul.f32 %v1365, %v1637
        %v1696 = vmul.f32 %v1370, %v1639
        %v1697 = vmul.f32 %v1375, %v1641
        %v1698 = vmul.f32 %v1380, %v1643
        %v1699 = vmul.f32 %v1385, %v1645
        %v1700 = vmul.f32 %v1390, %v1647
        %v1701 = vmul.f32 %v1395, %v1649
        %v1702 = vmul.f32 %v1400, %v1651
        %v1703 = vmul.f32 %v1405, %v1653
        %v1704 = vmul.f32 %v1410, %v1655
        %v1705 = vmul.f32 %v1415, %v1657
        %v1706 = vmul.f32 %v1420, %v1659
        %v1707 = vmul.f32 %v1425, %v1661
        %v1708 = vmul.f32 %v1430, %v1663
        %v1709 = vmul.f32 %v1435, %v1665
        %v1710 = vmul.f32 %v1440, %v1667
        %v1711 = vmul.f32 %v1445, %v1669
        %v1712 = vmul.f32 %v1450, %v1671
        %v1713 = vmul.f32 %v1455, %v1673
        %v1714 = vmul.f32 %v1460, %v1675
        %v1715 = vmul.f32 %v1465, %v1677
        %v1716 = vmul.f32 %v1470, %v1679
        %v1717 = vmul.f32 %v1475, %v1681
        %v1718 = vmul.f32 %v1480, %v1683
        %v1719 = vmul.f32 %v1485, %v1685
        %v1720 = vmul.f32 %v1490, %v1687
        %v1721 = vmul.f32 %v1495, %v1689
        %v1722 = vld [vmem:[%s498] sm:$0xff]
        %v1723 = vld [vmem:[%s498 + $0x8] sm:$0xff]
        %v1724 = vld [vmem:[%s507] sm:$0xff]
        %v1725 = vld [vmem:[%s507 + $0x8] sm:$0xff]
        %v1727 = vsel %vm621, %v1722, 0
        %v1730 = vsel %vm621, %v1723, 0
        %v1733 = vsel %vm621, %v1724, 0
        %v1736 = vsel %vm621, %v1725, 0
        %1738 = vmatprep.subr.mxu0 0.0
        %1739 = vmatpush1.msra.mxu0 0.0
        %1740 = vmatprep.subr.mxu0 0.0
        %1741 = vmatpush1.msra.mxu0 0.0
        %1742 = vmatprep.subr.mxu0 0.0
        %1743 = vmatpush1.msra.mxu0 0.0
        %1744 = vmatprep.subr.mxu0 0.0
        %1745 = vmatpush1.msra.mxu0 0.0
        %1746 = vmatprep.subr.mxu0 0.0
        %1747 = vmatpush1.msra.mxu0 0.0
        %1748 = vmatprep.subr.mxu0 0.0
        %1749 = vmatpush1.msra.mxu0 0.0
        %1750 = vmatprep.subr.mxu0 0.0
        %1751 = vmatpush1.msra.mxu0 0.0
        %1752 = vmatprep.subr.mxu0 0.0
        %1753 = vmatpush1.msra.mxu0 0.0
        %1754 = vmatprep.subr.mxu0 0.0
        %1755 = vmatpush1.msra.mxu0 0.0
        %1756 = vmatprep.subr.mxu0 0.0
        %1757 = vmatpush1.msra.mxu0 0.0
        %1758 = vmatprep.subr.mxu0 0.0
        %1759 = vmatpush1.msra.mxu0 0.0
        %1760 = vmatprep.subr.mxu0 0.0
        %1761 = vmatpush1.msra.mxu0 0.0
        %1762 = vmatprep.subr.mxu0 0.0
        %1763 = vmatpush1.msra.mxu0 %v613
        %1764 = vmatprep.subr.mxu0 0.0
        %1765 = vmatpush1.msra.mxu0 %v612
        %1766 = vmatprep.subr.mxu0 0.0
        %1767 = vmatpush1.msra.mxu0 %v611
        %1768 = vmatprep.subr.mxu0 0.0
        %1769 = vmatpush1.msra.mxu0 %v610
        %1770 = vmatprep.subr.mxu0 0.0
        %1771 = vmatpush2.msra.mxu0 0.0
        %1772 = vmatprep.subr.mxu0 0.0
        %1773 = vmatpush2.msra.mxu0 0.0
        %1774 = vmatprep.subr.mxu0 0.0
        %1775 = vmatpush2.msra.mxu0 0.0
        %1776 = vmatprep.subr.mxu0 0.0
        %1777 = vmatpush2.msra.mxu0 0.0
        %1778 = vmatprep.subr.mxu0 0.0
        %1779 = vmatpush2.msra.mxu0 0.0
        %1780 = vmatprep.subr.mxu0 0.0
        %1781 = vmatpush2.msra.mxu0 0.0
        %1782 = vmatprep.subr.mxu0 0.0
        %1783 = vmatpush2.msra.mxu0 0.0
        %1784 = vmatprep.subr.mxu0 0.0
        %1785 = vmatpush2.msra.mxu0 0.0
        %1786 = vmatprep.subr.mxu0 0.0
        %1787 = vmatpush2.msra.mxu0 0.0
        %1788 = vmatprep.subr.mxu0 0.0
        %1789 = vmatpush2.msra.mxu0 0.0
        %1790 = vmatprep.subr.mxu0 0.0
        %1791 = vmatpush2.msra.mxu0 0.0
        %1792 = vmatprep.subr.mxu0 0.0
        %1793 = vmatpush2.msra.mxu0 0.0
        %1794 = vmatprep.subr.mxu0 0.0
        %1795 = vmatpush2.msra.mxu0 0.0
        %1796 = vmatprep.subr.mxu0 0.0
        %1797 = vmatpush2.msra.mxu0 0.0
        %1798 = vmatprep.subr.mxu0 0.0
        %1799 = vmatpush2.msra.mxu0 0.0
        %1800 = vmatprep.subr.mxu0 0.0
        %1801 = vmatpush2.msra.mxu0 0.0
        %1802 = vmatprep.mubr.f32.mxu0 0.0
        %1803 = vmatmul.mubr.f32.gmra.mxu0 %v1727
        %v1804 = vpop.f32.mrf.mxu0
        %v1805 = vadd.f32 %v619, %v1804
        %v1806 = vpop.f32.mrf.mxu0
        %1807 = vmatprep.mubr.f32.mxu0 0.0
        %1808 = vmatmul.mubr.f32.gmra.mxu0 %v1730
        %v1809 = vpop.f32.mrf.mxu0
        %v1810 = vadd.f32 %v619, %v1809
        %v1811 = vpop.f32.mrf.mxu0
        %1812 = vmatprep.mubr.f32.mxu0 0.0
        %1813 = vmatmul.mubr.f32.gmra.mxu0 %v1733
        %v1814 = vpop.f32.mrf.mxu0
        %v1815 = vadd.f32 %v619, %v1814
        %v1816 = vpop.f32.mrf.mxu0
        %1817 = vmatprep.mubr.f32.mxu0 0.0
        %1818 = vmatmul.mubr.f32.gmra.mxu0 %v1736
        %v1819 = vpop.f32.mrf.mxu0
        %v1820 = vadd.f32 %v619, %v1819
        %v1821 = vpop.f32.mrf.mxu0
        %1822 = vdwg.mxu0
        %v1823 = vxor.u32 %v1805, 2147483648
        %v1824 = vxor.u32 %v1810, 2147483648
        %v1825 = vxor.u32 %v1815, 2147483648
        %v1826 = vxor.u32 %v1820, 2147483648
        %v1827 = vmul.f32 %v1823, 1.442695
        %v1828 = vpow.pop %v1827
        %v1829 = vmul.f32 %v1824, 1.442695
        %v1830 = vpow.pop %v1829
        %v1831 = vmul.f32 %v1825, 1.442695
        %v1832 = vpow.pop %v1831
        %v1833 = vmul.f32 %v1826, 1.442695
        %v1834 = vpow.pop %v1833
        %v1835 = vadd.f32 %v1828, 1.0
        %v1836 = vadd.f32 %v1830, 1.0
        %v1837 = vadd.f32 %v1832, 1.0
        %v1838 = vadd.f32 %v1834, 1.0
        %v1839 = vrcp.pop %v1835
        %v1840 = vmul.f32 1.0, %v1839
        %v1841 = vrcp.pop %v1836
        %v1842 = vmul.f32 1.0, %v1841
        %v1843 = vrcp.pop %v1837
        %v1844 = vmul.f32 1.0, %v1843
        %v1845 = vrcp.pop %v1838
        %v1846 = vmul.f32 1.0, %v1845
        %v1847 = vmul.f32 %v1805, %v1840
        %v1848 = vmul.f32 %v1810, %v1842
        %v1849 = vmul.f32 %v1815, %v1844
        %v1850 = vmul.f32 %v1820, %v1846
        %v1852 = vsel %vm1176, %v1847, 0
        %v1855 = vsel %vm1176, %v1848, 0
        %v1858 = vsel %vm1176, %v1849, 0
        %v1861 = vsel %vm1176, %v1850, 0
        %1863 = vmatprep.subr.mxu0 0.0
        %1864 = vmatpush1.msra.mxu0 0.0
        %1865 = vmatprep.subr.mxu0 0.0
        %1866 = vmatpush1.msra.mxu0 0.0
        %1867 = vmatprep.subr.mxu0 0.0
        %1868 = vmatpush1.msra.mxu0 0.0
        %1869 = vmatprep.subr.mxu0 0.0
        %1870 = vmatpush1.msra.mxu0 0.0
        %1871 = vmatprep.subr.mxu0 0.0
        %1872 = vmatpush1.msra.mxu0 0.0
        %1873 = vmatprep.subr.mxu0 0.0
        %1874 = vmatpush1.msra.mxu0 0.0
        %1875 = vmatprep.subr.mxu0 0.0
        %1876 = vmatpush1.msra.mxu0 0.0
        %1877 = vmatprep.subr.mxu0 0.0
        %1878 = vmatpush1.msra.mxu0 0.0
        %1879 = vmatprep.subr.mxu0 0.0
        %1880 = vmatpush1.msra.mxu0 0.0
        %1881 = vmatprep.subr.mxu0 0.0
        %1882 = vmatpush1.msra.mxu0 0.0
        %1883 = vmatprep.subr.mxu0 0.0
        %1884 = vmatpush1.msra.mxu0 0.0
        %1885 = vmatprep.subr.mxu0 0.0
        %1886 = vmatpush1.msra.mxu0 0.0
        %1887 = vmatprep.subr.mxu0 0.0
        %1888 = vmatpush1.msra.mxu0 0.0
        %1889 = vmatprep.subr.mxu0 0.0
        %1890 = vmatpush1.msra.mxu0 0.0
        %1891 = vmatprep.subr.mxu0 0.0
        %1892 = vmatpush1.msra.mxu0 %v1168
        %1893 = vmatprep.subr.mxu0 0.0
        %1894 = vmatpush1.msra.mxu0 %v1167
        %1895 = vmatprep.subr.mxu0 0.0
        %1896 = vmatpush2.msra.mxu0 0.0
        %1897 = vmatprep.subr.mxu0 0.0
        %1898 = vmatpush2.msra.mxu0 0.0
        %1899 = vmatprep.subr.mxu0 0.0
        %1900 = vmatpush2.msra.mxu0 0.0
        %1901 = vmatprep.subr.mxu0 0.0
        %1902 = vmatpush2.msra.mxu0 0.0
        %1903 = vmatprep.subr.mxu0 0.0
        %1904 = vmatpush2.msra.mxu0 0.0
        %1905 = vmatprep.subr.mxu0 0.0
        %1906 = vmatpush2.msra.mxu0 0.0
        %1907 = vmatprep.subr.mxu0 0.0
        %1908 = vmatpush2.msra.mxu0 0.0
        %1909 = vmatprep.subr.mxu0 0.0
        %1910 = vmatpush2.msra.mxu0 0.0
        %1911 = vmatprep.subr.mxu0 0.0
        %1912 = vmatpush2.msra.mxu0 0.0
        %1913 = vmatprep.subr.mxu0 0.0
        %1914 = vmatpush2.msra.mxu0 0.0
        %1915 = vmatprep.subr.mxu0 0.0
        %1916 = vmatpush2.msra.mxu0 0.0
        %1917 = vmatprep.subr.mxu0 0.0
        %1918 = vmatpush2.msra.mxu0 0.0
        %1919 = vmatprep.subr.mxu0 0.0
        %1920 = vmatpush2.msra.mxu0 0.0
        %1921 = vmatprep.subr.mxu0 0.0
        %1922 = vmatpush2.msra.mxu0 0.0
        %1923 = vmatprep.subr.mxu0 0.0
        %1924 = vmatpush2.msra.mxu0 0.0
        %1925 = vmatprep.subr.mxu0 0.0
        %1926 = vmatpush2.msra.mxu0 0.0
        %1927 = vmatprep.mubr.f32.mxu0 0.0
        %1928 = vmatmul.mubr.f32.gmra.mxu0 %v1852
        %v1929 = vpop.f32.mrf.mxu0
        %v1930 = vadd.f32 %v1174, %v1929
        %v1931 = vpop.f32.mrf.mxu0
        %1932 = vmatprep.mubr.f32.mxu0 0.0
        %1933 = vmatmul.mubr.f32.gmra.mxu0 %v1855
        %v1934 = vpop.f32.mrf.mxu0
        %v1935 = vadd.f32 %v1174, %v1934
        %v1936 = vpop.f32.mrf.mxu0
        %1937 = vmatprep.mubr.f32.mxu0 0.0
        %1938 = vmatmul.mubr.f32.gmra.mxu0 %v1858
        %v1939 = vpop.f32.mrf.mxu0
        %v1940 = vadd.f32 %v1174, %v1939
        %v1941 = vpop.f32.mrf.mxu0
        %1942 = vmatprep.mubr.f32.mxu0 0.0
        %1943 = vmatmul.mubr.f32.gmra.mxu0 %v1861
        %v1944 = vpop.f32.mrf.mxu0
        %v1945 = vadd.f32 %v1174, %v1944
        %v1946 = vpop.f32.mrf.mxu0
        %1947 = vdwg.mxu0
        %v1948 = vxor.u32 %v1930, 2147483648
        %v1949 = vxor.u32 %v1935, 2147483648
        %v1950 = vxor.u32 %v1940, 2147483648
        %v1951 = vxor.u32 %v1945, 2147483648
        %v1952 = vmul.f32 %v1948, 1.442695
        %v1953 = vpow.pop %v1952
        %v1954 = vmul.f32 %v1949, 1.442695
        %v1955 = vpow.pop %v1954
        %v1956 = vmul.f32 %v1950, 1.442695
        %v1957 = vpow.pop %v1956
        %v1958 = vmul.f32 %v1951, 1.442695
        %v1959 = vpow.pop %v1958
        %v1960 = vadd.f32 %v1953, 1.0
        %v1961 = vadd.f32 %v1955, 1.0
        %v1962 = vadd.f32 %v1957, 1.0
        %v1963 = vadd.f32 %v1959, 1.0
        %v1964 = vrcp.pop %v1960
        %v1965 = vmul.f32 1.0, %v1964
        %v1966 = vrcp.pop %v1961
        %v1967 = vmul.f32 1.0, %v1966
        %v1968 = vrcp.pop %v1962
        %v1969 = vmul.f32 1.0, %v1968
        %v1970 = vrcp.pop %v1963
        %v1971 = vmul.f32 1.0, %v1970
        %v1972 = vmul.f32 %v1930, %v1965
        %v1973 = vmul.f32 %v1935, %v1967
        %v1974 = vmul.f32 %v1940, %v1969
        %v1975 = vmul.f32 %v1945, %v1971
        %p1976 = scmp.gt.s32.totalorder %s41, 0
        %s1977 = scalar_select %p1976, 1, 0
        %v1978 = vstv %s1977
        %vm1979 = vcmp.eq.s32.totalorder %v1978, 1
        %v1980 = vsel %vm1979, %v1972, 0.0
        %v1981 = vsel %vm1979, %v1973, 0.0
        %p1982 = scmp.lt.s32.totalorder %s41, 0
        %s1983 = scalar_select %p1982, 1, 0
        %v1984 = vstv %s1983
        %vm1985 = vcmp.eq.s32.totalorder %v1984, 1
        %v1986 = vsel %vm1985, %v1974, 0.0
        %v1987 = vsel %vm1985, %v1975, 0.0
        %1988 = vst.msk [vmem:[#allocation2 + $0x10] sm:$0xff] %vm1176, 0.0
        %1989 = vst.msk [vmem:[#allocation2 + $0x28] sm:$0xff] %vm1176, 0.0
        %1990 = vst.msk [vmem:[#allocation2 + $0x40] sm:$0xff] %vm1176, 0.0
        %1991 = vst.msk [vmem:[#allocation2 + $0x58] sm:$0xff] %vm1176, 0.0
        %1992 = vst.msk [vmem:[#allocation2 + $0x70] sm:$0xff] %vm1176, 0.0
        %1993 = vst.msk [vmem:[#allocation2 + $0x88] sm:$0xff] %vm1176, 0.0
        %1994 = vst.msk [vmem:[#allocation2 + $0xa0] sm:$0xff] %vm1176, 0.0
        %1995 = vst.msk [vmem:[#allocation2 + $0xb8] sm:$0xff] %vm1176, 0.0
        %1996 = vst.msk [vmem:[#allocation2 + $0xd0] sm:$0xff] %vm1176, 0.0
        %1997 = vst.msk [vmem:[#allocation2 + $0xe8] sm:$0xff] %vm1176, 0.0
        %1998 = vst.msk [vmem:[#allocation2 + $0x100] sm:$0xff] %vm1176, 0.0
        %1999 = vst.msk [vmem:[#allocation2 + $0x118] sm:$0xff] %vm1176, 0.0
        %2000 = vst.msk [vmem:[#allocation2 + $0x130] sm:$0xff] %vm1176, 0.0
        %2001 = vst.msk [vmem:[#allocation2 + $0x148] sm:$0xff] %vm1176, 0.0
        %2002 = vst.msk [vmem:[#allocation2 + $0x160] sm:$0xff] %vm1176, 0.0
        %2003 = vst.msk [vmem:[#allocation2 + $0x178] sm:$0xff] %vm1176, 0.0
        %2004 = vst.msk [vmem:[#allocation2 + $0x190] sm:$0xff] %vm1176, 0.0
        %2005 = vst.msk [vmem:[#allocation2 + $0x1a8] sm:$0xff] %vm1176, 0.0
        %2006 = vst.msk [vmem:[#allocation2] sm:$0xff] %vm1176, %v1980
        %2007 = vst.msk [vmem:[#allocation2 + $0x8] sm:$0xff] %vm1176, %v1981
        %s2008 = scalar_lea.vmem [#allocation2], 24
        %2009 = vst.msk [vmem:[%s2008] sm:$0xff] %vm1176, %v1690
        %2010 = vst.msk [vmem:[%s2008 + $0x8] sm:$0xff] %vm1176, %v1691
        %2011 = vst.msk [vmem:[%s2008 + $0x18] sm:$0xff] %vm1176, %v1692
        %2012 = vst.msk [vmem:[%s2008 + $0x20] sm:$0xff] %vm1176, %v1693
        %2013 = vst.msk [vmem:[%s2008 + $0x30] sm:$0xff] %vm1176, %v1694
        %2014 = vst.msk [vmem:[%s2008 + $0x38] sm:$0xff] %vm1176, %v1695
        %2015 = vst.msk [vmem:[%s2008 + $0x48] sm:$0xff] %vm1176, %v1696
        %2016 = vst.msk [vmem:[%s2008 + $0x50] sm:$0xff] %vm1176, %v1697
        %2017 = vst.msk [vmem:[%s2008 + $0x60] sm:$0xff] %vm1176, %v1698
        %2018 = vst.msk [vmem:[%s2008 + $0x68] sm:$0xff] %vm1176, %v1699
        %2019 = vst.msk [vmem:[%s2008 + $0x78] sm:$0xff] %vm1176, %v1700
        %2020 = vst.msk [vmem:[%s2008 + $0x80] sm:$0xff] %vm1176, %v1701
        %2021 = vst.msk [vmem:[%s2008 + $0x90] sm:$0xff] %vm1176, %v1702
        %2022 = vst.msk [vmem:[%s2008 + $0x98] sm:$0xff] %vm1176, %v1703
        %2023 = vst.msk [vmem:[%s2008 + $0xa8] sm:$0xff] %vm1176, %v1704
        %2024 = vst.msk [vmem:[%s2008 + $0xb0] sm:$0xff] %vm1176, %v1705
        %2025 = vst.msk [vmem:[%s2008 + $0xc0] sm:$0xff] %vm1176, %v1706
        %2026 = vst.msk [vmem:[%s2008 + $0xc8] sm:$0xff] %vm1176, %v1707
        %2027 = vst.msk [vmem:[%s2008 + $0xd8] sm:$0xff] %vm1176, %v1708
        %2028 = vst.msk [vmem:[%s2008 + $0xe0] sm:$0xff] %vm1176, %v1709
        %2029 = vst.msk [vmem:[%s2008 + $0xf0] sm:$0xff] %vm1176, %v1710
        %2030 = vst.msk [vmem:[%s2008 + $0xf8] sm:$0xff] %vm1176, %v1711
        %2031 = vst.msk [vmem:[%s2008 + $0x108] sm:$0xff] %vm1176, %v1712
        %2032 = vst.msk [vmem:[%s2008 + $0x110] sm:$0xff] %vm1176, %v1713
        %2033 = vst.msk [vmem:[%s2008 + $0x120] sm:$0xff] %vm1176, %v1714
        %2034 = vst.msk [vmem:[%s2008 + $0x128] sm:$0xff] %vm1176, %v1715
        %2035 = vst.msk [vmem:[%s2008 + $0x138] sm:$0xff] %vm1176, %v1716
        %2036 = vst.msk [vmem:[%s2008 + $0x140] sm:$0xff] %vm1176, %v1717
        %2037 = vst.msk [vmem:[%s2008 + $0x150] sm:$0xff] %vm1176, %v1718
        %2038 = vst.msk [vmem:[%s2008 + $0x158] sm:$0xff] %vm1176, %v1719
        %2039 = vst.msk [vmem:[%s2008 + $0x168] sm:$0xff] %vm1176, %v1720
        %2040 = vst.msk [vmem:[%s2008 + $0x170] sm:$0xff] %vm1176, %v1721
        %s2041 = scalar_lea.vmem [#allocation2], 408
        %2042 = vst.msk [vmem:[%s2041] sm:$0xff] %vm1176, %v1986
        %2043 = vst.msk [vmem:[%s2041 + $0x8] sm:$0xff] %vm1176, %v1987
        %v2044 = vld [vmem:[#allocation2] sm:$0xff]
        %v2045 = vld [vmem:[#allocation2 + $0x8] sm:$0xff]
        %v2046 = vld [vmem:[#allocation2 + $0x10] sm:$0xff]
        %v2047 = vld [vmem:[#allocation2 + $0x18] sm:$0xff]
        %v2048 = vld [vmem:[#allocation2 + $0x20] sm:$0xff]
        %v2049 = vld [vmem:[#allocation2 + $0x28] sm:$0xff]
        %v2050 = vld [vmem:[#allocation2 + $0x30] sm:$0xff]
        %v2051 = vld [vmem:[#allocation2 + $0x38] sm:$0xff]
        %v2052 = vld [vmem:[#allocation2 + $0x40] sm:$0xff]
        %v2053 = vld [vmem:[#allocation2 + $0x48] sm:$0xff]
        %v2054 = vld [vmem:[#allocation2 + $0x50] sm:$0xff]
        %v2055 = vld [vmem:[#allocation2 + $0x58] sm:$0xff]
        %v2056 = vld [vmem:[#allocation2 + $0x60] sm:$0xff]
        %v2057 = vld [vmem:[#allocation2 + $0x68] sm:$0xff]
        %v2058 = vld [vmem:[#allocation2 + $0x70] sm:$0xff]
        %v2059 = vld [vmem:[#allocation2 + $0x78] sm:$0xff]
        %v2060 = vld [vmem:[#allocation2 + $0x80] sm:$0xff]
        %v2061 = vld [vmem:[#allocation2 + $0x88] sm:$0xff]
        %v2062 = vld [vmem:[#allocation2 + $0x90] sm:$0xff]
        %v2063 = vld [vmem:[#allocation2 + $0x98] sm:$0xff]
        %v2064 = vld [vmem:[#allocation2 + $0xa0] sm:$0xff]
        %v2065 = vld [vmem:[#allocation2 + $0xa8] sm:$0xff]
        %v2066 = vld [vmem:[#allocation2 + $0xb0] sm:$0xff]
        %v2067 = vld [vmem:[#allocation2 + $0xb8] sm:$0xff]
        %v2068 = vld [vmem:[#allocation2 + $0xc0] sm:$0xff]
        %v2069 = vld [vmem:[#allocation2 + $0xc8] sm:$0xff]
        %v2070 = vld [vmem:[#allocation2 + $0xd0] sm:$0xff]
        %v2071 = vld [vmem:[#allocation2 + $0xd8] sm:$0xff]
        %v2072 = vld [vmem:[#allocation2 + $0xe0] sm:$0xff]
        %v2073 = vld [vmem:[#allocation2 + $0xe8] sm:$0xff]
        %v2074 = vld [vmem:[#allocation2 + $0xf0] sm:$0xff]
        %v2075 = vld [vmem:[#allocation2 + $0xf8] sm:$0xff]
        %v2076 = vld [vmem:[#allocation2 + $0x100] sm:$0xff]
        %v2077 = vld [vmem:[#allocation2 + $0x108] sm:$0xff]
        %v2078 = vld [vmem:[#allocation2 + $0x110] sm:$0xff]
        %v2079 = vld [vmem:[#allocation2 + $0x118] sm:$0xff]
        %v2080 = vld [vmem:[#allocation2 + $0x120] sm:$0xff]
        %v2081 = vld [vmem:[#allocation2 + $0x128] sm:$0xff]
        %v2082 = vld [vmem:[#allocation2 + $0x130] sm:$0xff]
        %v2083 = vld [vmem:[#allocation2 + $0x138] sm:$0xff]
        %v2084 = vld [vmem:[#allocation2 + $0x140] sm:$0xff]
        %v2085 = vld [vmem:[#allocation2 + $0x148] sm:$0xff]
        %v2086 = vld [vmem:[#allocation2 + $0x150] sm:$0xff]
        %v2087 = vld [vmem:[#allocation2 + $0x158] sm:$0xff]
        %v2088 = vld [vmem:[#allocation2 + $0x160] sm:$0xff]
        %v2089 = vld [vmem:[#allocation2 + $0x168] sm:$0xff]
        %v2090 = vld [vmem:[#allocation2 + $0x170] sm:$0xff]
        %v2091 = vld [vmem:[#allocation2 + $0x178] sm:$0xff]
        %v2092 = vld [vmem:[%s2008] sm:$0xff]
        %v2093 = vld [vmem:[%s2008 + $0x8] sm:$0xff]
        %v2094 = vld [vmem:[%s2008 + $0x10] sm:$0xff]
        %v2095 = vld [vmem:[%s2008 + $0x18] sm:$0xff]
        %v2096 = vld [vmem:[%s2008 + $0x20] sm:$0xff]
        %v2097 = vld [vmem:[%s2008 + $0x28] sm:$0xff]
        %v2098 = vld [vmem:[%s2008 + $0x30] sm:$0xff]
        %v2099 = vld [vmem:[%s2008 + $0x38] sm:$0xff]
        %v2100 = vld [vmem:[%s2008 + $0x40] sm:$0xff]
        %v2101 = vld [vmem:[%s2008 + $0x48] sm:$0xff]
        %v2102 = vld [vmem:[%s2008 + $0x50] sm:$0xff]
        %v2103 = vld [vmem:[%s2008 + $0x58] sm:$0xff]
        %v2104 = vld [vmem:[%s2008 + $0x60] sm:$0xff]
        %v2105 = vld [vmem:[%s2008 + $0x68] sm:$0xff]
        %v2106 = vld [vmem:[%s2008 + $0x70] sm:$0xff]
        %v2107 = vld [vmem:[%s2008 + $0x78] sm:$0xff]
        %v2108 = vld [vmem:[%s2008 + $0x80] sm:$0xff]
        %v2109 = vld [vmem:[%s2008 + $0x88] sm:$0xff]
        %v2110 = vld [vmem:[%s2008 + $0x90] sm:$0xff]
        %v2111 = vld [vmem:[%s2008 + $0x98] sm:$0xff]
        %v2112 = vld [vmem:[%s2008 + $0xa0] sm:$0xff]
        %v2113 = vld [vmem:[%s2008 + $0xa8] sm:$0xff]
        %v2114 = vld [vmem:[%s2008 + $0xb0] sm:$0xff]
        %v2115 = vld [vmem:[%s2008 + $0xb8] sm:$0xff]
        %v2116 = vld [vmem:[%s2008 + $0xc0] sm:$0xff]
        %v2117 = vld [vmem:[%s2008 + $0xc8] sm:$0xff]
        %v2118 = vld [vmem:[%s2008 + $0xd0] sm:$0xff]
        %v2119 = vld [vmem:[%s2008 + $0xd8] sm:$0xff]
        %v2120 = vld [vmem:[%s2008 + $0xe0] sm:$0xff]
        %v2121 = vld [vmem:[%s2008 + $0xe8] sm:$0xff]
        %v2122 = vld [vmem:[%s2008 + $0xf0] sm:$0xff]
        %v2123 = vld [vmem:[%s2008 + $0xf8] sm:$0xff]
        %v2124 = vld [vmem:[%s2008 + $0x100] sm:$0xff]
        %v2125 = vld [vmem:[%s2008 + $0x108] sm:$0xff]
        %v2126 = vld [vmem:[%s2008 + $0x110] sm:$0xff]
        %v2127 = vld [vmem:[%s2008 + $0x118] sm:$0xff]
        %v2128 = vld [vmem:[%s2008 + $0x120] sm:$0xff]
        %v2129 = vld [vmem:[%s2008 + $0x128] sm:$0xff]
        %v2130 = vld [vmem:[%s2008 + $0x130] sm:$0xff]
        %v2131 = vld [vmem:[%s2008 + $0x138] sm:$0xff]
        %v2132 = vld [vmem:[%s2008 + $0x140] sm:$0xff]
        %v2133 = vld [vmem:[%s2008 + $0x148] sm:$0xff]
        %v2134 = vld [vmem:[%s2008 + $0x150] sm:$0xff]
        %v2135 = vld [vmem:[%s2008 + $0x158] sm:$0xff]
        %v2136 = vld [vmem:[%s2008 + $0x160] sm:$0xff]
        %v2137 = vld [vmem:[%s2008 + $0x168] sm:$0xff]
        %v2138 = vld [vmem:[%s2008 + $0x170] sm:$0xff]
        %v2139 = vld [vmem:[%s2008 + $0x178] sm:$0xff]
        %s2140 = scalar_lea.vmem [#allocation2], 48
        %v2141 = vld [vmem:[%s2140] sm:$0xff]
        %v2142 = vld [vmem:[%s2140 + $0x8] sm:$0xff]
        %v2143 = vld [vmem:[%s2140 + $0x10] sm:$0xff]
        %v2144 = vld [vmem:[%s2140 + $0x18] sm:$0xff]
        %v2145 = vld [vmem:[%s2140 + $0x20] sm:$0xff]
        %v2146 = vld [vmem:[%s2140 + $0x28] sm:$0xff]
        %v2147 = vld [vmem:[%s2140 + $0x30] sm:$0xff]
        %v2148 = vld [vmem:[%s2140 + $0x38] sm:$0xff]
        %v2149 = vld [vmem:[%s2140 + $0x40] sm:$0xff]
        %v2150 = vld [vmem:[%s2140 + $0x48] sm:$0xff]
        %v2151 = vld [vmem:[%s2140 + $0x50] sm:$0xff]
        %v2152 = vld [vmem:[%s2140 + $0x58] sm:$0xff]
        %v2153 = vld [vmem:[%s2140 + $0x60] sm:$0xff]
        %v2154 = vld [vmem:[%s2140 + $0x68] sm:$0xff]
        %v2155 = vld [vmem:[%s2140 + $0x70] sm:$0xff]
        %v2156 = vld [vmem:[%s2140 + $0x78] sm:$0xff]
        %v2157 = vld [vmem:[%s2140 + $0x80] sm:$0xff]
        %v2158 = vld [vmem:[%s2140 + $0x88] sm:$0xff]
        %v2159 = vld [vmem:[%s2140 + $0x90] sm:$0xff]
        %v2160 = vld [vmem:[%s2140 + $0x98] sm:$0xff]
        %v2161 = vld [vmem:[%s2140 + $0xa0] sm:$0xff]
        %v2162 = vld [vmem:[%s2140 + $0xa8] sm:$0xff]
        %v2163 = vld [vmem:[%s2140 + $0xb0] sm:$0xff]
        %v2164 = vld [vmem:[%s2140 + $0xb8] sm:$0xff]
        %v2165 = vld [vmem:[%s2140 + $0xc0] sm:$0xff]
        %v2166 = vld [vmem:[%s2140 + $0xc8] sm:$0xff]
        %v2167 = vld [vmem:[%s2140 + $0xd0] sm:$0xff]
        %v2168 = vld [vmem:[%s2140 + $0xd8] sm:$0xff]
        %v2169 = vld [vmem:[%s2140 + $0xe0] sm:$0xff]
        %v2170 = vld [vmem:[%s2140 + $0xe8] sm:$0xff]
        %v2171 = vld [vmem:[%s2140 + $0xf0] sm:$0xff]
        %v2172 = vld [vmem:[%s2140 + $0xf8] sm:$0xff]
        %v2173 = vld [vmem:[%s2140 + $0x100] sm:$0xff]
        %v2174 = vld [vmem:[%s2140 + $0x108] sm:$0xff]
        %v2175 = vld [vmem:[%s2140 + $0x110] sm:$0xff]
        %v2176 = vld [vmem:[%s2140 + $0x118] sm:$0xff]
        %v2177 = vld [vmem:[%s2140 + $0x120] sm:$0xff]
        %v2178 = vld [vmem:[%s2140 + $0x128] sm:$0xff]
        %v2179 = vld [vmem:[%s2140 + $0x130] sm:$0xff]
        %v2180 = vld [vmem:[%s2140 + $0x138] sm:$0xff]
        %v2181 = vld [vmem:[%s2140 + $0x140] sm:$0xff]
        %v2182 = vld [vmem:[%s2140 + $0x148] sm:$0xff]
        %v2183 = vld [vmem:[%s2140 + $0x150] sm:$0xff]
        %v2184 = vld [vmem:[%s2140 + $0x158] sm:$0xff]
        %v2185 = vld [vmem:[%s2140 + $0x160] sm:$0xff]
        %v2186 = vld [vmem:[%s2140 + $0x168] sm:$0xff]
        %v2187 = vld [vmem:[%s2140 + $0x170] sm:$0xff]
        %v2188 = vld [vmem:[%s2140 + $0x178] sm:$0xff]
        %v2189 = vld [vmem:[#allocation9] sm:$0xff]
        %v2190 = vld [vmem:[#allocation9 + $0x8] sm:$0xff]
        %s2191 = scalar_lea.vmem [#allocation9], 48
        %v2192 = vld [vmem:[%s2191] sm:$0xff]
        %v2193 = vld [vmem:[%s2191 + $0x8] sm:$0xff]
        %v2195 = vsel %vm1176, %v2092, 0
        %v2198 = vsel %vm1176, %v2093, 0
        %v2201 = vsel %vm1176, %v2094, 0
        %v2204 = vsel %vm1176, %v2095, 0
        %v2207 = vsel %vm1176, %v2096, 0
        %v2210 = vsel %vm1176, %v2097, 0
        %v2213 = vsel %vm1176, %v2098, 0
        %v2216 = vsel %vm1176, %v2099, 0
        %v2219 = vsel %vm1176, %v2100, 0
        %v2222 = vsel %vm1176, %v2101, 0
        %v2225 = vsel %vm1176, %v2102, 0
        %v2228 = vsel %vm1176, %v2103, 0
        %v2231 = vsel %vm1176, %v2104, 0
        %v2234 = vsel %vm1176, %v2105, 0
        %v2237 = vsel %vm1176, %v2106, 0
        %v2240 = vsel %vm1176, %v2107, 0
        %v2243 = vsel %vm1176, %v2108, 0
        %v2246 = vsel %vm1176, %v2109, 0
        %v2249 = vsel %vm1176, %v2110, 0
        %v2252 = vsel %vm1176, %v2111, 0
        %v2255 = vsel %vm1176, %v2112, 0
        %v2258 = vsel %vm1176, %v2113, 0
        %v2261 = vsel %vm1176, %v2114, 0
        %v2264 = vsel %vm1176, %v2115, 0
        %v2267 = vsel %vm1176, %v2116, 0
        %v2270 = vsel %vm1176, %v2117, 0
        %v2273 = vsel %vm1176, %v2118, 0
        %v2276 = vsel %vm1176, %v2119, 0
        %v2279 = vsel %vm1176, %v2120, 0
        %v2282 = vsel %vm1176, %v2121, 0
        %v2285 = vsel %vm1176, %v2122, 0
        %v2288 = vsel %vm1176, %v2123, 0
        %v2291 = vsel %vm1176, %v2124, 0
        %v2294 = vsel %vm1176, %v2125, 0
        %v2297 = vsel %vm1176, %v2126, 0
        %v2300 = vsel %vm1176, %v2127, 0
        %v2303 = vsel %vm1176, %v2128, 0
        %v2306 = vsel %vm1176, %v2129, 0
        %v2309 = vsel %vm1176, %v2130, 0
        %v2312 = vsel %vm1176, %v2131, 0
        %v2315 = vsel %vm1176, %v2132, 0
        %v2318 = vsel %vm1176, %v2133, 0
        %v2321 = vsel %vm1176, %v2134, 0
        %v2324 = vsel %vm1176, %v2135, 0
        %v2327 = vsel %vm1176, %v2136, 0
        %v2330 = vsel %vm1176, %v2137, 0
        %v2333 = vsel %vm1176, %v2138, 0
        %v2336 = vsel %vm1176, %v2139, 0
        %2338 = vmatprep.subr.mxu0 0.0
        %2339 = vmatpush1.msra.mxu0 0.0
        %2340 = vmatprep.subr.mxu0 0.0
        %2341 = vmatpush1.msra.mxu0 0.0
        %2342 = vmatprep.subr.mxu0 0.0
        %2343 = vmatpush1.msra.mxu0 0.0
        %2344 = vmatprep.subr.mxu0 0.0
        %2345 = vmatpush1.msra.mxu0 0.0
        %2346 = vmatprep.subr.mxu0 0.0
        %2347 = vmatpush1.msra.mxu0 0.0
        %2348 = vmatprep.subr.mxu0 0.0
        %2349 = vmatpush1.msra.mxu0 0.0
        %2350 = vmatprep.subr.mxu0 0.0
        %2351 = vmatpush1.msra.mxu0 0.0
        %2352 = vmatprep.subr.mxu0 0.0
        %2353 = vmatpush1.msra.mxu0 0.0
        %2354 = vmatprep.subr.mxu0 0.0
        %2355 = vmatpush1.msra.mxu0 0.0
        %2356 = vmatprep.subr.mxu0 0.0
        %2357 = vmatpush1.msra.mxu0 0.0
        %2358 = vmatprep.subr.mxu0 0.0
        %2359 = vmatpush1.msra.mxu0 0.0
        %2360 = vmatprep.subr.mxu0 0.0
        %2361 = vmatpush1.msra.mxu0 0.0
        %2362 = vmatprep.subr.mxu0 0.0
        %2363 = vmatpush1.msra.mxu0 0.0
        %2364 = vmatprep.subr.mxu0 0.0
        %2365 = vmatpush1.msra.mxu0 0.0
        %2366 = vmatprep.subr.mxu0 0.0
        %2367 = vmatpush1.msra.mxu0 %v2193
        %2368 = vmatprep.subr.mxu0 0.0
        %2369 = vmatpush1.msra.mxu0 %v2192
        %2370 = vmatprep.subr.mxu0 0.0
        %2371 = vmatpush2.msra.mxu0 0.0
        %2372 = vmatprep.subr.mxu0 0.0
        %2373 = vmatpush2.msra.mxu0 0.0
        %2374 = vmatprep.subr.mxu0 0.0
        %2375 = vmatpush2.msra.mxu0 0.0
        %2376 = vmatprep.subr.mxu0 0.0
        %2377 = vmatpush2.msra.mxu0 0.0
        %2378 = vmatprep.subr.mxu0 0.0
        %2379 = vmatpush2.msra.mxu0 0.0
        %2380 = vmatprep.subr.mxu0 0.0
        %2381 = vmatpush2.msra.mxu0 0.0
        %2382 = vmatprep.subr.mxu0 0.0
        %2383 = vmatpush2.msra.mxu0 0.0
        %2384 = vmatprep.subr.mxu0 0.0
        %2385 = vmatpush2.msra.mxu0 0.0
        %2386 = vmatprep.subr.mxu0 0.0
        %2387 = vmatpush2.msra.mxu0 0.0
        %2388 = vmatprep.subr.mxu0 0.0
        %2389 = vmatpush2.msra.mxu0 0.0
        %2390 = vmatprep.subr.mxu0 0.0
        %2391 = vmatpush2.msra.mxu0 0.0
        %2392 = vmatprep.subr.mxu0 0.0
        %2393 = vmatpush2.msra.mxu0 0.0
        %2394 = vmatprep.subr.mxu0 0.0
        %2395 = vmatpush2.msra.mxu0 0.0
        %2396 = vmatprep.subr.mxu0 0.0
        %2397 = vmatpush2.msra.mxu0 0.0
        %2398 = vmatprep.subr.mxu0 0.0
        %2399 = vmatpush2.msra.mxu0 0.0
        %2400 = vmatprep.subr.mxu0 0.0
        %2401 = vmatpush2.msra.mxu0 0.0
        %2402 = vmatprep.mubr.f32.mxu0 0.0
        %2403 = vmatmul.mubr.f32.gmra.mxu0 %v2195
        %v2404 = vpop.f32.mrf.mxu0
        %v2405 = vadd.f32 0.0, %v2404
        %v2406 = vpop.f32.mrf.mxu0
        %2407 = vmatprep.mubr.f32.mxu0 0.0
        %2408 = vmatmul.mubr.f32.gmra.mxu0 %v2198
        %v2409 = vpop.f32.mrf.mxu0
        %v2410 = vadd.f32 0.0, %v2409
        %v2411 = vpop.f32.mrf.mxu0
        %2412 = vmatprep.mubr.f32.mxu0 0.0
        %2413 = vmatmul.mubr.f32.gmra.mxu0 %v2201
        %v2414 = vpop.f32.mrf.mxu0
        %v2415 = vadd.f32 0.0, %v2414
        %v2416 = vpop.f32.mrf.mxu0
        %2417 = vmatprep.mubr.f32.mxu0 0.0
        %2418 = vmatmul.mubr.f32.gmra.mxu0 %v2204
        %v2419 = vpop.f32.mrf.mxu0
        %v2420 = vadd.f32 0.0, %v2419
        %v2421 = vpop.f32.mrf.mxu0
        %2422 = vmatprep.mubr.f32.mxu0 0.0
        %2423 = vmatmul.mubr.f32.gmra.mxu0 %v2207
        %v2424 = vpop.f32.mrf.mxu0
        %v2425 = vadd.f32 0.0, %v2424
        %v2426 = vpop.f32.mrf.mxu0
        %2427 = vmatprep.mubr.f32.mxu0 0.0
        %2428 = vmatmul.mubr.f32.gmra.mxu0 %v2210
        %v2429 = vpop.f32.mrf.mxu0
        %v2430 = vadd.f32 0.0, %v2429
        %v2431 = vpop.f32.mrf.mxu0
        %2432 = vmatprep.mubr.f32.mxu0 0.0
        %2433 = vmatmul.mubr.f32.gmra.mxu0 %v2213
        %v2434 = vpop.f32.mrf.mxu0
        %v2435 = vadd.f32 0.0, %v2434
        %v2436 = vpop.f32.mrf.mxu0
        %2437 = vmatprep.mubr.f32.mxu0 0.0
        %2438 = vmatmul.mubr.f32.gmra.mxu0 %v2216
        %v2439 = vpop.f32.mrf.mxu0
        %v2440 = vadd.f32 0.0, %v2439
        %v2441 = vpop.f32.mrf.mxu0
        %2442 = vmatprep.mubr.f32.mxu0 0.0
        %2443 = vmatmul.mubr.f32.gmra.mxu0 %v2219
        %v2444 = vpop.f32.mrf.mxu0
        %v2445 = vadd.f32 0.0, %v2444
        %v2446 = vpop.f32.mrf.mxu0
        %2447 = vmatprep.mubr.f32.mxu0 0.0
        %2448 = vmatmul.mubr.f32.gmra.mxu0 %v2222
        %v2449 = vpop.f32.mrf.mxu0
        %v2450 = vadd.f32 0.0, %v2449
        %v2451 = vpop.f32.mrf.mxu0
        %2452 = vmatprep.mubr.f32.mxu0 0.0
        %2453 = vmatmul.mubr.f32.gmra.mxu0 %v2225
        %v2454 = vpop.f32.mrf.mxu0
        %v2455 = vadd.f32 0.0, %v2454
        %v2456 = vpop.f32.mrf.mxu0
        %2457 = vmatprep.mubr.f32.mxu0 0.0
        %2458 = vmatmul.mubr.f32.gmra.mxu0 %v2228
        %v2459 = vpop.f32.mrf.mxu0
        %v2460 = vadd.f32 0.0, %v2459
        %v2461 = vpop.f32.mrf.mxu0
        %2462 = vmatprep.mubr.f32.mxu0 0.0
        %2463 = vmatmul.mubr.f32.gmra.mxu0 %v2231
        %v2464 = vpop.f32.mrf.mxu0
        %v2465 = vadd.f32 0.0, %v2464
        %v2466 = vpop.f32.mrf.mxu0
        %2467 = vmatprep.mubr.f32.mxu0 0.0
        %2468 = vmatmul.mubr.f32.gmra.mxu0 %v2234
        %v2469 = vpop.f32.mrf.mxu0
        %v2470 = vadd.f32 0.0, %v2469
        %v2471 = vpop.f32.mrf.mxu0
        %2472 = vmatprep.mubr.f32.mxu0 0.0
        %2473 = vmatmul.mubr.f32.gmra.mxu0 %v2237
        %v2474 = vpop.f32.mrf.mxu0
        %v2475 = vadd.f32 0.0, %v2474
        %v2476 = vpop.f32.mrf.mxu0
        %2477 = vmatprep.mubr.f32.mxu0 0.0
        %2478 = vmatmul.mubr.f32.gmra.mxu0 %v2240
        %v2479 = vpop.f32.mrf.mxu0
        %v2480 = vadd.f32 0.0, %v2479
        %v2481 = vpop.f32.mrf.mxu0
        %2482 = vmatprep.mubr.f32.mxu0 0.0
        %2483 = vmatmul.mubr.f32.gmra.mxu0 %v2243
        %v2484 = vpop.f32.mrf.mxu0
        %v2485 = vadd.f32 0.0, %v2484
        %v2486 = vpop.f32.mrf.mxu0
        %2487 = vmatprep.mubr.f32.mxu0 0.0
        %2488 = vmatmul.mubr.f32.gmra.mxu0 %v2246
        %v2489 = vpop.f32.mrf.mxu0
        %v2490 = vadd.f32 0.0, %v2489
        %v2491 = vpop.f32.mrf.mxu0
        %2492 = vmatprep.mubr.f32.mxu0 0.0
        %2493 = vmatmul.mubr.f32.gmra.mxu0 %v2249
        %v2494 = vpop.f32.mrf.mxu0
        %v2495 = vadd.f32 0.0, %v2494
        %v2496 = vpop.f32.mrf.mxu0
        %2497 = vmatprep.mubr.f32.mxu0 0.0
        %2498 = vmatmul.mubr.f32.gmra.mxu0 %v2252
        %v2499 = vpop.f32.mrf.mxu0
        %v2500 = vadd.f32 0.0, %v2499
        %v2501 = vpop.f32.mrf.mxu0
        %2502 = vmatprep.mubr.f32.mxu0 0.0
        %2503 = vmatmul.mubr.f32.gmra.mxu0 %v2255
        %v2504 = vpop.f32.mrf.mxu0
        %v2505 = vadd.f32 0.0, %v2504
        %v2506 = vpop.f32.mrf.mxu0
        %2507 = vmatprep.mubr.f32.mxu0 0.0
        %2508 = vmatmul.mubr.f32.gmra.mxu0 %v2258
        %v2509 = vpop.f32.mrf.mxu0
        %v2510 = vadd.f32 0.0, %v2509
        %v2511 = vpop.f32.mrf.mxu0
        %2512 = vmatprep.mubr.f32.mxu0 0.0
        %2513 = vmatmul.mubr.f32.gmra.mxu0 %v2261
        %v2514 = vpop.f32.mrf.mxu0
        %v2515 = vadd.f32 0.0, %v2514
        %v2516 = vpop.f32.mrf.mxu0
        %2517 = vmatprep.mubr.f32.mxu0 0.0
        %2518 = vmatmul.mubr.f32.gmra.mxu0 %v2264
        %v2519 = vpop.f32.mrf.mxu0
        %v2520 = vadd.f32 0.0, %v2519
        %v2521 = vpop.f32.mrf.mxu0
        %2522 = vmatprep.mubr.f32.mxu0 0.0
        %2523 = vmatmul.mubr.f32.gmra.mxu0 %v2267
        %v2524 = vpop.f32.mrf.mxu0
        %v2525 = vadd.f32 0.0, %v2524
        %v2526 = vpop.f32.mrf.mxu0
        %2527 = vmatprep.mubr.f32.mxu0 0.0
        %2528 = vmatmul.mubr.f32.gmra.mxu0 %v2270
        %v2529 = vpop.f32.mrf.mxu0
        %v2530 = vadd.f32 0.0, %v2529
        %v2531 = vpop.f32.mrf.mxu0
        %2532 = vmatprep.mubr.f32.mxu0 0.0
        %2533 = vmatmul.mubr.f32.gmra.mxu0 %v2273
        %v2534 = vpop.f32.mrf.mxu0
        %v2535 = vadd.f32 0.0, %v2534
        %v2536 = vpop.f32.mrf.mxu0
        %2537 = vmatprep.mubr.f32.mxu0 0.0
        %2538 = vmatmul.mubr.f32.gmra.mxu0 %v2276
        %v2539 = vpop.f32.mrf.mxu0
        %v2540 = vadd.f32 0.0, %v2539
        %v2541 = vpop.f32.mrf.mxu0
        %2542 = vmatprep.mubr.f32.mxu0 0.0
        %2543 = vmatmul.mubr.f32.gmra.mxu0 %v2279
        %v2544 = vpop.f32.mrf.mxu0
        %v2545 = vadd.f32 0.0, %v2544
        %v2546 = vpop.f32.mrf.mxu0
        %2547 = vmatprep.mubr.f32.mxu0 0.0
        %2548 = vmatmul.mubr.f32.gmra.mxu0 %v2282
        %v2549 = vpop.f32.mrf.mxu0
        %v2550 = vadd.f32 0.0, %v2549
        %v2551 = vpop.f32.mrf.mxu0
        %2552 = vmatprep.mubr.f32.mxu0 0.0
        %2553 = vmatmul.mubr.f32.gmra.mxu0 %v2285
        %v2554 = vpop.f32.mrf.mxu0
        %v2555 = vadd.f32 0.0, %v2554
        %v2556 = vpop.f32.mrf.mxu0
        %2557 = vmatprep.mubr.f32.mxu0 0.0
        %2558 = vmatmul.mubr.f32.gmra.mxu0 %v2288
        %v2559 = vpop.f32.mrf.mxu0
        %v2560 = vadd.f32 0.0, %v2559
        %v2561 = vpop.f32.mrf.mxu0
        %2562 = vmatprep.mubr.f32.mxu0 0.0
        %2563 = vmatmul.mubr.f32.gmra.mxu0 %v2291
        %v2564 = vpop.f32.mrf.mxu0
        %v2565 = vadd.f32 0.0, %v2564
        %v2566 = vpop.f32.mrf.mxu0
        %2567 = vmatprep.mubr.f32.mxu0 0.0
        %2568 = vmatmul.mubr.f32.gmra.mxu0 %v2294
        %v2569 = vpop.f32.mrf.mxu0
        %v2570 = vadd.f32 0.0, %v2569
        %v2571 = vpop.f32.mrf.mxu0
        %2572 = vmatprep.mubr.f32.mxu0 0.0
        %2573 = vmatmul.mubr.f32.gmra.mxu0 %v2297
        %v2574 = vpop.f32.mrf.mxu0
        %v2575 = vadd.f32 0.0, %v2574
        %v2576 = vpop.f32.mrf.mxu0
        %2577 = vmatprep.mubr.f32.mxu0 0.0
        %2578 = vmatmul.mubr.f32.gmra.mxu0 %v2300
        %v2579 = vpop.f32.mrf.mxu0
        %v2580 = vadd.f32 0.0, %v2579
        %v2581 = vpop.f32.mrf.mxu0
        %2582 = vmatprep.mubr.f32.mxu0 0.0
        %2583 = vmatmul.mubr.f32.gmra.mxu0 %v2303
        %v2584 = vpop.f32.mrf.mxu0
        %v2585 = vadd.f32 0.0, %v2584
        %v2586 = vpop.f32.mrf.mxu0
        %2587 = vmatprep.mubr.f32.mxu0 0.0
        %2588 = vmatmul.mubr.f32.gmra.mxu0 %v2306
        %v2589 = vpop.f32.mrf.mxu0
        %v2590 = vadd.f32 0.0, %v2589
        %v2591 = vpop.f32.mrf.mxu0
        %2592 = vmatprep.mubr.f32.mxu0 0.0
        %2593 = vmatmul.mubr.f32.gmra.mxu0 %v2309
        %v2594 = vpop.f32.mrf.mxu0
        %v2595 = vadd.f32 0.0, %v2594
        %v2596 = vpop.f32.mrf.mxu0
        %2597 = vmatprep.mubr.f32.mxu0 0.0
        %2598 = vmatmul.mubr.f32.gmra.mxu0 %v2312
        %v2599 = vpop.f32.mrf.mxu0
        %v2600 = vadd.f32 0.0, %v2599
        %v2601 = vpop.f32.mrf.mxu0
        %2602 = vmatprep.mubr.f32.mxu0 0.0
        %2603 = vmatmul.mubr.f32.gmra.mxu0 %v2315
        %v2604 = vpop.f32.mrf.mxu0
        %v2605 = vadd.f32 0.0, %v2604
        %v2606 = vpop.f32.mrf.mxu0
        %2607 = vmatprep.mubr.f32.mxu0 0.0
        %2608 = vmatmul.mubr.f32.gmra.mxu0 %v2318
        %v2609 = vpop.f32.mrf.mxu0
        %v2610 = vadd.f32 0.0, %v2609
        %v2611 = vpop.f32.mrf.mxu0
        %2612 = vmatprep.mubr.f32.mxu0 0.0
        %2613 = vmatmul.mubr.f32.gmra.mxu0 %v2321
        %v2614 = vpop.f32.mrf.mxu0
        %v2615 = vadd.f32 0.0, %v2614
        %v2616 = vpop.f32.mrf.mxu0
        %2617 = vmatprep.mubr.f32.mxu0 0.0
        %2618 = vmatmul.mubr.f32.gmra.mxu0 %v2324
        %v2619 = vpop.f32.mrf.mxu0
        %v2620 = vadd.f32 0.0, %v2619
        %v2621 = vpop.f32.mrf.mxu0
        %2622 = vmatprep.mubr.f32.mxu0 0.0
        %2623 = vmatmul.mubr.f32.gmra.mxu0 %v2327
        %v2624 = vpop.f32.mrf.mxu0
        %v2625 = vadd.f32 0.0, %v2624
        %v2626 = vpop.f32.mrf.mxu0
        %2627 = vmatprep.mubr.f32.mxu0 0.0
        %2628 = vmatmul.mubr.f32.gmra.mxu0 %v2330
        %v2629 = vpop.f32.mrf.mxu0
        %v2630 = vadd.f32 0.0, %v2629
        %v2631 = vpop.f32.mrf.mxu0
        %2632 = vmatprep.mubr.f32.mxu0 0.0
        %2633 = vmatmul.mubr.f32.gmra.mxu0 %v2333
        %v2634 = vpop.f32.mrf.mxu0
        %v2635 = vadd.f32 0.0, %v2634
        %v2636 = vpop.f32.mrf.mxu0
        %2637 = vmatprep.mubr.f32.mxu0 0.0
        %2638 = vmatmul.mubr.f32.gmra.mxu0 %v2336
        %v2639 = vpop.f32.mrf.mxu0
        %v2640 = vadd.f32 0.0, %v2639
        %v2641 = vpop.f32.mrf.mxu0
        %2642 = vdwg.mxu0
        %v2644 = vsel %vm1176, %v2044, 0
        %v2647 = vsel %vm1176, %v2045, 0
        %v2650 = vsel %vm1176, %v2046, 0
        %v2653 = vsel %vm1176, %v2047, 0
        %v2656 = vsel %vm1176, %v2048, 0
        %v2659 = vsel %vm1176, %v2049, 0
        %v2662 = vsel %vm1176, %v2050, 0
        %v2665 = vsel %vm1176, %v2051, 0
        %v2668 = vsel %vm1176, %v2052, 0
        %v2671 = vsel %vm1176, %v2053, 0
        %v2674 = vsel %vm1176, %v2054, 0
        %v2677 = vsel %vm1176, %v2055, 0
        %v2680 = vsel %vm1176, %v2056, 0
        %v2683 = vsel %vm1176, %v2057, 0
        %v2686 = vsel %vm1176, %v2058, 0
        %v2689 = vsel %vm1176, %v2059, 0
        %v2692 = vsel %vm1176, %v2060, 0
        %v2695 = vsel %vm1176, %v2061, 0
        %v2698 = vsel %vm1176, %v2062, 0
        %v2701 = vsel %vm1176, %v2063, 0
        %v2704 = vsel %vm1176, %v2064, 0
        %v2707 = vsel %vm1176, %v2065, 0
        %v2710 = vsel %vm1176, %v2066, 0
        %v2713 = vsel %vm1176, %v2067, 0
        %v2716 = vsel %vm1176, %v2068, 0
        %v2719 = vsel %vm1176, %v2069, 0
        %v2722 = vsel %vm1176, %v2070, 0
        %v2725 = vsel %vm1176, %v2071, 0
        %v2728 = vsel %vm1176, %v2072, 0
        %v2731 = vsel %vm1176, %v2073, 0
        %v2734 = vsel %vm1176, %v2074, 0
        %v2737 = vsel %vm1176, %v2075, 0
        %v2740 = vsel %vm1176, %v2076, 0
        %v2743 = vsel %vm1176, %v2077, 0
        %v2746 = vsel %vm1176, %v2078, 0
        %v2749 = vsel %vm1176, %v2079, 0
        %v2752 = vsel %vm1176, %v2080, 0
        %v2755 = vsel %vm1176, %v2081, 0
        %v2758 = vsel %vm1176, %v2082, 0
        %v2761 = vsel %vm1176, %v2083, 0
        %v2764 = vsel %vm1176, %v2084, 0
        %v2767 = vsel %vm1176, %v2085, 0
        %v2770 = vsel %vm1176, %v2086, 0
        %v2773 = vsel %vm1176, %v2087, 0
        %v2776 = vsel %vm1176, %v2088, 0
        %v2779 = vsel %vm1176, %v2089, 0
        %v2782 = vsel %vm1176, %v2090, 0
        %v2785 = vsel %vm1176, %v2091, 0
        %2787 = vmatprep.subr.mxu0 0.0
        %2788 = vmatpush1.msra.mxu0 0.0
        %2789 = vmatprep.subr.mxu0 0.0
        %2790 = vmatpush1.msra.mxu0 0.0
        %2791 = vmatprep.subr.mxu0 0.0
        %2792 = vmatpush1.msra.mxu0 0.0
        %2793 = vmatprep.subr.mxu0 0.0
        %2794 = vmatpush1.msra.mxu0 0.0
        %2795 = vmatprep.subr.mxu0 0.0
        %2796 = vmatpush1.msra.mxu0 0.0
        %2797 = vmatprep.subr.mxu0 0.0
        %2798 = vmatpush1.msra.mxu0 0.0
        %2799 = vmatprep.subr.mxu0 0.0
        %2800 = vmatpush1.msra.mxu0 0.0
        %2801 = vmatprep.subr.mxu0 0.0
        %2802 = vmatpush1.msra.mxu0 0.0
        %2803 = vmatprep.subr.mxu0 0.0
        %2804 = vmatpush1.msra.mxu0 0.0
        %2805 = vmatprep.subr.mxu0 0.0
        %2806 = vmatpush1.msra.mxu0 0.0
        %2807 = vmatprep.subr.mxu0 0.0
        %2808 = vmatpush1.msra.mxu0 0.0
        %2809 = vmatprep.subr.mxu0 0.0
        %2810 = vmatpush1.msra.mxu0 0.0
        %2811 = vmatprep.subr.mxu0 0.0
        %2812 = vmatpush1.msra.mxu0 0.0
        %2813 = vmatprep.subr.mxu0 0.0
        %2814 = vmatpush1.msra.mxu0 0.0
        %2815 = vmatprep.subr.mxu0 0.0
        %2816 = vmatpush1.msra.mxu0 %v2190
        %2817 = vmatprep.subr.mxu0 0.0
        %2818 = vmatpush1.msra.mxu0 %v2189
        %2819 = vmatprep.subr.mxu0 0.0
        %2820 = vmatpush2.msra.mxu0 0.0
        %2821 = vmatprep.subr.mxu0 0.0
        %2822 = vmatpush2.msra.mxu0 0.0
        %2823 = vmatprep.subr.mxu0 0.0
        %2824 = vmatpush2.msra.mxu0 0.0
        %2825 = vmatprep.subr.mxu0 0.0
        %2826 = vmatpush2.msra.mxu0 0.0
        %2827 = vmatprep.subr.mxu0 0.0
        %2828 = vmatpush2.msra.mxu0 0.0
        %2829 = vmatprep.subr.mxu0 0.0
        %2830 = vmatpush2.msra.mxu0 0.0
        %2831 = vmatprep.subr.mxu0 0.0
        %2832 = vmatpush2.msra.mxu0 0.0
        %2833 = vmatprep.subr.mxu0 0.0
        %2834 = vmatpush2.msra.mxu0 0.0
        %2835 = vmatprep.subr.mxu0 0.0
        %2836 = vmatpush2.msra.mxu0 0.0
        %2837 = vmatprep.subr.mxu0 0.0
        %2838 = vmatpush2.msra.mxu0 0.0
        %2839 = vmatprep.subr.mxu0 0.0
        %2840 = vmatpush2.msra.mxu0 0.0
        %2841 = vmatprep.subr.mxu0 0.0
        %2842 = vmatpush2.msra.mxu0 0.0
        %2843 = vmatprep.subr.mxu0 0.0
        %2844 = vmatpush2.msra.mxu0 0.0
        %2845 = vmatprep.subr.mxu0 0.0
        %2846 = vmatpush2.msra.mxu0 0.0
        %2847 = vmatprep.subr.mxu0 0.0
        %2848 = vmatpush2.msra.mxu0 0.0
        %2849 = vmatprep.subr.mxu0 0.0
        %2850 = vmatpush2.msra.mxu0 0.0
        %2851 = vmatprep.mubr.f32.mxu0 0.0
        %2852 = vmatmul.mubr.f32.gmra.mxu0 %v2644
        %v2853 = vpop.f32.mrf.mxu0
        %v2854 = vadd.f32 %v2405, %v2853
        %v2855 = vpop.f32.mrf.mxu0
        %2856 = vmatprep.mubr.f32.mxu0 0.0
        %2857 = vmatmul.mubr.f32.gmra.mxu0 %v2647
        %v2858 = vpop.f32.mrf.mxu0
        %v2859 = vadd.f32 %v2410, %v2858
        %v2860 = vpop.f32.mrf.mxu0
        %2861 = vmatprep.mubr.f32.mxu0 0.0
        %2862 = vmatmul.mubr.f32.gmra.mxu0 %v2650
        %v2863 = vpop.f32.mrf.mxu0
        %v2864 = vadd.f32 %v2415, %v2863
        %v2865 = vpop.f32.mrf.mxu0
        %2866 = vmatprep.mubr.f32.mxu0 0.0
        %2867 = vmatmul.mubr.f32.gmra.mxu0 %v2653
        %v2868 = vpop.f32.mrf.mxu0
        %v2869 = vadd.f32 %v2420, %v2868
        %v2870 = vpop.f32.mrf.mxu0
        %2871 = vmatprep.mubr.f32.mxu0 0.0
        %2872 = vmatmul.mubr.f32.gmra.mxu0 %v2656
        %v2873 = vpop.f32.mrf.mxu0
        %v2874 = vadd.f32 %v2425, %v2873
        %v2875 = vpop.f32.mrf.mxu0
        %2876 = vmatprep.mubr.f32.mxu0 0.0
        %2877 = vmatmul.mubr.f32.gmra.mxu0 %v2659
        %v2878 = vpop.f32.mrf.mxu0
        %v2879 = vadd.f32 %v2430, %v2878
        %v2880 = vpop.f32.mrf.mxu0
        %2881 = vmatprep.mubr.f32.mxu0 0.0
        %2882 = vmatmul.mubr.f32.gmra.mxu0 %v2662
        %v2883 = vpop.f32.mrf.mxu0
        %v2884 = vadd.f32 %v2435, %v2883
        %v2885 = vpop.f32.mrf.mxu0
        %2886 = vmatprep.mubr.f32.mxu0 0.0
        %2887 = vmatmul.mubr.f32.gmra.mxu0 %v2665
        %v2888 = vpop.f32.mrf.mxu0
        %v2889 = vadd.f32 %v2440, %v2888
        %v2890 = vpop.f32.mrf.mxu0
        %2891 = vmatprep.mubr.f32.mxu0 0.0
        %2892 = vmatmul.mubr.f32.gmra.mxu0 %v2668
        %v2893 = vpop.f32.mrf.mxu0
        %v2894 = vadd.f32 %v2445, %v2893
        %v2895 = vpop.f32.mrf.mxu0
        %2896 = vmatprep.mubr.f32.mxu0 0.0
        %2897 = vmatmul.mubr.f32.gmra.mxu0 %v2671
        %v2898 = vpop.f32.mrf.mxu0
        %v2899 = vadd.f32 %v2450, %v2898
        %v2900 = vpop.f32.mrf.mxu0
        %2901 = vmatprep.mubr.f32.mxu0 0.0
        %2902 = vmatmul.mubr.f32.gmra.mxu0 %v2674
        %v2903 = vpop.f32.mrf.mxu0
        %v2904 = vadd.f32 %v2455, %v2903
        %v2905 = vpop.f32.mrf.mxu0
        %2906 = vmatprep.mubr.f32.mxu0 0.0
        %2907 = vmatmul.mubr.f32.gmra.mxu0 %v2677
        %v2908 = vpop.f32.mrf.mxu0
        %v2909 = vadd.f32 %v2460, %v2908
        %v2910 = vpop.f32.mrf.mxu0
        %2911 = vmatprep.mubr.f32.mxu0 0.0
        %2912 = vmatmul.mubr.f32.gmra.mxu0 %v2680
        %v2913 = vpop.f32.mrf.mxu0
        %v2914 = vadd.f32 %v2465, %v2913
        %v2915 = vpop.f32.mrf.mxu0
        %2916 = vmatprep.mubr.f32.mxu0 0.0
        %2917 = vmatmul.mubr.f32.gmra.mxu0 %v2683
        %v2918 = vpop.f32.mrf.mxu0
        %v2919 = vadd.f32 %v2470, %v2918
        %v2920 = vpop.f32.mrf.mxu0
        %2921 = vmatprep.mubr.f32.mxu0 0.0
        %2922 = vmatmul.mubr.f32.gmra.mxu0 %v2686
        %v2923 = vpop.f32.mrf.mxu0
        %v2924 = vadd.f32 %v2475, %v2923
        %v2925 = vpop.f32.mrf.mxu0
        %2926 = vmatprep.mubr.f32.mxu0 0.0
        %2927 = vmatmul.mubr.f32.gmra.mxu0 %v2689
        %v2928 = vpop.f32.mrf.mxu0
        %v2929 = vadd.f32 %v2480, %v2928
        %v2930 = vpop.f32.mrf.mxu0
        %2931 = vmatprep.mubr.f32.mxu0 0.0
        %2932 = vmatmul.mubr.f32.gmra.mxu0 %v2692
        %v2933 = vpop.f32.mrf.mxu0
        %v2934 = vadd.f32 %v2485, %v2933
        %v2935 = vpop.f32.mrf.mxu0
        %2936 = vmatprep.mubr.f32.mxu0 0.0
        %2937 = vmatmul.mubr.f32.gmra.mxu0 %v2695
        %v2938 = vpop.f32.mrf.mxu0
        %v2939 = vadd.f32 %v2490, %v2938
        %v2940 = vpop.f32.mrf.mxu0
        %2941 = vmatprep.mubr.f32.mxu0 0.0
        %2942 = vmatmul.mubr.f32.gmra.mxu0 %v2698
        %v2943 = vpop.f32.mrf.mxu0
        %v2944 = vadd.f32 %v2495, %v2943
        %v2945 = vpop.f32.mrf.mxu0
        %2946 = vmatprep.mubr.f32.mxu0 0.0
        %2947 = vmatmul.mubr.f32.gmra.mxu0 %v2701
        %v2948 = vpop.f32.mrf.mxu0
        %v2949 = vadd.f32 %v2500, %v2948
        %v2950 = vpop.f32.mrf.mxu0
        %2951 = vmatprep.mubr.f32.mxu0 0.0
        %2952 = vmatmul.mubr.f32.gmra.mxu0 %v2704
        %v2953 = vpop.f32.mrf.mxu0
        %v2954 = vadd.f32 %v2505, %v2953
        %v2955 = vpop.f32.mrf.mxu0
        %2956 = vmatprep.mubr.f32.mxu0 0.0
        %2957 = vmatmul.mubr.f32.gmra.mxu0 %v2707
        %v2958 = vpop.f32.mrf.mxu0
        %v2959 = vadd.f32 %v2510, %v2958
        %v2960 = vpop.f32.mrf.mxu0
        %2961 = vmatprep.mubr.f32.mxu0 0.0
        %2962 = vmatmul.mubr.f32.gmra.mxu0 %v2710
        %v2963 = vpop.f32.mrf.mxu0
        %v2964 = vadd.f32 %v2515, %v2963
        %v2965 = vpop.f32.mrf.mxu0
        %2966 = vmatprep.mubr.f32.mxu0 0.0
        %2967 = vmatmul.mubr.f32.gmra.mxu0 %v2713
        %v2968 = vpop.f32.mrf.mxu0
        %v2969 = vadd.f32 %v2520, %v2968
        %v2970 = vpop.f32.mrf.mxu0
        %2971 = vmatprep.mubr.f32.mxu0 0.0
        %2972 = vmatmul.mubr.f32.gmra.mxu0 %v2716
        %v2973 = vpop.f32.mrf.mxu0
        %v2974 = vadd.f32 %v2525, %v2973
        %v2975 = vpop.f32.mrf.mxu0
        %2976 = vmatprep.mubr.f32.mxu0 0.0
        %2977 = vmatmul.mubr.f32.gmra.mxu0 %v2719
        %v2978 = vpop.f32.mrf.mxu0
        %v2979 = vadd.f32 %v2530, %v2978
        %v2980 = vpop.f32.mrf.mxu0
        %2981 = vmatprep.mubr.f32.mxu0 0.0
        %2982 = vmatmul.mubr.f32.gmra.mxu0 %v2722
        %v2983 = vpop.f32.mrf.mxu0
        %v2984 = vadd.f32 %v2535, %v2983
        %v2985 = vpop.f32.mrf.mxu0
        %2986 = vmatprep.mubr.f32.mxu0 0.0
        %2987 = vmatmul.mubr.f32.gmra.mxu0 %v2725
        %v2988 = vpop.f32.mrf.mxu0
        %v2989 = vadd.f32 %v2540, %v2988
        %v2990 = vpop.f32.mrf.mxu0
        %2991 = vmatprep.mubr.f32.mxu0 0.0
        %2992 = vmatmul.mubr.f32.gmra.mxu0 %v2728
        %v2993 = vpop.f32.mrf.mxu0
        %v2994 = vadd.f32 %v2545, %v2993
        %v2995 = vpop.f32.mrf.mxu0
        %2996 = vmatprep.mubr.f32.mxu0 0.0
        %2997 = vmatmul.mubr.f32.gmra.mxu0 %v2731
        %v2998 = vpop.f32.mrf.mxu0
        %v2999 = vadd.f32 %v2550, %v2998
        %v3000 = vpop.f32.mrf.mxu0
        %3001 = vmatprep.mubr.f32.mxu0 0.0
        %3002 = vmatmul.mubr.f32.gmra.mxu0 %v2734
        %v3003 = vpop.f32.mrf.mxu0
        %v3004 = vadd.f32 %v2555, %v3003
        %v3005 = vpop.f32.mrf.mxu0
        %3006 = vmatprep.mubr.f32.mxu0 0.0
        %3007 = vmatmul.mubr.f32.gmra.mxu0 %v2737
        %v3008 = vpop.f32.mrf.mxu0
        %v3009 = vadd.f32 %v2560, %v3008
        %v3010 = vpop.f32.mrf.mxu0
        %3011 = vmatprep.mubr.f32.mxu0 0.0
        %3012 = vmatmul.mubr.f32.gmra.mxu0 %v2740
        %v3013 = vpop.f32.mrf.mxu0
        %v3014 = vadd.f32 %v2565, %v3013
        %v3015 = vpop.f32.mrf.mxu0
        %3016 = vmatprep.mubr.f32.mxu0 0.0
        %3017 = vmatmul.mubr.f32.gmra.mxu0 %v2743
        %v3018 = vpop.f32.mrf.mxu0
        %v3019 = vadd.f32 %v2570, %v3018
        %v3020 = vpop.f32.mrf.mxu0
        %3021 = vmatprep.mubr.f32.mxu0 0.0
        %3022 = vmatmul.mubr.f32.gmra.mxu0 %v2746
        %v3023 = vpop.f32.mrf.mxu0
        %v3024 = vadd.f32 %v2575, %v3023
        %v3025 = vpop.f32.mrf.mxu0
        %3026 = vmatprep.mubr.f32.mxu0 0.0
        %3027 = vmatmul.mubr.f32.gmra.mxu0 %v2749
        %v3028 = vpop.f32.mrf.mxu0
        %v3029 = vadd.f32 %v2580, %v3028
        %v3030 = vpop.f32.mrf.mxu0
        %3031 = vmatprep.mubr.f32.mxu0 0.0
        %3032 = vmatmul.mubr.f32.gmra.mxu0 %v2752
        %v3033 = vpop.f32.mrf.mxu0
        %v3034 = vadd.f32 %v2585, %v3033
        %v3035 = vpop.f32.mrf.mxu0
        %3036 = vmatprep.mubr.f32.mxu0 0.0
        %3037 = vmatmul.mubr.f32.gmra.mxu0 %v2755
        %v3038 = vpop.f32.mrf.mxu0
        %v3039 = vadd.f32 %v2590, %v3038
        %v3040 = vpop.f32.mrf.mxu0
        %3041 = vmatprep.mubr.f32.mxu0 0.0
        %3042 = vmatmul.mubr.f32.gmra.mxu0 %v2758
        %v3043 = vpop.f32.mrf.mxu0
        %v3044 = vadd.f32 %v2595, %v3043
        %v3045 = vpop.f32.mrf.mxu0
        %3046 = vmatprep.mubr.f32.mxu0 0.0
        %3047 = vmatmul.mubr.f32.gmra.mxu0 %v2761
        %v3048 = vpop.f32.mrf.mxu0
        %v3049 = vadd.f32 %v2600, %v3048
        %v3050 = vpop.f32.mrf.mxu0
        %3051 = vmatprep.mubr.f32.mxu0 0.0
        %3052 = vmatmul.mubr.f32.gmra.mxu0 %v2764
        %v3053 = vpop.f32.mrf.mxu0
        %v3054 = vadd.f32 %v2605, %v3053
        %v3055 = vpop.f32.mrf.mxu0
        %3056 = vmatprep.mubr.f32.mxu0 0.0
        %3057 = vmatmul.mubr.f32.gmra.mxu0 %v2767
        %v3058 = vpop.f32.mrf.mxu0
        %v3059 = vadd.f32 %v2610, %v3058
        %v3060 = vpop.f32.mrf.mxu0
        %3061 = vmatprep.mubr.f32.mxu0 0.0
        %3062 = vmatmul.mubr.f32.gmra.mxu0 %v2770
        %v3063 = vpop.f32.mrf.mxu0
        %v3064 = vadd.f32 %v2615, %v3063
        %v3065 = vpop.f32.mrf.mxu0
        %3066 = vmatprep.mubr.f32.mxu0 0.0
        %3067 = vmatmul.mubr.f32.gmra.mxu0 %v2773
        %v3068 = vpop.f32.mrf.mxu0
        %v3069 = vadd.f32 %v2620, %v3068
        %v3070 = vpop.f32.mrf.mxu0
        %3071 = vmatprep.mubr.f32.mxu0 0.0
        %3072 = vmatmul.mubr.f32.gmra.mxu0 %v2776
        %v3073 = vpop.f32.mrf.mxu0
        %v3074 = vadd.f32 %v2625, %v3073
        %v3075 = vpop.f32.mrf.mxu0
        %3076 = vmatprep.mubr.f32.mxu0 0.0
        %3077 = vmatmul.mubr.f32.gmra.mxu0 %v2779
        %v3078 = vpop.f32.mrf.mxu0
        %v3079 = vadd.f32 %v2630, %v3078
        %v3080 = vpop.f32.mrf.mxu0
        %3081 = vmatprep.mubr.f32.mxu0 0.0
        %3082 = vmatmul.mubr.f32.gmra.mxu0 %v2782
        %v3083 = vpop.f32.mrf.mxu0
        %v3084 = vadd.f32 %v2635, %v3083
        %v3085 = vpop.f32.mrf.mxu0
        %3086 = vmatprep.mubr.f32.mxu0 0.0
        %3087 = vmatmul.mubr.f32.gmra.mxu0 %v2785
        %v3088 = vpop.f32.mrf.mxu0
        %v3089 = vadd.f32 %v2640, %v3088
        %v3090 = vpop.f32.mrf.mxu0
        %3091 = vdwg.mxu0
        %s3092 = scalar_lea.vmem [#allocation9], 96
        %v3093 = vld [vmem:[%s3092] sm:$0xff]
        %v3094 = vld [vmem:[%s3092 + $0x8] sm:$0xff]
        %v3096 = vsel %vm1176, %v2141, 0
        %v3099 = vsel %vm1176, %v2142, 0
        %v3102 = vsel %vm1176, %v2143, 0
        %v3105 = vsel %vm1176, %v2144, 0
        %v3108 = vsel %vm1176, %v2145, 0
        %v3111 = vsel %vm1176, %v2146, 0
        %v3114 = vsel %vm1176, %v2147, 0
        %v3117 = vsel %vm1176, %v2148, 0
        %v3120 = vsel %vm1176, %v2149, 0
        %v3123 = vsel %vm1176, %v2150, 0
        %v3126 = vsel %vm1176, %v2151, 0
        %v3129 = vsel %vm1176, %v2152, 0
        %v3132 = vsel %vm1176, %v2153, 0
        %v3135 = vsel %vm1176, %v2154, 0
        %v3138 = vsel %vm1176, %v2155, 0
        %v3141 = vsel %vm1176, %v2156, 0
        %v3144 = vsel %vm1176, %v2157, 0
        %v3147 = vsel %vm1176, %v2158, 0
        %v3150 = vsel %vm1176, %v2159, 0
        %v3153 = vsel %vm1176, %v2160, 0
        %v3156 = vsel %vm1176, %v2161, 0
        %v3159 = vsel %vm1176, %v2162, 0
        %v3162 = vsel %vm1176, %v2163, 0
        %v3165 = vsel %vm1176, %v2164, 0
        %v3168 = vsel %vm1176, %v2165, 0
        %v3171 = vsel %vm1176, %v2166, 0
        %v3174 = vsel %vm1176, %v2167, 0
        %v3177 = vsel %vm1176, %v2168, 0
        %v3180 = vsel %vm1176, %v2169, 0
        %v3183 = vsel %vm1176, %v2170, 0
        %v3186 = vsel %vm1176, %v2171, 0
        %v3189 = vsel %vm1176, %v2172, 0
        %v3192 = vsel %vm1176, %v2173, 0
        %v3195 = vsel %vm1176, %v2174, 0
        %v3198 = vsel %vm1176, %v2175, 0
        %v3201 = vsel %vm1176, %v2176, 0
        %v3204 = vsel %vm1176, %v2177, 0
        %v3207 = vsel %vm1176, %v2178, 0
        %v3210 = vsel %vm1176, %v2179, 0
        %v3213 = vsel %vm1176, %v2180, 0
        %v3216 = vsel %vm1176, %v2181, 0
        %v3219 = vsel %vm1176, %v2182, 0
        %v3222 = vsel %vm1176, %v2183, 0
        %v3225 = vsel %vm1176, %v2184, 0
        %v3228 = vsel %vm1176, %v2185, 0
        %v3231 = vsel %vm1176, %v2186, 0
        %v3234 = vsel %vm1176, %v2187, 0
        %v3237 = vsel %vm1176, %v2188, 0
        %3239 = vmatprep.subr.mxu0 0.0
        %3240 = vmatpush1.msra.mxu0 0.0
        %3241 = vmatprep.subr.mxu0 0.0
        %3242 = vmatpush1.msra.mxu0 0.0
        %3243 = vmatprep.subr.mxu0 0.0
        %3244 = vmatpush1.msra.mxu0 0.0
        %3245 = vmatprep.subr.mxu0 0.0
        %3246 = vmatpush1.msra.mxu0 0.0
        %3247 = vmatprep.subr.mxu0 0.0
        %3248 = vmatpush1.msra.mxu0 0.0
        %3249 = vmatprep.subr.mxu0 0.0
        %3250 = vmatpush1.msra.mxu0 0.0
        %3251 = vmatprep.subr.mxu0 0.0
        %3252 = vmatpush1.msra.mxu0 0.0
        %3253 = vmatprep.subr.mxu0 0.0
        %3254 = vmatpush1.msra.mxu0 0.0
        %3255 = vmatprep.subr.mxu0 0.0
        %3256 = vmatpush1.msra.mxu0 0.0
        %3257 = vmatprep.subr.mxu0 0.0
        %3258 = vmatpush1.msra.mxu0 0.0
        %3259 = vmatprep.subr.mxu0 0.0
        %3260 = vmatpush1.msra.mxu0 0.0
        %3261 = vmatprep.subr.mxu0 0.0
        %3262 = vmatpush1.msra.mxu0 0.0
        %3263 = vmatprep.subr.mxu0 0.0
        %3264 = vmatpush1.msra.mxu0 0.0
        %3265 = vmatprep.subr.mxu0 0.0
        %3266 = vmatpush1.msra.mxu0 0.0
        %3267 = vmatprep.subr.mxu0 0.0
        %3268 = vmatpush1.msra.mxu0 %v3094
        %3269 = vmatprep.subr.mxu0 0.0
        %3270 = vmatpush1.msra.mxu0 %v3093
        %3271 = vmatprep.subr.mxu0 0.0
        %3272 = vmatpush2.msra.mxu0 0.0
        %3273 = vmatprep.subr.mxu0 0.0
        %3274 = vmatpush2.msra.mxu0 0.0
        %3275 = vmatprep.subr.mxu0 0.0
        %3276 = vmatpush2.msra.mxu0 0.0
        %3277 = vmatprep.subr.mxu0 0.0
        %3278 = vmatpush2.msra.mxu0 0.0
        %3279 = vmatprep.subr.mxu0 0.0
        %3280 = vmatpush2.msra.mxu0 0.0
        %3281 = vmatprep.subr.mxu0 0.0
        %3282 = vmatpush2.msra.mxu0 0.0
        %3283 = vmatprep.subr.mxu0 0.0
        %3284 = vmatpush2.msra.mxu0 0.0
        %3285 = vmatprep.subr.mxu0 0.0
        %3286 = vmatpush2.msra.mxu0 0.0
        %3287 = vmatprep.subr.mxu0 0.0
        %3288 = vmatpush2.msra.mxu0 0.0
        %3289 = vmatprep.subr.mxu0 0.0
        %3290 = vmatpush2.msra.mxu0 0.0
        %3291 = vmatprep.subr.mxu0 0.0
        %3292 = vmatpush2.msra.mxu0 0.0
        %3293 = vmatprep.subr.mxu0 0.0
        %3294 = vmatpush2.msra.mxu0 0.0
        %3295 = vmatprep.subr.mxu0 0.0
        %3296 = vmatpush2.msra.mxu0 0.0
        %3297 = vmatprep.subr.mxu0 0.0
        %3298 = vmatpush2.msra.mxu0 0.0
        %3299 = vmatprep.subr.mxu0 0.0
        %3300 = vmatpush2.msra.mxu0 0.0
        %3301 = vmatprep.subr.mxu0 0.0
        %3302 = vmatpush2.msra.mxu0 0.0
        %3303 = vmatprep.mubr.f32.mxu0 0.0
        %3304 = vmatmul.mubr.f32.gmra.mxu0 %v3096
        %v3305 = vpop.f32.mrf.mxu0
        %v3306 = vadd.f32 0.0, %v3305
        %v3307 = vpop.f32.mrf.mxu0
        %3308 = vmatprep.mubr.f32.mxu0 0.0
        %3309 = vmatmul.mubr.f32.gmra.mxu0 %v3099
        %v3310 = vpop.f32.mrf.mxu0
        %v3311 = vadd.f32 0.0, %v3310
        %v3312 = vpop.f32.mrf.mxu0
        %3313 = vmatprep.mubr.f32.mxu0 0.0
        %3314 = vmatmul.mubr.f32.gmra.mxu0 %v3102
        %v3315 = vpop.f32.mrf.mxu0
        %v3316 = vadd.f32 0.0, %v3315
        %v3317 = vpop.f32.mrf.mxu0
        %3318 = vmatprep.mubr.f32.mxu0 0.0
        %3319 = vmatmul.mubr.f32.gmra.mxu0 %v3105
        %v3320 = vpop.f32.mrf.mxu0
        %v3321 = vadd.f32 0.0, %v3320
        %v3322 = vpop.f32.mrf.mxu0
        %3323 = vmatprep.mubr.f32.mxu0 0.0
        %3324 = vmatmul.mubr.f32.gmra.mxu0 %v3108
        %v3325 = vpop.f32.mrf.mxu0
        %v3326 = vadd.f32 0.0, %v3325
        %v3327 = vpop.f32.mrf.mxu0
        %3328 = vmatprep.mubr.f32.mxu0 0.0
        %3329 = vmatmul.mubr.f32.gmra.mxu0 %v3111
        %v3330 = vpop.f32.mrf.mxu0
        %v3331 = vadd.f32 0.0, %v3330
        %v3332 = vpop.f32.mrf.mxu0
        %3333 = vmatprep.mubr.f32.mxu0 0.0
        %3334 = vmatmul.mubr.f32.gmra.mxu0 %v3114
        %v3335 = vpop.f32.mrf.mxu0
        %v3336 = vadd.f32 0.0, %v3335
        %v3337 = vpop.f32.mrf.mxu0
        %3338 = vmatprep.mubr.f32.mxu0 0.0
        %3339 = vmatmul.mubr.f32.gmra.mxu0 %v3117
        %v3340 = vpop.f32.mrf.mxu0
        %v3341 = vadd.f32 0.0, %v3340
        %v3342 = vpop.f32.mrf.mxu0
        %3343 = vmatprep.mubr.f32.mxu0 0.0
        %3344 = vmatmul.mubr.f32.gmra.mxu0 %v3120
        %v3345 = vpop.f32.mrf.mxu0
        %v3346 = vadd.f32 0.0, %v3345
        %v3347 = vpop.f32.mrf.mxu0
        %3348 = vmatprep.mubr.f32.mxu0 0.0
        %3349 = vmatmul.mubr.f32.gmra.mxu0 %v3123
        %v3350 = vpop.f32.mrf.mxu0
        %v3351 = vadd.f32 0.0, %v3350
        %v3352 = vpop.f32.mrf.mxu0
        %3353 = vmatprep.mubr.f32.mxu0 0.0
        %3354 = vmatmul.mubr.f32.gmra.mxu0 %v3126
        %v3355 = vpop.f32.mrf.mxu0
        %v3356 = vadd.f32 0.0, %v3355
        %v3357 = vpop.f32.mrf.mxu0
        %3358 = vmatprep.mubr.f32.mxu0 0.0
        %3359 = vmatmul.mubr.f32.gmra.mxu0 %v3129
        %v3360 = vpop.f32.mrf.mxu0
        %v3361 = vadd.f32 0.0, %v3360
        %v3362 = vpop.f32.mrf.mxu0
        %3363 = vmatprep.mubr.f32.mxu0 0.0
        %3364 = vmatmul.mubr.f32.gmra.mxu0 %v3132
        %v3365 = vpop.f32.mrf.mxu0
        %v3366 = vadd.f32 0.0, %v3365
        %v3367 = vpop.f32.mrf.mxu0
        %3368 = vmatprep.mubr.f32.mxu0 0.0
        %3369 = vmatmul.mubr.f32.gmra.mxu0 %v3135
        %v3370 = vpop.f32.mrf.mxu0
        %v3371 = vadd.f32 0.0, %v3370
        %v3372 = vpop.f32.mrf.mxu0
        %3373 = vmatprep.mubr.f32.mxu0 0.0
        %3374 = vmatmul.mubr.f32.gmra.mxu0 %v3138
        %v3375 = vpop.f32.mrf.mxu0
        %v3376 = vadd.f32 0.0, %v3375
        %v3377 = vpop.f32.mrf.mxu0
        %3378 = vmatprep.mubr.f32.mxu0 0.0
        %3379 = vmatmul.mubr.f32.gmra.mxu0 %v3141
        %v3380 = vpop.f32.mrf.mxu0
        %v3381 = vadd.f32 0.0, %v3380
        %v3382 = vpop.f32.mrf.mxu0
        %3383 = vmatprep.mubr.f32.mxu0 0.0
        %3384 = vmatmul.mubr.f32.gmra.mxu0 %v3144
        %v3385 = vpop.f32.mrf.mxu0
        %v3386 = vadd.f32 0.0, %v3385
        %v3387 = vpop.f32.mrf.mxu0
        %3388 = vmatprep.mubr.f32.mxu0 0.0
        %3389 = vmatmul.mubr.f32.gmra.mxu0 %v3147
        %v3390 = vpop.f32.mrf.mxu0
        %v3391 = vadd.f32 0.0, %v3390
        %v3392 = vpop.f32.mrf.mxu0
        %3393 = vmatprep.mubr.f32.mxu0 0.0
        %3394 = vmatmul.mubr.f32.gmra.mxu0 %v3150
        %v3395 = vpop.f32.mrf.mxu0
        %v3396 = vadd.f32 0.0, %v3395
        %v3397 = vpop.f32.mrf.mxu0
        %3398 = vmatprep.mubr.f32.mxu0 0.0
        %3399 = vmatmul.mubr.f32.gmra.mxu0 %v3153
        %v3400 = vpop.f32.mrf.mxu0
        %v3401 = vadd.f32 0.0, %v3400
        %v3402 = vpop.f32.mrf.mxu0
        %3403 = vmatprep.mubr.f32.mxu0 0.0
        %3404 = vmatmul.mubr.f32.gmra.mxu0 %v3156
        %v3405 = vpop.f32.mrf.mxu0
        %v3406 = vadd.f32 0.0, %v3405
        %v3407 = vpop.f32.mrf.mxu0
        %3408 = vmatprep.mubr.f32.mxu0 0.0
        %3409 = vmatmul.mubr.f32.gmra.mxu0 %v3159
        %v3410 = vpop.f32.mrf.mxu0
        %v3411 = vadd.f32 0.0, %v3410
        %v3412 = vpop.f32.mrf.mxu0
        %3413 = vmatprep.mubr.f32.mxu0 0.0
        %3414 = vmatmul.mubr.f32.gmra.mxu0 %v3162
        %v3415 = vpop.f32.mrf.mxu0
        %v3416 = vadd.f32 0.0, %v3415
        %v3417 = vpop.f32.mrf.mxu0
        %3418 = vmatprep.mubr.f32.mxu0 0.0
        %3419 = vmatmul.mubr.f32.gmra.mxu0 %v3165
        %v3420 = vpop.f32.mrf.mxu0
        %v3421 = vadd.f32 0.0, %v3420
        %v3422 = vpop.f32.mrf.mxu0
        %3423 = vmatprep.mubr.f32.mxu0 0.0
        %3424 = vmatmul.mubr.f32.gmra.mxu0 %v3168
        %v3425 = vpop.f32.mrf.mxu0
        %v3426 = vadd.f32 0.0, %v3425
        %v3427 = vpop.f32.mrf.mxu0
        %3428 = vmatprep.mubr.f32.mxu0 0.0
        %3429 = vmatmul.mubr.f32.gmra.mxu0 %v3171
        %v3430 = vpop.f32.mrf.mxu0
        %v3431 = vadd.f32 0.0, %v3430
        %v3432 = vpop.f32.mrf.mxu0
        %3433 = vmatprep.mubr.f32.mxu0 0.0
        %3434 = vmatmul.mubr.f32.gmra.mxu0 %v3174
        %v3435 = vpop.f32.mrf.mxu0
        %v3436 = vadd.f32 0.0, %v3435
        %v3437 = vpop.f32.mrf.mxu0
        %3438 = vmatprep.mubr.f32.mxu0 0.0
        %3439 = vmatmul.mubr.f32.gmra.mxu0 %v3177
        %v3440 = vpop.f32.mrf.mxu0
        %v3441 = vadd.f32 0.0, %v3440
        %v3442 = vpop.f32.mrf.mxu0
        %3443 = vmatprep.mubr.f32.mxu0 0.0
        %3444 = vmatmul.mubr.f32.gmra.mxu0 %v3180
        %v3445 = vpop.f32.mrf.mxu0
        %v3446 = vadd.f32 0.0, %v3445
        %v3447 = vpop.f32.mrf.mxu0
        %3448 = vmatprep.mubr.f32.mxu0 0.0
        %3449 = vmatmul.mubr.f32.gmra.mxu0 %v3183
        %v3450 = vpop.f32.mrf.mxu0
        %v3451 = vadd.f32 0.0, %v3450
        %v3452 = vpop.f32.mrf.mxu0
        %3453 = vmatprep.mubr.f32.mxu0 0.0
        %3454 = vmatmul.mubr.f32.gmra.mxu0 %v3186
        %v3455 = vpop.f32.mrf.mxu0
        %v3456 = vadd.f32 0.0, %v3455
        %v3457 = vpop.f32.mrf.mxu0
        %3458 = vmatprep.mubr.f32.mxu0 0.0
        %3459 = vmatmul.mubr.f32.gmra.mxu0 %v3189
        %v3460 = vpop.f32.mrf.mxu0
        %v3461 = vadd.f32 0.0, %v3460
        %v3462 = vpop.f32.mrf.mxu0
        %3463 = vmatprep.mubr.f32.mxu0 0.0
        %3464 = vmatmul.mubr.f32.gmra.mxu0 %v3192
        %v3465 = vpop.f32.mrf.mxu0
        %v3466 = vadd.f32 0.0, %v3465
        %v3467 = vpop.f32.mrf.mxu0
        %3468 = vmatprep.mubr.f32.mxu0 0.0
        %3469 = vmatmul.mubr.f32.gmra.mxu0 %v3195
        %v3470 = vpop.f32.mrf.mxu0
        %v3471 = vadd.f32 0.0, %v3470
        %v3472 = vpop.f32.mrf.mxu0
        %3473 = vmatprep.mubr.f32.mxu0 0.0
        %3474 = vmatmul.mubr.f32.gmra.mxu0 %v3198
        %v3475 = vpop.f32.mrf.mxu0
        %v3476 = vadd.f32 0.0, %v3475
        %v3477 = vpop.f32.mrf.mxu0
        %3478 = vmatprep.mubr.f32.mxu0 0.0
        %3479 = vmatmul.mubr.f32.gmra.mxu0 %v3201
        %v3480 = vpop.f32.mrf.mxu0
        %v3481 = vadd.f32 0.0, %v3480
        %v3482 = vpop.f32.mrf.mxu0
        %3483 = vmatprep.mubr.f32.mxu0 0.0
        %3484 = vmatmul.mubr.f32.gmra.mxu0 %v3204
        %v3485 = vpop.f32.mrf.mxu0
        %v3486 = vadd.f32 0.0, %v3485
        %v3487 = vpop.f32.mrf.mxu0
        %3488 = vmatprep.mubr.f32.mxu0 0.0
        %3489 = vmatmul.mubr.f32.gmra.mxu0 %v3207
        %v3490 = vpop.f32.mrf.mxu0
        %v3491 = vadd.f32 0.0, %v3490
        %v3492 = vpop.f32.mrf.mxu0
        %3493 = vmatprep.mubr.f32.mxu0 0.0
        %3494 = vmatmul.mubr.f32.gmra.mxu0 %v3210
        %v3495 = vpop.f32.mrf.mxu0
        %v3496 = vadd.f32 0.0, %v3495
        %v3497 = vpop.f32.mrf.mxu0
        %3498 = vmatprep.mubr.f32.mxu0 0.0
        %3499 = vmatmul.mubr.f32.gmra.mxu0 %v3213
        %v3500 = vpop.f32.mrf.mxu0
        %v3501 = vadd.f32 0.0, %v3500
        %v3502 = vpop.f32.mrf.mxu0
        %3503 = vmatprep.mubr.f32.mxu0 0.0
        %3504 = vmatmul.mubr.f32.gmra.mxu0 %v3216
        %v3505 = vpop.f32.mrf.mxu0
        %v3506 = vadd.f32 0.0, %v3505
        %v3507 = vpop.f32.mrf.mxu0
        %3508 = vmatprep.mubr.f32.mxu0 0.0
        %3509 = vmatmul.mubr.f32.gmra.mxu0 %v3219
        %v3510 = vpop.f32.mrf.mxu0
        %v3511 = vadd.f32 0.0, %v3510
        %v3512 = vpop.f32.mrf.mxu0
        %3513 = vmatprep.mubr.f32.mxu0 0.0
        %3514 = vmatmul.mubr.f32.gmra.mxu0 %v3222
        %v3515 = vpop.f32.mrf.mxu0
        %v3516 = vadd.f32 0.0, %v3515
        %v3517 = vpop.f32.mrf.mxu0
        %3518 = vmatprep.mubr.f32.mxu0 0.0
        %3519 = vmatmul.mubr.f32.gmra.mxu0 %v3225
        %v3520 = vpop.f32.mrf.mxu0
        %v3521 = vadd.f32 0.0, %v3520
        %v3522 = vpop.f32.mrf.mxu0
        %3523 = vmatprep.mubr.f32.mxu0 0.0
        %3524 = vmatmul.mubr.f32.gmra.mxu0 %v3228
        %v3525 = vpop.f32.mrf.mxu0
        %v3526 = vadd.f32 0.0, %v3525
        %v3527 = vpop.f32.mrf.mxu0
        %3528 = vmatprep.mubr.f32.mxu0 0.0
        %3529 = vmatmul.mubr.f32.gmra.mxu0 %v3231
        %v3530 = vpop.f32.mrf.mxu0
        %v3531 = vadd.f32 0.0, %v3530
        %v3532 = vpop.f32.mrf.mxu0
        %3533 = vmatprep.mubr.f32.mxu0 0.0
        %3534 = vmatmul.mubr.f32.gmra.mxu0 %v3234
        %v3535 = vpop.f32.mrf.mxu0
        %v3536 = vadd.f32 0.0, %v3535
        %v3537 = vpop.f32.mrf.mxu0
        %3538 = vmatprep.mubr.f32.mxu0 0.0
        %3539 = vmatmul.mubr.f32.gmra.mxu0 %v3237
        %v3540 = vpop.f32.mrf.mxu0
        %v3541 = vadd.f32 0.0, %v3540
        %v3542 = vpop.f32.mrf.mxu0
        %3543 = vdwg.mxu0
        %v3544 = vadd.f32 %v2854, %v3306
        %v3545 = vadd.f32 %v2859, %v3311
        %v3546 = vadd.f32 %v2864, %v3316
        %v3547 = vadd.f32 %v2869, %v3321
        %v3548 = vadd.f32 %v2874, %v3326
        %v3549 = vadd.f32 %v2879, %v3331
        %v3550 = vadd.f32 %v2884, %v3336
        %v3551 = vadd.f32 %v2889, %v3341
        %v3552 = vadd.f32 %v2894, %v3346
        %v3553 = vadd.f32 %v2899, %v3351
        %v3554 = vadd.f32 %v2904, %v3356
        %v3555 = vadd.f32 %v2909, %v3361
        %v3556 = vadd.f32 %v2914, %v3366
        %v3557 = vadd.f32 %v2919, %v3371
        %v3558 = vadd.f32 %v2924, %v3376
        %v3559 = vadd.f32 %v2929, %v3381
        %v3560 = vadd.f32 %v2934, %v3386
        %v3561 = vadd.f32 %v2939, %v3391
        %v3562 = vadd.f32 %v2944, %v3396
        %v3563 = vadd.f32 %v2949, %v3401
        %v3564 = vadd.f32 %v2954, %v3406
        %v3565 = vadd.f32 %v2959, %v3411
        %v3566 = vadd.f32 %v2964, %v3416
        %v3567 = vadd.f32 %v2969, %v3421
        %v3568 = vadd.f32 %v2974, %v3426
        %v3569 = vadd.f32 %v2979, %v3431
        %v3570 = vadd.f32 %v2984, %v3436
        %v3571 = vadd.f32 %v2989, %v3441
        %v3572 = vadd.f32 %v2994, %v3446
        %v3573 = vadd.f32 %v2999, %v3451
        %v3574 = vadd.f32 %v3004, %v3456
        %v3575 = vadd.f32 %v3009, %v3461
        %v3576 = vadd.f32 %v3014, %v3466
        %v3577 = vadd.f32 %v3019, %v3471
        %v3578 = vadd.f32 %v3024, %v3476
        %v3579 = vadd.f32 %v3029, %v3481
        %v3580 = vadd.f32 %v3034, %v3486
        %v3581 = vadd.f32 %v3039, %v3491
        %v3582 = vadd.f32 %v3044, %v3496
        %v3583 = vadd.f32 %v3049, %v3501
        %v3584 = vadd.f32 %v3054, %v3506
        %v3585 = vadd.f32 %v3059, %v3511
        %v3586 = vadd.f32 %v3064, %v3516
        %v3587 = vadd.f32 %v3069, %v3521
        %v3588 = vadd.f32 %v3074, %v3526
        %v3589 = vadd.f32 %v3079, %v3531
        %v3590 = vadd.f32 %v3084, %v3536
        %v3591 = vadd.f32 %v3089, %v3541
        %v3608 = vrot.slane %v3546, 7
        %v3609 = vrot.slane %v3549, 7
        %v3610 = vrot.slane %v3552, 7
        %v3611 = vrot.slane %v3555, 7
        %v3612 = vrot.slane %v3558, 7
        %v3613 = vrot.slane %v3561, 7
        %v3614 = vrot.slane %v3564, 7
        %v3615 = vrot.slane %v3567, 7
        %v3616 = vrot.slane %v3570, 7
        %v3617 = vrot.slane %v3573, 7
        %v3618 = vrot.slane %v3576, 7
        %v3619 = vrot.slane %v3579, 7
        %v3620 = vrot.slane %v3582, 7
        %v3621 = vrot.slane %v3585, 7
        %v3622 = vrot.slane %v3588, 7
        %v3623 = vrot.slane %v3591, 7
        %vm3672 = vcmask 1040384
        %v3673 = vrot.slane %v3544, 7
        %v3674 = vrot.slane %v3545, 7
        %v3675 = vsel %vm3672, %v3673, %v3674
        %v3676 = vrot.slane %v3547, 7
        %v3677 = vrot.slane %v3548, 7
        %v3678 = vsel %vm3672, %v3676, %v3677
        %v3679 = vrot.slane %v3550, 7
        %v3680 = vrot.slane %v3551, 7
        %v3681 = vsel %vm3672, %v3679, %v3680
        %v3682 = vrot.slane %v3553, 7
        %v3683 = vrot.slane %v3554, 7
        %v3684 = vsel %vm3672, %v3682, %v3683
        %v3685 = vrot.slane %v3556, 7
        %v3686 = vrot.slane %v3557, 7
        %v3687 = vsel %vm3672, %v3685, %v3686
        %v3688 = vrot.slane %v3559, 7
        %v3689 = vrot.slane %v3560, 7
        %v3690 = vsel %vm3672, %v3688, %v3689
        %v3691 = vrot.slane %v3562, 7
        %v3692 = vrot.slane %v3563, 7
        %v3693 = vsel %vm3672, %v3691, %v3692
        %v3694 = vrot.slane %v3565, 7
        %v3695 = vrot.slane %v3566, 7
        %v3696 = vsel %vm3672, %v3694, %v3695
        %v3697 = vrot.slane %v3568, 7
        %v3698 = vrot.slane %v3569, 7
        %v3699 = vsel %vm3672, %v3697, %v3698
        %v3700 = vrot.slane %v3571, 7
        %v3701 = vrot.slane %v3572, 7
        %v3702 = vsel %vm3672, %v3700, %v3701
        %v3703 = vrot.slane %v3574, 7
        %v3704 = vrot.slane %v3575, 7
        %v3705 = vsel %vm3672, %v3703, %v3704
        %v3706 = vrot.slane %v3577, 7
        %v3707 = vrot.slane %v3578, 7
        %v3708 = vsel %vm3672, %v3706, %v3707
        %v3709 = vrot.slane %v3580, 7
        %v3710 = vrot.slane %v3581, 7
        %v3711 = vsel %vm3672, %v3709, %v3710
        %v3712 = vrot.slane %v3583, 7
        %v3713 = vrot.slane %v3584, 7
        %v3714 = vsel %vm3672, %v3712, %v3713
        %v3715 = vrot.slane %v3586, 7
        %v3716 = vrot.slane %v3587, 7
        %v3717 = vsel %vm3672, %v3715, %v3716
        %v3718 = vrot.slane %v3589, 7
        %v3719 = vrot.slane %v3590, 7
        %v3720 = vsel %vm3672, %v3718, %v3719
        %v3753 = vsel %vm3672, %v3608, %v3673
        %v3754 = vsel %vm3672, %v3609, %v3676
        %v3755 = vsel %vm3672, %v3610, %v3679
        %v3756 = vsel %vm3672, %v3611, %v3682
        %v3757 = vsel %vm3672, %v3612, %v3685
        %v3758 = vsel %vm3672, %v3613, %v3688
        %v3759 = vsel %vm3672, %v3614, %v3691
        %v3760 = vsel %vm3672, %v3615, %v3694
        %v3761 = vsel %vm3672, %v3616, %v3697
        %v3762 = vsel %vm3672, %v3617, %v3700
        %v3763 = vsel %vm3672, %v3618, %v3703
        %v3764 = vsel %vm3672, %v3619, %v3706
        %v3765 = vsel %vm3672, %v3620, %v3709
        %v3766 = vsel %vm3672, %v3621, %v3712
        %v3767 = vsel %vm3672, %v3622, %v3715
        %v3768 = vsel %vm3672, %v3623, %v3718
        %v3769 = vadd.f32 %v3753, 0.0
        %v3770 = vadd.f32 %v3675, 0.0
        %v3771 = vadd.f32 %v3754, 0.0
        %v3772 = vadd.f32 %v3678, 0.0
        %v3773 = vadd.f32 %v3755, 0.0
        %v3774 = vadd.f32 %v3681, 0.0
        %v3775 = vadd.f32 %v3756, 0.0
        %v3776 = vadd.f32 %v3684, 0.0
        %v3777 = vadd.f32 %v3757, 0.0
        %v3778 = vadd.f32 %v3687, 0.0
        %v3779 = vadd.f32 %v3758, 0.0
        %v3780 = vadd.f32 %v3690, 0.0
        %v3781 = vadd.f32 %v3759, 0.0
        %v3782 = vadd.f32 %v3693, 0.0
        %v3783 = vadd.f32 %v3760, 0.0
        %v3784 = vadd.f32 %v3696, 0.0
        %v3785 = vadd.f32 %v3761, 0.0
        %v3786 = vadd.f32 %v3699, 0.0
        %v3787 = vadd.f32 %v3762, 0.0
        %v3788 = vadd.f32 %v3702, 0.0
        %v3789 = vadd.f32 %v3763, 0.0
        %v3790 = vadd.f32 %v3705, 0.0
        %v3791 = vadd.f32 %v3764, 0.0
        %v3792 = vadd.f32 %v3708, 0.0
        %v3793 = vadd.f32 %v3765, 0.0
        %v3794 = vadd.f32 %v3711, 0.0
        %v3795 = vadd.f32 %v3766, 0.0
        %v3796 = vadd.f32 %v3714, 0.0
        %v3797 = vadd.f32 %v3767, 0.0
        %v3798 = vadd.f32 %v3717, 0.0
        %v3799 = vadd.f32 %v3768, 0.0
        %v3800 = vadd.f32 %v3720, 0.0
        %s3801 = scalar_lea.vmem [#allocation9], 16
        %v3802 = vld [vmem:[%s3801] sm:$0xff]
        %v3803 = vld [vmem:[%s3801 + $0x8] sm:$0xff]
        %s3804 = scalar_lea.vmem [#allocation9], 64
        %v3805 = vld [vmem:[%s3804] sm:$0xff]
        %v3806 = vld [vmem:[%s3804 + $0x8] sm:$0xff]
        %3807 = vmatprep.subr.mxu0 0.0
        %3808 = vmatpush1.msra.mxu0 0.0
        %3809 = vmatprep.subr.mxu0 0.0
        %3810 = vmatpush1.msra.mxu0 0.0
        %3811 = vmatprep.subr.mxu0 0.0
        %3812 = vmatpush1.msra.mxu0 0.0
        %3813 = vmatprep.subr.mxu0 0.0
        %3814 = vmatpush1.msra.mxu0 0.0
        %3815 = vmatprep.subr.mxu0 0.0
        %3816 = vmatpush1.msra.mxu0 0.0
        %3817 = vmatprep.subr.mxu0 0.0
        %3818 = vmatpush1.msra.mxu0 0.0
        %3819 = vmatprep.subr.mxu0 0.0
        %3820 = vmatpush1.msra.mxu0 0.0
        %3821 = vmatprep.subr.mxu0 0.0
        %3822 = vmatpush1.msra.mxu0 0.0
        %3823 = vmatprep.subr.mxu0 0.0
        %3824 = vmatpush1.msra.mxu0 0.0
        %3825 = vmatprep.subr.mxu0 0.0
        %3826 = vmatpush1.msra.mxu0 0.0
        %3827 = vmatprep.subr.mxu0 0.0
        %3828 = vmatpush1.msra.mxu0 0.0
        %3829 = vmatprep.subr.mxu0 0.0
        %3830 = vmatpush1.msra.mxu0 0.0
        %3831 = vmatprep.subr.mxu0 0.0
        %3832 = vmatpush1.msra.mxu0 0.0
        %3833 = vmatprep.subr.mxu0 0.0
        %3834 = vmatpush1.msra.mxu0 0.0
        %3835 = vmatprep.subr.mxu0 0.0
        %3836 = vmatpush1.msra.mxu0 %v3806
        %3837 = vmatprep.subr.mxu0 0.0
        %3838 = vmatpush1.msra.mxu0 %v3805
        %3839 = vmatprep.subr.mxu0 0.0
        %3840 = vmatpush2.msra.mxu0 0.0
        %3841 = vmatprep.subr.mxu0 0.0
        %3842 = vmatpush2.msra.mxu0 0.0
        %3843 = vmatprep.subr.mxu0 0.0
        %3844 = vmatpush2.msra.mxu0 0.0
        %3845 = vmatprep.subr.mxu0 0.0
        %3846 = vmatpush2.msra.mxu0 0.0
        %3847 = vmatprep.subr.mxu0 0.0
        %3848 = vmatpush2.msra.mxu0 0.0
        %3849 = vmatprep.subr.mxu0 0.0
        %3850 = vmatpush2.msra.mxu0 0.0
        %3851 = vmatprep.subr.mxu0 0.0
        %3852 = vmatpush2.msra.mxu0 0.0
        %3853 = vmatprep.subr.mxu0 0.0
        %3854 = vmatpush2.msra.mxu0 0.0
        %3855 = vmatprep.subr.mxu0 0.0
        %3856 = vmatpush2.msra.mxu0 0.0
        %3857 = vmatprep.subr.mxu0 0.0
        %3858 = vmatpush2.msra.mxu0 0.0
        %3859 = vmatprep.subr.mxu0 0.0
        %3860 = vmatpush2.msra.mxu0 0.0
        %3861 = vmatprep.subr.mxu0 0.0
        %3862 = vmatpush2.msra.mxu0 0.0
        %3863 = vmatprep.subr.mxu0 0.0
        %3864 = vmatpush2.msra.mxu0 0.0
        %3865 = vmatprep.subr.mxu0 0.0
        %3866 = vmatpush2.msra.mxu0 0.0
        %3867 = vmatprep.subr.mxu0 0.0
        %3868 = vmatpush2.msra.mxu0 0.0
        %3869 = vmatprep.subr.mxu0 0.0
        %3870 = vmatpush2.msra.mxu0 0.0
        %3871 = vmatprep.mubr.f32.mxu0 0.0
        %3872 = vmatmul.mubr.f32.gmra.mxu0 %v2195
        %v3873 = vpop.f32.mrf.mxu0
        %v3874 = vadd.f32 0.0, %v3873
        %v3875 = vpop.f32.mrf.mxu0
        %3876 = vmatprep.mubr.f32.mxu0 0.0
        %3877 = vmatmul.mubr.f32.gmra.mxu0 %v2198
        %v3878 = vpop.f32.mrf.mxu0
        %v3879 = vadd.f32 0.0, %v3878
        %v3880 = vpop.f32.mrf.mxu0
        %3881 = vmatprep.mubr.f32.mxu0 0.0
        %3882 = vmatmul.mubr.f32.gmra.mxu0 %v2201
        %v3883 = vpop.f32.mrf.mxu0
        %v3884 = vpop.f32.mrf.mxu0
        %3885 = vmatprep.mubr.f32.mxu0 0.0
        %3886 = vmatmul.mubr.f32.gmra.mxu0 %v2204
        %v3887 = vpop.f32.mrf.mxu0
        %v3888 = vadd.f32 0.0, %v3887
        %v3889 = vpop.f32.mrf.mxu0
        %3890 = vmatprep.mubr.f32.mxu0 0.0
        %3891 = vmatmul.mubr.f32.gmra.mxu0 %v2207
        %v3892 = vpop.f32.mrf.mxu0
        %v3893 = vadd.f32 0.0, %v3892
        %v3894 = vpop.f32.mrf.mxu0
        %3895 = vmatprep.mubr.f32.mxu0 0.0
        %3896 = vmatmul.mubr.f32.gmra.mxu0 %v2210
        %v3897 = vpop.f32.mrf.mxu0
        %v3898 = vpop.f32.mrf.mxu0
        %3899 = vmatprep.mubr.f32.mxu0 0.0
        %3900 = vmatmul.mubr.f32.gmra.mxu0 %v2213
        %v3901 = vpop.f32.mrf.mxu0
        %v3902 = vadd.f32 0.0, %v3901
        %v3903 = vpop.f32.mrf.mxu0
        %3904 = vmatprep.mubr.f32.mxu0 0.0
        %3905 = vmatmul.mubr.f32.gmra.mxu0 %v2216
        %v3906 = vpop.f32.mrf.mxu0
        %v3907 = vadd.f32 0.0, %v3906
        %v3908 = vpop.f32.mrf.mxu0
        %3909 = vmatprep.mubr.f32.mxu0 0.0
        %3910 = vmatmul.mubr.f32.gmra.mxu0 %v2219
        %v3911 = vpop.f32.mrf.mxu0
        %v3912 = vpop.f32.mrf.mxu0
        %3913 = vmatprep.mubr.f32.mxu0 0.0
        %3914 = vmatmul.mubr.f32.gmra.mxu0 %v2222
        %v3915 = vpop.f32.mrf.mxu0
        %v3916 = vadd.f32 0.0, %v3915
        %v3917 = vpop.f32.mrf.mxu0
        %3918 = vmatprep.mubr.f32.mxu0 0.0
        %3919 = vmatmul.mubr.f32.gmra.mxu0 %v2225
        %v3920 = vpop.f32.mrf.mxu0
        %v3921 = vadd.f32 0.0, %v3920
        %v3922 = vpop.f32.mrf.mxu0
        %3923 = vmatprep.mubr.f32.mxu0 0.0
        %3924 = vmatmul.mubr.f32.gmra.mxu0 %v2228
        %v3925 = vpop.f32.mrf.mxu0
        %v3926 = vpop.f32.mrf.mxu0
        %3927 = vmatprep.mubr.f32.mxu0 0.0
        %3928 = vmatmul.mubr.f32.gmra.mxu0 %v2231
        %v3929 = vpop.f32.mrf.mxu0
        %v3930 = vadd.f32 0.0, %v3929
        %v3931 = vpop.f32.mrf.mxu0
        %3932 = vmatprep.mubr.f32.mxu0 0.0
        %3933 = vmatmul.mubr.f32.gmra.mxu0 %v2234
        %v3934 = vpop.f32.mrf.mxu0
        %v3935 = vadd.f32 0.0, %v3934
        %v3936 = vpop.f32.mrf.mxu0
        %3937 = vmatprep.mubr.f32.mxu0 0.0
        %3938 = vmatmul.mubr.f32.gmra.mxu0 %v2237
        %v3939 = vpop.f32.mrf.mxu0
        %v3940 = vpop.f32.mrf.mxu0
        %3941 = vmatprep.mubr.f32.mxu0 0.0
        %3942 = vmatmul.mubr.f32.gmra.mxu0 %v2240
        %v3943 = vpop.f32.mrf.mxu0
        %v3944 = vadd.f32 0.0, %v3943
        %v3945 = vpop.f32.mrf.mxu0
        %3946 = vmatprep.mubr.f32.mxu0 0.0
        %3947 = vmatmul.mubr.f32.gmra.mxu0 %v2243
        %v3948 = vpop.f32.mrf.mxu0
        %v3949 = vadd.f32 0.0, %v3948
        %v3950 = vpop.f32.mrf.mxu0
        %3951 = vmatprep.mubr.f32.mxu0 0.0
        %3952 = vmatmul.mubr.f32.gmra.mxu0 %v2246
        %v3953 = vpop.f32.mrf.mxu0
        %v3954 = vpop.f32.mrf.mxu0
        %3955 = vmatprep.mubr.f32.mxu0 0.0
        %3956 = vmatmul.mubr.f32.gmra.mxu0 %v2249
        %v3957 = vpop.f32.mrf.mxu0
        %v3958 = vadd.f32 0.0, %v3957
        %v3959 = vpop.f32.mrf.mxu0
        %3960 = vmatprep.mubr.f32.mxu0 0.0
        %3961 = vmatmul.mubr.f32.gmra.mxu0 %v2252
        %v3962 = vpop.f32.mrf.mxu0
        %v3963 = vadd.f32 0.0, %v3962
        %v3964 = vpop.f32.mrf.mxu0
        %3965 = vmatprep.mubr.f32.mxu0 0.0
        %3966 = vmatmul.mubr.f32.gmra.mxu0 %v2255
        %v3967 = vpop.f32.mrf.mxu0
        %v3968 = vpop.f32.mrf.mxu0
        %3969 = vmatprep.mubr.f32.mxu0 0.0
        %3970 = vmatmul.mubr.f32.gmra.mxu0 %v2258
        %v3971 = vpop.f32.mrf.mxu0
        %v3972 = vadd.f32 0.0, %v3971
        %v3973 = vpop.f32.mrf.mxu0
        %3974 = vmatprep.mubr.f32.mxu0 0.0
        %3975 = vmatmul.mubr.f32.gmra.mxu0 %v2261
        %v3976 = vpop.f32.mrf.mxu0
        %v3977 = vadd.f32 0.0, %v3976
        %v3978 = vpop.f32.mrf.mxu0
        %3979 = vmatprep.mubr.f32.mxu0 0.0
        %3980 = vmatmul.mubr.f32.gmra.mxu0 %v2264
        %v3981 = vpop.f32.mrf.mxu0
        %v3982 = vpop.f32.mrf.mxu0
        %3983 = vmatprep.mubr.f32.mxu0 0.0
        %3984 = vmatmul.mubr.f32.gmra.mxu0 %v2267
        %v3985 = vpop.f32.mrf.mxu0
        %v3986 = vadd.f32 0.0, %v3985
        %v3987 = vpop.f32.mrf.mxu0
        %3988 = vmatprep.mubr.f32.mxu0 0.0
        %3989 = vmatmul.mubr.f32.gmra.mxu0 %v2270
        %v3990 = vpop.f32.mrf.mxu0
        %v3991 = vadd.f32 0.0, %v3990
        %v3992 = vpop.f32.mrf.mxu0
        %3993 = vmatprep.mubr.f32.mxu0 0.0
        %3994 = vmatmul.mubr.f32.gmra.mxu0 %v2273
        %v3995 = vpop.f32.mrf.mxu0
        %v3996 = vpop.f32.mrf.mxu0
        %3997 = vmatprep.mubr.f32.mxu0 0.0
        %3998 = vmatmul.mubr.f32.gmra.mxu0 %v2276
        %v3999 = vpop.f32.mrf.mxu0
        %v4000 = vadd.f32 0.0, %v3999
        %v4001 = vpop.f32.mrf.mxu0
        %4002 = vmatprep.mubr.f32.mxu0 0.0
        %4003 = vmatmul.mubr.f32.gmra.mxu0 %v2279
        %v4004 = vpop.f32.mrf.mxu0
        %v4005 = vadd.f32 0.0, %v4004
        %v4006 = vpop.f32.mrf.mxu0
        %4007 = vmatprep.mubr.f32.mxu0 0.0
        %4008 = vmatmul.mubr.f32.gmra.mxu0 %v2282
        %v4009 = vpop.f32.mrf.mxu0
        %v4010 = vpop.f32.mrf.mxu0
        %4011 = vmatprep.mubr.f32.mxu0 0.0
        %4012 = vmatmul.mubr.f32.gmra.mxu0 %v2285
        %v4013 = vpop.f32.mrf.mxu0
        %v4014 = vadd.f32 0.0, %v4013
        %v4015 = vpop.f32.mrf.mxu0
        %4016 = vmatprep.mubr.f32.mxu0 0.0
        %4017 = vmatmul.mubr.f32.gmra.mxu0 %v2288
        %v4018 = vpop.f32.mrf.mxu0
        %v4019 = vadd.f32 0.0, %v4018
        %v4020 = vpop.f32.mrf.mxu0
        %4021 = vmatprep.mubr.f32.mxu0 0.0
        %4022 = vmatmul.mubr.f32.gmra.mxu0 %v2291
        %v4023 = vpop.f32.mrf.mxu0
        %v4024 = vpop.f32.mrf.mxu0
        %4025 = vmatprep.mubr.f32.mxu0 0.0
        %4026 = vmatmul.mubr.f32.gmra.mxu0 %v2294
        %v4027 = vpop.f32.mrf.mxu0
        %v4028 = vadd.f32 0.0, %v4027
        %v4029 = vpop.f32.mrf.mxu0
        %4030 = vmatprep.mubr.f32.mxu0 0.0
        %4031 = vmatmul.mubr.f32.gmra.mxu0 %v2297
        %v4032 = vpop.f32.mrf.mxu0
        %v4033 = vadd.f32 0.0, %v4032
        %v4034 = vpop.f32.mrf.mxu0
        %4035 = vmatprep.mubr.f32.mxu0 0.0
        %4036 = vmatmul.mubr.f32.gmra.mxu0 %v2300
        %v4037 = vpop.f32.mrf.mxu0
        %v4038 = vpop.f32.mrf.mxu0
        %4039 = vmatprep.mubr.f32.mxu0 0.0
        %4040 = vmatmul.mubr.f32.gmra.mxu0 %v2303
        %v4041 = vpop.f32.mrf.mxu0
        %v4042 = vadd.f32 0.0, %v4041
        %v4043 = vpop.f32.mrf.mxu0
        %4044 = vmatprep.mubr.f32.mxu0 0.0
        %4045 = vmatmul.mubr.f32.gmra.mxu0 %v2306
        %v4046 = vpop.f32.mrf.mxu0
        %v4047 = vadd.f32 0.0, %v4046
        %v4048 = vpop.f32.mrf.mxu0
        %4049 = vmatprep.mubr.f32.mxu0 0.0
        %4050 = vmatmul.mubr.f32.gmra.mxu0 %v2309
        %v4051 = vpop.f32.mrf.mxu0
        %v4052 = vpop.f32.mrf.mxu0
        %4053 = vmatprep.mubr.f32.mxu0 0.0
        %4054 = vmatmul.mubr.f32.gmra.mxu0 %v2312
        %v4055 = vpop.f32.mrf.mxu0
        %v4056 = vadd.f32 0.0, %v4055
        %v4057 = vpop.f32.mrf.mxu0
        %4058 = vmatprep.mubr.f32.mxu0 0.0
        %4059 = vmatmul.mubr.f32.gmra.mxu0 %v2315
        %v4060 = vpop.f32.mrf.mxu0
        %v4061 = vadd.f32 0.0, %v4060
        %v4062 = vpop.f32.mrf.mxu0
        %4063 = vmatprep.mubr.f32.mxu0 0.0
        %4064 = vmatmul.mubr.f32.gmra.mxu0 %v2318
        %v4065 = vpop.f32.mrf.mxu0
        %v4066 = vpop.f32.mrf.mxu0
        %4067 = vmatprep.mubr.f32.mxu0 0.0
        %4068 = vmatmul.mubr.f32.gmra.mxu0 %v2321
        %v4069 = vpop.f32.mrf.mxu0
        %v4070 = vadd.f32 0.0, %v4069
        %v4071 = vpop.f32.mrf.mxu0
        %4072 = vmatprep.mubr.f32.mxu0 0.0
        %4073 = vmatmul.mubr.f32.gmra.mxu0 %v2324
        %v4074 = vpop.f32.mrf.mxu0
        %v4075 = vadd.f32 0.0, %v4074
        %v4076 = vpop.f32.mrf.mxu0
        %4077 = vmatprep.mubr.f32.mxu0 0.0
        %4078 = vmatmul.mubr.f32.gmra.mxu0 %v2327
        %v4079 = vpop.f32.mrf.mxu0
        %v4080 = vpop.f32.mrf.mxu0
        %4081 = vmatprep.mubr.f32.mxu0 0.0
        %4082 = vmatmul.mubr.f32.gmra.mxu0 %v2330
        %v4083 = vpop.f32.mrf.mxu0
        %v4084 = vadd.f32 0.0, %v4083
        %v4085 = vpop.f32.mrf.mxu0
        %4086 = vmatprep.mubr.f32.mxu0 0.0
        %4087 = vmatmul.mubr.f32.gmra.mxu0 %v2333
        %v4088 = vpop.f32.mrf.mxu0
        %v4089 = vadd.f32 0.0, %v4088
        %v4090 = vpop.f32.mrf.mxu0
        %4091 = vmatprep.mubr.f32.mxu0 0.0
        %4092 = vmatmul.mubr.f32.gmra.mxu0 %v2336
        %v4093 = vpop.f32.mrf.mxu0
        %v4094 = vpop.f32.mrf.mxu0
        %4095 = vdwg.mxu0
        %4096 = vmatprep.subr.mxu0 0.0
        %4097 = vmatpush1.msra.mxu0 0.0
        %4098 = vmatprep.subr.mxu0 0.0
        %4099 = vmatpush1.msra.mxu0 0.0
        %4100 = vmatprep.subr.mxu0 0.0
        %4101 = vmatpush1.msra.mxu0 0.0
        %4102 = vmatprep.subr.mxu0 0.0
        %4103 = vmatpush1.msra.mxu0 0.0
        %4104 = vmatprep.subr.mxu0 0.0
        %4105 = vmatpush1.msra.mxu0 0.0
        %4106 = vmatprep.subr.mxu0 0.0
        %4107 = vmatpush1.msra.mxu0 0.0
        %4108 = vmatprep.subr.mxu0 0.0
        %4109 = vmatpush1.msra.mxu0 0.0
        %4110 = vmatprep.subr.mxu0 0.0
        %4111 = vmatpush1.msra.mxu0 0.0
        %4112 = vmatprep.subr.mxu0 0.0
        %4113 = vmatpush1.msra.mxu0 0.0
        %4114 = vmatprep.subr.mxu0 0.0
        %4115 = vmatpush1.msra.mxu0 0.0
        %4116 = vmatprep.subr.mxu0 0.0
        %4117 = vmatpush1.msra.mxu0 0.0
        %4118 = vmatprep.subr.mxu0 0.0
        %4119 = vmatpush1.msra.mxu0 0.0
        %4120 = vmatprep.subr.mxu0 0.0
        %4121 = vmatpush1.msra.mxu0 0.0
        %4122 = vmatprep.subr.mxu0 0.0
        %4123 = vmatpush1.msra.mxu0 0.0
        %4124 = vmatprep.subr.mxu0 0.0
        %4125 = vmatpush1.msra.mxu0 %v3803
        %4126 = vmatprep.subr.mxu0 0.0
        %4127 = vmatpush1.msra.mxu0 %v3802
        %4128 = vmatprep.subr.mxu0 0.0
        %4129 = vmatpush2.msra.mxu0 0.0
        %4130 = vmatprep.subr.mxu0 0.0
        %4131 = vmatpush2.msra.mxu0 0.0
        %4132 = vmatprep.subr.mxu0 0.0
        %4133 = vmatpush2.msra.mxu0 0.0
        %4134 = vmatprep.subr.mxu0 0.0
        %4135 = vmatpush2.msra.mxu0 0.0
        %4136 = vmatprep.subr.mxu0 0.0
        %4137 = vmatpush2.msra.mxu0 0.0
        %4138 = vmatprep.subr.mxu0 0.0
        %4139 = vmatpush2.msra.mxu0 0.0
        %4140 = vmatprep.subr.mxu0 0.0
        %4141 = vmatpush2.msra.mxu0 0.0
        %4142 = vmatprep.subr.mxu0 0.0
        %4143 = vmatpush2.msra.mxu0 0.0
        %4144 = vmatprep.subr.mxu0 0.0
        %4145 = vmatpush2.msra.mxu0 0.0
        %4146 = vmatprep.subr.mxu0 0.0
        %4147 = vmatpush2.msra.mxu0 0.0
        %4148 = vmatprep.subr.mxu0 0.0
        %4149 = vmatpush2.msra.mxu0 0.0
        %4150 = vmatprep.subr.mxu0 0.0
        %4151 = vmatpush2.msra.mxu0 0.0
        %4152 = vmatprep.subr.mxu0 0.0
        %4153 = vmatpush2.msra.mxu0 0.0
        %4154 = vmatprep.subr.mxu0 0.0
        %4155 = vmatpush2.msra.mxu0 0.0
        %4156 = vmatprep.subr.mxu0 0.0
        %4157 = vmatpush2.msra.mxu0 0.0
        %4158 = vmatprep.subr.mxu0 0.0
        %4159 = vmatpush2.msra.mxu0 0.0
        %4160 = vmatprep.mubr.f32.mxu0 0.0
        %4161 = vmatmul.mubr.f32.gmra.mxu0 %v2644
        %v4162 = vpop.f32.mrf.mxu0
        %v4163 = vadd.f32 %v3874, %v4162
        %v4164 = vpop.f32.mrf.mxu0
        %4165 = vmatprep.mubr.f32.mxu0 0.0
        %4166 = vmatmul.mubr.f32.gmra.mxu0 %v2647
        %v4167 = vpop.f32.mrf.mxu0
        %v4168 = vadd.f32 %v3879, %v4167
        %v4169 = vpop.f32.mrf.mxu0
        %4170 = vmatprep.mubr.f32.mxu0 0.0
        %4171 = vmatmul.mubr.f32.gmra.mxu0 %v2650
        %v4172 = vpop.f32.mrf.mxu0
        %v4173 = vpop.f32.mrf.mxu0
        %4174 = vmatprep.mubr.f32.mxu0 0.0
        %4175 = vmatmul.mubr.f32.gmra.mxu0 %v2653
        %v4176 = vpop.f32.mrf.mxu0
        %v4177 = vadd.f32 %v3888, %v4176
        %v4178 = vpop.f32.mrf.mxu0
        %4179 = vmatprep.mubr.f32.mxu0 0.0
        %4180 = vmatmul.mubr.f32.gmra.mxu0 %v2656
        %v4181 = vpop.f32.mrf.mxu0
        %v4182 = vadd.f32 %v3893, %v4181
        %v4183 = vpop.f32.mrf.mxu0
        %4184 = vmatprep.mubr.f32.mxu0 0.0
        %4185 = vmatmul.mubr.f32.gmra.mxu0 %v2659
        %v4186 = vpop.f32.mrf.mxu0
        %v4187 = vpop.f32.mrf.mxu0
        %4188 = vmatprep.mubr.f32.mxu0 0.0
        %4189 = vmatmul.mubr.f32.gmra.mxu0 %v2662
        %v4190 = vpop.f32.mrf.mxu0
        %v4191 = vadd.f32 %v3902, %v4190
        %v4192 = vpop.f32.mrf.mxu0
        %4193 = vmatprep.mubr.f32.mxu0 0.0
        %4194 = vmatmul.mubr.f32.gmra.mxu0 %v2665
        %v4195 = vpop.f32.mrf.mxu0
        %v4196 = vadd.f32 %v3907, %v4195
        %v4197 = vpop.f32.mrf.mxu0
        %4198 = vmatprep.mubr.f32.mxu0 0.0
        %4199 = vmatmul.mubr.f32.gmra.mxu0 %v2668
        %v4200 = vpop.f32.mrf.mxu0
        %v4201 = vpop.f32.mrf.mxu0
        %4202 = vmatprep.mubr.f32.mxu0 0.0
        %4203 = vmatmul.mubr.f32.gmra.mxu0 %v2671
        %v4204 = vpop.f32.mrf.mxu0
        %v4205 = vadd.f32 %v3916, %v4204
        %v4206 = vpop.f32.mrf.mxu0
        %4207 = vmatprep.mubr.f32.mxu0 0.0
        %4208 = vmatmul.mubr.f32.gmra.mxu0 %v2674
        %v4209 = vpop.f32.mrf.mxu0
        %v4210 = vadd.f32 %v3921, %v4209
        %v4211 = vpop.f32.mrf.mxu0
        %4212 = vmatprep.mubr.f32.mxu0 0.0
        %4213 = vmatmul.mubr.f32.gmra.mxu0 %v2677
        %v4214 = vpop.f32.mrf.mxu0
        %v4215 = vpop.f32.mrf.mxu0
        %4216 = vmatprep.mubr.f32.mxu0 0.0
        %4217 = vmatmul.mubr.f32.gmra.mxu0 %v2680
        %v4218 = vpop.f32.mrf.mxu0
        %v4219 = vadd.f32 %v3930, %v4218
        %v4220 = vpop.f32.mrf.mxu0
        %4221 = vmatprep.mubr.f32.mxu0 0.0
        %4222 = vmatmul.mubr.f32.gmra.mxu0 %v2683
        %v4223 = vpop.f32.mrf.mxu0
        %v4224 = vadd.f32 %v3935, %v4223
        %v4225 = vpop.f32.mrf.mxu0
        %4226 = vmatprep.mubr.f32.mxu0 0.0
        %4227 = vmatmul.mubr.f32.gmra.mxu0 %v2686
        %v4228 = vpop.f32.mrf.mxu0
        %v4229 = vpop.f32.mrf.mxu0
        %4230 = vmatprep.mubr.f32.mxu0 0.0
        %4231 = vmatmul.mubr.f32.gmra.mxu0 %v2689
        %v4232 = vpop.f32.mrf.mxu0
        %v4233 = vadd.f32 %v3944, %v4232
        %v4234 = vpop.f32.mrf.mxu0
        %4235 = vmatprep.mubr.f32.mxu0 0.0
        %4236 = vmatmul.mubr.f32.gmra.mxu0 %v2692
        %v4237 = vpop.f32.mrf.mxu0
        %v4238 = vadd.f32 %v3949, %v4237
        %v4239 = vpop.f32.mrf.mxu0
        %4240 = vmatprep.mubr.f32.mxu0 0.0
        %4241 = vmatmul.mubr.f32.gmra.mxu0 %v2695
        %v4242 = vpop.f32.mrf.mxu0
        %v4243 = vpop.f32.mrf.mxu0
        %4244 = vmatprep.mubr.f32.mxu0 0.0
        %4245 = vmatmul.mubr.f32.gmra.mxu0 %v2698
        %v4246 = vpop.f32.mrf.mxu0
        %v4247 = vadd.f32 %v3958, %v4246
        %v4248 = vpop.f32.mrf.mxu0
        %4249 = vmatprep.mubr.f32.mxu0 0.0
        %4250 = vmatmul.mubr.f32.gmra.mxu0 %v2701
        %v4251 = vpop.f32.mrf.mxu0
        %v4252 = vadd.f32 %v3963, %v4251
        %v4253 = vpop.f32.mrf.mxu0
        %4254 = vmatprep.mubr.f32.mxu0 0.0
        %4255 = vmatmul.mubr.f32.gmra.mxu0 %v2704
        %v4256 = vpop.f32.mrf.mxu0
        %v4257 = vpop.f32.mrf.mxu0
        %4258 = vmatprep.mubr.f32.mxu0 0.0
        %4259 = vmatmul.mubr.f32.gmra.mxu0 %v2707
        %v4260 = vpop.f32.mrf.mxu0
        %v4261 = vadd.f32 %v3972, %v4260
        %v4262 = vpop.f32.mrf.mxu0
        %4263 = vmatprep.mubr.f32.mxu0 0.0
        %4264 = vmatmul.mubr.f32.gmra.mxu0 %v2710
        %v4265 = vpop.f32.mrf.mxu0
        %v4266 = vadd.f32 %v3977, %v4265
        %v4267 = vpop.f32.mrf.mxu0
        %4268 = vmatprep.mubr.f32.mxu0 0.0
        %4269 = vmatmul.mubr.f32.gmra.mxu0 %v2713
        %v4270 = vpop.f32.mrf.mxu0
        %v4271 = vpop.f32.mrf.mxu0
        %4272 = vmatprep.mubr.f32.mxu0 0.0
        %4273 = vmatmul.mubr.f32.gmra.mxu0 %v2716
        %v4274 = vpop.f32.mrf.mxu0
        %v4275 = vadd.f32 %v3986, %v4274
        %v4276 = vpop.f32.mrf.mxu0
        %4277 = vmatprep.mubr.f32.mxu0 0.0
        %4278 = vmatmul.mubr.f32.gmra.mxu0 %v2719
        %v4279 = vpop.f32.mrf.mxu0
        %v4280 = vadd.f32 %v3991, %v4279
        %v4281 = vpop.f32.mrf.mxu0
        %4282 = vmatprep.mubr.f32.mxu0 0.0
        %4283 = vmatmul.mubr.f32.gmra.mxu0 %v2722
        %v4284 = vpop.f32.mrf.mxu0
        %v4285 = vpop.f32.mrf.mxu0
        %4286 = vmatprep.mubr.f32.mxu0 0.0
        %4287 = vmatmul.mubr.f32.gmra.mxu0 %v2725
        %v4288 = vpop.f32.mrf.mxu0
        %v4289 = vadd.f32 %v4000, %v4288
        %v4290 = vpop.f32.mrf.mxu0
        %4291 = vmatprep.mubr.f32.mxu0 0.0
        %4292 = vmatmul.mubr.f32.gmra.mxu0 %v2728
        %v4293 = vpop.f32.mrf.mxu0
        %v4294 = vadd.f32 %v4005, %v4293
        %v4295 = vpop.f32.mrf.mxu0
        %4296 = vmatprep.mubr.f32.mxu0 0.0
        %4297 = vmatmul.mubr.f32.gmra.mxu0 %v2731
        %v4298 = vpop.f32.mrf.mxu0
        %v4299 = vpop.f32.mrf.mxu0
        %4300 = vmatprep.mubr.f32.mxu0 0.0
        %4301 = vmatmul.mubr.f32.gmra.mxu0 %v2734
        %v4302 = vpop.f32.mrf.mxu0
        %v4303 = vadd.f32 %v4014, %v4302
        %v4304 = vpop.f32.mrf.mxu0
        %4305 = vmatprep.mubr.f32.mxu0 0.0
        %4306 = vmatmul.mubr.f32.gmra.mxu0 %v2737
        %v4307 = vpop.f32.mrf.mxu0
        %v4308 = vadd.f32 %v4019, %v4307
        %v4309 = vpop.f32.mrf.mxu0
        %4310 = vmatprep.mubr.f32.mxu0 0.0
        %4311 = vmatmul.mubr.f32.gmra.mxu0 %v2740
        %v4312 = vpop.f32.mrf.mxu0
        %v4313 = vpop.f32.mrf.mxu0
        %4314 = vmatprep.mubr.f32.mxu0 0.0
        %4315 = vmatmul.mubr.f32.gmra.mxu0 %v2743
        %v4316 = vpop.f32.mrf.mxu0
        %v4317 = vadd.f32 %v4028, %v4316
        %v4318 = vpop.f32.mrf.mxu0
        %4319 = vmatprep.mubr.f32.mxu0 0.0
        %4320 = vmatmul.mubr.f32.gmra.mxu0 %v2746
        %v4321 = vpop.f32.mrf.mxu0
        %v4322 = vadd.f32 %v4033, %v4321
        %v4323 = vpop.f32.mrf.mxu0
        %4324 = vmatprep.mubr.f32.mxu0 0.0
        %4325 = vmatmul.mubr.f32.gmra.mxu0 %v2749
        %v4326 = vpop.f32.mrf.mxu0
        %v4327 = vpop.f32.mrf.mxu0
        %4328 = vmatprep.mubr.f32.mxu0 0.0
        %4329 = vmatmul.mubr.f32.gmra.mxu0 %v2752
        %v4330 = vpop.f32.mrf.mxu0
        %v4331 = vadd.f32 %v4042, %v4330
        %v4332 = vpop.f32.mrf.mxu0
        %4333 = vmatprep.mubr.f32.mxu0 0.0
        %4334 = vmatmul.mubr.f32.gmra.mxu0 %v2755
        %v4335 = vpop.f32.mrf.mxu0
        %v4336 = vadd.f32 %v4047, %v4335
        %v4337 = vpop.f32.mrf.mxu0
        %4338 = vmatprep.mubr.f32.mxu0 0.0
        %4339 = vmatmul.mubr.f32.gmra.mxu0 %v2758
        %v4340 = vpop.f32.mrf.mxu0
        %v4341 = vpop.f32.mrf.mxu0
        %4342 = vmatprep.mubr.f32.mxu0 0.0
        %4343 = vmatmul.mubr.f32.gmra.mxu0 %v2761
        %v4344 = vpop.f32.mrf.mxu0
        %v4345 = vadd.f32 %v4056, %v4344
        %v4346 = vpop.f32.mrf.mxu0
        %4347 = vmatprep.mubr.f32.mxu0 0.0
        %4348 = vmatmul.mubr.f32.gmra.mxu0 %v2764
        %v4349 = vpop.f32.mrf.mxu0
        %v4350 = vadd.f32 %v4061, %v4349
        %v4351 = vpop.f32.mrf.mxu0
        %4352 = vmatprep.mubr.f32.mxu0 0.0
        %4353 = vmatmul.mubr.f32.gmra.mxu0 %v2767
        %v4354 = vpop.f32.mrf.mxu0
        %v4355 = vpop.f32.mrf.mxu0
        %4356 = vmatprep.mubr.f32.mxu0 0.0
        %4357 = vmatmul.mubr.f32.gmra.mxu0 %v2770
        %v4358 = vpop.f32.mrf.mxu0
        %v4359 = vadd.f32 %v4070, %v4358
        %v4360 = vpop.f32.mrf.mxu0
        %4361 = vmatprep.mubr.f32.mxu0 0.0
        %4362 = vmatmul.mubr.f32.gmra.mxu0 %v2773
        %v4363 = vpop.f32.mrf.mxu0
        %v4364 = vadd.f32 %v4075, %v4363
        %v4365 = vpop.f32.mrf.mxu0
        %4366 = vmatprep.mubr.f32.mxu0 0.0
        %4367 = vmatmul.mubr.f32.gmra.mxu0 %v2776
        %v4368 = vpop.f32.mrf.mxu0
        %v4369 = vpop.f32.mrf.mxu0
        %4370 = vmatprep.mubr.f32.mxu0 0.0
        %4371 = vmatmul.mubr.f32.gmra.mxu0 %v2779
        %v4372 = vpop.f32.mrf.mxu0
        %v4373 = vadd.f32 %v4084, %v4372
        %v4374 = vpop.f32.mrf.mxu0
        %4375 = vmatprep.mubr.f32.mxu0 0.0
        %4376 = vmatmul.mubr.f32.gmra.mxu0 %v2782
        %v4377 = vpop.f32.mrf.mxu0
        %v4378 = vadd.f32 %v4089, %v4377
        %v4379 = vpop.f32.mrf.mxu0
        %4380 = vmatprep.mubr.f32.mxu0 0.0
        %4381 = vmatmul.mubr.f32.gmra.mxu0 %v2785
        %v4382 = vpop.f32.mrf.mxu0
        %v4383 = vpop.f32.mrf.mxu0
        %4384 = vdwg.mxu0
        %s4385 = scalar_lea.vmem [#allocation9], 112
        %v4386 = vld [vmem:[%s4385] sm:$0xff]
        %v4387 = vld [vmem:[%s4385 + $0x8] sm:$0xff]
        %4388 = vmatprep.subr.mxu0 0.0
        %4389 = vmatpush1.msra.mxu0 0.0
        %4390 = vmatprep.subr.mxu0 0.0
        %4391 = vmatpush1.msra.mxu0 0.0
        %4392 = vmatprep.subr.mxu0 0.0
        %4393 = vmatpush1.msra.mxu0 0.0
        %4394 = vmatprep.subr.mxu0 0.0
        %4395 = vmatpush1.msra.mxu0 0.0
        %4396 = vmatprep.subr.mxu0 0.0
        %4397 = vmatpush1.msra.mxu0 0.0
        %4398 = vmatprep.subr.mxu0 0.0
        %4399 = vmatpush1.msra.mxu0 0.0
        %4400 = vmatprep.subr.mxu0 0.0
        %4401 = vmatpush1.msra.mxu0 0.0
        %4402 = vmatprep.subr.mxu0 0.0
        %4403 = vmatpush1.msra.mxu0 0.0
        %4404 = vmatprep.subr.mxu0 0.0
        %4405 = vmatpush1.msra.mxu0 0.0
        %4406 = vmatprep.subr.mxu0 0.0
        %4407 = vmatpush1.msra.mxu0 0.0
        %4408 = vmatprep.subr.mxu0 0.0
        %4409 = vmatpush1.msra.mxu0 0.0
        %4410 = vmatprep.subr.mxu0 0.0
        %4411 = vmatpush1.msra.mxu0 0.0
        %4412 = vmatprep.subr.mxu0 0.0
        %4413 = vmatpush1.msra.mxu0 0.0
        %4414 = vmatprep.subr.mxu0 0.0
        %4415 = vmatpush1.msra.mxu0 0.0
        %4416 = vmatprep.subr.mxu0 0.0
        %4417 = vmatpush1.msra.mxu0 %v4387
        %4418 = vmatprep.subr.mxu0 0.0
        %4419 = vmatpush1.msra.mxu0 %v4386
        %4420 = vmatprep.subr.mxu0 0.0
        %4421 = vmatpush2.msra.mxu0 0.0
        %4422 = vmatprep.subr.mxu0 0.0
        %4423 = vmatpush2.msra.mxu0 0.0
        %4424 = vmatprep.subr.mxu0 0.0
        %4425 = vmatpush2.msra.mxu0 0.0
        %4426 = vmatprep.subr.mxu0 0.0
        %4427 = vmatpush2.msra.mxu0 0.0
        %4428 = vmatprep.subr.mxu0 0.0
        %4429 = vmatpush2.msra.mxu0 0.0
        %4430 = vmatprep.subr.mxu0 0.0
        %4431 = vmatpush2.msra.mxu0 0.0
        %4432 = vmatprep.subr.mxu0 0.0
        %4433 = vmatpush2.msra.mxu0 0.0
        %4434 = vmatprep.subr.mxu0 0.0
        %4435 = vmatpush2.msra.mxu0 0.0
        %4436 = vmatprep.subr.mxu0 0.0
        %4437 = vmatpush2.msra.mxu0 0.0
        %4438 = vmatprep.subr.mxu0 0.0
        %4439 = vmatpush2.msra.mxu0 0.0
        %4440 = vmatprep.subr.mxu0 0.0
        %4441 = vmatpush2.msra.mxu0 0.0
        %4442 = vmatprep.subr.mxu0 0.0
        %4443 = vmatpush2.msra.mxu0 0.0
        %4444 = vmatprep.subr.mxu0 0.0
        %4445 = vmatpush2.msra.mxu0 0.0
        %4446 = vmatprep.subr.mxu0 0.0
        %4447 = vmatpush2.msra.mxu0 0.0
        %4448 = vmatprep.subr.mxu0 0.0
        %4449 = vmatpush2.msra.mxu0 0.0
        %4450 = vmatprep.subr.mxu0 0.0
        %4451 = vmatpush2.msra.mxu0 0.0
        %4452 = vmatprep.mubr.f32.mxu0 0.0
        %4453 = vmatmul.mubr.f32.gmra.mxu0 %v3096
        %v4454 = vpop.f32.mrf.mxu0
        %v4455 = vadd.f32 0.0, %v4454
        %v4456 = vpop.f32.mrf.mxu0
        %4457 = vmatprep.mubr.f32.mxu0 0.0
        %4458 = vmatmul.mubr.f32.gmra.mxu0 %v3099
        %v4459 = vpop.f32.mrf.mxu0
        %v4460 = vadd.f32 0.0, %v4459
        %v4461 = vpop.f32.mrf.mxu0
        %4462 = vmatprep.mubr.f32.mxu0 0.0
        %4463 = vmatmul.mubr.f32.gmra.mxu0 %v3102
        %v4464 = vpop.f32.mrf.mxu0
        %v4465 = vpop.f32.mrf.mxu0
        %4466 = vmatprep.mubr.f32.mxu0 0.0
        %4467 = vmatmul.mubr.f32.gmra.mxu0 %v3105
        %v4468 = vpop.f32.mrf.mxu0
        %v4469 = vadd.f32 0.0, %v4468
        %v4470 = vpop.f32.mrf.mxu0
        %4471 = vmatprep.mubr.f32.mxu0 0.0
        %4472 = vmatmul.mubr.f32.gmra.mxu0 %v3108
        %v4473 = vpop.f32.mrf.mxu0
        %v4474 = vadd.f32 0.0, %v4473
        %v4475 = vpop.f32.mrf.mxu0
        %4476 = vmatprep.mubr.f32.mxu0 0.0
        %4477 = vmatmul.mubr.f32.gmra.mxu0 %v3111
        %v4478 = vpop.f32.mrf.mxu0
        %v4479 = vpop.f32.mrf.mxu0
        %4480 = vmatprep.mubr.f32.mxu0 0.0
        %4481 = vmatmul.mubr.f32.gmra.mxu0 %v3114
        %v4482 = vpop.f32.mrf.mxu0
        %v4483 = vadd.f32 0.0, %v4482
        %v4484 = vpop.f32.mrf.mxu0
        %4485 = vmatprep.mubr.f32.mxu0 0.0
        %4486 = vmatmul.mubr.f32.gmra.mxu0 %v3117
        %v4487 = vpop.f32.mrf.mxu0
        %v4488 = vadd.f32 0.0, %v4487
        %v4489 = vpop.f32.mrf.mxu0
        %4490 = vmatprep.mubr.f32.mxu0 0.0
        %4491 = vmatmul.mubr.f32.gmra.mxu0 %v3120
        %v4492 = vpop.f32.mrf.mxu0
        %v4493 = vpop.f32.mrf.mxu0
        %4494 = vmatprep.mubr.f32.mxu0 0.0
        %4495 = vmatmul.mubr.f32.gmra.mxu0 %v3123
        %v4496 = vpop.f32.mrf.mxu0
        %v4497 = vadd.f32 0.0, %v4496
        %v4498 = vpop.f32.mrf.mxu0
        %4499 = vmatprep.mubr.f32.mxu0 0.0
        %4500 = vmatmul.mubr.f32.gmra.mxu0 %v3126
        %v4501 = vpop.f32.mrf.mxu0
        %v4502 = vadd.f32 0.0, %v4501
        %v4503 = vpop.f32.mrf.mxu0
        %4504 = vmatprep.mubr.f32.mxu0 0.0
        %4505 = vmatmul.mubr.f32.gmra.mxu0 %v3129
        %v4506 = vpop.f32.mrf.mxu0
        %v4507 = vpop.f32.mrf.mxu0
        %4508 = vmatprep.mubr.f32.mxu0 0.0
        %4509 = vmatmul.mubr.f32.gmra.mxu0 %v3132
        %v4510 = vpop.f32.mrf.mxu0
        %v4511 = vadd.f32 0.0, %v4510
        %v4512 = vpop.f32.mrf.mxu0
        %4513 = vmatprep.mubr.f32.mxu0 0.0
        %4514 = vmatmul.mubr.f32.gmra.mxu0 %v3135
        %v4515 = vpop.f32.mrf.mxu0
        %v4516 = vadd.f32 0.0, %v4515
        %v4517 = vpop.f32.mrf.mxu0
        %4518 = vmatprep.mubr.f32.mxu0 0.0
        %4519 = vmatmul.mubr.f32.gmra.mxu0 %v3138
        %v4520 = vpop.f32.mrf.mxu0
        %v4521 = vpop.f32.mrf.mxu0
        %4522 = vmatprep.mubr.f32.mxu0 0.0
        %4523 = vmatmul.mubr.f32.gmra.mxu0 %v3141
        %v4524 = vpop.f32.mrf.mxu0
        %v4525 = vadd.f32 0.0, %v4524
        %v4526 = vpop.f32.mrf.mxu0
        %4527 = vmatprep.mubr.f32.mxu0 0.0
        %4528 = vmatmul.mubr.f32.gmra.mxu0 %v3144
        %v4529 = vpop.f32.mrf.mxu0
        %v4530 = vadd.f32 0.0, %v4529
        %v4531 = vpop.f32.mrf.mxu0
        %4532 = vmatprep.mubr.f32.mxu0 0.0
        %4533 = vmatmul.mubr.f32.gmra.mxu0 %v3147
        %v4534 = vpop.f32.mrf.mxu0
        %v4535 = vpop.f32.mrf.mxu0
        %4536 = vmatprep.mubr.f32.mxu0 0.0
        %4537 = vmatmul.mubr.f32.gmra.mxu0 %v3150
        %v4538 = vpop.f32.mrf.mxu0
        %v4539 = vadd.f32 0.0, %v4538
        %v4540 = vpop.f32.mrf.mxu0
        %4541 = vmatprep.mubr.f32.mxu0 0.0
        %4542 = vmatmul.mubr.f32.gmra.mxu0 %v3153
        %v4543 = vpop.f32.mrf.mxu0
        %v4544 = vadd.f32 0.0, %v4543
        %v4545 = vpop.f32.mrf.mxu0
        %4546 = vmatprep.mubr.f32.mxu0 0.0
        %4547 = vmatmul.mubr.f32.gmra.mxu0 %v3156
        %v4548 = vpop.f32.mrf.mxu0
        %v4549 = vpop.f32.mrf.mxu0
        %4550 = vmatprep.mubr.f32.mxu0 0.0
        %4551 = vmatmul.mubr.f32.gmra.mxu0 %v3159
        %v4552 = vpop.f32.mrf.mxu0
        %v4553 = vadd.f32 0.0, %v4552
        %v4554 = vpop.f32.mrf.mxu0
        %4555 = vmatprep.mubr.f32.mxu0 0.0
        %4556 = vmatmul.mubr.f32.gmra.mxu0 %v3162
        %v4557 = vpop.f32.mrf.mxu0
        %v4558 = vadd.f32 0.0, %v4557
        %v4559 = vpop.f32.mrf.mxu0
        %4560 = vmatprep.mubr.f32.mxu0 0.0
        %4561 = vmatmul.mubr.f32.gmra.mxu0 %v3165
        %v4562 = vpop.f32.mrf.mxu0
        %v4563 = vpop.f32.mrf.mxu0
        %4564 = vmatprep.mubr.f32.mxu0 0.0
        %4565 = vmatmul.mubr.f32.gmra.mxu0 %v3168
        %v4566 = vpop.f32.mrf.mxu0
        %v4567 = vadd.f32 0.0, %v4566
        %v4568 = vpop.f32.mrf.mxu0
        %4569 = vmatprep.mubr.f32.mxu0 0.0
        %4570 = vmatmul.mubr.f32.gmra.mxu0 %v3171
        %v4571 = vpop.f32.mrf.mxu0
        %v4572 = vadd.f32 0.0, %v4571
        %v4573 = vpop.f32.mrf.mxu0
        %4574 = vmatprep.mubr.f32.mxu0 0.0
        %4575 = vmatmul.mubr.f32.gmra.mxu0 %v3174
        %v4576 = vpop.f32.mrf.mxu0
        %v4577 = vpop.f32.mrf.mxu0
        %4578 = vmatprep.mubr.f32.mxu0 0.0
        %4579 = vmatmul.mubr.f32.gmra.mxu0 %v3177
        %v4580 = vpop.f32.mrf.mxu0
        %v4581 = vadd.f32 0.0, %v4580
        %v4582 = vpop.f32.mrf.mxu0
        %4583 = vmatprep.mubr.f32.mxu0 0.0
        %4584 = vmatmul.mubr.f32.gmra.mxu0 %v3180
        %v4585 = vpop.f32.mrf.mxu0
        %v4586 = vadd.f32 0.0, %v4585
        %v4587 = vpop.f32.mrf.mxu0
        %4588 = vmatprep.mubr.f32.mxu0 0.0
        %4589 = vmatmul.mubr.f32.gmra.mxu0 %v3183
        %v4590 = vpop.f32.mrf.mxu0
        %v4591 = vpop.f32.mrf.mxu0
        %4592 = vmatprep.mubr.f32.mxu0 0.0
        %4593 = vmatmul.mubr.f32.gmra.mxu0 %v3186
        %v4594 = vpop.f32.mrf.mxu0
        %v4595 = vadd.f32 0.0, %v4594
        %v4596 = vpop.f32.mrf.mxu0
        %4597 = vmatprep.mubr.f32.mxu0 0.0
        %4598 = vmatmul.mubr.f32.gmra.mxu0 %v3189
        %v4599 = vpop.f32.mrf.mxu0
        %v4600 = vadd.f32 0.0, %v4599
        %v4601 = vpop.f32.mrf.mxu0
        %4602 = vmatprep.mubr.f32.mxu0 0.0
        %4603 = vmatmul.mubr.f32.gmra.mxu0 %v3192
        %v4604 = vpop.f32.mrf.mxu0
        %v4605 = vpop.f32.mrf.mxu0
        %4606 = vmatprep.mubr.f32.mxu0 0.0
        %4607 = vmatmul.mubr.f32.gmra.mxu0 %v3195
        %v4608 = vpop.f32.mrf.mxu0
        %v4609 = vadd.f32 0.0, %v4608
        %v4610 = vpop.f32.mrf.mxu0
        %4611 = vmatprep.mubr.f32.mxu0 0.0
        %4612 = vmatmul.mubr.f32.gmra.mxu0 %v3198
        %v4613 = vpop.f32.mrf.mxu0
        %v4614 = vadd.f32 0.0, %v4613
        %v4615 = vpop.f32.mrf.mxu0
        %4616 = vmatprep.mubr.f32.mxu0 0.0
        %4617 = vmatmul.mubr.f32.gmra.mxu0 %v3201
        %v4618 = vpop.f32.mrf.mxu0
        %v4619 = vpop.f32.mrf.mxu0
        %4620 = vmatprep.mubr.f32.mxu0 0.0
        %4621 = vmatmul.mubr.f32.gmra.mxu0 %v3204
        %v4622 = vpop.f32.mrf.mxu0
        %v4623 = vadd.f32 0.0, %v4622
        %v4624 = vpop.f32.mrf.mxu0
        %4625 = vmatprep.mubr.f32.mxu0 0.0
        %4626 = vmatmul.mubr.f32.gmra.mxu0 %v3207
        %v4627 = vpop.f32.mrf.mxu0
        %v4628 = vadd.f32 0.0, %v4627
        %v4629 = vpop.f32.mrf.mxu0
        %4630 = vmatprep.mubr.f32.mxu0 0.0
        %4631 = vmatmul.mubr.f32.gmra.mxu0 %v3210
        %v4632 = vpop.f32.mrf.mxu0
        %v4633 = vpop.f32.mrf.mxu0
        %4634 = vmatprep.mubr.f32.mxu0 0.0
        %4635 = vmatmul.mubr.f32.gmra.mxu0 %v3213
        %v4636 = vpop.f32.mrf.mxu0
        %v4637 = vadd.f32 0.0, %v4636
        %v4638 = vpop.f32.mrf.mxu0
        %4639 = vmatprep.mubr.f32.mxu0 0.0
        %4640 = vmatmul.mubr.f32.gmra.mxu0 %v3216
        %v4641 = vpop.f32.mrf.mxu0
        %v4642 = vadd.f32 0.0, %v4641
        %v4643 = vpop.f32.mrf.mxu0
        %4644 = vmatprep.mubr.f32.mxu0 0.0
        %4645 = vmatmul.mubr.f32.gmra.mxu0 %v3219
        %v4646 = vpop.f32.mrf.mxu0
        %v4647 = vpop.f32.mrf.mxu0
        %4648 = vmatprep.mubr.f32.mxu0 0.0
        %4649 = vmatmul.mubr.f32.gmra.mxu0 %v3222
        %v4650 = vpop.f32.mrf.mxu0
        %v4651 = vadd.f32 0.0, %v4650
        %v4652 = vpop.f32.mrf.mxu0
        %4653 = vmatprep.mubr.f32.mxu0 0.0
        %4654 = vmatmul.mubr.f32.gmra.mxu0 %v3225
        %v4655 = vpop.f32.mrf.mxu0
        %v4656 = vadd.f32 0.0, %v4655
        %v4657 = vpop.f32.mrf.mxu0
        %4658 = vmatprep.mubr.f32.mxu0 0.0
        %4659 = vmatmul.mubr.f32.gmra.mxu0 %v3228
        %v4660 = vpop.f32.mrf.mxu0
        %v4661 = vpop.f32.mrf.mxu0
        %4662 = vmatprep.mubr.f32.mxu0 0.0
        %4663 = vmatmul.mubr.f32.gmra.mxu0 %v3231
        %v4664 = vpop.f32.mrf.mxu0
        %v4665 = vadd.f32 0.0, %v4664
        %v4666 = vpop.f32.mrf.mxu0
        %4667 = vmatprep.mubr.f32.mxu0 0.0
        %4668 = vmatmul.mubr.f32.gmra.mxu0 %v3234
        %v4669 = vpop.f32.mrf.mxu0
        %v4670 = vadd.f32 0.0, %v4669
        %v4671 = vpop.f32.mrf.mxu0
        %4672 = vmatprep.mubr.f32.mxu0 0.0
        %4673 = vmatmul.mubr.f32.gmra.mxu0 %v3237
        %v4674 = vpop.f32.mrf.mxu0
        %v4675 = vpop.f32.mrf.mxu0
        %4676 = vdwg.mxu0
        %v4677 = vadd.f32 %v4163, %v4455
        %v4678 = vadd.f32 %v4168, %v4460
        %v4679 = vadd.f32 %v4177, %v4469
        %v4680 = vadd.f32 %v4182, %v4474
        %v4681 = vadd.f32 %v4191, %v4483
        %v4682 = vadd.f32 %v4196, %v4488
        %v4683 = vadd.f32 %v4205, %v4497
        %v4684 = vadd.f32 %v4210, %v4502
        %v4685 = vadd.f32 %v4219, %v4511
        %v4686 = vadd.f32 %v4224, %v4516
        %v4687 = vadd.f32 %v4233, %v4525
        %v4688 = vadd.f32 %v4238, %v4530
        %v4689 = vadd.f32 %v4247, %v4539
        %v4690 = vadd.f32 %v4252, %v4544
        %v4691 = vadd.f32 %v4261, %v4553
        %v4692 = vadd.f32 %v4266, %v4558
        %v4693 = vadd.f32 %v4275, %v4567
        %v4694 = vadd.f32 %v4280, %v4572
        %v4695 = vadd.f32 %v4289, %v4581
        %v4696 = vadd.f32 %v4294, %v4586
        %v4697 = vadd.f32 %v4303, %v4595
        %v4698 = vadd.f32 %v4308, %v4600
        %v4699 = vadd.f32 %v4317, %v4609
        %v4700 = vadd.f32 %v4322, %v4614
        %v4701 = vadd.f32 %v4331, %v4623
        %v4702 = vadd.f32 %v4336, %v4628
        %v4703 = vadd.f32 %v4345, %v4637
        %v4704 = vadd.f32 %v4350, %v4642
        %v4705 = vadd.f32 %v4359, %v4651
        %v4706 = vadd.f32 %v4364, %v4656
        %v4707 = vadd.f32 %v4373, %v4665
        %v4708 = vadd.f32 %v4378, %v4670
        %v4709 = vadd.f32 %v3769, %v4677
        %v4710 = vadd.f32 %v3770, %v4678
        %v4711 = vadd.f32 %v3771, %v4679
        %v4712 = vadd.f32 %v3772, %v4680
        %v4713 = vadd.f32 %v3773, %v4681
        %v4714 = vadd.f32 %v3774, %v4682
        %v4715 = vadd.f32 %v3775, %v4683
        %v4716 = vadd.f32 %v3776, %v4684
        %v4717 = vadd.f32 %v3777, %v4685
        %v4718 = vadd.f32 %v3778, %v4686
        %v4719 = vadd.f32 %v3779, %v4687
        %v4720 = vadd.f32 %v3780, %v4688
        %v4721 = vadd.f32 %v3781, %v4689
        %v4722 = vadd.f32 %v3782, %v4690
        %v4723 = vadd.f32 %v3783, %v4691
        %v4724 = vadd.f32 %v3784, %v4692
        %v4725 = vadd.f32 %v3785, %v4693
        %v4726 = vadd.f32 %v3786, %v4694
        %v4727 = vadd.f32 %v3787, %v4695
        %v4728 = vadd.f32 %v3788, %v4696
        %v4729 = vadd.f32 %v3789, %v4697
        %v4730 = vadd.f32 %v3790, %v4698
        %v4731 = vadd.f32 %v3791, %v4699
        %v4732 = vadd.f32 %v3792, %v4700
        %v4733 = vadd.f32 %v3793, %v4701
        %v4734 = vadd.f32 %v3794, %v4702
        %v4735 = vadd.f32 %v3795, %v4703
        %v4736 = vadd.f32 %v3796, %v4704
        %v4737 = vadd.f32 %v3797, %v4705
        %v4738 = vadd.f32 %v3798, %v4706
        %v4739 = vadd.f32 %v3799, %v4707
        %v4740 = vadd.f32 %v3800, %v4708
        %s4741 = scalar_lea.vmem [#allocation9], 32
        %v4742 = vld [vmem:[%s4741] sm:$0xff]
        %v4743 = vld [vmem:[%s4741 + $0x8] sm:$0xff]
        %s4744 = scalar_lea.vmem [#allocation9], 80
        %v4745 = vld [vmem:[%s4744] sm:$0xff]
        %v4746 = vld [vmem:[%s4744 + $0x8] sm:$0xff]
        %4747 = vmatprep.subr.mxu0 0.0
        %4748 = vmatpush1.msra.mxu0 0.0
        %4749 = vmatprep.subr.mxu0 0.0
        %4750 = vmatpush1.msra.mxu0 0.0
        %4751 = vmatprep.subr.mxu0 0.0
        %4752 = vmatpush1.msra.mxu0 0.0
        %4753 = vmatprep.subr.mxu0 0.0
        %4754 = vmatpush1.msra.mxu0 0.0
        %4755 = vmatprep.subr.mxu0 0.0
        %4756 = vmatpush1.msra.mxu0 0.0
        %4757 = vmatprep.subr.mxu0 0.0
        %4758 = vmatpush1.msra.mxu0 0.0
        %4759 = vmatprep.subr.mxu0 0.0
        %4760 = vmatpush1.msra.mxu0 0.0
        %4761 = vmatprep.subr.mxu0 0.0
        %4762 = vmatpush1.msra.mxu0 0.0
        %4763 = vmatprep.subr.mxu0 0.0
        %4764 = vmatpush1.msra.mxu0 0.0
        %4765 = vmatprep.subr.mxu0 0.0
        %4766 = vmatpush1.msra.mxu0 0.0
        %4767 = vmatprep.subr.mxu0 0.0
        %4768 = vmatpush1.msra.mxu0 0.0
        %4769 = vmatprep.subr.mxu0 0.0
        %4770 = vmatpush1.msra.mxu0 0.0
        %4771 = vmatprep.subr.mxu0 0.0
        %4772 = vmatpush1.msra.mxu0 0.0
        %4773 = vmatprep.subr.mxu0 0.0
        %4774 = vmatpush1.msra.mxu0 0.0
        %4775 = vmatprep.subr.mxu0 0.0
        %4776 = vmatpush1.msra.mxu0 %v4746
        %4777 = vmatprep.subr.mxu0 0.0
        %4778 = vmatpush1.msra.mxu0 %v4745
        %4779 = vmatprep.subr.mxu0 0.0
        %4780 = vmatpush2.msra.mxu0 0.0
        %4781 = vmatprep.subr.mxu0 0.0
        %4782 = vmatpush2.msra.mxu0 0.0
        %4783 = vmatprep.subr.mxu0 0.0
        %4784 = vmatpush2.msra.mxu0 0.0
        %4785 = vmatprep.subr.mxu0 0.0
        %4786 = vmatpush2.msra.mxu0 0.0
        %4787 = vmatprep.subr.mxu0 0.0
        %4788 = vmatpush2.msra.mxu0 0.0
        %4789 = vmatprep.subr.mxu0 0.0
        %4790 = vmatpush2.msra.mxu0 0.0
        %4791 = vmatprep.subr.mxu0 0.0
        %4792 = vmatpush2.msra.mxu0 0.0
        %4793 = vmatprep.subr.mxu0 0.0
        %4794 = vmatpush2.msra.mxu0 0.0
        %4795 = vmatprep.subr.mxu0 0.0
        %4796 = vmatpush2.msra.mxu0 0.0
        %4797 = vmatprep.subr.mxu0 0.0
        %4798 = vmatpush2.msra.mxu0 0.0
        %4799 = vmatprep.subr.mxu0 0.0
        %4800 = vmatpush2.msra.mxu0 0.0
        %4801 = vmatprep.subr.mxu0 0.0
        %4802 = vmatpush2.msra.mxu0 0.0
        %4803 = vmatprep.subr.mxu0 0.0
        %4804 = vmatpush2.msra.mxu0 0.0
        %4805 = vmatprep.subr.mxu0 0.0
        %4806 = vmatpush2.msra.mxu0 0.0
        %4807 = vmatprep.subr.mxu0 0.0
        %4808 = vmatpush2.msra.mxu0 0.0
        %4809 = vmatprep.subr.mxu0 0.0
        %4810 = vmatpush2.msra.mxu0 0.0
        %4811 = vmatprep.mubr.f32.mxu0 0.0
        %4812 = vmatmul.mubr.f32.gmra.mxu0 %v2195
        %v4813 = vpop.f32.mrf.mxu0
        %v4814 = vadd.f32 0.0, %v4813
        %v4815 = vpop.f32.mrf.mxu0
        %4816 = vmatprep.mubr.f32.mxu0 0.0
        %4817 = vmatmul.mubr.f32.gmra.mxu0 %v2198
        %v4818 = vpop.f32.mrf.mxu0
        %v4819 = vadd.f32 0.0, %v4818
        %v4820 = vpop.f32.mrf.mxu0
        %4821 = vmatprep.mubr.f32.mxu0 0.0
        %4822 = vmatmul.mubr.f32.gmra.mxu0 %v2201
        %v4823 = vpop.f32.mrf.mxu0
        %v4824 = vadd.f32 0.0, %v4823
        %v4825 = vpop.f32.mrf.mxu0
        %4826 = vmatprep.mubr.f32.mxu0 0.0
        %4827 = vmatmul.mubr.f32.gmra.mxu0 %v2204
        %v4828 = vpop.f32.mrf.mxu0
        %v4829 = vadd.f32 0.0, %v4828
        %v4830 = vpop.f32.mrf.mxu0
        %4831 = vmatprep.mubr.f32.mxu0 0.0
        %4832 = vmatmul.mubr.f32.gmra.mxu0 %v2207
        %v4833 = vpop.f32.mrf.mxu0
        %v4834 = vadd.f32 0.0, %v4833
        %v4835 = vpop.f32.mrf.mxu0
        %4836 = vmatprep.mubr.f32.mxu0 0.0
        %4837 = vmatmul.mubr.f32.gmra.mxu0 %v2210
        %v4838 = vpop.f32.mrf.mxu0
        %v4839 = vadd.f32 0.0, %v4838
        %v4840 = vpop.f32.mrf.mxu0
        %4841 = vmatprep.mubr.f32.mxu0 0.0
        %4842 = vmatmul.mubr.f32.gmra.mxu0 %v2213
        %v4843 = vpop.f32.mrf.mxu0
        %v4844 = vadd.f32 0.0, %v4843
        %v4845 = vpop.f32.mrf.mxu0
        %4846 = vmatprep.mubr.f32.mxu0 0.0
        %4847 = vmatmul.mubr.f32.gmra.mxu0 %v2216
        %v4848 = vpop.f32.mrf.mxu0
        %v4849 = vadd.f32 0.0, %v4848
        %v4850 = vpop.f32.mrf.mxu0
        %4851 = vmatprep.mubr.f32.mxu0 0.0
        %4852 = vmatmul.mubr.f32.gmra.mxu0 %v2219
        %v4853 = vpop.f32.mrf.mxu0
        %v4854 = vadd.f32 0.0, %v4853
        %v4855 = vpop.f32.mrf.mxu0
        %4856 = vmatprep.mubr.f32.mxu0 0.0
        %4857 = vmatmul.mubr.f32.gmra.mxu0 %v2222
        %v4858 = vpop.f32.mrf.mxu0
        %v4859 = vadd.f32 0.0, %v4858
        %v4860 = vpop.f32.mrf.mxu0
        %4861 = vmatprep.mubr.f32.mxu0 0.0
        %4862 = vmatmul.mubr.f32.gmra.mxu0 %v2225
        %v4863 = vpop.f32.mrf.mxu0
        %v4864 = vadd.f32 0.0, %v4863
        %v4865 = vpop.f32.mrf.mxu0
        %4866 = vmatprep.mubr.f32.mxu0 0.0
        %4867 = vmatmul.mubr.f32.gmra.mxu0 %v2228
        %v4868 = vpop.f32.mrf.mxu0
        %v4869 = vadd.f32 0.0, %v4868
        %v4870 = vpop.f32.mrf.mxu0
        %4871 = vmatprep.mubr.f32.mxu0 0.0
        %4872 = vmatmul.mubr.f32.gmra.mxu0 %v2231
        %v4873 = vpop.f32.mrf.mxu0
        %v4874 = vadd.f32 0.0, %v4873
        %v4875 = vpop.f32.mrf.mxu0
        %4876 = vmatprep.mubr.f32.mxu0 0.0
        %4877 = vmatmul.mubr.f32.gmra.mxu0 %v2234
        %v4878 = vpop.f32.mrf.mxu0
        %v4879 = vadd.f32 0.0, %v4878
        %v4880 = vpop.f32.mrf.mxu0
        %4881 = vmatprep.mubr.f32.mxu0 0.0
        %4882 = vmatmul.mubr.f32.gmra.mxu0 %v2237
        %v4883 = vpop.f32.mrf.mxu0
        %v4884 = vadd.f32 0.0, %v4883
        %v4885 = vpop.f32.mrf.mxu0
        %4886 = vmatprep.mubr.f32.mxu0 0.0
        %4887 = vmatmul.mubr.f32.gmra.mxu0 %v2240
        %v4888 = vpop.f32.mrf.mxu0
        %v4889 = vadd.f32 0.0, %v4888
        %v4890 = vpop.f32.mrf.mxu0
        %4891 = vmatprep.mubr.f32.mxu0 0.0
        %4892 = vmatmul.mubr.f32.gmra.mxu0 %v2243
        %v4893 = vpop.f32.mrf.mxu0
        %v4894 = vadd.f32 0.0, %v4893
        %v4895 = vpop.f32.mrf.mxu0
        %4896 = vmatprep.mubr.f32.mxu0 0.0
        %4897 = vmatmul.mubr.f32.gmra.mxu0 %v2246
        %v4898 = vpop.f32.mrf.mxu0
        %v4899 = vadd.f32 0.0, %v4898
        %v4900 = vpop.f32.mrf.mxu0
        %4901 = vmatprep.mubr.f32.mxu0 0.0
        %4902 = vmatmul.mubr.f32.gmra.mxu0 %v2249
        %v4903 = vpop.f32.mrf.mxu0
        %v4904 = vadd.f32 0.0, %v4903
        %v4905 = vpop.f32.mrf.mxu0
        %4906 = vmatprep.mubr.f32.mxu0 0.0
        %4907 = vmatmul.mubr.f32.gmra.mxu0 %v2252
        %v4908 = vpop.f32.mrf.mxu0
        %v4909 = vadd.f32 0.0, %v4908
        %v4910 = vpop.f32.mrf.mxu0
        %4911 = vmatprep.mubr.f32.mxu0 0.0
        %4912 = vmatmul.mubr.f32.gmra.mxu0 %v2255
        %v4913 = vpop.f32.mrf.mxu0
        %v4914 = vadd.f32 0.0, %v4913
        %v4915 = vpop.f32.mrf.mxu0
        %4916 = vmatprep.mubr.f32.mxu0 0.0
        %4917 = vmatmul.mubr.f32.gmra.mxu0 %v2258
        %v4918 = vpop.f32.mrf.mxu0
        %v4919 = vadd.f32 0.0, %v4918
        %v4920 = vpop.f32.mrf.mxu0
        %4921 = vmatprep.mubr.f32.mxu0 0.0
        %4922 = vmatmul.mubr.f32.gmra.mxu0 %v2261
        %v4923 = vpop.f32.mrf.mxu0
        %v4924 = vadd.f32 0.0, %v4923
        %v4925 = vpop.f32.mrf.mxu0
        %4926 = vmatprep.mubr.f32.mxu0 0.0
        %4927 = vmatmul.mubr.f32.gmra.mxu0 %v2264
        %v4928 = vpop.f32.mrf.mxu0
        %v4929 = vadd.f32 0.0, %v4928
        %v4930 = vpop.f32.mrf.mxu0
        %4931 = vmatprep.mubr.f32.mxu0 0.0
        %4932 = vmatmul.mubr.f32.gmra.mxu0 %v2267
        %v4933 = vpop.f32.mrf.mxu0
        %v4934 = vadd.f32 0.0, %v4933
        %v4935 = vpop.f32.mrf.mxu0
        %4936 = vmatprep.mubr.f32.mxu0 0.0
        %4937 = vmatmul.mubr.f32.gmra.mxu0 %v2270
        %v4938 = vpop.f32.mrf.mxu0
        %v4939 = vadd.f32 0.0, %v4938
        %v4940 = vpop.f32.mrf.mxu0
        %4941 = vmatprep.mubr.f32.mxu0 0.0
        %4942 = vmatmul.mubr.f32.gmra.mxu0 %v2273
        %v4943 = vpop.f32.mrf.mxu0
        %v4944 = vadd.f32 0.0, %v4943
        %v4945 = vpop.f32.mrf.mxu0
        %4946 = vmatprep.mubr.f32.mxu0 0.0
        %4947 = vmatmul.mubr.f32.gmra.mxu0 %v2276
        %v4948 = vpop.f32.mrf.mxu0
        %v4949 = vadd.f32 0.0, %v4948
        %v4950 = vpop.f32.mrf.mxu0
        %4951 = vmatprep.mubr.f32.mxu0 0.0
        %4952 = vmatmul.mubr.f32.gmra.mxu0 %v2279
        %v4953 = vpop.f32.mrf.mxu0
        %v4954 = vadd.f32 0.0, %v4953
        %v4955 = vpop.f32.mrf.mxu0
        %4956 = vmatprep.mubr.f32.mxu0 0.0
        %4957 = vmatmul.mubr.f32.gmra.mxu0 %v2282
        %v4958 = vpop.f32.mrf.mxu0
        %v4959 = vadd.f32 0.0, %v4958
        %v4960 = vpop.f32.mrf.mxu0
        %4961 = vmatprep.mubr.f32.mxu0 0.0
        %4962 = vmatmul.mubr.f32.gmra.mxu0 %v2285
        %v4963 = vpop.f32.mrf.mxu0
        %v4964 = vadd.f32 0.0, %v4963
        %v4965 = vpop.f32.mrf.mxu0
        %4966 = vmatprep.mubr.f32.mxu0 0.0
        %4967 = vmatmul.mubr.f32.gmra.mxu0 %v2288
        %v4968 = vpop.f32.mrf.mxu0
        %v4969 = vadd.f32 0.0, %v4968
        %v4970 = vpop.f32.mrf.mxu0
        %4971 = vmatprep.mubr.f32.mxu0 0.0
        %4972 = vmatmul.mubr.f32.gmra.mxu0 %v2291
        %v4973 = vpop.f32.mrf.mxu0
        %v4974 = vadd.f32 0.0, %v4973
        %v4975 = vpop.f32.mrf.mxu0
        %4976 = vmatprep.mubr.f32.mxu0 0.0
        %4977 = vmatmul.mubr.f32.gmra.mxu0 %v2294
        %v4978 = vpop.f32.mrf.mxu0
        %v4979 = vadd.f32 0.0, %v4978
        %v4980 = vpop.f32.mrf.mxu0
        %4981 = vmatprep.mubr.f32.mxu0 0.0
        %4982 = vmatmul.mubr.f32.gmra.mxu0 %v2297
        %v4983 = vpop.f32.mrf.mxu0
        %v4984 = vadd.f32 0.0, %v4983
        %v4985 = vpop.f32.mrf.mxu0
        %4986 = vmatprep.mubr.f32.mxu0 0.0
        %4987 = vmatmul.mubr.f32.gmra.mxu0 %v2300
        %v4988 = vpop.f32.mrf.mxu0
        %v4989 = vadd.f32 0.0, %v4988
        %v4990 = vpop.f32.mrf.mxu0
        %4991 = vmatprep.mubr.f32.mxu0 0.0
        %4992 = vmatmul.mubr.f32.gmra.mxu0 %v2303
        %v4993 = vpop.f32.mrf.mxu0
        %v4994 = vadd.f32 0.0, %v4993
        %v4995 = vpop.f32.mrf.mxu0
        %4996 = vmatprep.mubr.f32.mxu0 0.0
        %4997 = vmatmul.mubr.f32.gmra.mxu0 %v2306
        %v4998 = vpop.f32.mrf.mxu0
        %v4999 = vadd.f32 0.0, %v4998
        %v5000 = vpop.f32.mrf.mxu0
        %5001 = vmatprep.mubr.f32.mxu0 0.0
        %5002 = vmatmul.mubr.f32.gmra.mxu0 %v2309
        %v5003 = vpop.f32.mrf.mxu0
        %v5004 = vadd.f32 0.0, %v5003
        %v5005 = vpop.f32.mrf.mxu0
        %5006 = vmatprep.mubr.f32.mxu0 0.0
        %5007 = vmatmul.mubr.f32.gmra.mxu0 %v2312
        %v5008 = vpop.f32.mrf.mxu0
        %v5009 = vadd.f32 0.0, %v5008
        %v5010 = vpop.f32.mrf.mxu0
        %5011 = vmatprep.mubr.f32.mxu0 0.0
        %5012 = vmatmul.mubr.f32.gmra.mxu0 %v2315
        %v5013 = vpop.f32.mrf.mxu0
        %v5014 = vadd.f32 0.0, %v5013
        %v5015 = vpop.f32.mrf.mxu0
        %5016 = vmatprep.mubr.f32.mxu0 0.0
        %5017 = vmatmul.mubr.f32.gmra.mxu0 %v2318
        %v5018 = vpop.f32.mrf.mxu0
        %v5019 = vadd.f32 0.0, %v5018
        %v5020 = vpop.f32.mrf.mxu0
        %5021 = vmatprep.mubr.f32.mxu0 0.0
        %5022 = vmatmul.mubr.f32.gmra.mxu0 %v2321
        %v5023 = vpop.f32.mrf.mxu0
        %v5024 = vadd.f32 0.0, %v5023
        %v5025 = vpop.f32.mrf.mxu0
        %5026 = vmatprep.mubr.f32.mxu0 0.0
        %5027 = vmatmul.mubr.f32.gmra.mxu0 %v2324
        %v5028 = vpop.f32.mrf.mxu0
        %v5029 = vadd.f32 0.0, %v5028
        %v5030 = vpop.f32.mrf.mxu0
        %5031 = vmatprep.mubr.f32.mxu0 0.0
        %5032 = vmatmul.mubr.f32.gmra.mxu0 %v2327
        %v5033 = vpop.f32.mrf.mxu0
        %v5034 = vadd.f32 0.0, %v5033
        %v5035 = vpop.f32.mrf.mxu0
        %5036 = vmatprep.mubr.f32.mxu0 0.0
        %5037 = vmatmul.mubr.f32.gmra.mxu0 %v2330
        %v5038 = vpop.f32.mrf.mxu0
        %v5039 = vadd.f32 0.0, %v5038
        %v5040 = vpop.f32.mrf.mxu0
        %5041 = vmatprep.mubr.f32.mxu0 0.0
        %5042 = vmatmul.mubr.f32.gmra.mxu0 %v2333
        %v5043 = vpop.f32.mrf.mxu0
        %v5044 = vadd.f32 0.0, %v5043
        %v5045 = vpop.f32.mrf.mxu0
        %5046 = vmatprep.mubr.f32.mxu0 0.0
        %5047 = vmatmul.mubr.f32.gmra.mxu0 %v2336
        %v5048 = vpop.f32.mrf.mxu0
        %v5049 = vadd.f32 0.0, %v5048
        %v5050 = vpop.f32.mrf.mxu0
        %5051 = vdwg.mxu0
        %5052 = vmatprep.subr.mxu0 0.0
        %5053 = vmatpush1.msra.mxu0 0.0
        %5054 = vmatprep.subr.mxu0 0.0
        %5055 = vmatpush1.msra.mxu0 0.0
        %5056 = vmatprep.subr.mxu0 0.0
        %5057 = vmatpush1.msra.mxu0 0.0
        %5058 = vmatprep.subr.mxu0 0.0
        %5059 = vmatpush1.msra.mxu0 0.0
        %5060 = vmatprep.subr.mxu0 0.0
        %5061 = vmatpush1.msra.mxu0 0.0
        %5062 = vmatprep.subr.mxu0 0.0
        %5063 = vmatpush1.msra.mxu0 0.0
        %5064 = vmatprep.subr.mxu0 0.0
        %5065 = vmatpush1.msra.mxu0 0.0
        %5066 = vmatprep.subr.mxu0 0.0
        %5067 = vmatpush1.msra.mxu0 0.0
        %5068 = vmatprep.subr.mxu0 0.0
        %5069 = vmatpush1.msra.mxu0 0.0
        %5070 = vmatprep.subr.mxu0 0.0
        %5071 = vmatpush1.msra.mxu0 0.0
        %5072 = vmatprep.subr.mxu0 0.0
        %5073 = vmatpush1.msra.mxu0 0.0
        %5074 = vmatprep.subr.mxu0 0.0
        %5075 = vmatpush1.msra.mxu0 0.0
        %5076 = vmatprep.subr.mxu0 0.0
        %5077 = vmatpush1.msra.mxu0 0.0
        %5078 = vmatprep.subr.mxu0 0.0
        %5079 = vmatpush1.msra.mxu0 0.0
        %5080 = vmatprep.subr.mxu0 0.0
        %5081 = vmatpush1.msra.mxu0 %v4743
        %5082 = vmatprep.subr.mxu0 0.0
        %5083 = vmatpush1.msra.mxu0 %v4742
        %5084 = vmatprep.subr.mxu0 0.0
        %5085 = vmatpush2.msra.mxu0 0.0
        %5086 = vmatprep.subr.mxu0 0.0
        %5087 = vmatpush2.msra.mxu0 0.0
        %5088 = vmatprep.subr.mxu0 0.0
        %5089 = vmatpush2.msra.mxu0 0.0
        %5090 = vmatprep.subr.mxu0 0.0
        %5091 = vmatpush2.msra.mxu0 0.0
        %5092 = vmatprep.subr.mxu0 0.0
        %5093 = vmatpush2.msra.mxu0 0.0
        %5094 = vmatprep.subr.mxu0 0.0
        %5095 = vmatpush2.msra.mxu0 0.0
        %5096 = vmatprep.subr.mxu0 0.0
        %5097 = vmatpush2.msra.mxu0 0.0
        %5098 = vmatprep.subr.mxu0 0.0
        %5099 = vmatpush2.msra.mxu0 0.0
        %5100 = vmatprep.subr.mxu0 0.0
        %5101 = vmatpush2.msra.mxu0 0.0
        %5102 = vmatprep.subr.mxu0 0.0
        %5103 = vmatpush2.msra.mxu0 0.0
        %5104 = vmatprep.subr.mxu0 0.0
        %5105 = vmatpush2.msra.mxu0 0.0
        %5106 = vmatprep.subr.mxu0 0.0
        %5107 = vmatpush2.msra.mxu0 0.0
        %5108 = vmatprep.subr.mxu0 0.0
        %5109 = vmatpush2.msra.mxu0 0.0
        %5110 = vmatprep.subr.mxu0 0.0
        %5111 = vmatpush2.msra.mxu0 0.0
        %5112 = vmatprep.subr.mxu0 0.0
        %5113 = vmatpush2.msra.mxu0 0.0
        %5114 = vmatprep.subr.mxu0 0.0
        %5115 = vmatpush2.msra.mxu0 0.0
        %5116 = vmatprep.mubr.f32.mxu0 0.0
        %5117 = vmatmul.mubr.f32.gmra.mxu0 %v2644
        %v5118 = vpop.f32.mrf.mxu0
        %v5119 = vadd.f32 %v4814, %v5118
        %v5120 = vpop.f32.mrf.mxu0
        %5121 = vmatprep.mubr.f32.mxu0 0.0
        %5122 = vmatmul.mubr.f32.gmra.mxu0 %v2647
        %v5123 = vpop.f32.mrf.mxu0
        %v5124 = vadd.f32 %v4819, %v5123
        %v5125 = vpop.f32.mrf.mxu0
        %5126 = vmatprep.mubr.f32.mxu0 0.0
        %5127 = vmatmul.mubr.f32.gmra.mxu0 %v2650
        %v5128 = vpop.f32.mrf.mxu0
        %v5129 = vadd.f32 %v4824, %v5128
        %v5130 = vpop.f32.mrf.mxu0
        %5131 = vmatprep.mubr.f32.mxu0 0.0
        %5132 = vmatmul.mubr.f32.gmra.mxu0 %v2653
        %v5133 = vpop.f32.mrf.mxu0
        %v5134 = vadd.f32 %v4829, %v5133
        %v5135 = vpop.f32.mrf.mxu0
        %5136 = vmatprep.mubr.f32.mxu0 0.0
        %5137 = vmatmul.mubr.f32.gmra.mxu0 %v2656
        %v5138 = vpop.f32.mrf.mxu0
        %v5139 = vadd.f32 %v4834, %v5138
        %v5140 = vpop.f32.mrf.mxu0
        %5141 = vmatprep.mubr.f32.mxu0 0.0
        %5142 = vmatmul.mubr.f32.gmra.mxu0 %v2659
        %v5143 = vpop.f32.mrf.mxu0
        %v5144 = vadd.f32 %v4839, %v5143
        %v5145 = vpop.f32.mrf.mxu0
        %5146 = vmatprep.mubr.f32.mxu0 0.0
        %5147 = vmatmul.mubr.f32.gmra.mxu0 %v2662
        %v5148 = vpop.f32.mrf.mxu0
        %v5149 = vadd.f32 %v4844, %v5148
        %v5150 = vpop.f32.mrf.mxu0
        %5151 = vmatprep.mubr.f32.mxu0 0.0
        %5152 = vmatmul.mubr.f32.gmra.mxu0 %v2665
        %v5153 = vpop.f32.mrf.mxu0
        %v5154 = vadd.f32 %v4849, %v5153
        %v5155 = vpop.f32.mrf.mxu0
        %5156 = vmatprep.mubr.f32.mxu0 0.0
        %5157 = vmatmul.mubr.f32.gmra.mxu0 %v2668
        %v5158 = vpop.f32.mrf.mxu0
        %v5159 = vadd.f32 %v4854, %v5158
        %v5160 = vpop.f32.mrf.mxu0
        %5161 = vmatprep.mubr.f32.mxu0 0.0
        %5162 = vmatmul.mubr.f32.gmra.mxu0 %v2671
        %v5163 = vpop.f32.mrf.mxu0
        %v5164 = vadd.f32 %v4859, %v5163
        %v5165 = vpop.f32.mrf.mxu0
        %5166 = vmatprep.mubr.f32.mxu0 0.0
        %5167 = vmatmul.mubr.f32.gmra.mxu0 %v2674
        %v5168 = vpop.f32.mrf.mxu0
        %v5169 = vadd.f32 %v4864, %v5168
        %v5170 = vpop.f32.mrf.mxu0
        %5171 = vmatprep.mubr.f32.mxu0 0.0
        %5172 = vmatmul.mubr.f32.gmra.mxu0 %v2677
        %v5173 = vpop.f32.mrf.mxu0
        %v5174 = vadd.f32 %v4869, %v5173
        %v5175 = vpop.f32.mrf.mxu0
        %5176 = vmatprep.mubr.f32.mxu0 0.0
        %5177 = vmatmul.mubr.f32.gmra.mxu0 %v2680
        %v5178 = vpop.f32.mrf.mxu0
        %v5179 = vadd.f32 %v4874, %v5178
        %v5180 = vpop.f32.mrf.mxu0
        %5181 = vmatprep.mubr.f32.mxu0 0.0
        %5182 = vmatmul.mubr.f32.gmra.mxu0 %v2683
        %v5183 = vpop.f32.mrf.mxu0
        %v5184 = vadd.f32 %v4879, %v5183
        %v5185 = vpop.f32.mrf.mxu0
        %5186 = vmatprep.mubr.f32.mxu0 0.0
        %5187 = vmatmul.mubr.f32.gmra.mxu0 %v2686
        %v5188 = vpop.f32.mrf.mxu0
        %v5189 = vadd.f32 %v4884, %v5188
        %v5190 = vpop.f32.mrf.mxu0
        %5191 = vmatprep.mubr.f32.mxu0 0.0
        %5192 = vmatmul.mubr.f32.gmra.mxu0 %v2689
        %v5193 = vpop.f32.mrf.mxu0
        %v5194 = vadd.f32 %v4889, %v5193
        %v5195 = vpop.f32.mrf.mxu0
        %5196 = vmatprep.mubr.f32.mxu0 0.0
        %5197 = vmatmul.mubr.f32.gmra.mxu0 %v2692
        %v5198 = vpop.f32.mrf.mxu0
        %v5199 = vadd.f32 %v4894, %v5198
        %v5200 = vpop.f32.mrf.mxu0
        %5201 = vmatprep.mubr.f32.mxu0 0.0
        %5202 = vmatmul.mubr.f32.gmra.mxu0 %v2695
        %v5203 = vpop.f32.mrf.mxu0
        %v5204 = vadd.f32 %v4899, %v5203
        %v5205 = vpop.f32.mrf.mxu0
        %5206 = vmatprep.mubr.f32.mxu0 0.0
        %5207 = vmatmul.mubr.f32.gmra.mxu0 %v2698
        %v5208 = vpop.f32.mrf.mxu0
        %v5209 = vadd.f32 %v4904, %v5208
        %v5210 = vpop.f32.mrf.mxu0
        %5211 = vmatprep.mubr.f32.mxu0 0.0
        %5212 = vmatmul.mubr.f32.gmra.mxu0 %v2701
        %v5213 = vpop.f32.mrf.mxu0
        %v5214 = vadd.f32 %v4909, %v5213
        %v5215 = vpop.f32.mrf.mxu0
        %5216 = vmatprep.mubr.f32.mxu0 0.0
        %5217 = vmatmul.mubr.f32.gmra.mxu0 %v2704
        %v5218 = vpop.f32.mrf.mxu0
        %v5219 = vadd.f32 %v4914, %v5218
        %v5220 = vpop.f32.mrf.mxu0
        %5221 = vmatprep.mubr.f32.mxu0 0.0
        %5222 = vmatmul.mubr.f32.gmra.mxu0 %v2707
        %v5223 = vpop.f32.mrf.mxu0
        %v5224 = vadd.f32 %v4919, %v5223
        %v5225 = vpop.f32.mrf.mxu0
        %5226 = vmatprep.mubr.f32.mxu0 0.0
        %5227 = vmatmul.mubr.f32.gmra.mxu0 %v2710
        %v5228 = vpop.f32.mrf.mxu0
        %v5229 = vadd.f32 %v4924, %v5228
        %v5230 = vpop.f32.mrf.mxu0
        %5231 = vmatprep.mubr.f32.mxu0 0.0
        %5232 = vmatmul.mubr.f32.gmra.mxu0 %v2713
        %v5233 = vpop.f32.mrf.mxu0
        %v5234 = vadd.f32 %v4929, %v5233
        %v5235 = vpop.f32.mrf.mxu0
        %5236 = vmatprep.mubr.f32.mxu0 0.0
        %5237 = vmatmul.mubr.f32.gmra.mxu0 %v2716
        %v5238 = vpop.f32.mrf.mxu0
        %v5239 = vadd.f32 %v4934, %v5238
        %v5240 = vpop.f32.mrf.mxu0
        %5241 = vmatprep.mubr.f32.mxu0 0.0
        %5242 = vmatmul.mubr.f32.gmra.mxu0 %v2719
        %v5243 = vpop.f32.mrf.mxu0
        %v5244 = vadd.f32 %v4939, %v5243
        %v5245 = vpop.f32.mrf.mxu0
        %5246 = vmatprep.mubr.f32.mxu0 0.0
        %5247 = vmatmul.mubr.f32.gmra.mxu0 %v2722
        %v5248 = vpop.f32.mrf.mxu0
        %v5249 = vadd.f32 %v4944, %v5248
        %v5250 = vpop.f32.mrf.mxu0
        %5251 = vmatprep.mubr.f32.mxu0 0.0
        %5252 = vmatmul.mubr.f32.gmra.mxu0 %v2725
        %v5253 = vpop.f32.mrf.mxu0
        %v5254 = vadd.f32 %v4949, %v5253
        %v5255 = vpop.f32.mrf.mxu0
        %5256 = vmatprep.mubr.f32.mxu0 0.0
        %5257 = vmatmul.mubr.f32.gmra.mxu0 %v2728
        %v5258 = vpop.f32.mrf.mxu0
        %v5259 = vadd.f32 %v4954, %v5258
        %v5260 = vpop.f32.mrf.mxu0
        %5261 = vmatprep.mubr.f32.mxu0 0.0
        %5262 = vmatmul.mubr.f32.gmra.mxu0 %v2731
        %v5263 = vpop.f32.mrf.mxu0
        %v5264 = vadd.f32 %v4959, %v5263
        %v5265 = vpop.f32.mrf.mxu0
        %5266 = vmatprep.mubr.f32.mxu0 0.0
        %5267 = vmatmul.mubr.f32.gmra.mxu0 %v2734
        %v5268 = vpop.f32.mrf.mxu0
        %v5269 = vadd.f32 %v4964, %v5268
        %v5270 = vpop.f32.mrf.mxu0
        %5271 = vmatprep.mubr.f32.mxu0 0.0
        %5272 = vmatmul.mubr.f32.gmra.mxu0 %v2737
        %v5273 = vpop.f32.mrf.mxu0
        %v5274 = vadd.f32 %v4969, %v5273
        %v5275 = vpop.f32.mrf.mxu0
        %5276 = vmatprep.mubr.f32.mxu0 0.0
        %5277 = vmatmul.mubr.f32.gmra.mxu0 %v2740
        %v5278 = vpop.f32.mrf.mxu0
        %v5279 = vadd.f32 %v4974, %v5278
        %v5280 = vpop.f32.mrf.mxu0
        %5281 = vmatprep.mubr.f32.mxu0 0.0
        %5282 = vmatmul.mubr.f32.gmra.mxu0 %v2743
        %v5283 = vpop.f32.mrf.mxu0
        %v5284 = vadd.f32 %v4979, %v5283
        %v5285 = vpop.f32.mrf.mxu0
        %5286 = vmatprep.mubr.f32.mxu0 0.0
        %5287 = vmatmul.mubr.f32.gmra.mxu0 %v2746
        %v5288 = vpop.f32.mrf.mxu0
        %v5289 = vadd.f32 %v4984, %v5288
        %v5290 = vpop.f32.mrf.mxu0
        %5291 = vmatprep.mubr.f32.mxu0 0.0
        %5292 = vmatmul.mubr.f32.gmra.mxu0 %v2749
        %v5293 = vpop.f32.mrf.mxu0
        %v5294 = vadd.f32 %v4989, %v5293
        %v5295 = vpop.f32.mrf.mxu0
        %5296 = vmatprep.mubr.f32.mxu0 0.0
        %5297 = vmatmul.mubr.f32.gmra.mxu0 %v2752
        %v5298 = vpop.f32.mrf.mxu0
        %v5299 = vadd.f32 %v4994, %v5298
        %v5300 = vpop.f32.mrf.mxu0
        %5301 = vmatprep.mubr.f32.mxu0 0.0
        %5302 = vmatmul.mubr.f32.gmra.mxu0 %v2755
        %v5303 = vpop.f32.mrf.mxu0
        %v5304 = vadd.f32 %v4999, %v5303
        %v5305 = vpop.f32.mrf.mxu0
        %5306 = vmatprep.mubr.f32.mxu0 0.0
        %5307 = vmatmul.mubr.f32.gmra.mxu0 %v2758
        %v5308 = vpop.f32.mrf.mxu0
        %v5309 = vadd.f32 %v5004, %v5308
        %v5310 = vpop.f32.mrf.mxu0
        %5311 = vmatprep.mubr.f32.mxu0 0.0
        %5312 = vmatmul.mubr.f32.gmra.mxu0 %v2761
        %v5313 = vpop.f32.mrf.mxu0
        %v5314 = vadd.f32 %v5009, %v5313
        %v5315 = vpop.f32.mrf.mxu0
        %5316 = vmatprep.mubr.f32.mxu0 0.0
        %5317 = vmatmul.mubr.f32.gmra.mxu0 %v2764
        %v5318 = vpop.f32.mrf.mxu0
        %v5319 = vadd.f32 %v5014, %v5318
        %v5320 = vpop.f32.mrf.mxu0
        %5321 = vmatprep.mubr.f32.mxu0 0.0
        %5322 = vmatmul.mubr.f32.gmra.mxu0 %v2767
        %v5323 = vpop.f32.mrf.mxu0
        %v5324 = vadd.f32 %v5019, %v5323
        %v5325 = vpop.f32.mrf.mxu0
        %5326 = vmatprep.mubr.f32.mxu0 0.0
        %5327 = vmatmul.mubr.f32.gmra.mxu0 %v2770
        %v5328 = vpop.f32.mrf.mxu0
        %v5329 = vadd.f32 %v5024, %v5328
        %v5330 = vpop.f32.mrf.mxu0
        %5331 = vmatprep.mubr.f32.mxu0 0.0
        %5332 = vmatmul.mubr.f32.gmra.mxu0 %v2773
        %v5333 = vpop.f32.mrf.mxu0
        %v5334 = vadd.f32 %v5029, %v5333
        %v5335 = vpop.f32.mrf.mxu0
        %5336 = vmatprep.mubr.f32.mxu0 0.0
        %5337 = vmatmul.mubr.f32.gmra.mxu0 %v2776
        %v5338 = vpop.f32.mrf.mxu0
        %v5339 = vadd.f32 %v5034, %v5338
        %v5340 = vpop.f32.mrf.mxu0
        %5341 = vmatprep.mubr.f32.mxu0 0.0
        %5342 = vmatmul.mubr.f32.gmra.mxu0 %v2779
        %v5343 = vpop.f32.mrf.mxu0
        %v5344 = vadd.f32 %v5039, %v5343
        %v5345 = vpop.f32.mrf.mxu0
        %5346 = vmatprep.mubr.f32.mxu0 0.0
        %5347 = vmatmul.mubr.f32.gmra.mxu0 %v2782
        %v5348 = vpop.f32.mrf.mxu0
        %v5349 = vadd.f32 %v5044, %v5348
        %v5350 = vpop.f32.mrf.mxu0
        %5351 = vmatprep.mubr.f32.mxu0 0.0
        %5352 = vmatmul.mubr.f32.gmra.mxu0 %v2785
        %v5353 = vpop.f32.mrf.mxu0
        %v5354 = vadd.f32 %v5049, %v5353
        %v5355 = vpop.f32.mrf.mxu0
        %5356 = vdwg.mxu0
        %s5357 = scalar_lea.vmem [#allocation9], 128
        %v5358 = vld [vmem:[%s5357] sm:$0xff]
        %v5359 = vld [vmem:[%s5357 + $0x8] sm:$0xff]
        %5360 = vmatprep.subr.mxu0 0.0
        %5361 = vmatpush1.msra.mxu0 0.0
        %5362 = vmatprep.subr.mxu0 0.0
        %5363 = vmatpush1.msra.mxu0 0.0
        %5364 = vmatprep.subr.mxu0 0.0
        %5365 = vmatpush1.msra.mxu0 0.0
        %5366 = vmatprep.subr.mxu0 0.0
        %5367 = vmatpush1.msra.mxu0 0.0
        %5368 = vmatprep.subr.mxu0 0.0
        %5369 = vmatpush1.msra.mxu0 0.0
        %5370 = vmatprep.subr.mxu0 0.0
        %5371 = vmatpush1.msra.mxu0 0.0
        %5372 = vmatprep.subr.mxu0 0.0
        %5373 = vmatpush1.msra.mxu0 0.0
        %5374 = vmatprep.subr.mxu0 0.0
        %5375 = vmatpush1.msra.mxu0 0.0
        %5376 = vmatprep.subr.mxu0 0.0
        %5377 = vmatpush1.msra.mxu0 0.0
        %5378 = vmatprep.subr.mxu0 0.0
        %5379 = vmatpush1.msra.mxu0 0.0
        %5380 = vmatprep.subr.mxu0 0.0
        %5381 = vmatpush1.msra.mxu0 0.0
        %5382 = vmatprep.subr.mxu0 0.0
        %5383 = vmatpush1.msra.mxu0 0.0
        %5384 = vmatprep.subr.mxu0 0.0
        %5385 = vmatpush1.msra.mxu0 0.0
        %5386 = vmatprep.subr.mxu0 0.0
        %5387 = vmatpush1.msra.mxu0 0.0
        %5388 = vmatprep.subr.mxu0 0.0
        %5389 = vmatpush1.msra.mxu0 %v5359
        %5390 = vmatprep.subr.mxu0 0.0
        %5391 = vmatpush1.msra.mxu0 %v5358
        %5392 = vmatprep.subr.mxu0 0.0
        %5393 = vmatpush2.msra.mxu0 0.0
        %5394 = vmatprep.subr.mxu0 0.0
        %5395 = vmatpush2.msra.mxu0 0.0
        %5396 = vmatprep.subr.mxu0 0.0
        %5397 = vmatpush2.msra.mxu0 0.0
        %5398 = vmatprep.subr.mxu0 0.0
        %5399 = vmatpush2.msra.mxu0 0.0
        %5400 = vmatprep.subr.mxu0 0.0
        %5401 = vmatpush2.msra.mxu0 0.0
        %5402 = vmatprep.subr.mxu0 0.0
        %5403 = vmatpush2.msra.mxu0 0.0
        %5404 = vmatprep.subr.mxu0 0.0
        %5405 = vmatpush2.msra.mxu0 0.0
        %5406 = vmatprep.subr.mxu0 0.0
        %5407 = vmatpush2.msra.mxu0 0.0
        %5408 = vmatprep.subr.mxu0 0.0
        %5409 = vmatpush2.msra.mxu0 0.0
        %5410 = vmatprep.subr.mxu0 0.0
        %5411 = vmatpush2.msra.mxu0 0.0
        %5412 = vmatprep.subr.mxu0 0.0
        %5413 = vmatpush2.msra.mxu0 0.0
        %5414 = vmatprep.subr.mxu0 0.0
        %5415 = vmatpush2.msra.mxu0 0.0
        %5416 = vmatprep.subr.mxu0 0.0
        %5417 = vmatpush2.msra.mxu0 0.0
        %5418 = vmatprep.subr.mxu0 0.0
        %5419 = vmatpush2.msra.mxu0 0.0
        %5420 = vmatprep.subr.mxu0 0.0
        %5421 = vmatpush2.msra.mxu0 0.0
        %5422 = vmatprep.subr.mxu0 0.0
        %5423 = vmatpush2.msra.mxu0 0.0
        %5424 = vmatprep.mubr.f32.mxu0 0.0
        %5425 = vmatmul.mubr.f32.gmra.mxu0 %v3096
        %v5426 = vpop.f32.mrf.mxu0
        %v5427 = vadd.f32 0.0, %v5426
        %v5428 = vpop.f32.mrf.mxu0
        %5429 = vmatprep.mubr.f32.mxu0 0.0
        %5430 = vmatmul.mubr.f32.gmra.mxu0 %v3099
        %v5431 = vpop.f32.mrf.mxu0
        %v5432 = vadd.f32 0.0, %v5431
        %v5433 = vpop.f32.mrf.mxu0
        %5434 = vmatprep.mubr.f32.mxu0 0.0
        %5435 = vmatmul.mubr.f32.gmra.mxu0 %v3102
        %v5436 = vpop.f32.mrf.mxu0
        %v5437 = vadd.f32 0.0, %v5436
        %v5438 = vpop.f32.mrf.mxu0
        %5439 = vmatprep.mubr.f32.mxu0 0.0
        %5440 = vmatmul.mubr.f32.gmra.mxu0 %v3105
        %v5441 = vpop.f32.mrf.mxu0
        %v5442 = vadd.f32 0.0, %v5441
        %v5443 = vpop.f32.mrf.mxu0
        %5444 = vmatprep.mubr.f32.mxu0 0.0
        %5445 = vmatmul.mubr.f32.gmra.mxu0 %v3108
        %v5446 = vpop.f32.mrf.mxu0
        %v5447 = vadd.f32 0.0, %v5446
        %v5448 = vpop.f32.mrf.mxu0
        %5449 = vmatprep.mubr.f32.mxu0 0.0
        %5450 = vmatmul.mubr.f32.gmra.mxu0 %v3111
        %v5451 = vpop.f32.mrf.mxu0
        %v5452 = vadd.f32 0.0, %v5451
        %v5453 = vpop.f32.mrf.mxu0
        %5454 = vmatprep.mubr.f32.mxu0 0.0
        %5455 = vmatmul.mubr.f32.gmra.mxu0 %v3114
        %v5456 = vpop.f32.mrf.mxu0
        %v5457 = vadd.f32 0.0, %v5456
        %v5458 = vpop.f32.mrf.mxu0
        %5459 = vmatprep.mubr.f32.mxu0 0.0
        %5460 = vmatmul.mubr.f32.gmra.mxu0 %v3117
        %v5461 = vpop.f32.mrf.mxu0
        %v5462 = vadd.f32 0.0, %v5461
        %v5463 = vpop.f32.mrf.mxu0
        %5464 = vmatprep.mubr.f32.mxu0 0.0
        %5465 = vmatmul.mubr.f32.gmra.mxu0 %v3120
        %v5466 = vpop.f32.mrf.mxu0
        %v5467 = vadd.f32 0.0, %v5466
        %v5468 = vpop.f32.mrf.mxu0
        %5469 = vmatprep.mubr.f32.mxu0 0.0
        %5470 = vmatmul.mubr.f32.gmra.mxu0 %v3123
        %v5471 = vpop.f32.mrf.mxu0
        %v5472 = vadd.f32 0.0, %v5471
        %v5473 = vpop.f32.mrf.mxu0
        %5474 = vmatprep.mubr.f32.mxu0 0.0
        %5475 = vmatmul.mubr.f32.gmra.mxu0 %v3126
        %v5476 = vpop.f32.mrf.mxu0
        %v5477 = vadd.f32 0.0, %v5476
        %v5478 = vpop.f32.mrf.mxu0
        %5479 = vmatprep.mubr.f32.mxu0 0.0
        %5480 = vmatmul.mubr.f32.gmra.mxu0 %v3129
        %v5481 = vpop.f32.mrf.mxu0
        %v5482 = vadd.f32 0.0, %v5481
        %v5483 = vpop.f32.mrf.mxu0
        %5484 = vmatprep.mubr.f32.mxu0 0.0
        %5485 = vmatmul.mubr.f32.gmra.mxu0 %v3132
        %v5486 = vpop.f32.mrf.mxu0
        %v5487 = vadd.f32 0.0, %v5486
        %v5488 = vpop.f32.mrf.mxu0
        %5489 = vmatprep.mubr.f32.mxu0 0.0
        %5490 = vmatmul.mubr.f32.gmra.mxu0 %v3135
        %v5491 = vpop.f32.mrf.mxu0
        %v5492 = vadd.f32 0.0, %v5491
        %v5493 = vpop.f32.mrf.mxu0
        %5494 = vmatprep.mubr.f32.mxu0 0.0
        %5495 = vmatmul.mubr.f32.gmra.mxu0 %v3138
        %v5496 = vpop.f32.mrf.mxu0
        %v5497 = vadd.f32 0.0, %v5496
        %v5498 = vpop.f32.mrf.mxu0
        %5499 = vmatprep.mubr.f32.mxu0 0.0
        %5500 = vmatmul.mubr.f32.gmra.mxu0 %v3141
        %v5501 = vpop.f32.mrf.mxu0
        %v5502 = vadd.f32 0.0, %v5501
        %v5503 = vpop.f32.mrf.mxu0
        %5504 = vmatprep.mubr.f32.mxu0 0.0
        %5505 = vmatmul.mubr.f32.gmra.mxu0 %v3144
        %v5506 = vpop.f32.mrf.mxu0
        %v5507 = vadd.f32 0.0, %v5506
        %v5508 = vpop.f32.mrf.mxu0
        %5509 = vmatprep.mubr.f32.mxu0 0.0
        %5510 = vmatmul.mubr.f32.gmra.mxu0 %v3147
        %v5511 = vpop.f32.mrf.mxu0
        %v5512 = vadd.f32 0.0, %v5511
        %v5513 = vpop.f32.mrf.mxu0
        %5514 = vmatprep.mubr.f32.mxu0 0.0
        %5515 = vmatmul.mubr.f32.gmra.mxu0 %v3150
        %v5516 = vpop.f32.mrf.mxu0
        %v5517 = vadd.f32 0.0, %v5516
        %v5518 = vpop.f32.mrf.mxu0
        %5519 = vmatprep.mubr.f32.mxu0 0.0
        %5520 = vmatmul.mubr.f32.gmra.mxu0 %v3153
        %v5521 = vpop.f32.mrf.mxu0
        %v5522 = vadd.f32 0.0, %v5521
        %v5523 = vpop.f32.mrf.mxu0
        %5524 = vmatprep.mubr.f32.mxu0 0.0
        %5525 = vmatmul.mubr.f32.gmra.mxu0 %v3156
        %v5526 = vpop.f32.mrf.mxu0
        %v5527 = vadd.f32 0.0, %v5526
        %v5528 = vpop.f32.mrf.mxu0
        %5529 = vmatprep.mubr.f32.mxu0 0.0
        %5530 = vmatmul.mubr.f32.gmra.mxu0 %v3159
        %v5531 = vpop.f32.mrf.mxu0
        %v5532 = vadd.f32 0.0, %v5531
        %v5533 = vpop.f32.mrf.mxu0
        %5534 = vmatprep.mubr.f32.mxu0 0.0
        %5535 = vmatmul.mubr.f32.gmra.mxu0 %v3162
        %v5536 = vpop.f32.mrf.mxu0
        %v5537 = vadd.f32 0.0, %v5536
        %v5538 = vpop.f32.mrf.mxu0
        %5539 = vmatprep.mubr.f32.mxu0 0.0
        %5540 = vmatmul.mubr.f32.gmra.mxu0 %v3165
        %v5541 = vpop.f32.mrf.mxu0
        %v5542 = vadd.f32 0.0, %v5541
        %v5543 = vpop.f32.mrf.mxu0
        %5544 = vmatprep.mubr.f32.mxu0 0.0
        %5545 = vmatmul.mubr.f32.gmra.mxu0 %v3168
        %v5546 = vpop.f32.mrf.mxu0
        %v5547 = vadd.f32 0.0, %v5546
        %v5548 = vpop.f32.mrf.mxu0
        %5549 = vmatprep.mubr.f32.mxu0 0.0
        %5550 = vmatmul.mubr.f32.gmra.mxu0 %v3171
        %v5551 = vpop.f32.mrf.mxu0
        %v5552 = vadd.f32 0.0, %v5551
        %v5553 = vpop.f32.mrf.mxu0
        %5554 = vmatprep.mubr.f32.mxu0 0.0
        %5555 = vmatmul.mubr.f32.gmra.mxu0 %v3174
        %v5556 = vpop.f32.mrf.mxu0
        %v5557 = vadd.f32 0.0, %v5556
        %v5558 = vpop.f32.mrf.mxu0
        %5559 = vmatprep.mubr.f32.mxu0 0.0
        %5560 = vmatmul.mubr.f32.gmra.mxu0 %v3177
        %v5561 = vpop.f32.mrf.mxu0
        %v5562 = vadd.f32 0.0, %v5561
        %v5563 = vpop.f32.mrf.mxu0
        %5564 = vmatprep.mubr.f32.mxu0 0.0
        %5565 = vmatmul.mubr.f32.gmra.mxu0 %v3180
        %v5566 = vpop.f32.mrf.mxu0
        %v5567 = vadd.f32 0.0, %v5566
        %v5568 = vpop.f32.mrf.mxu0
        %5569 = vmatprep.mubr.f32.mxu0 0.0
        %5570 = vmatmul.mubr.f32.gmra.mxu0 %v3183
        %v5571 = vpop.f32.mrf.mxu0
        %v5572 = vadd.f32 0.0, %v5571
        %v5573 = vpop.f32.mrf.mxu0
        %5574 = vmatprep.mubr.f32.mxu0 0.0
        %5575 = vmatmul.mubr.f32.gmra.mxu0 %v3186
        %v5576 = vpop.f32.mrf.mxu0
        %v5577 = vadd.f32 0.0, %v5576
        %v5578 = vpop.f32.mrf.mxu0
        %5579 = vmatprep.mubr.f32.mxu0 0.0
        %5580 = vmatmul.mubr.f32.gmra.mxu0 %v3189
        %v5581 = vpop.f32.mrf.mxu0
        %v5582 = vadd.f32 0.0, %v5581
        %v5583 = vpop.f32.mrf.mxu0
        %5584 = vmatprep.mubr.f32.mxu0 0.0
        %5585 = vmatmul.mubr.f32.gmra.mxu0 %v3192
        %v5586 = vpop.f32.mrf.mxu0
        %v5587 = vadd.f32 0.0, %v5586
        %v5588 = vpop.f32.mrf.mxu0
        %5589 = vmatprep.mubr.f32.mxu0 0.0
        %5590 = vmatmul.mubr.f32.gmra.mxu0 %v3195
        %v5591 = vpop.f32.mrf.mxu0
        %v5592 = vadd.f32 0.0, %v5591
        %v5593 = vpop.f32.mrf.mxu0
        %5594 = vmatprep.mubr.f32.mxu0 0.0
        %5595 = vmatmul.mubr.f32.gmra.mxu0 %v3198
        %v5596 = vpop.f32.mrf.mxu0
        %v5597 = vadd.f32 0.0, %v5596
        %v5598 = vpop.f32.mrf.mxu0
        %5599 = vmatprep.mubr.f32.mxu0 0.0
        %5600 = vmatmul.mubr.f32.gmra.mxu0 %v3201
        %v5601 = vpop.f32.mrf.mxu0
        %v5602 = vadd.f32 0.0, %v5601
        %v5603 = vpop.f32.mrf.mxu0
        %5604 = vmatprep.mubr.f32.mxu0 0.0
        %5605 = vmatmul.mubr.f32.gmra.mxu0 %v3204
        %v5606 = vpop.f32.mrf.mxu0
        %v5607 = vadd.f32 0.0, %v5606
        %v5608 = vpop.f32.mrf.mxu0
        %5609 = vmatprep.mubr.f32.mxu0 0.0
        %5610 = vmatmul.mubr.f32.gmra.mxu0 %v3207
        %v5611 = vpop.f32.mrf.mxu0
        %v5612 = vadd.f32 0.0, %v5611
        %v5613 = vpop.f32.mrf.mxu0
        %5614 = vmatprep.mubr.f32.mxu0 0.0
        %5615 = vmatmul.mubr.f32.gmra.mxu0 %v3210
        %v5616 = vpop.f32.mrf.mxu0
        %v5617 = vadd.f32 0.0, %v5616
        %v5618 = vpop.f32.mrf.mxu0
        %5619 = vmatprep.mubr.f32.mxu0 0.0
        %5620 = vmatmul.mubr.f32.gmra.mxu0 %v3213
        %v5621 = vpop.f32.mrf.mxu0
        %v5622 = vadd.f32 0.0, %v5621
        %v5623 = vpop.f32.mrf.mxu0
        %5624 = vmatprep.mubr.f32.mxu0 0.0
        %5625 = vmatmul.mubr.f32.gmra.mxu0 %v3216
        %v5626 = vpop.f32.mrf.mxu0
        %v5627 = vadd.f32 0.0, %v5626
        %v5628 = vpop.f32.mrf.mxu0
        %5629 = vmatprep.mubr.f32.mxu0 0.0
        %5630 = vmatmul.mubr.f32.gmra.mxu0 %v3219
        %v5631 = vpop.f32.mrf.mxu0
        %v5632 = vadd.f32 0.0, %v5631
        %v5633 = vpop.f32.mrf.mxu0
        %5634 = vmatprep.mubr.f32.mxu0 0.0
        %5635 = vmatmul.mubr.f32.gmra.mxu0 %v3222
        %v5636 = vpop.f32.mrf.mxu0
        %v5637 = vadd.f32 0.0, %v5636
        %v5638 = vpop.f32.mrf.mxu0
        %5639 = vmatprep.mubr.f32.mxu0 0.0
        %5640 = vmatmul.mubr.f32.gmra.mxu0 %v3225
        %v5641 = vpop.f32.mrf.mxu0
        %v5642 = vadd.f32 0.0, %v5641
        %v5643 = vpop.f32.mrf.mxu0
        %5644 = vmatprep.mubr.f32.mxu0 0.0
        %5645 = vmatmul.mubr.f32.gmra.mxu0 %v3228
        %v5646 = vpop.f32.mrf.mxu0
        %v5647 = vadd.f32 0.0, %v5646
        %v5648 = vpop.f32.mrf.mxu0
        %5649 = vmatprep.mubr.f32.mxu0 0.0
        %5650 = vmatmul.mubr.f32.gmra.mxu0 %v3231
        %v5651 = vpop.f32.mrf.mxu0
        %v5652 = vadd.f32 0.0, %v5651
        %v5653 = vpop.f32.mrf.mxu0
        %5654 = vmatprep.mubr.f32.mxu0 0.0
        %5655 = vmatmul.mubr.f32.gmra.mxu0 %v3234
        %v5656 = vpop.f32.mrf.mxu0
        %v5657 = vadd.f32 0.0, %v5656
        %v5658 = vpop.f32.mrf.mxu0
        %5659 = vmatprep.mubr.f32.mxu0 0.0
        %5660 = vmatmul.mubr.f32.gmra.mxu0 %v3237
        %v5661 = vpop.f32.mrf.mxu0
        %v5662 = vadd.f32 0.0, %v5661
        %v5663 = vpop.f32.mrf.mxu0
        %5664 = vdwg.mxu0
        %v5665 = vadd.f32 %v5119, %v5427
        %v5666 = vadd.f32 %v5124, %v5432
        %v5667 = vadd.f32 %v5129, %v5437
        %v5668 = vadd.f32 %v5134, %v5442
        %v5669 = vadd.f32 %v5139, %v5447
        %v5670 = vadd.f32 %v5144, %v5452
        %v5671 = vadd.f32 %v5149, %v5457
        %v5672 = vadd.f32 %v5154, %v5462
        %v5673 = vadd.f32 %v5159, %v5467
        %v5674 = vadd.f32 %v5164, %v5472
        %v5675 = vadd.f32 %v5169, %v5477
        %v5676 = vadd.f32 %v5174, %v5482
        %v5677 = vadd.f32 %v5179, %v5487
        %v5678 = vadd.f32 %v5184, %v5492
        %v5679 = vadd.f32 %v5189, %v5497
        %v5680 = vadd.f32 %v5194, %v5502
        %v5681 = vadd.f32 %v5199, %v5507
        %v5682 = vadd.f32 %v5204, %v5512
        %v5683 = vadd.f32 %v5209, %v5517
        %v5684 = vadd.f32 %v5214, %v5522
        %v5685 = vadd.f32 %v5219, %v5527
        %v5686 = vadd.f32 %v5224, %v5532
        %v5687 = vadd.f32 %v5229, %v5537
        %v5688 = vadd.f32 %v5234, %v5542
        %v5689 = vadd.f32 %v5239, %v5547
        %v5690 = vadd.f32 %v5244, %v5552
        %v5691 = vadd.f32 %v5249, %v5557
        %v5692 = vadd.f32 %v5254, %v5562
        %v5693 = vadd.f32 %v5259, %v5567
        %v5694 = vadd.f32 %v5264, %v5572
        %v5695 = vadd.f32 %v5269, %v5577
        %v5696 = vadd.f32 %v5274, %v5582
        %v5697 = vadd.f32 %v5279, %v5587
        %v5698 = vadd.f32 %v5284, %v5592
        %v5699 = vadd.f32 %v5289, %v5597
        %v5700 = vadd.f32 %v5294, %v5602
        %v5701 = vadd.f32 %v5299, %v5607
        %v5702 = vadd.f32 %v5304, %v5612
        %v5703 = vadd.f32 %v5309, %v5617
        %v5704 = vadd.f32 %v5314, %v5622
        %v5705 = vadd.f32 %v5319, %v5627
        %v5706 = vadd.f32 %v5324, %v5632
        %v5707 = vadd.f32 %v5329, %v5637
        %v5708 = vadd.f32 %v5334, %v5642
        %v5709 = vadd.f32 %v5339, %v5647
        %v5710 = vadd.f32 %v5344, %v5652
        %v5711 = vadd.f32 %v5349, %v5657
        %v5712 = vadd.f32 %v5354, %v5662
        %vm5761 = vcmask 1046528
        %v5762 = vrot.slane %v5665, 1
        %v5763 = vrot.slane %v5666, 1
        %v5764 = vsel %vm5761, %v5762, %v5763
        %v5765 = vrot.slane %v5667, 1
        %v5766 = vsel %vm5761, %v5763, %v5765
        %v5767 = vrot.slane %v5668, 1
        %v5768 = vrot.slane %v5669, 1
        %v5769 = vsel %vm5761, %v5767, %v5768
        %v5770 = vrot.slane %v5670, 1
        %v5771 = vsel %vm5761, %v5768, %v5770
        %v5772 = vrot.slane %v5671, 1
        %v5773 = vrot.slane %v5672, 1
        %v5774 = vsel %vm5761, %v5772, %v5773
        %v5775 = vrot.slane %v5673, 1
        %v5776 = vsel %vm5761, %v5773, %v5775
        %v5777 = vrot.slane %v5674, 1
        %v5778 = vrot.slane %v5675, 1
        %v5779 = vsel %vm5761, %v5777, %v5778
        %v5780 = vrot.slane %v5676, 1
        %v5781 = vsel %vm5761, %v5778, %v5780
        %v5782 = vrot.slane %v5677, 1
        %v5783 = vrot.slane %v5678, 1
        %v5784 = vsel %vm5761, %v5782, %v5783
        %v5785 = vrot.slane %v5679, 1
        %v5786 = vsel %vm5761, %v5783, %v5785
        %v5787 = vrot.slane %v5680, 1
        %v5788 = vrot.slane %v5681, 1
        %v5789 = vsel %vm5761, %v5787, %v5788
        %v5790 = vrot.slane %v5682, 1
        %v5791 = vsel %vm5761, %v5788, %v5790
        %v5792 = vrot.slane %v5683, 1
        %v5793 = vrot.slane %v5684, 1
        %v5794 = vsel %vm5761, %v5792, %v5793
        %v5795 = vrot.slane %v5685, 1
        %v5796 = vsel %vm5761, %v5793, %v5795
        %v5797 = vrot.slane %v5686, 1
        %v5798 = vrot.slane %v5687, 1
        %v5799 = vsel %vm5761, %v5797, %v5798
        %v5800 = vrot.slane %v5688, 1
        %v5801 = vsel %vm5761, %v5798, %v5800
        %v5802 = vrot.slane %v5689, 1
        %v5803 = vrot.slane %v5690, 1
        %v5804 = vsel %vm5761, %v5802, %v5803
        %v5805 = vrot.slane %v5691, 1
        %v5806 = vsel %vm5761, %v5803, %v5805
        %v5807 = vrot.slane %v5692, 1
        %v5808 = vrot.slane %v5693, 1
        %v5809 = vsel %vm5761, %v5807, %v5808
        %v5810 = vrot.slane %v5694, 1
        %v5811 = vsel %vm5761, %v5808, %v5810
        %v5812 = vrot.slane %v5695, 1
        %v5813 = vrot.slane %v5696, 1
        %v5814 = vsel %vm5761, %v5812, %v5813
        %v5815 = vrot.slane %v5697, 1
        %v5816 = vsel %vm5761, %v5813, %v5815
        %v5817 = vrot.slane %v5698, 1
        %v5818 = vrot.slane %v5699, 1
        %v5819 = vsel %vm5761, %v5817, %v5818
        %v5820 = vrot.slane %v5700, 1
        %v5821 = vsel %vm5761, %v5818, %v5820
        %v5822 = vrot.slane %v5701, 1
        %v5823 = vrot.slane %v5702, 1
        %v5824 = vsel %vm5761, %v5822, %v5823
        %v5825 = vrot.slane %v5703, 1
        %v5826 = vsel %vm5761, %v5823, %v5825
        %v5827 = vrot.slane %v5704, 1
        %v5828 = vrot.slane %v5705, 1
        %v5829 = vsel %vm5761, %v5827, %v5828
        %v5830 = vrot.slane %v5706, 1
        %v5831 = vsel %vm5761, %v5828, %v5830
        %v5832 = vrot.slane %v5707, 1
        %v5833 = vrot.slane %v5708, 1
        %v5834 = vsel %vm5761, %v5832, %v5833
        %v5835 = vrot.slane %v5709, 1
        %v5836 = vsel %vm5761, %v5833, %v5835
        %v5837 = vrot.slane %v5710, 1
        %v5838 = vrot.slane %v5711, 1
        %v5839 = vsel %vm5761, %v5837, %v5838
        %v5840 = vrot.slane %v5712, 1
        %v5841 = vsel %vm5761, %v5838, %v5840
        %v5874 = vadd.f32 %v4709, %v5764
        %v5875 = vadd.f32 %v4710, %v5766
        %v5876 = vadd.f32 %v4711, %v5769
        %v5877 = vadd.f32 %v4712, %v5771
        %v5878 = vadd.f32 %v4713, %v5774
        %v5879 = vadd.f32 %v4714, %v5776
        %v5880 = vadd.f32 %v4715, %v5779
        %v5881 = vadd.f32 %v4716, %v5781
        %v5882 = vadd.f32 %v4717, %v5784
        %v5883 = vadd.f32 %v4718, %v5786
        %v5884 = vadd.f32 %v4719, %v5789
        %v5885 = vadd.f32 %v4720, %v5791
        %v5886 = vadd.f32 %v4721, %v5794
        %v5887 = vadd.f32 %v4722, %v5796
        %v5888 = vadd.f32 %v4723, %v5799
        %v5889 = vadd.f32 %v4724, %v5801
        %v5890 = vadd.f32 %v4725, %v5804
        %v5891 = vadd.f32 %v4726, %v5806
        %v5892 = vadd.f32 %v4727, %v5809
        %v5893 = vadd.f32 %v4728, %v5811
        %v5894 = vadd.f32 %v4729, %v5814
        %v5895 = vadd.f32 %v4730, %v5816
        %v5896 = vadd.f32 %v4731, %v5819
        %v5897 = vadd.f32 %v4732, %v5821
        %v5898 = vadd.f32 %v4733, %v5824
        %v5899 = vadd.f32 %v4734, %v5826
        %v5900 = vadd.f32 %v4735, %v5829
        %v5901 = vadd.f32 %v4736, %v5831
        %v5902 = vadd.f32 %v4737, %v5834
        %v5903 = vadd.f32 %v4738, %v5836
        %v5904 = vadd.f32 %v4739, %v5839
        %v5905 = vadd.f32 %v4740, %v5841
        %v5906 = vld [vmem:[%s8] sm:$0x1]
        %v5908 = vlaneseq
        %v5909 = vshrl.u32 %v5908, 7
        %v5910 = vsub.s32 0, %v5909
        %v5911 = vrot.slane %v5906, %v5910
        %v5913 = vadd.f32 %v5874, %v5911
        %v5914 = vadd.f32 %v5875, %v5911
        %v5915 = vadd.f32 %v5876, %v5911
        %v5916 = vadd.f32 %v5877, %v5911
        %v5917 = vadd.f32 %v5878, %v5911
        %v5918 = vadd.f32 %v5879, %v5911
        %v5919 = vadd.f32 %v5880, %v5911
        %v5920 = vadd.f32 %v5881, %v5911
        %v5921 = vadd.f32 %v5882, %v5911
        %v5922 = vadd.f32 %v5883, %v5911
        %v5923 = vadd.f32 %v5884, %v5911
        %v5924 = vadd.f32 %v5885, %v5911
        %v5925 = vadd.f32 %v5886, %v5911
        %v5926 = vadd.f32 %v5887, %v5911
        %v5927 = vadd.f32 %v5888, %v5911
        %v5928 = vadd.f32 %v5889, %v5911
        %v5929 = vadd.f32 %v5890, %v5911
        %v5930 = vadd.f32 %v5891, %v5911
        %v5931 = vadd.f32 %v5892, %v5911
        %v5932 = vadd.f32 %v5893, %v5911
        %v5933 = vadd.f32 %v5894, %v5911
        %v5934 = vadd.f32 %v5895, %v5911
        %v5935 = vadd.f32 %v5896, %v5911
        %v5936 = vadd.f32 %v5897, %v5911
        %v5937 = vadd.f32 %v5898, %v5911
        %v5938 = vadd.f32 %v5899, %v5911
        %v5939 = vadd.f32 %v5900, %v5911
        %v5940 = vadd.f32 %v5901, %v5911
        %v5941 = vadd.f32 %v5902, %v5911
        %v5942 = vadd.f32 %v5903, %v5911
        %v5943 = vadd.f32 %v5904, %v5911
        %v5944 = vadd.f32 %v5905, %v5911
        %v5945 = vxor.u32 %v5913, 2147483648
        %v5946 = vxor.u32 %v5914, 2147483648
        %v5947 = vxor.u32 %v5915, 2147483648
        %v5948 = vxor.u32 %v5916, 2147483648
        %v5949 = vxor.u32 %v5917, 2147483648
        %v5950 = vxor.u32 %v5918, 2147483648
        %v5951 = vxor.u32 %v5919, 2147483648
        %v5952 = vxor.u32 %v5920, 2147483648
        %v5953 = vxor.u32 %v5921, 2147483648
        %v5954 = vxor.u32 %v5922, 2147483648
        %v5955 = vxor.u32 %v5923, 2147483648
        %v5956 = vxor.u32 %v5924, 2147483648
        %v5957 = vxor.u32 %v5925, 2147483648
        %v5958 = vxor.u32 %v5926, 2147483648
        %v5959 = vxor.u32 %v5927, 2147483648
        %v5960 = vxor.u32 %v5928, 2147483648
        %v5961 = vxor.u32 %v5929, 2147483648
        %v5962 = vxor.u32 %v5930, 2147483648
        %v5963 = vxor.u32 %v5931, 2147483648
        %v5964 = vxor.u32 %v5932, 2147483648
        %v5965 = vxor.u32 %v5933, 2147483648
        %v5966 = vxor.u32 %v5934, 2147483648
        %v5967 = vxor.u32 %v5935, 2147483648
        %v5968 = vxor.u32 %v5936, 2147483648
        %v5969 = vxor.u32 %v5937, 2147483648
        %v5970 = vxor.u32 %v5938, 2147483648
        %v5971 = vxor.u32 %v5939, 2147483648
        %v5972 = vxor.u32 %v5940, 2147483648
        %v5973 = vxor.u32 %v5941, 2147483648
        %v5974 = vxor.u32 %v5942, 2147483648
        %v5975 = vxor.u32 %v5943, 2147483648
        %v5976 = vxor.u32 %v5944, 2147483648
        %v5977 = vmul.f32 %v5945, 1.442695
        %v5978 = vpow.pop %v5977
        %v5979 = vmul.f32 %v5946, 1.442695
        %v5980 = vpow.pop %v5979
        %v5981 = vmul.f32 %v5947, 1.442695
        %v5982 = vpow.pop %v5981
        %v5983 = vmul.f32 %v5948, 1.442695
        %v5984 = vpow.pop %v5983
        %v5985 = vmul.f32 %v5949, 1.442695
        %v5986 = vpow.pop %v5985
        %v5987 = vmul.f32 %v5950, 1.442695
        %v5988 = vpow.pop %v5987
        %v5989 = vmul.f32 %v5951, 1.442695
        %v5990 = vpow.pop %v5989
        %v5991 = vmul.f32 %v5952, 1.442695
        %v5992 = vpow.pop %v5991
        %v5993 = vmul.f32 %v5953, 1.442695
        %v5994 = vpow.pop %v5993
        %v5995 = vmul.f32 %v5954, 1.442695
        %v5996 = vpow.pop %v5995
        %v5997 = vmul.f32 %v5955, 1.442695
        %v5998 = vpow.pop %v5997
        %v5999 = vmul.f32 %v5956, 1.442695
        %v6000 = vpow.pop %v5999
        %v6001 = vmul.f32 %v5957, 1.442695
        %v6002 = vpow.pop %v6001
        %v6003 = vmul.f32 %v5958, 1.442695
        %v6004 = vpow.pop %v6003
        %v6005 = vmul.f32 %v5959, 1.442695
        %v6006 = vpow.pop %v6005
        %v6007 = vmul.f32 %v5960, 1.442695
        %v6008 = vpow.pop %v6007
        %v6009 = vmul.f32 %v5961, 1.442695
        %v6010 = vpow.pop %v6009
        %v6011 = vmul.f32 %v5962, 1.442695
        %v6012 = vpow.pop %v6011
        %v6013 = vmul.f32 %v5963, 1.442695
        %v6014 = vpow.pop %v6013
        %v6015 = vmul.f32 %v5964, 1.442695
        %v6016 = vpow.pop %v6015
        %v6017 = vmul.f32 %v5965, 1.442695
        %v6018 = vpow.pop %v6017
        %v6019 = vmul.f32 %v5966, 1.442695
        %v6020 = vpow.pop %v6019
        %v6021 = vmul.f32 %v5967, 1.442695
        %v6022 = vpow.pop %v6021
        %v6023 = vmul.f32 %v5968, 1.442695
        %v6024 = vpow.pop %v6023
        %v6025 = vmul.f32 %v5969, 1.442695
        %v6026 = vpow.pop %v6025
        %v6027 = vmul.f32 %v5970, 1.442695
        %v6028 = vpow.pop %v6027
        %v6029 = vmul.f32 %v5971, 1.442695
        %v6030 = vpow.pop %v6029
        %v6031 = vmul.f32 %v5972, 1.442695
        %v6032 = vpow.pop %v6031
        %v6033 = vmul.f32 %v5973, 1.442695
        %v6034 = vpow.pop %v6033
        %v6035 = vmul.f32 %v5974, 1.442695
        %v6036 = vpow.pop %v6035
        %v6037 = vmul.f32 %v5975, 1.442695
        %v6038 = vpow.pop %v6037
        %v6039 = vmul.f32 %v5976, 1.442695
        %v6040 = vpow.pop %v6039
        %v6041 = vadd.f32 %v5978, 1.0
        %v6042 = vadd.f32 %v5980, 1.0
        %v6043 = vadd.f32 %v5982, 1.0
        %v6044 = vadd.f32 %v5984, 1.0
        %v6045 = vadd.f32 %v5986, 1.0
        %v6046 = vadd.f32 %v5988, 1.0
        %v6047 = vadd.f32 %v5990, 1.0
        %v6048 = vadd.f32 %v5992, 1.0
        %v6049 = vadd.f32 %v5994, 1.0
        %v6050 = vadd.f32 %v5996, 1.0
        %v6051 = vadd.f32 %v5998, 1.0
        %v6052 = vadd.f32 %v6000, 1.0
        %v6053 = vadd.f32 %v6002, 1.0
        %v6054 = vadd.f32 %v6004, 1.0
        %v6055 = vadd.f32 %v6006, 1.0
        %v6056 = vadd.f32 %v6008, 1.0
        %v6057 = vadd.f32 %v6010, 1.0
        %v6058 = vadd.f32 %v6012, 1.0
        %v6059 = vadd.f32 %v6014, 1.0
        %v6060 = vadd.f32 %v6016, 1.0
        %v6061 = vadd.f32 %v6018, 1.0
        %v6062 = vadd.f32 %v6020, 1.0
        %v6063 = vadd.f32 %v6022, 1.0
        %v6064 = vadd.f32 %v6024, 1.0
        %v6065 = vadd.f32 %v6026, 1.0
        %v6066 = vadd.f32 %v6028, 1.0
        %v6067 = vadd.f32 %v6030, 1.0
        %v6068 = vadd.f32 %v6032, 1.0
        %v6069 = vadd.f32 %v6034, 1.0
        %v6070 = vadd.f32 %v6036, 1.0
        %v6071 = vadd.f32 %v6038, 1.0
        %v6072 = vadd.f32 %v6040, 1.0
        %v6073 = vrcp.pop %v6041
        %v6074 = vmul.f32 1.0, %v6073
        %v6075 = vrcp.pop %v6042
        %v6076 = vmul.f32 1.0, %v6075
        %v6077 = vrcp.pop %v6043
        %v6078 = vmul.f32 1.0, %v6077
        %v6079 = vrcp.pop %v6044
        %v6080 = vmul.f32 1.0, %v6079
        %v6081 = vrcp.pop %v6045
        %v6082 = vmul.f32 1.0, %v6081
        %v6083 = vrcp.pop %v6046
        %v6084 = vmul.f32 1.0, %v6083
        %v6085 = vrcp.pop %v6047
        %v6086 = vmul.f32 1.0, %v6085
        %v6087 = vrcp.pop %v6048
        %v6088 = vmul.f32 1.0, %v6087
        %v6089 = vrcp.pop %v6049
        %v6090 = vmul.f32 1.0, %v6089
        %v6091 = vrcp.pop %v6050
        %v6092 = vmul.f32 1.0, %v6091
        %v6093 = vrcp.pop %v6051
        %v6094 = vmul.f32 1.0, %v6093
        %v6095 = vrcp.pop %v6052
        %v6096 = vmul.f32 1.0, %v6095
        %v6097 = vrcp.pop %v6053
        %v6098 = vmul.f32 1.0, %v6097
        %v6099 = vrcp.pop %v6054
        %v6100 = vmul.f32 1.0, %v6099
        %v6101 = vrcp.pop %v6055
        %v6102 = vmul.f32 1.0, %v6101
        %v6103 = vrcp.pop %v6056
        %v6104 = vmul.f32 1.0, %v6103
        %v6105 = vrcp.pop %v6057
        %v6106 = vmul.f32 1.0, %v6105
        %v6107 = vrcp.pop %v6058
        %v6108 = vmul.f32 1.0, %v6107
        %v6109 = vrcp.pop %v6059
        %v6110 = vmul.f32 1.0, %v6109
        %v6111 = vrcp.pop %v6060
        %v6112 = vmul.f32 1.0, %v6111
        %v6113 = vrcp.pop %v6061
        %v6114 = vmul.f32 1.0, %v6113
        %v6115 = vrcp.pop %v6062
        %v6116 = vmul.f32 1.0, %v6115
        %v6117 = vrcp.pop %v6063
        %v6118 = vmul.f32 1.0, %v6117
        %v6119 = vrcp.pop %v6064
        %v6120 = vmul.f32 1.0, %v6119
        %v6121 = vrcp.pop %v6065
        %v6122 = vmul.f32 1.0, %v6121
        %v6123 = vrcp.pop %v6066
        %v6124 = vmul.f32 1.0, %v6123
        %v6125 = vrcp.pop %v6067
        %v6126 = vmul.f32 1.0, %v6125
        %v6127 = vrcp.pop %v6068
        %v6128 = vmul.f32 1.0, %v6127
        %v6129 = vrcp.pop %v6069
        %v6130 = vmul.f32 1.0, %v6129
        %v6131 = vrcp.pop %v6070
        %v6132 = vmul.f32 1.0, %v6131
        %v6133 = vrcp.pop %v6071
        %v6134 = vmul.f32 1.0, %v6133
        %v6135 = vrcp.pop %v6072
        %v6136 = vmul.f32 1.0, %v6135
        %v6137 = vmul.f32 %v5913, %v6074
        %v6138 = vmul.f32 %v5914, %v6076
        %v6139 = vmul.f32 %v5915, %v6078
        %v6140 = vmul.f32 %v5916, %v6080
        %v6141 = vmul.f32 %v5917, %v6082
        %v6142 = vmul.f32 %v5918, %v6084
        %v6143 = vmul.f32 %v5919, %v6086
        %v6144 = vmul.f32 %v5920, %v6088
        %v6145 = vmul.f32 %v5921, %v6090
        %v6146 = vmul.f32 %v5922, %v6092
        %v6147 = vmul.f32 %v5923, %v6094
        %v6148 = vmul.f32 %v5924, %v6096
        %v6149 = vmul.f32 %v5925, %v6098
        %v6150 = vmul.f32 %v5926, %v6100
        %v6151 = vmul.f32 %v5927, %v6102
        %v6152 = vmul.f32 %v5928, %v6104
        %v6153 = vmul.f32 %v5929, %v6106
        %v6154 = vmul.f32 %v5930, %v6108
        %v6155 = vmul.f32 %v5931, %v6110
        %v6156 = vmul.f32 %v5932, %v6112
        %v6157 = vmul.f32 %v5933, %v6114
        %v6158 = vmul.f32 %v5934, %v6116
        %v6159 = vmul.f32 %v5935, %v6118
        %v6160 = vmul.f32 %v5936, %v6120
        %v6161 = vmul.f32 %v5937, %v6122
        %v6162 = vmul.f32 %v5938, %v6124
        %v6163 = vmul.f32 %v5939, %v6126
        %v6164 = vmul.f32 %v5940, %v6128
        %v6165 = vmul.f32 %v5941, %v6130
        %v6166 = vmul.f32 %v5942, %v6132
        %v6167 = vmul.f32 %v5943, %v6134
        %v6168 = vmul.f32 %v5944, %v6136
        %6169 = vst.msk [vmem:[%s555] sm:$0xff] %vm1176, %v6137
        %6170 = vst.msk [vmem:[%s555 + $0x8] sm:$0xff] %vm1176, %v6138
        %6171 = vst.msk [vmem:[%s555 + $0x10] sm:$0xff] %vm1176, %v6139
        %6172 = vst.msk [vmem:[%s555 + $0x18] sm:$0xff] %vm1176, %v6140
        %6173 = vst.msk [vmem:[%s555 + $0x20] sm:$0xff] %vm1176, %v6141
        %6174 = vst.msk [vmem:[%s555 + $0x28] sm:$0xff] %vm1176, %v6142
        %6175 = vst.msk [vmem:[%s555 + $0x30] sm:$0xff] %vm1176, %v6143
        %6176 = vst.msk [vmem:[%s555 + $0x38] sm:$0xff] %vm1176, %v6144
        %6177 = vst.msk [vmem:[%s555 + $0x40] sm:$0xff] %vm1176, %v6145
        %6178 = vst.msk [vmem:[%s555 + $0x48] sm:$0xff] %vm1176, %v6146
        %6179 = vst.msk [vmem:[%s555 + $0x50] sm:$0xff] %vm1176, %v6147
        %6180 = vst.msk [vmem:[%s555 + $0x58] sm:$0xff] %vm1176, %v6148
        %6181 = vst.msk [vmem:[%s555 + $0x60] sm:$0xff] %vm1176, %v6149
        %6182 = vst.msk [vmem:[%s555 + $0x68] sm:$0xff] %vm1176, %v6150
        %6183 = vst.msk [vmem:[%s555 + $0x70] sm:$0xff] %vm1176, %v6151
        %6184 = vst.msk [vmem:[%s555 + $0x78] sm:$0xff] %vm1176, %v6152
        %6185 = vst.msk [vmem:[%s555 + $0x80] sm:$0xff] %vm1176, %v6153
        %6186 = vst.msk [vmem:[%s555 + $0x88] sm:$0xff] %vm1176, %v6154
        %6187 = vst.msk [vmem:[%s555 + $0x90] sm:$0xff] %vm1176, %v6155
        %6188 = vst.msk [vmem:[%s555 + $0x98] sm:$0xff] %vm1176, %v6156
        %6189 = vst.msk [vmem:[%s555 + $0xa0] sm:$0xff] %vm1176, %v6157
        %6190 = vst.msk [vmem:[%s555 + $0xa8] sm:$0xff] %vm1176, %v6158
        %6191 = vst.msk [vmem:[%s555 + $0xb0] sm:$0xff] %vm1176, %v6159
        %6192 = vst.msk [vmem:[%s555 + $0xb8] sm:$0xff] %vm1176, %v6160
        %6193 = vst.msk [vmem:[%s555 + $0xc0] sm:$0xff] %vm1176, %v6161
        %6194 = vst.msk [vmem:[%s555 + $0xc8] sm:$0xff] %vm1176, %v6162
        %6195 = vst.msk [vmem:[%s555 + $0xd0] sm:$0xff] %vm1176, %v6163
        %6196 = vst.msk [vmem:[%s555 + $0xd8] sm:$0xff] %vm1176, %v6164
        %6197 = vst.msk [vmem:[%s555 + $0xe0] sm:$0xff] %vm1176, %v6165
        %6198 = vst.msk [vmem:[%s555 + $0xe8] sm:$0xff] %vm1176, %v6166
        %6199 = vst.msk [vmem:[%s555 + $0xf0] sm:$0xff] %vm1176, %v6167
        %6200 = vst.msk [vmem:[%s555 + $0xf8] sm:$0xff] %vm1176, %v6168
        %v6201 = vsel %vm1176, %v6137, 0.0
        %v6202 = vsel %vm1176, %v6138, 0.0
        %v6203 = vadd.f32 %v6201, %v6202
        %v6204 = vsel %vm1176, %v6139, 0.0
        %v6205 = vadd.f32 %v6203, %v6204
        %v6206 = vsel %vm1176, %v6140, 0.0
        %v6207 = vadd.f32 %v6205, %v6206
        %v6208 = vsel %vm1176, %v6141, 0.0
        %v6209 = vadd.f32 %v6207, %v6208
        %v6210 = vsel %vm1176, %v6142, 0.0
        %v6211 = vadd.f32 %v6209, %v6210
        %v6212 = vsel %vm1176, %v6143, 0.0
        %v6213 = vadd.f32 %v6211, %v6212
        %v6214 = vsel %vm1176, %v6144, 0.0
        %v6215 = vadd.f32 %v6213, %v6214
        %v6216 = vsel %vm1176, %v6145, 0.0
        %v6217 = vadd.f32 %v6215, %v6216
        %v6218 = vsel %vm1176, %v6146, 0.0
        %v6219 = vadd.f32 %v6217, %v6218
        %v6220 = vsel %vm1176, %v6147, 0.0
        %v6221 = vadd.f32 %v6219, %v6220
        %v6222 = vsel %vm1176, %v6148, 0.0
        %v6223 = vadd.f32 %v6221, %v6222
        %v6224 = vsel %vm1176, %v6149, 0.0
        %v6225 = vadd.f32 %v6223, %v6224
        %v6226 = vsel %vm1176, %v6150, 0.0
        %v6227 = vadd.f32 %v6225, %v6226
        %v6228 = vsel %vm1176, %v6151, 0.0
        %v6229 = vadd.f32 %v6227, %v6228
        %v6230 = vsel %vm1176, %v6152, 0.0
        %v6231 = vadd.f32 %v6229, %v6230
        %v6232 = vsel %vm1176, %v6153, 0.0
        %v6233 = vadd.f32 %v6231, %v6232
        %v6234 = vsel %vm1176, %v6154, 0.0
        %v6235 = vadd.f32 %v6233, %v6234
        %v6236 = vsel %vm1176, %v6155, 0.0
        %v6237 = vadd.f32 %v6235, %v6236
        %v6238 = vsel %vm1176, %v6156, 0.0
        %v6239 = vadd.f32 %v6237, %v6238
        %v6240 = vsel %vm1176, %v6157, 0.0
        %v6241 = vadd.f32 %v6239, %v6240
        %v6242 = vsel %vm1176, %v6158, 0.0
        %v6243 = vadd.f32 %v6241, %v6242
        %v6244 = vsel %vm1176, %v6159, 0.0
        %v6245 = vadd.f32 %v6243, %v6244
        %v6246 = vsel %vm1176, %v6160, 0.0
        %v6247 = vadd.f32 %v6245, %v6246
        %v6248 = vsel %vm1176, %v6161, 0.0
        %v6249 = vadd.f32 %v6247, %v6248
        %v6250 = vsel %vm1176, %v6162, 0.0
        %v6251 = vadd.f32 %v6249, %v6250
        %v6252 = vsel %vm1176, %v6163, 0.0
        %v6253 = vadd.f32 %v6251, %v6252
        %v6254 = vsel %vm1176, %v6164, 0.0
        %v6255 = vadd.f32 %v6253, %v6254
        %v6256 = vsel %vm1176, %v6165, 0.0
        %v6257 = vadd.f32 %v6255, %v6256
        %v6258 = vsel %vm1176, %v6166, 0.0
        %v6259 = vadd.f32 %v6257, %v6258
        %v6260 = vsel %vm1176, %v6167, 0.0
        %v6261 = vadd.f32 %v6259, %v6260
        %v6262 = vsel %vm1176, %v6168, 0.0
        %v6263 = vadd.f32 %v6261, %v6262
        %v6264 = vrot.slane %v6263, 4
        %v6265 = vadd.f32 %v6263, %v6264
        %v6266 = vrot.slane %v6265, 2
        %v6267 = vadd.f32 %v6265, %v6266
        %v6268 = vrot.slane %v6267, 1
        %v6269 = vadd.f32 %v6267, %v6268
        %vm6270 = vcmask 122880
        %6271 = vst.msk [vmem:[%s561] sm:$0x1] %vm6270, %v6269
        %v6272 = vsel %vm1176, %v6137, -inf
        %v6273 = vsel %vm1176, %v6138, -inf
        %v6274 = vsel %vm1176, %v6139, -inf
        %v6275 = vsel %vm1176, %v6140, -inf
        %v6276 = vsel %vm1176, %v6141, -inf
        %v6277 = vmax.f32 %v6272, %v6276
        %v6278 = vsel %vm1176, %v6142, -inf
        %v6279 = vmax.f32 %v6273, %v6278
        %v6280 = vsel %vm1176, %v6143, -inf
        %v6281 = vmax.f32 %v6274, %v6280
        %v6282 = vsel %vm1176, %v6144, -inf
        %v6283 = vmax.f32 %v6275, %v6282
        %v6284 = vsel %vm1176, %v6145, -inf
        %v6285 = vmax.f32 %v6277, %v6284
        %v6286 = vsel %vm1176, %v6146, -inf
        %v6287 = vmax.f32 %v6279, %v6286
        %v6288 = vsel %vm1176, %v6147, -inf
        %v6289 = vmax.f32 %v6281, %v6288
        %v6290 = vsel %vm1176, %v6148, -inf
        %v6291 = vmax.f32 %v6283, %v6290
        %v6292 = vsel %vm1176, %v6149, -inf
        %v6293 = vmax.f32 %v6285, %v6292
        %v6294 = vsel %vm1176, %v6150, -inf
        %v6295 = vmax.f32 %v6287, %v6294
        %v6296 = vsel %vm1176, %v6151, -inf
        %v6297 = vmax.f32 %v6289, %v6296
        %v6298 = vsel %vm1176, %v6152, -inf
        %v6299 = vmax.f32 %v6291, %v6298
        %v6300 = vsel %vm1176, %v6153, -inf
        %v6301 = vmax.f32 %v6293, %v6300
        %v6302 = vsel %vm1176, %v6154, -inf
        %v6303 = vmax.f32 %v6295, %v6302
        %v6304 = vsel %vm1176, %v6155, -inf
        %v6305 = vmax.f32 %v6297, %v6304
        %v6306 = vsel %vm1176, %v6156, -inf
        %v6307 = vmax.f32 %v6299, %v6306
        %v6308 = vsel %vm1176, %v6157, -inf
        %v6309 = vmax.f32 %v6301, %v6308
        %v6310 = vsel %vm1176, %v6158, -inf
        %v6311 = vmax.f32 %v6303, %v6310
        %v6312 = vsel %vm1176, %v6159, -inf
        %v6313 = vmax.f32 %v6305, %v6312
        %v6314 = vsel %vm1176, %v6160, -inf
        %v6315 = vmax.f32 %v6307, %v6314
        %v6316 = vsel %vm1176, %v6161, -inf
        %v6317 = vmax.f32 %v6309, %v6316
        %v6318 = vsel %vm1176, %v6162, -inf
        %v6319 = vmax.f32 %v6311, %v6318
        %v6320 = vsel %vm1176, %v6163, -inf
        %v6321 = vmax.f32 %v6313, %v6320
        %v6322 = vsel %vm1176, %v6164, -inf
        %v6323 = vmax.f32 %v6315, %v6322
        %v6324 = vsel %vm1176, %v6165, -inf
        %v6325 = vmax.f32 %v6317, %v6324
        %v6326 = vsel %vm1176, %v6166, -inf
        %v6327 = vmax.f32 %v6319, %v6326
        %v6328 = vsel %vm1176, %v6167, -inf
        %v6329 = vmax.f32 %v6321, %v6328
        %v6330 = vsel %vm1176, %v6168, -inf
        %v6331 = vmax.f32 %v6323, %v6330
        %v6332 = vmax.f32 %v6325, %v6327
        %v6333 = vmax.f32 %v6329, %v6331
        %v6334 = vmax.f32 %v6332, %v6333
        %v6335 = vrot.slane %v6334, 4
        %v6336 = vmax.f32 %v6334, %v6335
        %v6337 = vrot.slane %v6336, 2
        %v6338 = vmax.f32 %v6336, %v6337
        %v6339 = vrot.slane %v6338, 1
        %v6340 = vmax.f32 %v6338, %v6339
        %6341 = vst.msk [vmem:[%s567] sm:$0x1] %vm6270, %v6340
        %s6342 = sand.u32 %s284, 1
        %s6343 = scalar_lea.sflag [#allocation5], %s6342
        %s6344 = sand.u32 %s284, 1
        %s6345 = smul.addr %s6344, 256
        %s6346 = scalar_lea.vmem [#allocation11], %s6345
        %s6347 = sand.u32 %s36, 1
        %s6348 = scalar_lea.sflag [#allocation13], %s6347
        %s6349 = sand.u32 %s312, 1
        %s6350 = scalar_lea.vmem [#allocation12], %s6349
        %s6351 = sand.u32 %s36, 1
        %s6352 = scalar_lea.sflag [#allocation13], %s6351
        %s6353 = sand.u32 %s340, 1
        %s6354 = scalar_lea.vmem [#allocation14], %s6353
        // Predicated region
        $region73: #{tpu_custom_call.1} parent=55 // pred_check
          %p6355 = pneg %p294
        $region74: #{tpu_custom_call.1} parent=55 // pred_check_branch
          %6357 = sbr.rel (%p6355) target = $region76
        $region75: #{tpu_custom_call.1} parent=55 // pred_region
          %s6358 = smul.u32 16, %s41
          %s6360 = ssub.s32 4096, 4096
          %6361 = vsyncadd %s6343, %s6360
          %s6362 = smul.addr %s6358, 2
          %s6363 = smul.addr %s40, 32
          %s6364 = sadd.s32 %s6362, %s6363
          %s6365 = smul.addr %s6364, 128
          %s6366 = scalar_lea.hbm %s9, %s6365
          %s6367 = sshll.u32 %s6346, 4
          %s6368 = int_to_ptr.vmem [resolvable:$true] %s6367
          %6373 = dma.vmem_to_hbm [thread:$0]  %s6368, 4096, %s6366, %s6343, 128, 128, 8
        $region76: #{tpu_custom_call.1} parent=55 // pred_fallthru
          _
        // Predicated region
        $region77: #{tpu_custom_call.1} parent=55 // pred_check
          %p6374 = pneg %p322
        $region78: #{tpu_custom_call.1} parent=55 // pred_check_branch
          %6376 = sbr.rel (%p6374) target = $region80
        $region79: #{tpu_custom_call.1} parent=55 // pred_region
          %s6378 = ssub.s32 16, 16
          %6379 = vsyncadd %s6348, %s6378
          %s6380 = sadd.s32 %s41, %s40
          %s6381 = smul.addr %s6380, 16
          %s6382 = scalar_lea.hbm %s10, %s6381
          %s6384 = sshll.u32 %s6350, 4
          %s6385 = int_to_ptr.vmem [resolvable:$true] %s6384
          %6387 = dma.vmem_to_hbm [thread:$0]  %s6385, 16, %s6382, %s6348
        $region80: #{tpu_custom_call.1} parent=55 // pred_fallthru
          _
        // Predicated region
        $region81: #{tpu_custom_call.1} parent=55 // pred_check
          %p6388 = pneg %p350
        $region82: #{tpu_custom_call.1} parent=55 // pred_check_branch
          %6390 = sbr.rel (%p6388) target = $region84
        $region83: #{tpu_custom_call.1} parent=55 // pred_region
          %s6392 = ssub.s32 16, 16
          %6393 = vsyncadd %s6352, %s6392
          %s6394 = sadd.s32 %s41, %s40
          %s6395 = smul.addr %s6394, 16
          %s6396 = scalar_lea.hbm %s11, %s6395
          %s6398 = sshll.u32 %s6354, 4
          %s6399 = int_to_ptr.vmem [resolvable:$true] %s6398
          %6401 = dma.vmem_to_hbm [thread:$0]  %s6399, 16, %s6396, %s6352
        $region84: #{tpu_custom_call.1} parent=55 // pred_fallthru
          _
      $region56: #{tpu_custom_call.1} parent=5 // pred_fallthru
        _
      %p6402 = scmp.le.s32.totalorder 2, %s31
      // Predicated region
      $region85: #{tpu_custom_call.1} parent=5 // pred_check
        %p6403 = pneg %p6402
      $region86: #{tpu_custom_call.1} parent=5 // pred_check_branch
        %6405 = sbr.rel (%p6403) target = $region88
      $region87: #{tpu_custom_call.1} parent=5 // pred_region
        %s6406 = ssub.s32 %s31, 2
        // Predicated region
        $region89: #{tpu_custom_call.1} parent=87 // pred_check
          %p6407 = pneg %p300
        $region90: #{tpu_custom_call.1} parent=87 // pred_check_branch
          %6409 = sbr.rel (%p6407) target = $region92
        $region91: #{tpu_custom_call.1} parent=87 // pred_region
          %s6410 = sand.u32 %s285, 1
          %s6411 = scalar_lea.sflag [#allocation5], %s6410
          %s6412 = sand.u32 %s285, 1
          %s6413 = smul.addr %s6412, 256
          %s6414 = scalar_lea.vmem [#allocation11], %s6413
          %6415 = dma.done %s6411, 4096
        $region92: #{tpu_custom_call.1} parent=87 // pred_fallthru
          _
        // Predicated region
        $region93: #{tpu_custom_call.1} parent=87 // pred_check
          %p6416 = pneg %p328
        $region94: #{tpu_custom_call.1} parent=87 // pred_check_branch
          %6418 = sbr.rel (%p6416) target = $region96
        $region95: #{tpu_custom_call.1} parent=87 // pred_region
          %s6419 = sand.u32 %s37, 1
          %s6420 = scalar_lea.sflag [#allocation13], %s6419
          %s6421 = sand.u32 %s313, 1
          %s6422 = scalar_lea.vmem [#allocation12], %s6421
          %6423 = dma.done %s6420, 16
        $region96: #{tpu_custom_call.1} parent=87 // pred_fallthru
          _
        // Predicated region
        $region97: #{tpu_custom_call.1} parent=87 // pred_check
          %p6424 = pneg %p356
        $region98: #{tpu_custom_call.1} parent=87 // pred_check_branch
          %6426 = sbr.rel (%p6424) target = $region100
        $region99: #{tpu_custom_call.1} parent=87 // pred_region
          %s6427 = sand.u32 %s37, 1
          %s6428 = scalar_lea.sflag [#allocation13], %s6427
          %s6429 = sand.u32 %s341, 1
          %s6430 = scalar_lea.vmem [#allocation14], %s6429
          %6431 = dma.done %s6428, 16
        $region100: #{tpu_custom_call.1} parent=87 // pred_fallthru
          _
      $region88: #{tpu_custom_call.1} parent=5 // pred_fallthru
        _
    $region6: #{tpu_custom_call.1} parent=1 // loop_footer
      %s35 = sadd.s32 1, %s31
    $region7: #{tpu_custom_call.1} parent=1 // loop_footer_branch
      %30 = sbr.rel target = $region3
    $region8: #{tpu_custom_call.1} parent=1 // loop_exit
      _
    %6432 = vsyncpa [#allocation4], 1
    %s6433 = scalar_lea.sflag [#allocation4], 1
    %6434 = vsyncpa %s6433, 1
    %6435 = vsyncpa [#allocation7], 1
    %s6436 = scalar_lea.sflag [#allocation7], 1
    %6437 = vsyncpa %s6436, 1
    %6438 = vsyncpa [#allocation10], 1
    %6439 = vsyncpa [#allocation5], 1
    %s6440 = scalar_lea.sflag [#allocation5], 1
    %6441 = vsyncpa %s6440, 1
    %6442 = vsyncpa [#allocation13], 1
    %s6443 = scalar_lea.sflag [#allocation13], 1
    %6444 = vsyncpa %s6443, 1

</llo_original>
